<compile_context>
chip_gen: v5e
topology: v5e:2x2
jax: 0.10.0
libtpu: 0.0.40
codegen_flags: <defaults>
</compile_context>

<pallas_src>
import jax
import jax.numpy as jnp
from jax import lax
from jax.experimental import pallas as pl
from jax.experimental.pallas import tpu as pltpu


CPAD = 128  # lane-dense channel padding


# ----------------------------------------------------------------------------
# Fused Pallas kernel: 3x (conv3x3 + folded BN + ReLU) on a flat halo layout
# ----------------------------------------------------------------------------
def _make_kernel(W, Wp, S0, L):
    """Kernel factory closing over the static flat-halo layout constants.

    Flat layout: padded position (yp, xp), yp in [0,H+2), xp in [0,W+2=Wp),
    lives at flat row yp*Wp + xp.  Interior pixel (y, x) is at S0 + y*Wp + x
    with S0 = Wp + 1.  L = (H-1)*Wp + W is the contiguous interior span.
    """

    def kernel(xcat_ref, w1_ref, w2_ref, w3_ref,
               s1_ref, b1_ref, s2_ref, b2_ref, s3_ref, b3_ref,
               o_ref, act_a, act_b):
        # xcat_ref: (F, CPAD) bf16  halo-padded concat(up(x), prev), F = Hp*Wp
        # wK_ref:   (9, CPAD, CPAD) bf16  per-tap conv weights (Cin, Cout)
        # sK/bK:    (1, CPAD) f32   folded BN scale / shift
        # o_ref:    (L, CPAD) bf16  lane-dense flat output span
        # act_a/b:  (F, CPAD) bf16  ping-pong activation scratch (halo'd)
        F = act_a.shape[0]
        tail = F - S0 - L

        # Re-zero ONLY the top/bottom halo rows (never written elsewhere);
        # the interior span (incl. the per-row halo columns) is fully
        # re-written below, so no full-buffer zeroing is needed.
        zeros_top = jnp.zeros((S0, CPAD), act_a.dtype)
        zeros_bot = jnp.zeros((tail, CPAD), act_a.dtype)
        act_a[pl.ds(0, S0), :] = zeros_top
        act_a[pl.ds(S0 + L, tail), :] = zeros_bot
        act_b[pl.ds(0, S0), :] = zeros_top
        act_b[pl.ds(S0 + L, tail), :] = zeros_bot

        # Interior mask over the flat span: keep columns xp in [1, W],
        # zero the two halo columns between image rows.
        col = (lax.broadcasted_iota(jnp.int32, (L, 1), 0) + S0) % Wp
        interior = jnp.logical_and(col >= 1, col <= W)

        def stage(src_ref, w_ref, s_ref, b_ref):
            # conv3x3 as 9 accumulated (L, C) x (C, C) matmuls on shifted,
            # contiguous row-slices of the flat halo'd layout (no im2col).
            acc = jnp.zeros((L, CPAD), jnp.float32)
            for t in range(9):
                ky, kx = divmod(t, 3)
                off = S0 + (ky - 1) * Wp + (kx - 1)      # static offset
                acc = acc + jnp.dot(src_ref[pl.ds(off, L), :], w_ref[t],
                                    preferred_element_type=jnp.float32)
            # folded BN + ReLU epilogue in f32
            return jnp.maximum(acc * s_ref[...] + b_ref[...], 0.0)

        y1 = stage(xcat_ref, w1_ref, s1_ref, b1_ref)
        act_a[pl.ds(S0, L), :] = jnp.where(interior, y1, 0.0).astype(act_a.dtype)

        y2 = stage(act_a, w2_ref, s2_ref, b2_ref)
        act_b[pl.ds(S0, L), :] = jnp.where(interior, y2, 0.0).astype(act_b.dtype)

        y3 = stage(act_b, w3_ref, s3_ref, b3_ref)
        # Gap rows of the output are garbage-but-finite; the wrapper drops them.
        o_ref[...] = y3.astype(o_ref.dtype)

    return kernel


# ----------------------------------------------------------------------------
# Wrapper: input prep (separable upsample / concat / halo), param folding,
# pallas_call, and layout restore
# ----------------------------------------------------------------------------
def _interp_matrix(n_out, n_in):
    """(n_out, n_in) f32 matrix M with M @ v == 1-D bilinear resize of v,
    matching F.interpolate(mode='bilinear', align_corners=True)."""
    if n_in == 1:
        return jnp.ones((n_out, 1), jnp.float32)
    s = jnp.arange(n_out, dtype=jnp.float32) * (n_in - 1) / (n_out - 1)
    lo = jnp.clip(jnp.floor(s).astype(jnp.int32), 0, n_in - 2)
    frac = s - lo.astype(jnp.float32)
    rows = jnp.arange(n_out)
    m = jnp.zeros((n_out, n_in), jnp.float32)
    m = m.at[rows, lo].add(1.0 - frac)
    m = m.at[rows, lo + 1].add(frac)
    return m


def unet_up_block(params, prev_feature_map_nchw, x_nchw):
    """Forward pass equivalent to UNet_up_block.forward (NCHW in / NCHW out)."""
    eps = 1e-5
    N, Cp, H, W = prev_feature_map_nchw.shape
    _, Ci, Hi, Wi = x_nchw.shape
    Cout = params["conv1"][0].shape[0]
    assert H == 2 * Hi and W == 2 * Wi
    assert Ci + Cp <= CPAD and Cout <= CPAD

    Hp, Wp = H + 2, W + 2
    F = Hp * Wp                 # flat halo'd spatial size
    S0 = Wp + 1                 # flat index of interior pixel (0, 0)
    L = (H - 1) * Wp + W        # contiguous interior span length

    # --- cheap XLA input prep: separable bilinear x2 upsample (f32 coeffs),
    #     channel concat, 'padding=1' spatial halo, channel pad to 128 -------
    prev = jnp.transpose(prev_feature_map_nchw, (0, 2, 3, 1)).astype(jnp.float32)
    x_nhwc = jnp.transpose(x_nchw, (0, 2, 3, 1)).astype(jnp.float32)
    ay = _interp_matrix(H, Hi)                       # (H, Hi) f32
    ax = _interp_matrix(W, Wi)                       # (W, Wi) f32
    x_up = jnp.einsum('yh,xw,nhwc->nyxc', ay, ax, x_nhwc)   # (N, H, W, Ci)
    cat = jnp.concatenate([x_up, prev], axis=-1)             # (N, H, W, Ci+Cp)
    cat = jnp.pad(cat, ((0, 0), (1, 1), (1, 1), (0, CPAD - Ci - Cp)))
    xcat = cat.reshape(N, F, CPAD).astype(jnp.bfloat16)

    # --- fold conv bias + BN into per-channel (scale, shift); per-tap weights
    ws, scales, shifts = [], [], []
    for i in (1, 2, 3):
        w, b = params[f"conv{i}"]                    # (Cout, Cin, 3, 3) OIHW
        gamma, beta, mean, var = params[f"bn{i}"]
        scale = gamma / jnp.sqrt(var + eps)
        shift = beta + scale * (b - mean)
        w_t = jnp.transpose(w, (2, 3, 1, 0))         # (3, 3, Cin, Cout)
        cin = w_t.shape[2]
        w_pad = (jnp.zeros((3, 3, CPAD, CPAD), jnp.float32)
                 .at[:, :, :cin, :Cout].set(w_t))
        ws.append(w_pad.reshape(9, CPAD, CPAD).astype(jnp.bfloat16))
        scales.append(jnp.zeros((1, CPAD), jnp.float32).at[0, :Cout].set(scale))
        shifts.append(jnp.zeros((1, CPAD), jnp.float32).at[0, :Cout].set(shift))

    kernel = _make_kernel(W, Wp, S0, L)
    inv3 = lambda n: (0, 0, 0)   # grid-invariant weight blocks
    inv2 = lambda n: (0, 0)      # grid-invariant scale/shift blocks

    out_flat = pl.pallas_call(
        kernel,
        out_shape=jax.ShapeDtypeStruct((N, L, CPAD), jnp.bfloat16),
        grid_spec=pltpu.PrefetchScalarGridSpec(
            num_scalar_prefetch=0,
            grid=(N,),
            in_specs=[
                pl.BlockSpec((None, F, CPAD), lambda n: (n, 0, 0)),
                pl.BlockSpec((9, CPAD, CPAD), inv3),
                pl.BlockSpec((9, CPAD, CPAD), inv3),
                pl.BlockSpec((9, CPAD, CPAD), inv3),
                pl.BlockSpec((1, CPAD), inv2),
                pl.BlockSpec((1, CPAD), inv2),
                pl.BlockSpec((1, CPAD), inv2),
                pl.BlockSpec((1, CPAD), inv2),
                pl.BlockSpec((1, CPAD), inv2),
                pl.BlockSpec((1, CPAD), inv2),
            ],
            out_specs=pl.BlockSpec((None, L, CPAD), lambda n: (n, 0, 0)),
            scratch_shapes=[
                pltpu.VMEM((F, CPAD), jnp.bfloat16),   # activation ping
                pltpu.VMEM((F, CPAD), jnp.bfloat16),   # activation pong
            ]),
        compiler_params=pltpu.CompilerParams(
            dimension_semantics=("parallel",),
            vmem_limit_bytes=32 * 1024 * 1024),
    )(xcat, ws[0], ws[1], ws[2],
      scales[0], shifts[0], scales[1], shifts[1], scales[2], shifts[2])

    # flat-halo span -> (N, H, W, Cout) -> NCHW  (gap columns / pad lanes dropped)
    out = jnp.pad(out_flat, ((0, 0), (0, H * Wp - L), (0, 0)))
    out = out.reshape(N, H, Wp, CPAD)[:, :, :W, :Cout].astype(jnp.float32)
    return jnp.transpose(out, (0, 3, 1, 2))


# ----------------------------------------------------------------------------
# Parameters (deterministic synthetic, same shapes as the nn.Module)
# ----------------------------------------------------------------------------
def init_params(key, prev_channel, input_channel, output_channel):
    cins = [prev_channel + input_channel, output_channel, output_channel]
    cout = output_channel
    params = {}
    keys = jax.random.split(key, 3)
    for i, (cin, k) in enumerate(zip(cins, keys), start=1):
        kw, kb = jax.random.split(k)
        bound = 1.0 / jnp.sqrt(float(cin * 9))
        w = jax.random.uniform(kw, (cout, cin, 3, 3), jnp.float32, -bound, bound)
        b = jax.random.uniform(kb, (cout,), jnp.float32, -bound, bound)
        c = jnp.arange(cout, dtype=jnp.float32)
        params[f"conv{i}"] = (w, b)
        params[f"bn{i}"] = (1.0 + 0.05 * c, 0.02 * c - 0.1, 0.01 * c, 1.0 + 0.1 * c)
    return params


# ----------------------------------------------------------------------------
# Pure-JAX reference (independent gather-based upsample, f32 HIGHEST convs)
# ----------------------------------------------------------------------------
def bilinear_up2_align_corners(x_nhwc):
    N, H, W, C = x_nhwc.shape
    Ho, Wo = 2 * H, 2 * W
    ys = jnp.arange(Ho, dtype=jnp.float32) * (H - 1) / (Ho - 1)
    xs = jnp.arange(Wo, dtype=jnp.float32) * (W - 1) / (Wo - 1)
    y0 = jnp.floor(ys).astype(jnp.int32)
    y1 = jnp.minimum(y0 + 1, H - 1)
    x0 = jnp.floor(xs).astype(jnp.int32)
    x1 = jnp.minimum(x0 + 1, W - 1)
    wy = (ys - y0.astype(jnp.float32))[None, :, None, None]
    wx = (xs - x0.astype(jnp.float32))[None, None, :, None]
    top, bot = x_nhwc[:, y0], x_nhwc[:, y1]
    v = top * (1.0 - wy) + bot * wy
    left, right = v[:, :, x0], v[:, :, x1]
    return left * (1.0 - wx) + right * wx


def unet_up_block_ref(params, prev_nchw, x_nchw):
    eps = 1e-5
    prev = jnp.transpose(prev_nchw, (0, 2, 3, 1))
    x = jnp.transpose(x_nchw, (0, 2, 3, 1))
    x = bilinear_up2_align_corners(x)
    x = jnp.concatenate([x, prev], axis=-1)
    for i in (1, 2, 3):
        w, b = params[f"conv{i}"]
        gamma, beta, mean, var = params[f"bn{i}"]
        w_hwio = jnp.transpose(w, (2, 3, 1, 0))
        y = lax.conv_general_dilated(
            x, w_hwio, (1, 1), "SAME",
            dimension_numbers=("NHWC", "HWIO", "NHWC"),
            precision=lax.Precision.HIGHEST) + b
        y = gamma * (y - mean) / jnp.sqrt(var + eps) + beta
        x = jnp.maximum(y, 0.0)
    return jnp.transpose(x, (0, 3, 1, 2))


if __name__ == "__main__":
    prev_channel, input_channel, output_channel = 4, 4, 8
    N, H, W = 2, 16, 16                       # prev_feature_map spatial size
    key = jax.random.PRNGKey(0)
    kp, kx, kparams = jax.random.split(key, 3)

    # x has half the spatial resolution of prev_feature_map (UNet decoder step)
    prev_feature_map = jax.random.normal(kp, (N, prev_channel, H, W), jnp.float32)
    x = jax.random.normal(kx, (N, input_channel, H // 2, W // 2), jnp.float32)

    params = init_params(kparams, prev_channel, input_channel, output_channel)

    out = jax.jit(unet_up_block)(params, prev_feature_map, x)
    out = jax.block_until_ready(out)
    assert out.shape == (N, output_channel, H, W), out.shape

    # Loose numerical sanity check (bf16 MXU operands/output vs. f32 reference).
    ref = jax.jit(unet_up_block_ref)(params, prev_feature_map, x)
    ref = jax.block_until_ready(ref)
    assert jnp.allclose(out, ref, rtol=5e-2, atol=5e-2), float(
        jnp.max(jnp.abs(out - ref)))

    print("KERNEL_OK")
</pallas_src>

<mosaic_0001>
module attributes {stable_mosaic.version = 11 : i64} {
  func.func @kernel(%arg0: i32, %arg1: memref<1x324x128xbf16, #tpu.memory_space<vmem>>, %arg2: memref<9x128x128xbf16, #tpu.memory_space<vmem>>, %arg3: memref<9x128x128xbf16, #tpu.memory_space<vmem>>, %arg4: memref<9x128x128xbf16, #tpu.memory_space<vmem>>, %arg5: memref<1x128xf32, #tpu.memory_space<vmem>>, %arg6: memref<1x128xf32, #tpu.memory_space<vmem>>, %arg7: memref<1x128xf32, #tpu.memory_space<vmem>>, %arg8: memref<1x128xf32, #tpu.memory_space<vmem>>, %arg9: memref<1x128xf32, #tpu.memory_space<vmem>>, %arg10: memref<1x128xf32, #tpu.memory_space<vmem>>, %arg11: memref<1x286x128xbf16, #tpu.memory_space<vmem>>, %arg12: memref<324x128xbf16, #tpu.memory_space<vmem>>, %arg13: memref<324x128xbf16, #tpu.memory_space<vmem>>) attributes {dimension_semantics = [#tpu.dimension_semantics<parallel>], iteration_bounds = array<i64: 2>, scalar_prefetch = 0 : i64, scratch_operands = 2 : i64, tpu.core_type = #tpu.core_type<tc>, window_params = [{transform_indices = @transform_0, window_bounds = array<i64: 1, 324, 128>}, {pipeline_mode = #tpu.pipeline_mode<synchronous>, transform_indices = @transform_1, window_bounds = array<i64: 9, 128, 128>}, {pipeline_mode = #tpu.pipeline_mode<synchronous>, transform_indices = @transform_2, window_bounds = array<i64: 9, 128, 128>}, {pipeline_mode = #tpu.pipeline_mode<synchronous>, transform_indices = @transform_3, window_bounds = array<i64: 9, 128, 128>}, {pipeline_mode = #tpu.pipeline_mode<synchronous>, transform_indices = @transform_4, window_bounds = array<i64: 1, 128>}, {pipeline_mode = #tpu.pipeline_mode<synchronous>, transform_indices = @transform_5, window_bounds = array<i64: 1, 128>}, {pipeline_mode = #tpu.pipeline_mode<synchronous>, transform_indices = @transform_6, window_bounds = array<i64: 1, 128>}, {pipeline_mode = #tpu.pipeline_mode<synchronous>, transform_indices = @transform_7, window_bounds = array<i64: 1, 128>}, {pipeline_mode = #tpu.pipeline_mode<synchronous>, transform_indices = @transform_8, window_bounds = array<i64: 1, 128>}, {pipeline_mode = #tpu.pipeline_mode<synchronous>, transform_indices = @transform_9, window_bounds = array<i64: 1, 128>}, {transform_indices = @transform_10, window_bounds = array<i64: 1, 286, 128>}]} {
    %cst = arith.constant 0.000000e+00 : bf16
    %0 = vector.broadcast %cst : bf16 to vector<19x128xbf16>
    %cst_0 = arith.constant 0.000000e+00 : bf16
    %1 = vector.broadcast %cst_0 : bf16 to vector<19x128xbf16>
    %c0 = arith.constant 0 : index
    %c0_1 = arith.constant 0 : index
    %2 = vector.load %arg12[%c0, %c0_1] : memref<324x128xbf16, #tpu.memory_space<vmem>>, vector<19x128xbf16>
    tpu.vector_store %arg12[%c0, %c0_1], %0 {strides = array<i32>} : memref<324x128xbf16, #tpu.memory_space<vmem>>, vector<19x128xbf16>,
    %c305 = arith.constant 305 : index
    %c0_2 = arith.constant 0 : index
    %3 = vector.load %arg12[%c305, %c0_2] : memref<324x128xbf16, #tpu.memory_space<vmem>>, vector<19x128xbf16>
    tpu.vector_store %arg12[%c305, %c0_2], %1 {strides = array<i32>} : memref<324x128xbf16, #tpu.memory_space<vmem>>, vector<19x128xbf16>,
    %c0_3 = arith.constant 0 : index
    %c0_4 = arith.constant 0 : index
    %4 = vector.load %arg13[%c0_3, %c0_4] : memref<324x128xbf16, #tpu.memory_space<vmem>>, vector<19x128xbf16>
    tpu.vector_store %arg13[%c0_3, %c0_4], %0 {strides = array<i32>} : memref<324x128xbf16, #tpu.memory_space<vmem>>, vector<19x128xbf16>,
    %c305_5 = arith.constant 305 : index
    %c0_6 = arith.constant 0 : index
    %5 = vector.load %arg13[%c305_5, %c0_6] : memref<324x128xbf16, #tpu.memory_space<vmem>>, vector<19x128xbf16>
    tpu.vector_store %arg13[%c305_5, %c0_6], %1 {strides = array<i32>} : memref<324x128xbf16, #tpu.memory_space<vmem>>, vector<19x128xbf16>,
    %6 = tpu.iota {dimensions = array<i32: 0>} : vector<286x1xi32>
    %c19_i32 = arith.constant 19 : i32
    %7 = vector.broadcast %c19_i32 : i32 to vector<286x1xi32>
    %8 = arith.addi %6, %7 : vector<286x1xi32>
    %c18_i32 = arith.constant 18 : i32
    %c0_i32 = arith.constant 0 : i32
    %9 = arith.cmpi eq, %c18_i32, %c0_i32 : i32
    %c1_i32 = arith.constant 1 : i32
    %10 = arith.select %9, %c1_i32, %c18_i32 : i32
    %11 = vector.broadcast %10 : i32 to vector<286x1xi32>
    %12 = arith.remsi %8, %11 : vector<286x1xi32>
    %c0_i32_7 = arith.constant 0 : i32
    %13 = vector.broadcast %c0_i32_7 : i32 to vector<286x1xi32>
    %14 = arith.cmpi ne, %12, %13 : vector<286x1xi32>
    %c0_i32_8 = arith.constant 0 : i32
    %15 = vector.broadcast %c0_i32_8 : i32 to vector<286x1xi32>
    %16 = arith.cmpi slt, %12, %15 : vector<286x1xi32>
    %c0_i32_9 = arith.constant 0 : i32
    %17 = arith.cmpi slt, %10, %c0_i32_9 : i32
    %18 = vector.broadcast %17 : i1 to vector<286x1xi1>
    %19 = vector.broadcast %18 : vector<286x1xi1> to vector<286x1xi1>
    %20 = arith.xori %16, %19 : vector<286x1xi1>
    %21 = arith.andi %20, %14 : vector<286x1xi1>
    %22 = vector.broadcast %10 : i32 to vector<286x1xi32>
    %23 = arith.addi %12, %22 : vector<286x1xi32>
    %24 = arith.select %21, %23, %12 : vector<286x1xi1>, vector<286x1xi32>
    %c1_i32_10 = arith.constant 1 : i32
    %25 = vector.broadcast %c1_i32_10 : i32 to vector<286x1xi32>
    %26 = arith.cmpi sge, %24, %25 : vector<286x1xi32>
    %c16_i32 = arith.constant 16 : i32
    %27 = vector.broadcast %c16_i32 : i32 to vector<286x1xi32>
    %28 = arith.cmpi sle, %24, %27 : vector<286x1xi32>
    %29 = arith.andi %26, %28 : vector<286x1xi1>
    %cst_11 = arith.constant 0.000000e+00 : f32
    %30 = vector.broadcast %cst_11 : f32 to vector<286x128xf32>
    %c0_12 = arith.constant 0 : index
    %c0_13 = arith.constant 0 : index
    %c0_14 = arith.constant 0 : index
    %31 = vector.load %arg1[%c0_12, %c0_13, %c0_14] : memref<1x324x128xbf16, #tpu.memory_space<vmem>>, vector<1x286x128xbf16>
    %32 = vector.shape_cast %31 : vector<1x286x128xbf16> to vector<286x128xbf16>
    %c0_15 = arith.constant 0 : index
    %c0_16 = arith.constant 0 : index
    %c0_17 = arith.constant 0 : index
    %33 = vector.load %arg2[%c0_15, %c0_16, %c0_17] : memref<9x128x128xbf16, #tpu.memory_space<vmem>>, vector<1x128x128xbf16>
    %34 = vector.shape_cast %33 : vector<1x128x128xbf16> to vector<128x128xbf16>
    %cst_18 = arith.constant dense<0.000000e+00> : vector<286x128xf32>
    %35 = tpu.matmul %32, %34, %cst_18 {dimension_numbers = #tpu.dot_dimension_numbers<[1], [0], [0], [1], [0, 0, 1, 1], [], []>} : vector<286x128xbf16>, vector<128x128xbf16>, vector<286x128xf32> -> vector<286x128xf32>
    %36 = arith.addf %30, %35 : vector<286x128xf32>
    %c0_19 = arith.constant 0 : index
    %c1 = arith.constant 1 : index
    %c0_20 = arith.constant 0 : index
    %37 = vector.load %arg1[%c0_19, %c1, %c0_20] : memref<1x324x128xbf16, #tpu.memory_space<vmem>>, vector<1x286x128xbf16>
    %38 = vector.shape_cast %37 : vector<1x286x128xbf16> to vector<286x128xbf16>
    %c1_21 = arith.constant 1 : index
    %c0_22 = arith.constant 0 : index
    %c0_23 = arith.constant 0 : index
    %39 = vector.load %arg2[%c1_21, %c0_22, %c0_23] : memref<9x128x128xbf16, #tpu.memory_space<vmem>>, vector<1x128x128xbf16>
    %40 = vector.shape_cast %39 : vector<1x128x128xbf16> to vector<128x128xbf16>
    %cst_24 = arith.constant dense<0.000000e+00> : vector<286x128xf32>
    %41 = tpu.matmul %38, %40, %cst_24 {dimension_numbers = #tpu.dot_dimension_numbers<[1], [0], [0], [1], [0, 0, 1, 1], [], []>} : vector<286x128xbf16>, vector<128x128xbf16>, vector<286x128xf32> -> vector<286x128xf32>
    %42 = arith.addf %36, %41 : vector<286x128xf32>
    %c0_25 = arith.constant 0 : index
    %c2 = arith.constant 2 : index
    %c0_26 = arith.constant 0 : index
    %43 = vector.load %arg1[%c0_25, %c2, %c0_26] : memref<1x324x128xbf16, #tpu.memory_space<vmem>>, vector<1x286x128xbf16>
    %44 = vector.shape_cast %43 : vector<1x286x128xbf16> to vector<286x128xbf16>
    %c2_27 = arith.constant 2 : index
    %c0_28 = arith.constant 0 : index
    %c0_29 = arith.constant 0 : index
    %45 = vector.load %arg2[%c2_27, %c0_28, %c0_29] : memref<9x128x128xbf16, #tpu.memory_space<vmem>>, vector<1x128x128xbf16>
    %46 = vector.shape_cast %45 : vector<1x128x128xbf16> to vector<128x128xbf16>
    %cst_30 = arith.constant dense<0.000000e+00> : vector<286x128xf32>
    %47 = tpu.matmul %44, %46, %cst_30 {dimension_numbers = #tpu.dot_dimension_numbers<[1], [0], [0], [1], [0, 0, 1, 1], [], []>} : vector<286x128xbf16>, vector<128x128xbf16>, vector<286x128xf32> -> vector<286x128xf32>
    %48 = arith.addf %42, %47 : vector<286x128xf32>
    %c0_31 = arith.constant 0 : index
    %c18 = arith.constant 18 : index
    %c0_32 = arith.constant 0 : index
    %49 = vector.load %arg1[%c0_31, %c18, %c0_32] : memref<1x324x128xbf16, #tpu.memory_space<vmem>>, vector<1x286x128xbf16>
    %50 = vector.shape_cast %49 : vector<1x286x128xbf16> to vector<286x128xbf16>
    %c3 = arith.constant 3 : index
    %c0_33 = arith.constant 0 : index
    %c0_34 = arith.constant 0 : index
    %51 = vector.load %arg2[%c3, %c0_33, %c0_34] : memref<9x128x128xbf16, #tpu.memory_space<vmem>>, vector<1x128x128xbf16>
    %52 = vector.shape_cast %51 : vector<1x128x128xbf16> to vector<128x128xbf16>
    %cst_35 = arith.constant dense<0.000000e+00> : vector<286x128xf32>
    %53 = tpu.matmul %50, %52, %cst_35 {dimension_numbers = #tpu.dot_dimension_numbers<[1], [0], [0], [1], [0, 0, 1, 1], [], []>} : vector<286x128xbf16>, vector<128x128xbf16>, vector<286x128xf32> -> vector<286x128xf32>
    %54 = arith.addf %48, %53 : vector<286x128xf32>
    %c0_36 = arith.constant 0 : index
    %c19 = arith.constant 19 : index
    %c0_37 = arith.constant 0 : index
    %55 = vector.load %arg1[%c0_36, %c19, %c0_37] : memref<1x324x128xbf16, #tpu.memory_space<vmem>>, vector<1x286x128xbf16>
    %56 = vector.shape_cast %55 : vector<1x286x128xbf16> to vector<286x128xbf16>
    %c4 = arith.constant 4 : index
    %c0_38 = arith.constant 0 : index
    %c0_39 = arith.constant 0 : index
    %57 = vector.load %arg2[%c4, %c0_38, %c0_39] : memref<9x128x128xbf16, #tpu.memory_space<vmem>>, vector<1x128x128xbf16>
    %58 = vector.shape_cast %57 : vector<1x128x128xbf16> to vector<128x128xbf16>
    %cst_40 = arith.constant dense<0.000000e+00> : vector<286x128xf32>
    %59 = tpu.matmul %56, %58, %cst_40 {dimension_numbers = #tpu.dot_dimension_numbers<[1], [0], [0], [1], [0, 0, 1, 1], [], []>} : vector<286x128xbf16>, vector<128x128xbf16>, vector<286x128xf32> -> vector<286x128xf32>
    %60 = arith.addf %54, %59 : vector<286x128xf32>
    %c0_41 = arith.constant 0 : index
    %c20 = arith.constant 20 : index
    %c0_42 = arith.constant 0 : index
    %61 = vector.load %arg1[%c0_41, %c20, %c0_42] : memref<1x324x128xbf16, #tpu.memory_space<vmem>>, vector<1x286x128xbf16>
    %62 = vector.shape_cast %61 : vector<1x286x128xbf16> to vector<286x128xbf16>
    %c5 = arith.constant 5 : index
    %c0_43 = arith.constant 0 : index
    %c0_44 = arith.constant 0 : index
    %63 = vector.load %arg2[%c5, %c0_43, %c0_44] : memref<9x128x128xbf16, #tpu.memory_space<vmem>>, vector<1x128x128xbf16>
    %64 = vector.shape_cast %63 : vector<1x128x128xbf16> to vector<128x128xbf16>
    %cst_45 = arith.constant dense<0.000000e+00> : vector<286x128xf32>
    %65 = tpu.matmul %62, %64, %cst_45 {dimension_numbers = #tpu.dot_dimension_numbers<[1], [0], [0], [1], [0, 0, 1, 1], [], []>} : vector<286x128xbf16>, vector<128x128xbf16>, vector<286x128xf32> -> vector<286x128xf32>
    %66 = arith.addf %60, %65 : vector<286x128xf32>
    %c0_46 = arith.constant 0 : index
    %c36 = arith.constant 36 : index
    %c0_47 = arith.constant 0 : index
    %67 = vector.load %arg1[%c0_46, %c36, %c0_47] : memref<1x324x128xbf16, #tpu.memory_space<vmem>>, vector<1x286x128xbf16>
    %68 = vector.shape_cast %67 : vector<1x286x128xbf16> to vector<286x128xbf16>
    %c6 = arith.constant 6 : index
    %c0_48 = arith.constant 0 : index
    %c0_49 = arith.constant 0 : index
    %69 = vector.load %arg2[%c6, %c0_48, %c0_49] : memref<9x128x128xbf16, #tpu.memory_space<vmem>>, vector<1x128x128xbf16>
    %70 = vector.shape_cast %69 : vector<1x128x128xbf16> to vector<128x128xbf16>
    %cst_50 = arith.constant dense<0.000000e+00> : vector<286x128xf32>
    %71 = tpu.matmul %68, %70, %cst_50 {dimension_numbers = #tpu.dot_dimension_numbers<[1], [0], [0], [1], [0, 0, 1, 1], [], []>} : vector<286x128xbf16>, vector<128x128xbf16>, vector<286x128xf32> -> vector<286x128xf32>
    %72 = arith.addf %66, %71 : vector<286x128xf32>
    %c0_51 = arith.constant 0 : index
    %c37 = arith.constant 37 : index
    %c0_52 = arith.constant 0 : index
    %73 = vector.load %arg1[%c0_51, %c37, %c0_52] : memref<1x324x128xbf16, #tpu.memory_space<vmem>>, vector<1x286x128xbf16>
    %74 = vector.shape_cast %73 : vector<1x286x128xbf16> to vector<286x128xbf16>
    %c7 = arith.constant 7 : index
    %c0_53 = arith.constant 0 : index
    %c0_54 = arith.constant 0 : index
    %75 = vector.load %arg2[%c7, %c0_53, %c0_54] : memref<9x128x128xbf16, #tpu.memory_space<vmem>>, vector<1x128x128xbf16>
    %76 = vector.shape_cast %75 : vector<1x128x128xbf16> to vector<128x128xbf16>
    %cst_55 = arith.constant dense<0.000000e+00> : vector<286x128xf32>
    %77 = tpu.matmul %74, %76, %cst_55 {dimension_numbers = #tpu.dot_dimension_numbers<[1], [0], [0], [1], [0, 0, 1, 1], [], []>} : vector<286x128xbf16>, vector<128x128xbf16>, vector<286x128xf32> -> vector<286x128xf32>
    %78 = arith.addf %72, %77 : vector<286x128xf32>
    %c0_56 = arith.constant 0 : index
    %c38 = arith.constant 38 : index
    %c0_57 = arith.constant 0 : index
    %79 = vector.load %arg1[%c0_56, %c38, %c0_57] : memref<1x324x128xbf16, #tpu.memory_space<vmem>>, vector<1x286x128xbf16>
    %80 = vector.shape_cast %79 : vector<1x286x128xbf16> to vector<286x128xbf16>
    %c8 = arith.constant 8 : index
    %c0_58 = arith.constant 0 : index
    %c0_59 = arith.constant 0 : index
    %81 = vector.load %arg2[%c8, %c0_58, %c0_59] : memref<9x128x128xbf16, #tpu.memory_space<vmem>>, vector<1x128x128xbf16>
    %82 = vector.shape_cast %81 : vector<1x128x128xbf16> to vector<128x128xbf16>
    %cst_60 = arith.constant dense<0.000000e+00> : vector<286x128xf32>
    %83 = tpu.matmul %80, %82, %cst_60 {dimension_numbers = #tpu.dot_dimension_numbers<[1], [0], [0], [1], [0, 0, 1, 1], [], []>} : vector<286x128xbf16>, vector<128x128xbf16>, vector<286x128xf32> -> vector<286x128xf32>
    %84 = arith.addf %78, %83 : vector<286x128xf32>
    %c0_61 = arith.constant 0 : index
    %c0_62 = arith.constant 0 : index
    %85 = vector.load %arg5[%c0_61, %c0_62] : memref<1x128xf32, #tpu.memory_space<vmem>>, vector<1x128xf32>
    %86 = vector.broadcast %85 : vector<1x128xf32> to vector<286x128xf32>
    %87 = arith.mulf %84, %86 : vector<286x128xf32>
    %c0_63 = arith.constant 0 : index
    %c0_64 = arith.constant 0 : index
    %88 = vector.load %arg6[%c0_63, %c0_64] : memref<1x128xf32, #tpu.memory_space<vmem>>, vector<1x128xf32>
    %89 = vector.broadcast %88 : vector<1x128xf32> to vector<286x128xf32>
    %90 = arith.addf %87, %89 : vector<286x128xf32>
    %cst_65 = arith.constant 0.000000e+00 : f32
    %91 = vector.broadcast %cst_65 : f32 to vector<286x128xf32>
    %92 = arith.maximumf %90, %91 : vector<286x128xf32>
    %cst_66 = arith.constant 0.000000e+00 : f32
    %93 = vector.shape_cast %29 : vector<286x1xi1> to vector<286x1xi1>
    %94 = vector.broadcast %93 : vector<286x1xi1> to vector<286x128xi1>
    %95 = vector.broadcast %cst_66 : f32 to vector<286x128xf32>
    %96 = arith.select %94, %92, %95 : vector<286x128xi1>, vector<286x128xf32>
    %97 = arith.truncf %96 : vector<286x128xf32> to vector<286x128xbf16>
    %c19_67 = arith.constant 19 : index
    %c0_68 = arith.constant 0 : index
    %98 = vector.load %arg12[%c19_67, %c0_68] : memref<324x128xbf16, #tpu.memory_space<vmem>>, vector<286x128xbf16>
    tpu.vector_store %arg12[%c19_67, %c0_68], %97 {strides = array<i32>} : memref<324x128xbf16, #tpu.memory_space<vmem>>, vector<286x128xbf16>,
    %cst_69 = arith.constant 0.000000e+00 : f32
    %99 = vector.broadcast %cst_69 : f32 to vector<286x128xf32>
    %c0_70 = arith.constant 0 : index
    %c0_71 = arith.constant 0 : index
    %100 = vector.load %arg12[%c0_70, %c0_71] : memref<324x128xbf16, #tpu.memory_space<vmem>>, vector<286x128xbf16>
    %c0_72 = arith.constant 0 : index
    %c0_73 = arith.constant 0 : index
    %c0_74 = arith.constant 0 : index
    %101 = vector.load %arg3[%c0_72, %c0_73, %c0_74] : memref<9x128x128xbf16, #tpu.memory_space<vmem>>, vector<1x128x128xbf16>
    %102 = vector.shape_cast %101 : vector<1x128x128xbf16> to vector<128x128xbf16>
    %cst_75 = arith.constant dense<0.000000e+00> : vector<286x128xf32>
    %103 = tpu.matmul %100, %102, %cst_75 {dimension_numbers = #tpu.dot_dimension_numbers<[1], [0], [0], [1], [0, 0, 1, 1], [], []>} : vector<286x128xbf16>, vector<128x128xbf16>, vector<286x128xf32> -> vector<286x128xf32>
    %104 = arith.addf %99, %103 : vector<286x128xf32>
    %c1_76 = arith.constant 1 : index
    %c0_77 = arith.constant 0 : index
    %105 = vector.load %arg12[%c1_76, %c0_77] : memref<324x128xbf16, #tpu.memory_space<vmem>>, vector<286x128xbf16>
    %c1_78 = arith.constant 1 : index
    %c0_79 = arith.constant 0 : index
    %c0_80 = arith.constant 0 : index
    %106 = vector.load %arg3[%c1_78, %c0_79, %c0_80] : memref<9x128x128xbf16, #tpu.memory_space<vmem>>, vector<1x128x128xbf16>
    %107 = vector.shape_cast %106 : vector<1x128x128xbf16> to vector<128x128xbf16>
    %cst_81 = arith.constant dense<0.000000e+00> : vector<286x128xf32>
    %108 = tpu.matmul %105, %107, %cst_81 {dimension_numbers = #tpu.dot_dimension_numbers<[1], [0], [0], [1], [0, 0, 1, 1], [], []>} : vector<286x128xbf16>, vector<128x128xbf16>, vector<286x128xf32> -> vector<286x128xf32>
    %109 = arith.addf %104, %108 : vector<286x128xf32>
    %c2_82 = arith.constant 2 : index
    %c0_83 = arith.constant 0 : index
    %110 = vector.load %arg12[%c2_82, %c0_83] : memref<324x128xbf16, #tpu.memory_space<vmem>>, vector<286x128xbf16>
    %c2_84 = arith.constant 2 : index
    %c0_85 = arith.constant 0 : index
    %c0_86 = arith.constant 0 : index
    %111 = vector.load %arg3[%c2_84, %c0_85, %c0_86] : memref<9x128x128xbf16, #tpu.memory_space<vmem>>, vector<1x128x128xbf16>
    %112 = vector.shape_cast %111 : vector<1x128x128xbf16> to vector<128x128xbf16>
    %cst_87 = arith.constant dense<0.000000e+00> : vector<286x128xf32>
    %113 = tpu.matmul %110, %112, %cst_87 {dimension_numbers = #tpu.dot_dimension_numbers<[1], [0], [0], [1], [0, 0, 1, 1], [], []>} : vector<286x128xbf16>, vector<128x128xbf16>, vector<286x128xf32> -> vector<286x128xf32>
    %114 = arith.addf %109, %113 : vector<286x128xf32>
    %c18_88 = arith.constant 18 : index
    %c0_89 = arith.constant 0 : index
    %115 = vector.load %arg12[%c18_88, %c0_89] : memref<324x128xbf16, #tpu.memory_space<vmem>>, vector<286x128xbf16>
    %c3_90 = arith.constant 3 : index
    %c0_91 = arith.constant 0 : index
    %c0_92 = arith.constant 0 : index
    %116 = vector.load %arg3[%c3_90, %c0_91, %c0_92] : memref<9x128x128xbf16, #tpu.memory_space<vmem>>, vector<1x128x128xbf16>
    %117 = vector.shape_cast %116 : vector<1x128x128xbf16> to vector<128x128xbf16>
    %cst_93 = arith.constant dense<0.000000e+00> : vector<286x128xf32>
    %118 = tpu.matmul %115, %117, %cst_93 {dimension_numbers = #tpu.dot_dimension_numbers<[1], [0], [0], [1], [0, 0, 1, 1], [], []>} : vector<286x128xbf16>, vector<128x128xbf16>, vector<286x128xf32> -> vector<286x128xf32>
    %119 = arith.addf %114, %118 : vector<286x128xf32>
    %c19_94 = arith.constant 19 : index
    %c0_95 = arith.constant 0 : index
    %120 = vector.load %arg12[%c19_94, %c0_95] : memref<324x128xbf16, #tpu.memory_space<vmem>>, vector<286x128xbf16>
    %c4_96 = arith.constant 4 : index
    %c0_97 = arith.constant 0 : index
    %c0_98 = arith.constant 0 : index
    %121 = vector.load %arg3[%c4_96, %c0_97, %c0_98] : memref<9x128x128xbf16, #tpu.memory_space<vmem>>, vector<1x128x128xbf16>
    %122 = vector.shape_cast %121 : vector<1x128x128xbf16> to vector<128x128xbf16>
    %cst_99 = arith.constant dense<0.000000e+00> : vector<286x128xf32>
    %123 = tpu.matmul %120, %122, %cst_99 {dimension_numbers = #tpu.dot_dimension_numbers<[1], [0], [0], [1], [0, 0, 1, 1], [], []>} : vector<286x128xbf16>, vector<128x128xbf16>, vector<286x128xf32> -> vector<286x128xf32>
    %124 = arith.addf %119, %123 : vector<286x128xf32>
    %c20_100 = arith.constant 20 : index
    %c0_101 = arith.constant 0 : index
    %125 = vector.load %arg12[%c20_100, %c0_101] : memref<324x128xbf16, #tpu.memory_space<vmem>>, vector<286x128xbf16>
    %c5_102 = arith.constant 5 : index
    %c0_103 = arith.constant 0 : index
    %c0_104 = arith.constant 0 : index
    %126 = vector.load %arg3[%c5_102, %c0_103, %c0_104] : memref<9x128x128xbf16, #tpu.memory_space<vmem>>, vector<1x128x128xbf16>
    %127 = vector.shape_cast %126 : vector<1x128x128xbf16> to vector<128x128xbf16>
    %cst_105 = arith.constant dense<0.000000e+00> : vector<286x128xf32>
    %128 = tpu.matmul %125, %127, %cst_105 {dimension_numbers = #tpu.dot_dimension_numbers<[1], [0], [0], [1], [0, 0, 1, 1], [], []>} : vector<286x128xbf16>, vector<128x128xbf16>, vector<286x128xf32> -> vector<286x128xf32>
    %129 = arith.addf %124, %128 : vector<286x128xf32>
    %c36_106 = arith.constant 36 : index
    %c0_107 = arith.constant 0 : index
    %130 = vector.load %arg12[%c36_106, %c0_107] : memref<324x128xbf16, #tpu.memory_space<vmem>>, vector<286x128xbf16>
    %c6_108 = arith.constant 6 : index
    %c0_109 = arith.constant 0 : index
    %c0_110 = arith.constant 0 : index
    %131 = vector.load %arg3[%c6_108, %c0_109, %c0_110] : memref<9x128x128xbf16, #tpu.memory_space<vmem>>, vector<1x128x128xbf16>
    %132 = vector.shape_cast %131 : vector<1x128x128xbf16> to vector<128x128xbf16>
    %cst_111 = arith.constant dense<0.000000e+00> : vector<286x128xf32>
    %133 = tpu.matmul %130, %132, %cst_111 {dimension_numbers = #tpu.dot_dimension_numbers<[1], [0], [0], [1], [0, 0, 1, 1], [], []>} : vector<286x128xbf16>, vector<128x128xbf16>, vector<286x128xf32> -> vector<286x128xf32>
    %134 = arith.addf %129, %133 : vector<286x128xf32>
    %c37_112 = arith.constant 37 : index
    %c0_113 = arith.constant 0 : index
    %135 = vector.load %arg12[%c37_112, %c0_113] : memref<324x128xbf16, #tpu.memory_space<vmem>>, vector<286x128xbf16>
    %c7_114 = arith.constant 7 : index
    %c0_115 = arith.constant 0 : index
    %c0_116 = arith.constant 0 : index
    %136 = vector.load %arg3[%c7_114, %c0_115, %c0_116] : memref<9x128x128xbf16, #tpu.memory_space<vmem>>, vector<1x128x128xbf16>
    %137 = vector.shape_cast %136 : vector<1x128x128xbf16> to vector<128x128xbf16>
    %cst_117 = arith.constant dense<0.000000e+00> : vector<286x128xf32>
    %138 = tpu.matmul %135, %137, %cst_117 {dimension_numbers = #tpu.dot_dimension_numbers<[1], [0], [0], [1], [0, 0, 1, 1], [], []>} : vector<286x128xbf16>, vector<128x128xbf16>, vector<286x128xf32> -> vector<286x128xf32>
    %139 = arith.addf %134, %138 : vector<286x128xf32>
    %c38_118 = arith.constant 38 : index
    %c0_119 = arith.constant 0 : index
    %140 = vector.load %arg12[%c38_118, %c0_119] : memref<324x128xbf16, #tpu.memory_space<vmem>>, vector<286x128xbf16>
    %c8_120 = arith.constant 8 : index
    %c0_121 = arith.constant 0 : index
    %c0_122 = arith.constant 0 : index
    %141 = vector.load %arg3[%c8_120, %c0_121, %c0_122] : memref<9x128x128xbf16, #tpu.memory_space<vmem>>, vector<1x128x128xbf16>
    %142 = vector.shape_cast %141 : vector<1x128x128xbf16> to vector<128x128xbf16>
    %cst_123 = arith.constant dense<0.000000e+00> : vector<286x128xf32>
    %143 = tpu.matmul %140, %142, %cst_123 {dimension_numbers = #tpu.dot_dimension_numbers<[1], [0], [0], [1], [0, 0, 1, 1], [], []>} : vector<286x128xbf16>, vector<128x128xbf16>, vector<286x128xf32> -> vector<286x128xf32>
    %144 = arith.addf %139, %143 : vector<286x128xf32>
    %c0_124 = arith.constant 0 : index
    %c0_125 = arith.constant 0 : index
    %145 = vector.load %arg7[%c0_124, %c0_125] : memref<1x128xf32, #tpu.memory_space<vmem>>, vector<1x128xf32>
    %146 = vector.broadcast %145 : vector<1x128xf32> to vector<286x128xf32>
    %147 = arith.mulf %144, %146 : vector<286x128xf32>
    %c0_126 = arith.constant 0 : index
    %c0_127 = arith.constant 0 : index
    %148 = vector.load %arg8[%c0_126, %c0_127] : memref<1x128xf32, #tpu.memory_space<vmem>>, vector<1x128xf32>
    %149 = vector.broadcast %148 : vector<1x128xf32> to vector<286x128xf32>
    %150 = arith.addf %147, %149 : vector<286x128xf32>
    %cst_128 = arith.constant 0.000000e+00 : f32
    %151 = vector.broadcast %cst_128 : f32 to vector<286x128xf32>
    %152 = arith.maximumf %150, %151 : vector<286x128xf32>
    %cst_129 = arith.constant 0.000000e+00 : f32
    %153 = vector.shape_cast %29 : vector<286x1xi1> to vector<286x1xi1>
    %154 = vector.broadcast %153 : vector<286x1xi1> to vector<286x128xi1>
    %155 = vector.broadcast %cst_129 : f32 to vector<286x128xf32>
    %156 = arith.select %154, %152, %155 : vector<286x128xi1>, vector<286x128xf32>
    %157 = arith.truncf %156 : vector<286x128xf32> to vector<286x128xbf16>
    %c19_130 = arith.constant 19 : index
    %c0_131 = arith.constant 0 : index
    %158 = vector.load %arg13[%c19_130, %c0_131] : memref<324x128xbf16, #tpu.memory_space<vmem>>, vector<286x128xbf16>
    tpu.vector_store %arg13[%c19_130, %c0_131], %157 {strides = array<i32>} : memref<324x128xbf16, #tpu.memory_space<vmem>>, vector<286x128xbf16>,
    %cst_132 = arith.constant 0.000000e+00 : f32
    %159 = vector.broadcast %cst_132 : f32 to vector<286x128xf32>
    %c0_133 = arith.constant 0 : index
    %c0_134 = arith.constant 0 : index
    %160 = vector.load %arg13[%c0_133, %c0_134] : memref<324x128xbf16, #tpu.memory_space<vmem>>, vector<286x128xbf16>
    %c0_135 = arith.constant 0 : index
    %c0_136 = arith.constant 0 : index
    %c0_137 = arith.constant 0 : index
    %161 = vector.load %arg4[%c0_135, %c0_136, %c0_137] : memref<9x128x128xbf16, #tpu.memory_space<vmem>>, vector<1x128x128xbf16>
    %162 = vector.shape_cast %161 : vector<1x128x128xbf16> to vector<128x128xbf16>
    %cst_138 = arith.constant dense<0.000000e+00> : vector<286x128xf32>
    %163 = tpu.matmul %160, %162, %cst_138 {dimension_numbers = #tpu.dot_dimension_numbers<[1], [0], [0], [1], [0, 0, 1, 1], [], []>} : vector<286x128xbf16>, vector<128x128xbf16>, vector<286x128xf32> -> vector<286x128xf32>
    %164 = arith.addf %159, %163 : vector<286x128xf32>
    %c1_139 = arith.constant 1 : index
    %c0_140 = arith.constant 0 : index
    %165 = vector.load %arg13[%c1_139, %c0_140] : memref<324x128xbf16, #tpu.memory_space<vmem>>, vector<286x128xbf16>
    %c1_141 = arith.constant 1 : index
    %c0_142 = arith.constant 0 : index
    %c0_143 = arith.constant 0 : index
    %166 = vector.load %arg4[%c1_141, %c0_142, %c0_143] : memref<9x128x128xbf16, #tpu.memory_space<vmem>>, vector<1x128x128xbf16>
    %167 = vector.shape_cast %166 : vector<1x128x128xbf16> to vector<128x128xbf16>
    %cst_144 = arith.constant dense<0.000000e+00> : vector<286x128xf32>
    %168 = tpu.matmul %165, %167, %cst_144 {dimension_numbers = #tpu.dot_dimension_numbers<[1], [0], [0], [1], [0, 0, 1, 1], [], []>} : vector<286x128xbf16>, vector<128x128xbf16>, vector<286x128xf32> -> vector<286x128xf32>
    %169 = arith.addf %164, %168 : vector<286x128xf32>
    %c2_145 = arith.constant 2 : index
    %c0_146 = arith.constant 0 : index
    %170 = vector.load %arg13[%c2_145, %c0_146] : memref<324x128xbf16, #tpu.memory_space<vmem>>, vector<286x128xbf16>
    %c2_147 = arith.constant 2 : index
    %c0_148 = arith.constant 0 : index
    %c0_149 = arith.constant 0 : index
    %171 = vector.load %arg4[%c2_147, %c0_148, %c0_149] : memref<9x128x128xbf16, #tpu.memory_space<vmem>>, vector<1x128x128xbf16>
    %172 = vector.shape_cast %171 : vector<1x128x128xbf16> to vector<128x128xbf16>
    %cst_150 = arith.constant dense<0.000000e+00> : vector<286x128xf32>
    %173 = tpu.matmul %170, %172, %cst_150 {dimension_numbers = #tpu.dot_dimension_numbers<[1], [0], [0], [1], [0, 0, 1, 1], [], []>} : vector<286x128xbf16>, vector<128x128xbf16>, vector<286x128xf32> -> vector<286x128xf32>
    %174 = arith.addf %169, %173 : vector<286x128xf32>
    %c18_151 = arith.constant 18 : index
    %c0_152 = arith.constant 0 : index
    %175 = vector.load %arg13[%c18_151, %c0_152] : memref<324x128xbf16, #tpu.memory_space<vmem>>, vector<286x128xbf16>
    %c3_153 = arith.constant 3 : index
    %c0_154 = arith.constant 0 : index
    %c0_155 = arith.constant 0 : index
    %176 = vector.load %arg4[%c3_153, %c0_154, %c0_155] : memref<9x128x128xbf16, #tpu.memory_space<vmem>>, vector<1x128x128xbf16>
    %177 = vector.shape_cast %176 : vector<1x128x128xbf16> to vector<128x128xbf16>
    %cst_156 = arith.constant dense<0.000000e+00> : vector<286x128xf32>
    %178 = tpu.matmul %175, %177, %cst_156 {dimension_numbers = #tpu.dot_dimension_numbers<[1], [0], [0], [1], [0, 0, 1, 1], [], []>} : vector<286x128xbf16>, vector<128x128xbf16>, vector<286x128xf32> -> vector<286x128xf32>
    %179 = arith.addf %174, %178 : vector<286x128xf32>
    %c19_157 = arith.constant 19 : index
    %c0_158 = arith.constant 0 : index
    %180 = vector.load %arg13[%c19_157, %c0_158] : memref<324x128xbf16, #tpu.memory_space<vmem>>, vector<286x128xbf16>
    %c4_159 = arith.constant 4 : index
    %c0_160 = arith.constant 0 : index
    %c0_161 = arith.constant 0 : index
    %181 = vector.load %arg4[%c4_159, %c0_160, %c0_161] : memref<9x128x128xbf16, #tpu.memory_space<vmem>>, vector<1x128x128xbf16>
    %182 = vector.shape_cast %181 : vector<1x128x128xbf16> to vector<128x128xbf16>
    %cst_162 = arith.constant dense<0.000000e+00> : vector<286x128xf32>
    %183 = tpu.matmul %180, %182, %cst_162 {dimension_numbers = #tpu.dot_dimension_numbers<[1], [0], [0], [1], [0, 0, 1, 1], [], []>} : vector<286x128xbf16>, vector<128x128xbf16>, vector<286x128xf32> -> vector<286x128xf32>
    %184 = arith.addf %179, %183 : vector<286x128xf32>
    %c20_163 = arith.constant 20 : index
    %c0_164 = arith.constant 0 : index
    %185 = vector.load %arg13[%c20_163, %c0_164] : memref<324x128xbf16, #tpu.memory_space<vmem>>, vector<286x128xbf16>
    %c5_165 = arith.constant 5 : index
    %c0_166 = arith.constant 0 : index
    %c0_167 = arith.constant 0 : index
    %186 = vector.load %arg4[%c5_165, %c0_166, %c0_167] : memref<9x128x128xbf16, #tpu.memory_space<vmem>>, vector<1x128x128xbf16>
    %187 = vector.shape_cast %186 : vector<1x128x128xbf16> to vector<128x128xbf16>
    %cst_168 = arith.constant dense<0.000000e+00> : vector<286x128xf32>
    %188 = tpu.matmul %185, %187, %cst_168 {dimension_numbers = #tpu.dot_dimension_numbers<[1], [0], [0], [1], [0, 0, 1, 1], [], []>} : vector<286x128xbf16>, vector<128x128xbf16>, vector<286x128xf32> -> vector<286x128xf32>
    %189 = arith.addf %184, %188 : vector<286x128xf32>
    %c36_169 = arith.constant 36 : index
    %c0_170 = arith.constant 0 : index
    %190 = vector.load %arg13[%c36_169, %c0_170] : memref<324x128xbf16, #tpu.memory_space<vmem>>, vector<286x128xbf16>
    %c6_171 = arith.constant 6 : index
    %c0_172 = arith.constant 0 : index
    %c0_173 = arith.constant 0 : index
    %191 = vector.load %arg4[%c6_171, %c0_172, %c0_173] : memref<9x128x128xbf16, #tpu.memory_space<vmem>>, vector<1x128x128xbf16>
    %192 = vector.shape_cast %191 : vector<1x128x128xbf16> to vector<128x128xbf16>
    %cst_174 = arith.constant dense<0.000000e+00> : vector<286x128xf32>
    %193 = tpu.matmul %190, %192, %cst_174 {dimension_numbers = #tpu.dot_dimension_numbers<[1], [0], [0], [1], [0, 0, 1, 1], [], []>} : vector<286x128xbf16>, vector<128x128xbf16>, vector<286x128xf32> -> vector<286x128xf32>
    %194 = arith.addf %189, %193 : vector<286x128xf32>
    %c37_175 = arith.constant 37 : index
    %c0_176 = arith.constant 0 : index
    %195 = vector.load %arg13[%c37_175, %c0_176] : memref<324x128xbf16, #tpu.memory_space<vmem>>, vector<286x128xbf16>
    %c7_177 = arith.constant 7 : index
    %c0_178 = arith.constant 0 : index
    %c0_179 = arith.constant 0 : index
    %196 = vector.load %arg4[%c7_177, %c0_178, %c0_179] : memref<9x128x128xbf16, #tpu.memory_space<vmem>>, vector<1x128x128xbf16>
    %197 = vector.shape_cast %196 : vector<1x128x128xbf16> to vector<128x128xbf16>
    %cst_180 = arith.constant dense<0.000000e+00> : vector<286x128xf32>
    %198 = tpu.matmul %195, %197, %cst_180 {dimension_numbers = #tpu.dot_dimension_numbers<[1], [0], [0], [1], [0, 0, 1, 1], [], []>} : vector<286x128xbf16>, vector<128x128xbf16>, vector<286x128xf32> -> vector<286x128xf32>
    %199 = arith.addf %194, %198 : vector<286x128xf32>
    %c38_181 = arith.constant 38 : index
    %c0_182 = arith.constant 0 : index
    %200 = vector.load %arg13[%c38_181, %c0_182] : memref<324x128xbf16, #tpu.memory_space<vmem>>, vector<286x128xbf16>
    %c8_183 = arith.constant 8 : index
    %c0_184 = arith.constant 0 : index
    %c0_185 = arith.constant 0 : index
    %201 = vector.load %arg4[%c8_183, %c0_184, %c0_185] : memref<9x128x128xbf16, #tpu.memory_space<vmem>>, vector<1x128x128xbf16>
    %202 = vector.shape_cast %201 : vector<1x128x128xbf16> to vector<128x128xbf16>
    %cst_186 = arith.constant dense<0.000000e+00> : vector<286x128xf32>
    %203 = tpu.matmul %200, %202, %cst_186 {dimension_numbers = #tpu.dot_dimension_numbers<[1], [0], [0], [1], [0, 0, 1, 1], [], []>} : vector<286x128xbf16>, vector<128x128xbf16>, vector<286x128xf32> -> vector<286x128xf32>
    %204 = arith.addf %199, %203 : vector<286x128xf32>
    %c0_187 = arith.constant 0 : index
    %c0_188 = arith.constant 0 : index
    %205 = vector.load %arg9[%c0_187, %c0_188] : memref<1x128xf32, #tpu.memory_space<vmem>>, vector<1x128xf32>
    %206 = vector.broadcast %205 : vector<1x128xf32> to vector<286x128xf32>
    %207 = arith.mulf %204, %206 : vector<286x128xf32>
    %c0_189 = arith.constant 0 : index
    %c0_190 = arith.constant 0 : index
    %208 = vector.load %arg10[%c0_189, %c0_190] : memref<1x128xf32, #tpu.memory_space<vmem>>, vector<1x128xf32>
    %209 = vector.broadcast %208 : vector<1x128xf32> to vector<286x128xf32>
    %210 = arith.addf %207, %209 : vector<286x128xf32>
    %cst_191 = arith.constant 0.000000e+00 : f32
    %211 = vector.broadcast %cst_191 : f32 to vector<286x128xf32>
    %212 = arith.maximumf %210, %211 : vector<286x128xf32>
    %213 = arith.truncf %212 : vector<286x128xf32> to vector<286x128xbf16>
    %c0_192 = arith.constant 0 : index
    %c0_193 = arith.constant 0 : index
    %c0_194 = arith.constant 0 : index
    %214 = vector.load %arg11[%c0_192, %c0_193, %c0_194] : memref<1x286x128xbf16, #tpu.memory_space<vmem>>, vector<1x286x128xbf16>
    %215 = vector.shape_cast %214 : vector<1x286x128xbf16> to vector<286x128xbf16>
    %216 = vector.shape_cast %213 : vector<286x128xbf16> to vector<1x286x128xbf16>
    tpu.vector_store %arg11[%c0_192, %c0_193, %c0_194], %216 {strides = array<i32>} : memref<1x286x128xbf16, #tpu.memory_space<vmem>>, vector<1x286x128xbf16>,
    return
  }
  func.func @transform_0(%arg0: i32) -> (i32, i32, i32) {
    %c0_i32 = arith.constant 0 : i32
    %c0_i32_0 = arith.constant 0 : i32
    %c0_i32_1 = arith.constant 0 : i32
    return %arg0, %c0_i32, %c0_i32_0 : i32, i32, i32
  }
  func.func @transform_1(%arg0: i32) -> (i32, i32, i32) {
    %c0_i32 = arith.constant 0 : i32
    %c0_i32_0 = arith.constant 0 : i32
    %c0_i32_1 = arith.constant 0 : i32
    %c0_i32_2 = arith.constant 0 : i32
    return %c0_i32, %c0_i32_0, %c0_i32_1 : i32, i32, i32
  }
  func.func @transform_2(%arg0: i32) -> (i32, i32, i32) {
    %c0_i32 = arith.constant 0 : i32
    %c0_i32_0 = arith.constant 0 : i32
    %c0_i32_1 = arith.constant 0 : i32
    %c0_i32_2 = arith.constant 0 : i32
    return %c0_i32, %c0_i32_0, %c0_i32_1 : i32, i32, i32
  }
  func.func @transform_3(%arg0: i32) -> (i32, i32, i32) {
    %c0_i32 = arith.constant 0 : i32
    %c0_i32_0 = arith.constant 0 : i32
    %c0_i32_1 = arith.constant 0 : i32
    %c0_i32_2 = arith.constant 0 : i32
    return %c0_i32, %c0_i32_0, %c0_i32_1 : i32, i32, i32
  }
  func.func @transform_4(%arg0: i32) -> (i32, i32) {
    %c0_i32 = arith.constant 0 : i32
    %c0_i32_0 = arith.constant 0 : i32
    %c0_i32_1 = arith.constant 0 : i32
    return %c0_i32, %c0_i32_0 : i32, i32
  }
  func.func @transform_5(%arg0: i32) -> (i32, i32) {
    %c0_i32 = arith.constant 0 : i32
    %c0_i32_0 = arith.constant 0 : i32
    %c0_i32_1 = arith.constant 0 : i32
    return %c0_i32, %c0_i32_0 : i32, i32
  }
  func.func @transform_6(%arg0: i32) -> (i32, i32) {
    %c0_i32 = arith.constant 0 : i32
    %c0_i32_0 = arith.constant 0 : i32
    %c0_i32_1 = arith.constant 0 : i32
    return %c0_i32, %c0_i32_0 : i32, i32
  }
  func.func @transform_7(%arg0: i32) -> (i32, i32) {
    %c0_i32 = arith.constant 0 : i32
    %c0_i32_0 = arith.constant 0 : i32
    %c0_i32_1 = arith.constant 0 : i32
    return %c0_i32, %c0_i32_0 : i32, i32
  }
  func.func @transform_8(%arg0: i32) -> (i32, i32) {
    %c0_i32 = arith.constant 0 : i32
    %c0_i32_0 = arith.constant 0 : i32
    %c0_i32_1 = arith.constant 0 : i32
    return %c0_i32, %c0_i32_0 : i32, i32
  }
  func.func @transform_9(%arg0: i32) -> (i32, i32) {
    %c0_i32 = arith.constant 0 : i32
    %c0_i32_0 = arith.constant 0 : i32
    %c0_i32_1 = arith.constant 0 : i32
    return %c0_i32, %c0_i32_0 : i32, i32
  }
  func.func @transform_10(%arg0: i32) -> (i32, i32, i32) {
    %c0_i32 = arith.constant 0 : i32
    %c0_i32_0 = arith.constant 0 : i32
    %c0_i32_1 = arith.constant 0 : i32
    return %arg0, %c0_i32, %c0_i32_0 : i32, i32, i32
  }
}

</mosaic_0001>

<llo_original>
// kernel: unet_up_block.1
$region0: #{unet_up_block.1}
  #allocation0 [shape = 'u32[]', space=smem, size = 0x4, offset = 0x4, fixed_abs, tag = 'smem constant byte address 0x4 - core index']
  #allocation1 [shape = 'u32[72,128]{1,0:T(1,128)}', space=vmem, size = 0x9000, scoped, tag = 'internal scratch']
  #allocation2 [shape = 'bf16[324,128]{1,0:T(8,128)(2,1)}', space=vmem, size = 0x14800, scoped, tag = 'scratch operand']
  #allocation3 [shape = 'bf16[324,128]{1,0:T(8,128)(2,1)}', space=vmem, size = 0x14800, scoped, tag = 'scratch operand']
  %s0 = inlined_call_operand.vmem [shape: bf16[2,324,128], index: 0, kind: input, shape index: {}]
  %s1 = inlined_call_operand.vmem [shape: bf16[9,128,128], index: 1, kind: input, shape index: {}]
  %s2 = inlined_call_operand.vmem [shape: bf16[9,128,128], index: 2, kind: input, shape index: {}]
  %s3 = inlined_call_operand.vmem [shape: bf16[9,128,128], index: 3, kind: input, shape index: {}]
  %s4 = inlined_call_operand.vmem [shape: f32[1,128], index: 4, kind: input, shape index: {}]
  %s5 = inlined_call_operand.vmem [shape: f32[1,128], index: 5, kind: input, shape index: {}]
  %s6 = inlined_call_operand.vmem [shape: f32[1,128], index: 6, kind: input, shape index: {}]
  %s7 = inlined_call_operand.vmem [shape: f32[1,128], index: 7, kind: input, shape index: {}]
  %s8 = inlined_call_operand.vmem [shape: f32[1,128], index: 8, kind: input, shape index: {}]
  %s9 = inlined_call_operand.vmem [shape: f32[1,128], index: 9, kind: input, shape index: {}]
  %s10 = inlined_call_operand.vmem [shape: bf16[2,286,128], index: 10, kind: output, shape index: {}]
  %s11 = sld [smem:[#allocation0]]
  $region73: #{unet_up_block.1} parent=0
    _
  %s13 = ssub.s32 1, %s11
  %s14 = scalar_select 0, %s13, %s11
  loop: start=0, step=1, limit=4
  $region2: #{unet_up_block.1} parent=0 // loop_pre_header
    _
  $region3: #{unet_up_block.1} parent=0 // loop_header
    %s16 = sphi 0, %s20
    %p17 = scmp.ge.s32.totalorder %s16, 4
    %s26 = sphi 0, %s28
    %s29 = sphi 0, %s26
    %s30 = sphi 0, %s29
    %s46 = sphi 0, %s30
    %s50 = sphi 0, %s50
    %s52 = sphi 0, %s50
    %s53 = sphi 0, %s52
    %s67 = sphi 0, %s53
    %s71 = sphi 0, %s71
    %s73 = sphi 0, %s71
    %s74 = sphi 0, %s73
    %s88 = sphi 0, %s74
    %s92 = sphi 0, %s92
    %s94 = sphi 0, %s92
    %s95 = sphi 0, %s94
    %s109 = sphi 0, %s95
    %s113 = sphi 0, %s113
    %s115 = sphi 0, %s113
    %s116 = sphi 0, %s115
    %s130 = sphi 0, %s116
    %s134 = sphi 0, %s134
    %s136 = sphi 0, %s134
    %s137 = sphi 0, %s136
    %s151 = sphi 0, %s137
    %s155 = sphi 0, %s155
    %s157 = sphi 0, %s155
    %s158 = sphi 0, %s157
    %s172 = sphi 0, %s158
    %s176 = sphi 0, %s176
    %s178 = sphi 0, %s176
    %s179 = sphi 0, %s178
    %s193 = sphi 0, %s179
    %s197 = sphi 0, %s197
    %s199 = sphi 0, %s197
    %s200 = sphi 0, %s199
    %s214 = sphi 0, %s200
    %s218 = sphi 0, %s218
    %s220 = sphi 0, %s218
    %s221 = sphi 0, %s220
    %s235 = sphi 0, %s221
    %s241 = sphi 0, %s243
    %s244 = sphi 0, %s241
    %s245 = sphi 0, %s244
    %s261 = sphi 0, %s245
  $region4: #{unet_up_block.1} parent=0 // loop_header_branch
    %19 = sbr.rel (%p17) target = $region8
  $region5: #{unet_up_block.1} parent=0 // loop_body
    %s21 = ssub.s32 %s16, 1
    %s22 = ssub.s32 %s16, 2
    %s23 = sadd.s32 %s16, 1
    %s24 = ssub.s32 %s16, %s23
    %p25 = scmp.eq.s32.totalorder %s24, 0
    %s27 = sadd.s32 %s26, 1
    %s28 = scalar_select %p25, %s26, %s27
    %p31 = pneg %p25
    %p32 = scmp.eq.s32.totalorder %s16, 1
    %p33 = por %p31, %p32
    %p34 = scmp.ne.s32.totalorder %s26, %s29
    %p35 = scmp.eq.s32.totalorder %s16, 0
    %p36 = por %p34, %p35
    %p37 = scmp.ne.s32.totalorder %s26, %s29
    %p38 = scmp.eq.s32.totalorder %s21, 1
    %p39 = por %p37, %p38
    %p40 = scmp.ne.s32.totalorder %s29, %s30
    %p41 = scmp.eq.s32.totalorder %s21, 0
    %p42 = por %p40, %p41
    %p43 = scmp.ne.s32.totalorder %s29, %s30
    %p44 = scmp.eq.s32.totalorder %s22, 1
    %p45 = por %p43, %p44
    %p47 = scmp.ne.s32.totalorder %s30, %s46
    %p48 = scmp.eq.s32.totalorder %s22, 0
    %p49 = por %p47, %p48
    %s51 = sadd.s32 %s50, 1
    %p54 = scmp.eq.s32.totalorder %s16, 1
    %p55 = scmp.ne.s32.totalorder %s50, %s52
    %p56 = scmp.eq.s32.totalorder %s16, 0
    %p57 = por %p55, %p56
    %p58 = scmp.ne.s32.totalorder %s50, %s52
    %p59 = scmp.eq.s32.totalorder %s21, 1
    %p60 = por %p58, %p59
    %p61 = scmp.ne.s32.totalorder %s52, %s53
    %p62 = scmp.eq.s32.totalorder %s21, 0
    %p63 = por %p61, %p62
    %p64 = scmp.ne.s32.totalorder %s52, %s53
    %p65 = scmp.eq.s32.totalorder %s22, 1
    %p66 = por %p64, %p65
    %p68 = scmp.ne.s32.totalorder %s53, %s67
    %p69 = scmp.eq.s32.totalorder %s22, 0
    %p70 = por %p68, %p69
    %s72 = sadd.s32 %s71, 1
    %p75 = scmp.eq.s32.totalorder %s16, 1
    %p76 = scmp.ne.s32.totalorder %s71, %s73
    %p77 = scmp.eq.s32.totalorder %s16, 0
    %p78 = por %p76, %p77
    %p79 = scmp.ne.s32.totalorder %s71, %s73
    %p80 = scmp.eq.s32.totalorder %s21, 1
    %p81 = por %p79, %p80
    %p82 = scmp.ne.s32.totalorder %s73, %s74
    %p83 = scmp.eq.s32.totalorder %s21, 0
    %p84 = por %p82, %p83
    %p85 = scmp.ne.s32.totalorder %s73, %s74
    %p86 = scmp.eq.s32.totalorder %s22, 1
    %p87 = por %p85, %p86
    %p89 = scmp.ne.s32.totalorder %s74, %s88
    %p90 = scmp.eq.s32.totalorder %s22, 0
    %p91 = por %p89, %p90
    %s93 = sadd.s32 %s92, 1
    %p96 = scmp.eq.s32.totalorder %s16, 1
    %p97 = scmp.ne.s32.totalorder %s92, %s94
    %p98 = scmp.eq.s32.totalorder %s16, 0
    %p99 = por %p97, %p98
    %p100 = scmp.ne.s32.totalorder %s92, %s94
    %p101 = scmp.eq.s32.totalorder %s21, 1
    %p102 = por %p100, %p101
    %p103 = scmp.ne.s32.totalorder %s94, %s95
    %p104 = scmp.eq.s32.totalorder %s21, 0
    %p105 = por %p103, %p104
    %p106 = scmp.ne.s32.totalorder %s94, %s95
    %p107 = scmp.eq.s32.totalorder %s22, 1
    %p108 = por %p106, %p107
    %p110 = scmp.ne.s32.totalorder %s95, %s109
    %p111 = scmp.eq.s32.totalorder %s22, 0
    %p112 = por %p110, %p111
    %s114 = sadd.s32 %s113, 1
    %p117 = scmp.eq.s32.totalorder %s16, 1
    %p118 = scmp.ne.s32.totalorder %s113, %s115
    %p119 = scmp.eq.s32.totalorder %s16, 0
    %p120 = por %p118, %p119
    %p121 = scmp.ne.s32.totalorder %s113, %s115
    %p122 = scmp.eq.s32.totalorder %s21, 1
    %p123 = por %p121, %p122
    %p124 = scmp.ne.s32.totalorder %s115, %s116
    %p125 = scmp.eq.s32.totalorder %s21, 0
    %p126 = por %p124, %p125
    %p127 = scmp.ne.s32.totalorder %s115, %s116
    %p128 = scmp.eq.s32.totalorder %s22, 1
    %p129 = por %p127, %p128
    %p131 = scmp.ne.s32.totalorder %s116, %s130
    %p132 = scmp.eq.s32.totalorder %s22, 0
    %p133 = por %p131, %p132
    %s135 = sadd.s32 %s134, 1
    %p138 = scmp.eq.s32.totalorder %s16, 1
    %p139 = scmp.ne.s32.totalorder %s134, %s136
    %p140 = scmp.eq.s32.totalorder %s16, 0
    %p141 = por %p139, %p140
    %p142 = scmp.ne.s32.totalorder %s134, %s136
    %p143 = scmp.eq.s32.totalorder %s21, 1
    %p144 = por %p142, %p143
    %p145 = scmp.ne.s32.totalorder %s136, %s137
    %p146 = scmp.eq.s32.totalorder %s21, 0
    %p147 = por %p145, %p146
    %p148 = scmp.ne.s32.totalorder %s136, %s137
    %p149 = scmp.eq.s32.totalorder %s22, 1
    %p150 = por %p148, %p149
    %p152 = scmp.ne.s32.totalorder %s137, %s151
    %p153 = scmp.eq.s32.totalorder %s22, 0
    %p154 = por %p152, %p153
    %s156 = sadd.s32 %s155, 1
    %p159 = scmp.eq.s32.totalorder %s16, 1
    %p160 = scmp.ne.s32.totalorder %s155, %s157
    %p161 = scmp.eq.s32.totalorder %s16, 0
    %p162 = por %p160, %p161
    %p163 = scmp.ne.s32.totalorder %s155, %s157
    %p164 = scmp.eq.s32.totalorder %s21, 1
    %p165 = por %p163, %p164
    %p166 = scmp.ne.s32.totalorder %s157, %s158
    %p167 = scmp.eq.s32.totalorder %s21, 0
    %p168 = por %p166, %p167
    %p169 = scmp.ne.s32.totalorder %s157, %s158
    %p170 = scmp.eq.s32.totalorder %s22, 1
    %p171 = por %p169, %p170
    %p173 = scmp.ne.s32.totalorder %s158, %s172
    %p174 = scmp.eq.s32.totalorder %s22, 0
    %p175 = por %p173, %p174
    %s177 = sadd.s32 %s176, 1
    %p180 = scmp.eq.s32.totalorder %s16, 1
    %p181 = scmp.ne.s32.totalorder %s176, %s178
    %p182 = scmp.eq.s32.totalorder %s16, 0
    %p183 = por %p181, %p182
    %p184 = scmp.ne.s32.totalorder %s176, %s178
    %p185 = scmp.eq.s32.totalorder %s21, 1
    %p186 = por %p184, %p185
    %p187 = scmp.ne.s32.totalorder %s178, %s179
    %p188 = scmp.eq.s32.totalorder %s21, 0
    %p189 = por %p187, %p188
    %p190 = scmp.ne.s32.totalorder %s178, %s179
    %p191 = scmp.eq.s32.totalorder %s22, 1
    %p192 = por %p190, %p191
    %p194 = scmp.ne.s32.totalorder %s179, %s193
    %p195 = scmp.eq.s32.totalorder %s22, 0
    %p196 = por %p194, %p195
    %s198 = sadd.s32 %s197, 1
    %p201 = scmp.eq.s32.totalorder %s16, 1
    %p202 = scmp.ne.s32.totalorder %s197, %s199
    %p203 = scmp.eq.s32.totalorder %s16, 0
    %p204 = por %p202, %p203
    %p205 = scmp.ne.s32.totalorder %s197, %s199
    %p206 = scmp.eq.s32.totalorder %s21, 1
    %p207 = por %p205, %p206
    %p208 = scmp.ne.s32.totalorder %s199, %s200
    %p209 = scmp.eq.s32.totalorder %s21, 0
    %p210 = por %p208, %p209
    %p211 = scmp.ne.s32.totalorder %s199, %s200
    %p212 = scmp.eq.s32.totalorder %s22, 1
    %p213 = por %p211, %p212
    %p215 = scmp.ne.s32.totalorder %s200, %s214
    %p216 = scmp.eq.s32.totalorder %s22, 0
    %p217 = por %p215, %p216
    %s219 = sadd.s32 %s218, 1
    %p222 = scmp.eq.s32.totalorder %s16, 1
    %p223 = scmp.ne.s32.totalorder %s218, %s220
    %p224 = scmp.eq.s32.totalorder %s16, 0
    %p225 = por %p223, %p224
    %p226 = scmp.ne.s32.totalorder %s218, %s220
    %p227 = scmp.eq.s32.totalorder %s21, 1
    %p228 = por %p226, %p227
    %p229 = scmp.ne.s32.totalorder %s220, %s221
    %p230 = scmp.eq.s32.totalorder %s21, 0
    %p231 = por %p229, %p230
    %p232 = scmp.ne.s32.totalorder %s220, %s221
    %p233 = scmp.eq.s32.totalorder %s22, 1
    %p234 = por %p232, %p233
    %p236 = scmp.ne.s32.totalorder %s221, %s235
    %p237 = scmp.eq.s32.totalorder %s22, 0
    %p238 = por %p236, %p237
    %s239 = ssub.s32 %s16, %s23
    %p240 = scmp.eq.s32.totalorder %s239, 0
    %s242 = sadd.s32 %s241, 1
    %s243 = scalar_select %p240, %s241, %s242
    %p246 = pneg %p240
    %p247 = scmp.eq.s32.totalorder %s16, 1
    %p248 = por %p246, %p247
    %p249 = scmp.ne.s32.totalorder %s241, %s244
    %p250 = scmp.eq.s32.totalorder %s16, 0
    %p251 = por %p249, %p250
    %p252 = scmp.ne.s32.totalorder %s241, %s244
    %p253 = scmp.eq.s32.totalorder %s21, 1
    %p254 = por %p252, %p253
    %p255 = scmp.ne.s32.totalorder %s244, %s245
    %p256 = scmp.eq.s32.totalorder %s21, 0
    %p257 = por %p255, %p256
    %p258 = scmp.ne.s32.totalorder %s244, %s245
    %p259 = scmp.eq.s32.totalorder %s22, 1
    %p260 = por %p258, %p259
    %p262 = scmp.ne.s32.totalorder %s245, %s261
    %p263 = scmp.eq.s32.totalorder %s22, 0
    %p264 = por %p262, %p263
    %p265 = scmp.le.s32.totalorder 1, %s16
    %p266 = scmp.lt.s32.totalorder %s16, 3
    %p267 = pnand %p265, %p266
    %p268 = pneg %p267
    // Predicated region
    $region9: #{unet_up_block.1} parent=5 // pred_check
      _
    $region10: #{unet_up_block.1} parent=5 // pred_check_branch
      %270 = sbr.rel (%p267) target = $region12
    $region11: #{unet_up_block.1} parent=5 // pred_region
      %s271 = ssub.s32 %s16, 1
      // Predicated region
      $region13: #{unet_up_block.1} parent=11 // pred_check
        %p272 = pneg %p63
      $region14: #{unet_up_block.1} parent=11 // pred_check_branch
        %274 = sbr.rel (%p272) target = $region16
      $region15: #{unet_up_block.1} parent=11 // pred_region
        _
      $region16: #{unet_up_block.1} parent=11 // pred_fallthru
        _
      // Predicated region
      $region17: #{unet_up_block.1} parent=11 // pred_check
        %p275 = pneg %p84
      $region18: #{unet_up_block.1} parent=11 // pred_check_branch
        %277 = sbr.rel (%p275) target = $region20
      $region19: #{unet_up_block.1} parent=11 // pred_region
        _
      $region20: #{unet_up_block.1} parent=11 // pred_fallthru
        _
      // Predicated region
      $region21: #{unet_up_block.1} parent=11 // pred_check
        %p278 = pneg %p105
      $region22: #{unet_up_block.1} parent=11 // pred_check_branch
        %280 = sbr.rel (%p278) target = $region24
      $region23: #{unet_up_block.1} parent=11 // pred_region
        _
      $region24: #{unet_up_block.1} parent=11 // pred_fallthru
        _
      // Predicated region
      $region25: #{unet_up_block.1} parent=11 // pred_check
        %p281 = pneg %p126
      $region26: #{unet_up_block.1} parent=11 // pred_check_branch
        %283 = sbr.rel (%p281) target = $region28
      $region27: #{unet_up_block.1} parent=11 // pred_region
        _
      $region28: #{unet_up_block.1} parent=11 // pred_fallthru
        _
      // Predicated region
      $region29: #{unet_up_block.1} parent=11 // pred_check
        %p284 = pneg %p147
      $region30: #{unet_up_block.1} parent=11 // pred_check_branch
        %286 = sbr.rel (%p284) target = $region32
      $region31: #{unet_up_block.1} parent=11 // pred_region
        _
      $region32: #{unet_up_block.1} parent=11 // pred_fallthru
        _
      // Predicated region
      $region33: #{unet_up_block.1} parent=11 // pred_check
        %p287 = pneg %p168
      $region34: #{unet_up_block.1} parent=11 // pred_check_branch
        %289 = sbr.rel (%p287) target = $region36
      $region35: #{unet_up_block.1} parent=11 // pred_region
        _
      $region36: #{unet_up_block.1} parent=11 // pred_fallthru
        _
      // Predicated region
      $region37: #{unet_up_block.1} parent=11 // pred_check
        %p290 = pneg %p189
      $region38: #{unet_up_block.1} parent=11 // pred_check_branch
        %292 = sbr.rel (%p290) target = $region40
      $region39: #{unet_up_block.1} parent=11 // pred_region
        _
      $region40: #{unet_up_block.1} parent=11 // pred_fallthru
        _
      // Predicated region
      $region41: #{unet_up_block.1} parent=11 // pred_check
        %p293 = pneg %p210
      $region42: #{unet_up_block.1} parent=11 // pred_check_branch
        %295 = sbr.rel (%p293) target = $region44
      $region43: #{unet_up_block.1} parent=11 // pred_region
        _
      $region44: #{unet_up_block.1} parent=11 // pred_fallthru
        _
      // Predicated region
      $region45: #{unet_up_block.1} parent=11 // pred_check
        %p296 = pneg %p231
      $region46: #{unet_up_block.1} parent=11 // pred_check_branch
        %298 = sbr.rel (%p296) target = $region48
      $region47: #{unet_up_block.1} parent=11 // pred_region
        _
      $region48: #{unet_up_block.1} parent=11 // pred_fallthru
        _
    $region12: #{unet_up_block.1} parent=5 // pred_fallthru
      _
    %p299 = scmp.lt.s32.totalorder %s16, 2
    // Predicated region
    $region49: #{unet_up_block.1} parent=5 // pred_check
      %p300 = pneg %p299
    $region50: #{unet_up_block.1} parent=5 // pred_check_branch
      %302 = sbr.rel (%p300) target = $region52
    $region51: #{unet_up_block.1} parent=5 // pred_region
      // Predicated region
      $region53: #{unet_up_block.1} parent=51 // pred_check
        %p303 = pneg %p36
      $region54: #{unet_up_block.1} parent=51 // pred_check_branch
        %305 = sbr.rel (%p303) target = $region56
      $region55: #{unet_up_block.1} parent=51 // pred_region
        %p306 = scmp.lt.s32.totalorder %s16, 1
        %s307 = scalar_select %p306, %s16, 1
        %s308 = smul.addr %s307, 41
        %s309 = smul.addr %s308, 4
        %s310 = scalar_lea.vmem %s0, %s309
      $region56: #{unet_up_block.1} parent=51 // pred_fallthru
        _
    $region52: #{unet_up_block.1} parent=5 // pred_fallthru
      _
    %p311 = scmp.le.s32.totalorder 1, %s16
    %p312 = scmp.lt.s32.totalorder %s16, 3
    %p313 = pnand %p311, %p312
    %p314 = pneg %p313
    // Predicated region
    $region57: #{unet_up_block.1} parent=5 // pred_check
      _
    $region58: #{unet_up_block.1} parent=5 // pred_check_branch
      %316 = sbr.rel (%p313) target = $region60
    $region59: #{unet_up_block.1} parent=5 // pred_region
      %s317 = ssub.s32 %s16, 1
      %p318 = scmp.lt.s32.totalorder %s21, 1
      %s319 = scalar_select %p318, %s21, 1
      %s320 = smul.addr %s319, 41
      %s321 = smul.addr %s320, 4
      %s322 = scalar_lea.vmem %s0, %s321
      %p323 = pneg %p42
      %p324 = pneg %p39
      %p325 = pneg %p63
      %p326 = pneg %p60
      %p327 = pneg %p84
      %p328 = pneg %p81
      %p329 = pneg %p105
      %p330 = pneg %p102
      %p331 = pneg %p126
      %p332 = pneg %p123
      %p333 = pneg %p147
      %p334 = pneg %p144
      %p335 = pneg %p168
      %p336 = pneg %p165
      %p337 = pneg %p189
      %p338 = pneg %p186
      %p339 = pneg %p210
      %p340 = pneg %p207
      %p341 = pneg %p231
      %p342 = pneg %p228
      %p343 = pneg %p257
      %p344 = pneg %p254
      %p345 = scmp.lt.s32.totalorder %s21, 1
      %s346 = scalar_select %p345, %s21, 1
      %s347 = smul.addr %s346, 36
      %s348 = smul.addr %s347, 4
      %s349 = scalar_lea.vmem %s10, %s348
      %p350 = scmp.lt.s32.totalorder %s21, 1
      %s351 = scalar_select %p350, %s21, 1
      %s352 = smul.addr %s351, 41
      %s353 = smul.addr %s352, 4
      %s354 = scalar_lea.vmem %s0, %s353
      %p355 = scmp.lt.s32.totalorder %s21, 1
      %s356 = scalar_select %p355, %s21, 1
      %s357 = smul.addr %s356, 36
      %s358 = smul.addr %s357, 4
      %s359 = scalar_lea.vmem %s10, %s358
      %361 = vst [vmem:[#allocation2] sm:$0xf] 0
      %362 = vst [vmem:[#allocation2 + $0x4] sm:$0xf] 0
      %vm363 = vcmask 1041408
      %vm364 = vsmask.f32 1280
      %vm365 = vmand %vm363, %vm364
      %v366 = vld [vmem:[#allocation2 + $0x8] sm:$0x3]
      %v367 = vsel %vm365, 0, %v366
      %368 = vst [vmem:[#allocation2 + $0x8] sm:$0x3] %v367
      %vm369 = vcmask 1043456
      %vm370 = vsmask.f32 7938
      %vm371 = vmand %vm369, %vm370
      %v372 = vld [vmem:[#allocation2 + $0x98] sm:$0xf]
      %v373 = vsel %vm371, 0, %v372
      %374 = vst [vmem:[#allocation2 + $0x98] sm:$0xf] %v373
      %375 = vst [vmem:[#allocation2 + $0x9c] sm:$0xf] 0
      %376 = vst [vmem:[#allocation2 + $0xa0] sm:$0x3] 0
      %377 = vst [vmem:[#allocation3] sm:$0xf] 0
      %378 = vst [vmem:[#allocation3 + $0x4] sm:$0xf] 0
      %v379 = vld [vmem:[#allocation3 + $0x8] sm:$0x3]
      %v380 = vsel %vm365, 0, %v379
      %381 = vst [vmem:[#allocation3 + $0x8] sm:$0x3] %v380
      %v382 = vld [vmem:[#allocation3 + $0x98] sm:$0xf]
      %v383 = vsel %vm371, 0, %v382
      %384 = vst [vmem:[#allocation3 + $0x98] sm:$0xf] %v383
      %385 = vst [vmem:[#allocation3 + $0x9c] sm:$0xf] 0
      %386 = vst [vmem:[#allocation3 + $0xa0] sm:$0x3] 0
      %v387 = vlaneseq
      %v388 = vshrl.u32 %v387, 7
      %v389 = vadd.s32 %v388, 8
      %v390 = vadd.s32 %v388, 16
      %v391 = vadd.s32 %v388, 24
      %v392 = vadd.s32 %v388, 32
      %v393 = vadd.s32 %v388, 40
      %v394 = vadd.s32 %v388, 48
      %v395 = vadd.s32 %v388, 56
      %v396 = vadd.s32 %v388, 64
      %v397 = vadd.s32 %v388, 72
      %v398 = vadd.s32 %v388, 80
      %v399 = vadd.s32 %v388, 88
      %v400 = vadd.s32 %v388, 96
      %v401 = vadd.s32 %v388, 104
      %v402 = vadd.s32 %v388, 112
      %v403 = vadd.s32 %v388, 120
      %v404 = vadd.s32 %v388, 128
      %v405 = vadd.s32 %v388, 136
      %v406 = vadd.s32 %v388, 144
      %v407 = vadd.s32 %v388, 152
      %v408 = vadd.s32 %v388, 160
      %v409 = vadd.s32 %v388, 168
      %v410 = vadd.s32 %v388, 176
      %v411 = vadd.s32 %v388, 184
      %v412 = vadd.s32 %v388, 192
      %v413 = vadd.s32 %v388, 200
      %v414 = vadd.s32 %v388, 208
      %v415 = vadd.s32 %v388, 216
      %v416 = vadd.s32 %v388, 224
      %v417 = vadd.s32 %v388, 232
      %v418 = vadd.s32 %v388, 240
      %v419 = vadd.s32 %v388, 248
      %v420 = vadd.s32 %v388, 256
      %v421 = vadd.s32 %v388, 264
      %v422 = vadd.s32 %v388, 272
      %v423 = vadd.s32 %v388, 280
      %v424 = vadd.s32 %v388, 19
      %v425 = vadd.s32 %v389, 19
      %v426 = vadd.s32 %v390, 19
      %v427 = vadd.s32 %v391, 19
      %v428 = vadd.s32 %v392, 19
      %v429 = vadd.s32 %v393, 19
      %v430 = vadd.s32 %v394, 19
      %v431 = vadd.s32 %v395, 19
      %v432 = vadd.s32 %v396, 19
      %v433 = vadd.s32 %v397, 19
      %v434 = vadd.s32 %v398, 19
      %v435 = vadd.s32 %v399, 19
      %v436 = vadd.s32 %v400, 19
      %v437 = vadd.s32 %v401, 19
      %v438 = vadd.s32 %v402, 19
      %v439 = vadd.s32 %v403, 19
      %v440 = vadd.s32 %v404, 19
      %v441 = vadd.s32 %v405, 19
      %v442 = vadd.s32 %v406, 19
      %v443 = vadd.s32 %v407, 19
      %v444 = vadd.s32 %v408, 19
      %v445 = vadd.s32 %v409, 19
      %v446 = vadd.s32 %v410, 19
      %v447 = vadd.s32 %v411, 19
      %v448 = vadd.s32 %v412, 19
      %v449 = vadd.s32 %v413, 19
      %v450 = vadd.s32 %v414, 19
      %v451 = vadd.s32 %v415, 19
      %v452 = vadd.s32 %v416, 19
      %v453 = vadd.s32 %v417, 19
      %v454 = vadd.s32 %v418, 19
      %v455 = vadd.s32 %v419, 19
      %v456 = vadd.s32 %v420, 19
      %v457 = vadd.s32 %v421, 19
      %v458 = vadd.s32 %v422, 19
      %v459 = vadd.s32 %v423, 19
      %vm460 = vcmp.lt.s32.totalorder %v424, 0
      %v461 = vsub.s32 0, %v424
      %v462 = vsel %vm460, %v461, %v424
      %v463 = vand.u32 %v462, 65535
      %v464 = vshrl.u32 %v462, 16
      %v466 = vmul.u32 %v463, 14564
      %v467 = vmul.u32 %v463, 58254
      %v468 = vmul.u32 %v464, 14564
      %v469 = vmul.u32 %v464, 58254
      %v470 = vshll.u32 %v467, 16
      %v471 = vshrl.u32 %v467, 16
      %v472 = vshll.u32 %v468, 16
      %v473 = vshrl.u32 %v468, 16
      %vm474 = vc.u32 %v466, %v470
      %v475 = vsel %vm474, 1, 0
      %v476 = vadd.s32 %v466, %v470
      %v477 = vadd.s32 %v469, %v475
      %vm478 = vc.u32 %v476, %v472
      %v479 = vsel %vm478, 1, 0
      %v480 = vadd.s32 %v476, %v472
      %v481 = vadd.s32 %v477, %v479
      %v482 = vadd.s32 %v481, %v471
      %v483 = vadd.s32 %v482, %v473
      %v484 = vshrl.u32 %v483, 4
      %v485 = vmul.u32 %v484, 18
      %v486 = vsub.s32 %v462, %v485
      %v487 = vsub.s32 0, %v486
      %v488 = vsel %vm460, %v487, %v486
      %vm489 = vcmp.lt.s32.totalorder %v425, 0
      %v490 = vsub.s32 0, %v425
      %v491 = vsel %vm489, %v490, %v425
      %v492 = vand.u32 %v491, 65535
      %v493 = vshrl.u32 %v491, 16
      %v495 = vmul.u32 %v492, 14564
      %v496 = vmul.u32 %v492, 58254
      %v497 = vmul.u32 %v493, 14564
      %v498 = vmul.u32 %v493, 58254
      %v499 = vshll.u32 %v496, 16
      %v500 = vshrl.u32 %v496, 16
      %v501 = vshll.u32 %v497, 16
      %v502 = vshrl.u32 %v497, 16
      %vm503 = vc.u32 %v495, %v499
      %v504 = vsel %vm503, 1, 0
      %v505 = vadd.s32 %v495, %v499
      %v506 = vadd.s32 %v498, %v504
      %vm507 = vc.u32 %v505, %v501
      %v508 = vsel %vm507, 1, 0
      %v509 = vadd.s32 %v505, %v501
      %v510 = vadd.s32 %v506, %v508
      %v511 = vadd.s32 %v510, %v500
      %v512 = vadd.s32 %v511, %v502
      %v513 = vshrl.u32 %v512, 4
      %v514 = vmul.u32 %v513, 18
      %v515 = vsub.s32 %v491, %v514
      %v516 = vsub.s32 0, %v515
      %v517 = vsel %vm489, %v516, %v515
      %vm518 = vcmp.lt.s32.totalorder %v426, 0
      %v519 = vsub.s32 0, %v426
      %v520 = vsel %vm518, %v519, %v426
      %v521 = vand.u32 %v520, 65535
      %v522 = vshrl.u32 %v520, 16
      %v524 = vmul.u32 %v521, 14564
      %v525 = vmul.u32 %v521, 58254
      %v526 = vmul.u32 %v522, 14564
      %v527 = vmul.u32 %v522, 58254
      %v528 = vshll.u32 %v525, 16
      %v529 = vshrl.u32 %v525, 16
      %v530 = vshll.u32 %v526, 16
      %v531 = vshrl.u32 %v526, 16
      %vm532 = vc.u32 %v524, %v528
      %v533 = vsel %vm532, 1, 0
      %v534 = vadd.s32 %v524, %v528
      %v535 = vadd.s32 %v527, %v533
      %vm536 = vc.u32 %v534, %v530
      %v537 = vsel %vm536, 1, 0
      %v538 = vadd.s32 %v534, %v530
      %v539 = vadd.s32 %v535, %v537
      %v540 = vadd.s32 %v539, %v529
      %v541 = vadd.s32 %v540, %v531
      %v542 = vshrl.u32 %v541, 4
      %v543 = vmul.u32 %v542, 18
      %v544 = vsub.s32 %v520, %v543
      %v545 = vsub.s32 0, %v544
      %v546 = vsel %vm518, %v545, %v544
      %vm547 = vcmp.lt.s32.totalorder %v427, 0
      %v548 = vsub.s32 0, %v427
      %v549 = vsel %vm547, %v548, %v427
      %v550 = vand.u32 %v549, 65535
      %v551 = vshrl.u32 %v549, 16
      %v553 = vmul.u32 %v550, 14564
      %v554 = vmul.u32 %v550, 58254
      %v555 = vmul.u32 %v551, 14564
      %v556 = vmul.u32 %v551, 58254
      %v557 = vshll.u32 %v554, 16
      %v558 = vshrl.u32 %v554, 16
      %v559 = vshll.u32 %v555, 16
      %v560 = vshrl.u32 %v555, 16
      %vm561 = vc.u32 %v553, %v557
      %v562 = vsel %vm561, 1, 0
      %v563 = vadd.s32 %v553, %v557
      %v564 = vadd.s32 %v556, %v562
      %vm565 = vc.u32 %v563, %v559
      %v566 = vsel %vm565, 1, 0
      %v567 = vadd.s32 %v563, %v559
      %v568 = vadd.s32 %v564, %v566
      %v569 = vadd.s32 %v568, %v558
      %v570 = vadd.s32 %v569, %v560
      %v571 = vshrl.u32 %v570, 4
      %v572 = vmul.u32 %v571, 18
      %v573 = vsub.s32 %v549, %v572
      %v574 = vsub.s32 0, %v573
      %v575 = vsel %vm547, %v574, %v573
      %vm576 = vcmp.lt.s32.totalorder %v428, 0
      %v577 = vsub.s32 0, %v428
      %v578 = vsel %vm576, %v577, %v428
      %v579 = vand.u32 %v578, 65535
      %v580 = vshrl.u32 %v578, 16
      %v582 = vmul.u32 %v579, 14564
      %v583 = vmul.u32 %v579, 58254
      %v584 = vmul.u32 %v580, 14564
      %v585 = vmul.u32 %v580, 58254
      %v586 = vshll.u32 %v583, 16
      %v587 = vshrl.u32 %v583, 16
      %v588 = vshll.u32 %v584, 16
      %v589 = vshrl.u32 %v584, 16
      %vm590 = vc.u32 %v582, %v586
      %v591 = vsel %vm590, 1, 0
      %v592 = vadd.s32 %v582, %v586
      %v593 = vadd.s32 %v585, %v591
      %vm594 = vc.u32 %v592, %v588
      %v595 = vsel %vm594, 1, 0
      %v596 = vadd.s32 %v592, %v588
      %v597 = vadd.s32 %v593, %v595
      %v598 = vadd.s32 %v597, %v587
      %v599 = vadd.s32 %v598, %v589
      %v600 = vshrl.u32 %v599, 4
      %v601 = vmul.u32 %v600, 18
      %v602 = vsub.s32 %v578, %v601
      %v603 = vsub.s32 0, %v602
      %v604 = vsel %vm576, %v603, %v602
      %vm605 = vcmp.lt.s32.totalorder %v429, 0
      %v606 = vsub.s32 0, %v429
      %v607 = vsel %vm605, %v606, %v429
      %v608 = vand.u32 %v607, 65535
      %v609 = vshrl.u32 %v607, 16
      %v611 = vmul.u32 %v608, 14564
      %v612 = vmul.u32 %v608, 58254
      %v613 = vmul.u32 %v609, 14564
      %v614 = vmul.u32 %v609, 58254
      %v615 = vshll.u32 %v612, 16
      %v616 = vshrl.u32 %v612, 16
      %v617 = vshll.u32 %v613, 16
      %v618 = vshrl.u32 %v613, 16
      %vm619 = vc.u32 %v611, %v615
      %v620 = vsel %vm619, 1, 0
      %v621 = vadd.s32 %v611, %v615
      %v622 = vadd.s32 %v614, %v620
      %vm623 = vc.u32 %v621, %v617
      %v624 = vsel %vm623, 1, 0
      %v625 = vadd.s32 %v621, %v617
      %v626 = vadd.s32 %v622, %v624
      %v627 = vadd.s32 %v626, %v616
      %v628 = vadd.s32 %v627, %v618
      %v629 = vshrl.u32 %v628, 4
      %v630 = vmul.u32 %v629, 18
      %v631 = vsub.s32 %v607, %v630
      %v632 = vsub.s32 0, %v631
      %v633 = vsel %vm605, %v632, %v631
      %vm634 = vcmp.lt.s32.totalorder %v430, 0
      %v635 = vsub.s32 0, %v430
      %v636 = vsel %vm634, %v635, %v430
      %v637 = vand.u32 %v636, 65535
      %v638 = vshrl.u32 %v636, 16
      %v640 = vmul.u32 %v637, 14564
      %v641 = vmul.u32 %v637, 58254
      %v642 = vmul.u32 %v638, 14564
      %v643 = vmul.u32 %v638, 58254
      %v644 = vshll.u32 %v641, 16
      %v645 = vshrl.u32 %v641, 16
      %v646 = vshll.u32 %v642, 16
      %v647 = vshrl.u32 %v642, 16
      %vm648 = vc.u32 %v640, %v644
      %v649 = vsel %vm648, 1, 0
      %v650 = vadd.s32 %v640, %v644
      %v651 = vadd.s32 %v643, %v649
      %vm652 = vc.u32 %v650, %v646
      %v653 = vsel %vm652, 1, 0
      %v654 = vadd.s32 %v650, %v646
      %v655 = vadd.s32 %v651, %v653
      %v656 = vadd.s32 %v655, %v645
      %v657 = vadd.s32 %v656, %v647
      %v658 = vshrl.u32 %v657, 4
      %v659 = vmul.u32 %v658, 18
      %v660 = vsub.s32 %v636, %v659
      %v661 = vsub.s32 0, %v660
      %v662 = vsel %vm634, %v661, %v660
      %vm663 = vcmp.lt.s32.totalorder %v431, 0
      %v664 = vsub.s32 0, %v431
      %v665 = vsel %vm663, %v664, %v431
      %v666 = vand.u32 %v665, 65535
      %v667 = vshrl.u32 %v665, 16
      %v669 = vmul.u32 %v666, 14564
      %v670 = vmul.u32 %v666, 58254
      %v671 = vmul.u32 %v667, 14564
      %v672 = vmul.u32 %v667, 58254
      %v673 = vshll.u32 %v670, 16
      %v674 = vshrl.u32 %v670, 16
      %v675 = vshll.u32 %v671, 16
      %v676 = vshrl.u32 %v671, 16
      %vm677 = vc.u32 %v669, %v673
      %v678 = vsel %vm677, 1, 0
      %v679 = vadd.s32 %v669, %v673
      %v680 = vadd.s32 %v672, %v678
      %vm681 = vc.u32 %v679, %v675
      %v682 = vsel %vm681, 1, 0
      %v683 = vadd.s32 %v679, %v675
      %v684 = vadd.s32 %v680, %v682
      %v685 = vadd.s32 %v684, %v674
      %v686 = vadd.s32 %v685, %v676
      %v687 = vshrl.u32 %v686, 4
      %v688 = vmul.u32 %v687, 18
      %v689 = vsub.s32 %v665, %v688
      %v690 = vsub.s32 0, %v689
      %v691 = vsel %vm663, %v690, %v689
      %vm692 = vcmp.lt.s32.totalorder %v432, 0
      %v693 = vsub.s32 0, %v432
      %v694 = vsel %vm692, %v693, %v432
      %v695 = vand.u32 %v694, 65535
      %v696 = vshrl.u32 %v694, 16
      %v698 = vmul.u32 %v695, 14564
      %v699 = vmul.u32 %v695, 58254
      %v700 = vmul.u32 %v696, 14564
      %v701 = vmul.u32 %v696, 58254
      %v702 = vshll.u32 %v699, 16
      %v703 = vshrl.u32 %v699, 16
      %v704 = vshll.u32 %v700, 16
      %v705 = vshrl.u32 %v700, 16
      %vm706 = vc.u32 %v698, %v702
      %v707 = vsel %vm706, 1, 0
      %v708 = vadd.s32 %v698, %v702
      %v709 = vadd.s32 %v701, %v707
      %vm710 = vc.u32 %v708, %v704
      %v711 = vsel %vm710, 1, 0
      %v712 = vadd.s32 %v708, %v704
      %v713 = vadd.s32 %v709, %v711
      %v714 = vadd.s32 %v713, %v703
      %v715 = vadd.s32 %v714, %v705
      %v716 = vshrl.u32 %v715, 4
      %v717 = vmul.u32 %v716, 18
      %v718 = vsub.s32 %v694, %v717
      %v719 = vsub.s32 0, %v718
      %v720 = vsel %vm692, %v719, %v718
      %vm721 = vcmp.lt.s32.totalorder %v433, 0
      %v722 = vsub.s32 0, %v433
      %v723 = vsel %vm721, %v722, %v433
      %v724 = vand.u32 %v723, 65535
      %v725 = vshrl.u32 %v723, 16
      %v727 = vmul.u32 %v724, 14564
      %v728 = vmul.u32 %v724, 58254
      %v729 = vmul.u32 %v725, 14564
      %v730 = vmul.u32 %v725, 58254
      %v731 = vshll.u32 %v728, 16
      %v732 = vshrl.u32 %v728, 16
      %v733 = vshll.u32 %v729, 16
      %v734 = vshrl.u32 %v729, 16
      %vm735 = vc.u32 %v727, %v731
      %v736 = vsel %vm735, 1, 0
      %v737 = vadd.s32 %v727, %v731
      %v738 = vadd.s32 %v730, %v736
      %vm739 = vc.u32 %v737, %v733
      %v740 = vsel %vm739, 1, 0
      %v741 = vadd.s32 %v737, %v733
      %v742 = vadd.s32 %v738, %v740
      %v743 = vadd.s32 %v742, %v732
      %v744 = vadd.s32 %v743, %v734
      %v745 = vshrl.u32 %v744, 4
      %v746 = vmul.u32 %v745, 18
      %v747 = vsub.s32 %v723, %v746
      %v748 = vsub.s32 0, %v747
      %v749 = vsel %vm721, %v748, %v747
      %vm750 = vcmp.lt.s32.totalorder %v434, 0
      %v751 = vsub.s32 0, %v434
      %v752 = vsel %vm750, %v751, %v434
      %v753 = vand.u32 %v752, 65535
      %v754 = vshrl.u32 %v752, 16
      %v756 = vmul.u32 %v753, 14564
      %v757 = vmul.u32 %v753, 58254
      %v758 = vmul.u32 %v754, 14564
      %v759 = vmul.u32 %v754, 58254
      %v760 = vshll.u32 %v757, 16
      %v761 = vshrl.u32 %v757, 16
      %v762 = vshll.u32 %v758, 16
      %v763 = vshrl.u32 %v758, 16
      %vm764 = vc.u32 %v756, %v760
      %v765 = vsel %vm764, 1, 0
      %v766 = vadd.s32 %v756, %v760
      %v767 = vadd.s32 %v759, %v765
      %vm768 = vc.u32 %v766, %v762
      %v769 = vsel %vm768, 1, 0
      %v770 = vadd.s32 %v766, %v762
      %v771 = vadd.s32 %v767, %v769
      %v772 = vadd.s32 %v771, %v761
      %v773 = vadd.s32 %v772, %v763
      %v774 = vshrl.u32 %v773, 4
      %v775 = vmul.u32 %v774, 18
      %v776 = vsub.s32 %v752, %v775
      %v777 = vsub.s32 0, %v776
      %v778 = vsel %vm750, %v777, %v776
      %vm779 = vcmp.lt.s32.totalorder %v435, 0
      %v780 = vsub.s32 0, %v435
      %v781 = vsel %vm779, %v780, %v435
      %v782 = vand.u32 %v781, 65535
      %v783 = vshrl.u32 %v781, 16
      %v785 = vmul.u32 %v782, 14564
      %v786 = vmul.u32 %v782, 58254
      %v787 = vmul.u32 %v783, 14564
      %v788 = vmul.u32 %v783, 58254
      %v789 = vshll.u32 %v786, 16
      %v790 = vshrl.u32 %v786, 16
      %v791 = vshll.u32 %v787, 16
      %v792 = vshrl.u32 %v787, 16
      %vm793 = vc.u32 %v785, %v789
      %v794 = vsel %vm793, 1, 0
      %v795 = vadd.s32 %v785, %v789
      %v796 = vadd.s32 %v788, %v794
      %vm797 = vc.u32 %v795, %v791
      %v798 = vsel %vm797, 1, 0
      %v799 = vadd.s32 %v795, %v791
      %v800 = vadd.s32 %v796, %v798
      %v801 = vadd.s32 %v800, %v790
      %v802 = vadd.s32 %v801, %v792
      %v803 = vshrl.u32 %v802, 4
      %v804 = vmul.u32 %v803, 18
      %v805 = vsub.s32 %v781, %v804
      %v806 = vsub.s32 0, %v805
      %v807 = vsel %vm779, %v806, %v805
      %vm808 = vcmp.lt.s32.totalorder %v436, 0
      %v809 = vsub.s32 0, %v436
      %v810 = vsel %vm808, %v809, %v436
      %v811 = vand.u32 %v810, 65535
      %v812 = vshrl.u32 %v810, 16
      %v814 = vmul.u32 %v811, 14564
      %v815 = vmul.u32 %v811, 58254
      %v816 = vmul.u32 %v812, 14564
      %v817 = vmul.u32 %v812, 58254
      %v818 = vshll.u32 %v815, 16
      %v819 = vshrl.u32 %v815, 16
      %v820 = vshll.u32 %v816, 16
      %v821 = vshrl.u32 %v816, 16
      %vm822 = vc.u32 %v814, %v818
      %v823 = vsel %vm822, 1, 0
      %v824 = vadd.s32 %v814, %v818
      %v825 = vadd.s32 %v817, %v823
      %vm826 = vc.u32 %v824, %v820
      %v827 = vsel %vm826, 1, 0
      %v828 = vadd.s32 %v824, %v820
      %v829 = vadd.s32 %v825, %v827
      %v830 = vadd.s32 %v829, %v819
      %v831 = vadd.s32 %v830, %v821
      %v832 = vshrl.u32 %v831, 4
      %v833 = vmul.u32 %v832, 18
      %v834 = vsub.s32 %v810, %v833
      %v835 = vsub.s32 0, %v834
      %v836 = vsel %vm808, %v835, %v834
      %vm837 = vcmp.lt.s32.totalorder %v437, 0
      %v838 = vsub.s32 0, %v437
      %v839 = vsel %vm837, %v838, %v437
      %v840 = vand.u32 %v839, 65535
      %v841 = vshrl.u32 %v839, 16
      %v843 = vmul.u32 %v840, 14564
      %v844 = vmul.u32 %v840, 58254
      %v845 = vmul.u32 %v841, 14564
      %v846 = vmul.u32 %v841, 58254
      %v847 = vshll.u32 %v844, 16
      %v848 = vshrl.u32 %v844, 16
      %v849 = vshll.u32 %v845, 16
      %v850 = vshrl.u32 %v845, 16
      %vm851 = vc.u32 %v843, %v847
      %v852 = vsel %vm851, 1, 0
      %v853 = vadd.s32 %v843, %v847
      %v854 = vadd.s32 %v846, %v852
      %vm855 = vc.u32 %v853, %v849
      %v856 = vsel %vm855, 1, 0
      %v857 = vadd.s32 %v853, %v849
      %v858 = vadd.s32 %v854, %v856
      %v859 = vadd.s32 %v858, %v848
      %v860 = vadd.s32 %v859, %v850
      %v861 = vshrl.u32 %v860, 4
      %v862 = vmul.u32 %v861, 18
      %v863 = vsub.s32 %v839, %v862
      %v864 = vsub.s32 0, %v863
      %v865 = vsel %vm837, %v864, %v863
      %vm866 = vcmp.lt.s32.totalorder %v438, 0
      %v867 = vsub.s32 0, %v438
      %v868 = vsel %vm866, %v867, %v438
      %v869 = vand.u32 %v868, 65535
      %v870 = vshrl.u32 %v868, 16
      %v872 = vmul.u32 %v869, 14564
      %v873 = vmul.u32 %v869, 58254
      %v874 = vmul.u32 %v870, 14564
      %v875 = vmul.u32 %v870, 58254
      %v876 = vshll.u32 %v873, 16
      %v877 = vshrl.u32 %v873, 16
      %v878 = vshll.u32 %v874, 16
      %v879 = vshrl.u32 %v874, 16
      %vm880 = vc.u32 %v872, %v876
      %v881 = vsel %vm880, 1, 0
      %v882 = vadd.s32 %v872, %v876
      %v883 = vadd.s32 %v875, %v881
      %vm884 = vc.u32 %v882, %v878
      %v885 = vsel %vm884, 1, 0
      %v886 = vadd.s32 %v882, %v878
      %v887 = vadd.s32 %v883, %v885
      %v888 = vadd.s32 %v887, %v877
      %v889 = vadd.s32 %v888, %v879
      %v890 = vshrl.u32 %v889, 4
      %v891 = vmul.u32 %v890, 18
      %v892 = vsub.s32 %v868, %v891
      %v893 = vsub.s32 0, %v892
      %v894 = vsel %vm866, %v893, %v892
      %vm895 = vcmp.lt.s32.totalorder %v439, 0
      %v896 = vsub.s32 0, %v439
      %v897 = vsel %vm895, %v896, %v439
      %v898 = vand.u32 %v897, 65535
      %v899 = vshrl.u32 %v897, 16
      %v901 = vmul.u32 %v898, 14564
      %v902 = vmul.u32 %v898, 58254
      %v903 = vmul.u32 %v899, 14564
      %v904 = vmul.u32 %v899, 58254
      %v905 = vshll.u32 %v902, 16
      %v906 = vshrl.u32 %v902, 16
      %v907 = vshll.u32 %v903, 16
      %v908 = vshrl.u32 %v903, 16
      %vm909 = vc.u32 %v901, %v905
      %v910 = vsel %vm909, 1, 0
      %v911 = vadd.s32 %v901, %v905
      %v912 = vadd.s32 %v904, %v910
      %vm913 = vc.u32 %v911, %v907
      %v914 = vsel %vm913, 1, 0
      %v915 = vadd.s32 %v911, %v907
      %v916 = vadd.s32 %v912, %v914
      %v917 = vadd.s32 %v916, %v906
      %v918 = vadd.s32 %v917, %v908
      %v919 = vshrl.u32 %v918, 4
      %v920 = vmul.u32 %v919, 18
      %v921 = vsub.s32 %v897, %v920
      %v922 = vsub.s32 0, %v921
      %v923 = vsel %vm895, %v922, %v921
      %vm924 = vcmp.lt.s32.totalorder %v440, 0
      %v925 = vsub.s32 0, %v440
      %v926 = vsel %vm924, %v925, %v440
      %v927 = vand.u32 %v926, 65535
      %v928 = vshrl.u32 %v926, 16
      %v930 = vmul.u32 %v927, 14564
      %v931 = vmul.u32 %v927, 58254
      %v932 = vmul.u32 %v928, 14564
      %v933 = vmul.u32 %v928, 58254
      %v934 = vshll.u32 %v931, 16
      %v935 = vshrl.u32 %v931, 16
      %v936 = vshll.u32 %v932, 16
      %v937 = vshrl.u32 %v932, 16
      %vm938 = vc.u32 %v930, %v934
      %v939 = vsel %vm938, 1, 0
      %v940 = vadd.s32 %v930, %v934
      %v941 = vadd.s32 %v933, %v939
      %vm942 = vc.u32 %v940, %v936
      %v943 = vsel %vm942, 1, 0
      %v944 = vadd.s32 %v940, %v936
      %v945 = vadd.s32 %v941, %v943
      %v946 = vadd.s32 %v945, %v935
      %v947 = vadd.s32 %v946, %v937
      %v948 = vshrl.u32 %v947, 4
      %v949 = vmul.u32 %v948, 18
      %v950 = vsub.s32 %v926, %v949
      %v951 = vsub.s32 0, %v950
      %v952 = vsel %vm924, %v951, %v950
      %vm953 = vcmp.lt.s32.totalorder %v441, 0
      %v954 = vsub.s32 0, %v441
      %v955 = vsel %vm953, %v954, %v441
      %v956 = vand.u32 %v955, 65535
      %v957 = vshrl.u32 %v955, 16
      %v959 = vmul.u32 %v956, 14564
      %v960 = vmul.u32 %v956, 58254
      %v961 = vmul.u32 %v957, 14564
      %v962 = vmul.u32 %v957, 58254
      %v963 = vshll.u32 %v960, 16
      %v964 = vshrl.u32 %v960, 16
      %v965 = vshll.u32 %v961, 16
      %v966 = vshrl.u32 %v961, 16
      %vm967 = vc.u32 %v959, %v963
      %v968 = vsel %vm967, 1, 0
      %v969 = vadd.s32 %v959, %v963
      %v970 = vadd.s32 %v962, %v968
      %vm971 = vc.u32 %v969, %v965
      %v972 = vsel %vm971, 1, 0
      %v973 = vadd.s32 %v969, %v965
      %v974 = vadd.s32 %v970, %v972
      %v975 = vadd.s32 %v974, %v964
      %v976 = vadd.s32 %v975, %v966
      %v977 = vshrl.u32 %v976, 4
      %v978 = vmul.u32 %v977, 18
      %v979 = vsub.s32 %v955, %v978
      %v980 = vsub.s32 0, %v979
      %v981 = vsel %vm953, %v980, %v979
      %vm982 = vcmp.lt.s32.totalorder %v442, 0
      %v983 = vsub.s32 0, %v442
      %v984 = vsel %vm982, %v983, %v442
      %v985 = vand.u32 %v984, 65535
      %v986 = vshrl.u32 %v984, 16
      %v988 = vmul.u32 %v985, 14564
      %v989 = vmul.u32 %v985, 58254
      %v990 = vmul.u32 %v986, 14564
      %v991 = vmul.u32 %v986, 58254
      %v992 = vshll.u32 %v989, 16
      %v993 = vshrl.u32 %v989, 16
      %v994 = vshll.u32 %v990, 16
      %v995 = vshrl.u32 %v990, 16
      %vm996 = vc.u32 %v988, %v992
      %v997 = vsel %vm996, 1, 0
      %v998 = vadd.s32 %v988, %v992
      %v999 = vadd.s32 %v991, %v997
      %vm1000 = vc.u32 %v998, %v994
      %v1001 = vsel %vm1000, 1, 0
      %v1002 = vadd.s32 %v998, %v994
      %v1003 = vadd.s32 %v999, %v1001
      %v1004 = vadd.s32 %v1003, %v993
      %v1005 = vadd.s32 %v1004, %v995
      %v1006 = vshrl.u32 %v1005, 4
      %v1007 = vmul.u32 %v1006, 18
      %v1008 = vsub.s32 %v984, %v1007
      %v1009 = vsub.s32 0, %v1008
      %v1010 = vsel %vm982, %v1009, %v1008
      %vm1011 = vcmp.lt.s32.totalorder %v443, 0
      %v1012 = vsub.s32 0, %v443
      %v1013 = vsel %vm1011, %v1012, %v443
      %v1014 = vand.u32 %v1013, 65535
      %v1015 = vshrl.u32 %v1013, 16
      %v1017 = vmul.u32 %v1014, 14564
      %v1018 = vmul.u32 %v1014, 58254
      %v1019 = vmul.u32 %v1015, 14564
      %v1020 = vmul.u32 %v1015, 58254
      %v1021 = vshll.u32 %v1018, 16
      %v1022 = vshrl.u32 %v1018, 16
      %v1023 = vshll.u32 %v1019, 16
      %v1024 = vshrl.u32 %v1019, 16
      %vm1025 = vc.u32 %v1017, %v1021
      %v1026 = vsel %vm1025, 1, 0
      %v1027 = vadd.s32 %v1017, %v1021
      %v1028 = vadd.s32 %v1020, %v1026
      %vm1029 = vc.u32 %v1027, %v1023
      %v1030 = vsel %vm1029, 1, 0
      %v1031 = vadd.s32 %v1027, %v1023
      %v1032 = vadd.s32 %v1028, %v1030
      %v1033 = vadd.s32 %v1032, %v1022
      %v1034 = vadd.s32 %v1033, %v1024
      %v1035 = vshrl.u32 %v1034, 4
      %v1036 = vmul.u32 %v1035, 18
      %v1037 = vsub.s32 %v1013, %v1036
      %v1038 = vsub.s32 0, %v1037
      %v1039 = vsel %vm1011, %v1038, %v1037
      %vm1040 = vcmp.lt.s32.totalorder %v444, 0
      %v1041 = vsub.s32 0, %v444
      %v1042 = vsel %vm1040, %v1041, %v444
      %v1043 = vand.u32 %v1042, 65535
      %v1044 = vshrl.u32 %v1042, 16
      %v1046 = vmul.u32 %v1043, 14564
      %v1047 = vmul.u32 %v1043, 58254
      %v1048 = vmul.u32 %v1044, 14564
      %v1049 = vmul.u32 %v1044, 58254
      %v1050 = vshll.u32 %v1047, 16
      %v1051 = vshrl.u32 %v1047, 16
      %v1052 = vshll.u32 %v1048, 16
      %v1053 = vshrl.u32 %v1048, 16
      %vm1054 = vc.u32 %v1046, %v1050
      %v1055 = vsel %vm1054, 1, 0
      %v1056 = vadd.s32 %v1046, %v1050
      %v1057 = vadd.s32 %v1049, %v1055
      %vm1058 = vc.u32 %v1056, %v1052
      %v1059 = vsel %vm1058, 1, 0
      %v1060 = vadd.s32 %v1056, %v1052
      %v1061 = vadd.s32 %v1057, %v1059
      %v1062 = vadd.s32 %v1061, %v1051
      %v1063 = vadd.s32 %v1062, %v1053
      %v1064 = vshrl.u32 %v1063, 4
      %v1065 = vmul.u32 %v1064, 18
      %v1066 = vsub.s32 %v1042, %v1065
      %v1067 = vsub.s32 0, %v1066
      %v1068 = vsel %vm1040, %v1067, %v1066
      %vm1069 = vcmp.lt.s32.totalorder %v445, 0
      %v1070 = vsub.s32 0, %v445
      %v1071 = vsel %vm1069, %v1070, %v445
      %v1072 = vand.u32 %v1071, 65535
      %v1073 = vshrl.u32 %v1071, 16
      %v1075 = vmul.u32 %v1072, 14564
      %v1076 = vmul.u32 %v1072, 58254
      %v1077 = vmul.u32 %v1073, 14564
      %v1078 = vmul.u32 %v1073, 58254
      %v1079 = vshll.u32 %v1076, 16
      %v1080 = vshrl.u32 %v1076, 16
      %v1081 = vshll.u32 %v1077, 16
      %v1082 = vshrl.u32 %v1077, 16
      %vm1083 = vc.u32 %v1075, %v1079
      %v1084 = vsel %vm1083, 1, 0
      %v1085 = vadd.s32 %v1075, %v1079
      %v1086 = vadd.s32 %v1078, %v1084
      %vm1087 = vc.u32 %v1085, %v1081
      %v1088 = vsel %vm1087, 1, 0
      %v1089 = vadd.s32 %v1085, %v1081
      %v1090 = vadd.s32 %v1086, %v1088
      %v1091 = vadd.s32 %v1090, %v1080
      %v1092 = vadd.s32 %v1091, %v1082
      %v1093 = vshrl.u32 %v1092, 4
      %v1094 = vmul.u32 %v1093, 18
      %v1095 = vsub.s32 %v1071, %v1094
      %v1096 = vsub.s32 0, %v1095
      %v1097 = vsel %vm1069, %v1096, %v1095
      %vm1098 = vcmp.lt.s32.totalorder %v446, 0
      %v1099 = vsub.s32 0, %v446
      %v1100 = vsel %vm1098, %v1099, %v446
      %v1101 = vand.u32 %v1100, 65535
      %v1102 = vshrl.u32 %v1100, 16
      %v1104 = vmul.u32 %v1101, 14564
      %v1105 = vmul.u32 %v1101, 58254
      %v1106 = vmul.u32 %v1102, 14564
      %v1107 = vmul.u32 %v1102, 58254
      %v1108 = vshll.u32 %v1105, 16
      %v1109 = vshrl.u32 %v1105, 16
      %v1110 = vshll.u32 %v1106, 16
      %v1111 = vshrl.u32 %v1106, 16
      %vm1112 = vc.u32 %v1104, %v1108
      %v1113 = vsel %vm1112, 1, 0
      %v1114 = vadd.s32 %v1104, %v1108
      %v1115 = vadd.s32 %v1107, %v1113
      %vm1116 = vc.u32 %v1114, %v1110
      %v1117 = vsel %vm1116, 1, 0
      %v1118 = vadd.s32 %v1114, %v1110
      %v1119 = vadd.s32 %v1115, %v1117
      %v1120 = vadd.s32 %v1119, %v1109
      %v1121 = vadd.s32 %v1120, %v1111
      %v1122 = vshrl.u32 %v1121, 4
      %v1123 = vmul.u32 %v1122, 18
      %v1124 = vsub.s32 %v1100, %v1123
      %v1125 = vsub.s32 0, %v1124
      %v1126 = vsel %vm1098, %v1125, %v1124
      %vm1127 = vcmp.lt.s32.totalorder %v447, 0
      %v1128 = vsub.s32 0, %v447
      %v1129 = vsel %vm1127, %v1128, %v447
      %v1130 = vand.u32 %v1129, 65535
      %v1131 = vshrl.u32 %v1129, 16
      %v1133 = vmul.u32 %v1130, 14564
      %v1134 = vmul.u32 %v1130, 58254
      %v1135 = vmul.u32 %v1131, 14564
      %v1136 = vmul.u32 %v1131, 58254
      %v1137 = vshll.u32 %v1134, 16
      %v1138 = vshrl.u32 %v1134, 16
      %v1139 = vshll.u32 %v1135, 16
      %v1140 = vshrl.u32 %v1135, 16
      %vm1141 = vc.u32 %v1133, %v1137
      %v1142 = vsel %vm1141, 1, 0
      %v1143 = vadd.s32 %v1133, %v1137
      %v1144 = vadd.s32 %v1136, %v1142
      %vm1145 = vc.u32 %v1143, %v1139
      %v1146 = vsel %vm1145, 1, 0
      %v1147 = vadd.s32 %v1143, %v1139
      %v1148 = vadd.s32 %v1144, %v1146
      %v1149 = vadd.s32 %v1148, %v1138
      %v1150 = vadd.s32 %v1149, %v1140
      %v1151 = vshrl.u32 %v1150, 4
      %v1152 = vmul.u32 %v1151, 18
      %v1153 = vsub.s32 %v1129, %v1152
      %v1154 = vsub.s32 0, %v1153
      %v1155 = vsel %vm1127, %v1154, %v1153
      %vm1156 = vcmp.lt.s32.totalorder %v448, 0
      %v1157 = vsub.s32 0, %v448
      %v1158 = vsel %vm1156, %v1157, %v448
      %v1159 = vand.u32 %v1158, 65535
      %v1160 = vshrl.u32 %v1158, 16
      %v1162 = vmul.u32 %v1159, 14564
      %v1163 = vmul.u32 %v1159, 58254
      %v1164 = vmul.u32 %v1160, 14564
      %v1165 = vmul.u32 %v1160, 58254
      %v1166 = vshll.u32 %v1163, 16
      %v1167 = vshrl.u32 %v1163, 16
      %v1168 = vshll.u32 %v1164, 16
      %v1169 = vshrl.u32 %v1164, 16
      %vm1170 = vc.u32 %v1162, %v1166
      %v1171 = vsel %vm1170, 1, 0
      %v1172 = vadd.s32 %v1162, %v1166
      %v1173 = vadd.s32 %v1165, %v1171
      %vm1174 = vc.u32 %v1172, %v1168
      %v1175 = vsel %vm1174, 1, 0
      %v1176 = vadd.s32 %v1172, %v1168
      %v1177 = vadd.s32 %v1173, %v1175
      %v1178 = vadd.s32 %v1177, %v1167
      %v1179 = vadd.s32 %v1178, %v1169
      %v1180 = vshrl.u32 %v1179, 4
      %v1181 = vmul.u32 %v1180, 18
      %v1182 = vsub.s32 %v1158, %v1181
      %v1183 = vsub.s32 0, %v1182
      %v1184 = vsel %vm1156, %v1183, %v1182
      %vm1185 = vcmp.lt.s32.totalorder %v449, 0
      %v1186 = vsub.s32 0, %v449
      %v1187 = vsel %vm1185, %v1186, %v449
      %v1188 = vand.u32 %v1187, 65535
      %v1189 = vshrl.u32 %v1187, 16
      %v1191 = vmul.u32 %v1188, 14564
      %v1192 = vmul.u32 %v1188, 58254
      %v1193 = vmul.u32 %v1189, 14564
      %v1194 = vmul.u32 %v1189, 58254
      %v1195 = vshll.u32 %v1192, 16
      %v1196 = vshrl.u32 %v1192, 16
      %v1197 = vshll.u32 %v1193, 16
      %v1198 = vshrl.u32 %v1193, 16
      %vm1199 = vc.u32 %v1191, %v1195
      %v1200 = vsel %vm1199, 1, 0
      %v1201 = vadd.s32 %v1191, %v1195
      %v1202 = vadd.s32 %v1194, %v1200
      %vm1203 = vc.u32 %v1201, %v1197
      %v1204 = vsel %vm1203, 1, 0
      %v1205 = vadd.s32 %v1201, %v1197
      %v1206 = vadd.s32 %v1202, %v1204
      %v1207 = vadd.s32 %v1206, %v1196
      %v1208 = vadd.s32 %v1207, %v1198
      %v1209 = vshrl.u32 %v1208, 4
      %v1210 = vmul.u32 %v1209, 18
      %v1211 = vsub.s32 %v1187, %v1210
      %v1212 = vsub.s32 0, %v1211
      %v1213 = vsel %vm1185, %v1212, %v1211
      %vm1214 = vcmp.lt.s32.totalorder %v450, 0
      %v1215 = vsub.s32 0, %v450
      %v1216 = vsel %vm1214, %v1215, %v450
      %v1217 = vand.u32 %v1216, 65535
      %v1218 = vshrl.u32 %v1216, 16
      %v1220 = vmul.u32 %v1217, 14564
      %v1221 = vmul.u32 %v1217, 58254
      %v1222 = vmul.u32 %v1218, 14564
      %v1223 = vmul.u32 %v1218, 58254
      %v1224 = vshll.u32 %v1221, 16
      %v1225 = vshrl.u32 %v1221, 16
      %v1226 = vshll.u32 %v1222, 16
      %v1227 = vshrl.u32 %v1222, 16
      %vm1228 = vc.u32 %v1220, %v1224
      %v1229 = vsel %vm1228, 1, 0
      %v1230 = vadd.s32 %v1220, %v1224
      %v1231 = vadd.s32 %v1223, %v1229
      %vm1232 = vc.u32 %v1230, %v1226
      %v1233 = vsel %vm1232, 1, 0
      %v1234 = vadd.s32 %v1230, %v1226
      %v1235 = vadd.s32 %v1231, %v1233
      %v1236 = vadd.s32 %v1235, %v1225
      %v1237 = vadd.s32 %v1236, %v1227
      %v1238 = vshrl.u32 %v1237, 4
      %v1239 = vmul.u32 %v1238, 18
      %v1240 = vsub.s32 %v1216, %v1239
      %v1241 = vsub.s32 0, %v1240
      %v1242 = vsel %vm1214, %v1241, %v1240
      %vm1243 = vcmp.lt.s32.totalorder %v451, 0
      %v1244 = vsub.s32 0, %v451
      %v1245 = vsel %vm1243, %v1244, %v451
      %v1246 = vand.u32 %v1245, 65535
      %v1247 = vshrl.u32 %v1245, 16
      %v1249 = vmul.u32 %v1246, 14564
      %v1250 = vmul.u32 %v1246, 58254
      %v1251 = vmul.u32 %v1247, 14564
      %v1252 = vmul.u32 %v1247, 58254
      %v1253 = vshll.u32 %v1250, 16
      %v1254 = vshrl.u32 %v1250, 16
      %v1255 = vshll.u32 %v1251, 16
      %v1256 = vshrl.u32 %v1251, 16
      %vm1257 = vc.u32 %v1249, %v1253
      %v1258 = vsel %vm1257, 1, 0
      %v1259 = vadd.s32 %v1249, %v1253
      %v1260 = vadd.s32 %v1252, %v1258
      %vm1261 = vc.u32 %v1259, %v1255
      %v1262 = vsel %vm1261, 1, 0
      %v1263 = vadd.s32 %v1259, %v1255
      %v1264 = vadd.s32 %v1260, %v1262
      %v1265 = vadd.s32 %v1264, %v1254
      %v1266 = vadd.s32 %v1265, %v1256
      %v1267 = vshrl.u32 %v1266, 4
      %v1268 = vmul.u32 %v1267, 18
      %v1269 = vsub.s32 %v1245, %v1268
      %v1270 = vsub.s32 0, %v1269
      %v1271 = vsel %vm1243, %v1270, %v1269
      %vm1272 = vcmp.lt.s32.totalorder %v452, 0
      %v1273 = vsub.s32 0, %v452
      %v1274 = vsel %vm1272, %v1273, %v452
      %v1275 = vand.u32 %v1274, 65535
      %v1276 = vshrl.u32 %v1274, 16
      %v1278 = vmul.u32 %v1275, 14564
      %v1279 = vmul.u32 %v1275, 58254
      %v1280 = vmul.u32 %v1276, 14564
      %v1281 = vmul.u32 %v1276, 58254
      %v1282 = vshll.u32 %v1279, 16
      %v1283 = vshrl.u32 %v1279, 16
      %v1284 = vshll.u32 %v1280, 16
      %v1285 = vshrl.u32 %v1280, 16
      %vm1286 = vc.u32 %v1278, %v1282
      %v1287 = vsel %vm1286, 1, 0
      %v1288 = vadd.s32 %v1278, %v1282
      %v1289 = vadd.s32 %v1281, %v1287
      %vm1290 = vc.u32 %v1288, %v1284
      %v1291 = vsel %vm1290, 1, 0
      %v1292 = vadd.s32 %v1288, %v1284
      %v1293 = vadd.s32 %v1289, %v1291
      %v1294 = vadd.s32 %v1293, %v1283
      %v1295 = vadd.s32 %v1294, %v1285
      %v1296 = vshrl.u32 %v1295, 4
      %v1297 = vmul.u32 %v1296, 18
      %v1298 = vsub.s32 %v1274, %v1297
      %v1299 = vsub.s32 0, %v1298
      %v1300 = vsel %vm1272, %v1299, %v1298
      %vm1301 = vcmp.lt.s32.totalorder %v453, 0
      %v1302 = vsub.s32 0, %v453
      %v1303 = vsel %vm1301, %v1302, %v453
      %v1304 = vand.u32 %v1303, 65535
      %v1305 = vshrl.u32 %v1303, 16
      %v1307 = vmul.u32 %v1304, 14564
      %v1308 = vmul.u32 %v1304, 58254
      %v1309 = vmul.u32 %v1305, 14564
      %v1310 = vmul.u32 %v1305, 58254
      %v1311 = vshll.u32 %v1308, 16
      %v1312 = vshrl.u32 %v1308, 16
      %v1313 = vshll.u32 %v1309, 16
      %v1314 = vshrl.u32 %v1309, 16
      %vm1315 = vc.u32 %v1307, %v1311
      %v1316 = vsel %vm1315, 1, 0
      %v1317 = vadd.s32 %v1307, %v1311
      %v1318 = vadd.s32 %v1310, %v1316
      %vm1319 = vc.u32 %v1317, %v1313
      %v1320 = vsel %vm1319, 1, 0
      %v1321 = vadd.s32 %v1317, %v1313
      %v1322 = vadd.s32 %v1318, %v1320
      %v1323 = vadd.s32 %v1322, %v1312
      %v1324 = vadd.s32 %v1323, %v1314
      %v1325 = vshrl.u32 %v1324, 4
      %v1326 = vmul.u32 %v1325, 18
      %v1327 = vsub.s32 %v1303, %v1326
      %v1328 = vsub.s32 0, %v1327
      %v1329 = vsel %vm1301, %v1328, %v1327
      %vm1330 = vcmp.lt.s32.totalorder %v454, 0
      %v1331 = vsub.s32 0, %v454
      %v1332 = vsel %vm1330, %v1331, %v454
      %v1333 = vand.u32 %v1332, 65535
      %v1334 = vshrl.u32 %v1332, 16
      %v1336 = vmul.u32 %v1333, 14564
      %v1337 = vmul.u32 %v1333, 58254
      %v1338 = vmul.u32 %v1334, 14564
      %v1339 = vmul.u32 %v1334, 58254
      %v1340 = vshll.u32 %v1337, 16
      %v1341 = vshrl.u32 %v1337, 16
      %v1342 = vshll.u32 %v1338, 16
      %v1343 = vshrl.u32 %v1338, 16
      %vm1344 = vc.u32 %v1336, %v1340
      %v1345 = vsel %vm1344, 1, 0
      %v1346 = vadd.s32 %v1336, %v1340
      %v1347 = vadd.s32 %v1339, %v1345
      %vm1348 = vc.u32 %v1346, %v1342
      %v1349 = vsel %vm1348, 1, 0
      %v1350 = vadd.s32 %v1346, %v1342
      %v1351 = vadd.s32 %v1347, %v1349
      %v1352 = vadd.s32 %v1351, %v1341
      %v1353 = vadd.s32 %v1352, %v1343
      %v1354 = vshrl.u32 %v1353, 4
      %v1355 = vmul.u32 %v1354, 18
      %v1356 = vsub.s32 %v1332, %v1355
      %v1357 = vsub.s32 0, %v1356
      %v1358 = vsel %vm1330, %v1357, %v1356
      %vm1359 = vcmp.lt.s32.totalorder %v455, 0
      %v1360 = vsub.s32 0, %v455
      %v1361 = vsel %vm1359, %v1360, %v455
      %v1362 = vand.u32 %v1361, 65535
      %v1363 = vshrl.u32 %v1361, 16
      %v1365 = vmul.u32 %v1362, 14564
      %v1366 = vmul.u32 %v1362, 58254
      %v1367 = vmul.u32 %v1363, 14564
      %v1368 = vmul.u32 %v1363, 58254
      %v1369 = vshll.u32 %v1366, 16
      %v1370 = vshrl.u32 %v1366, 16
      %v1371 = vshll.u32 %v1367, 16
      %v1372 = vshrl.u32 %v1367, 16
      %vm1373 = vc.u32 %v1365, %v1369
      %v1374 = vsel %vm1373, 1, 0
      %v1375 = vadd.s32 %v1365, %v1369
      %v1376 = vadd.s32 %v1368, %v1374
      %vm1377 = vc.u32 %v1375, %v1371
      %v1378 = vsel %vm1377, 1, 0
      %v1379 = vadd.s32 %v1375, %v1371
      %v1380 = vadd.s32 %v1376, %v1378
      %v1381 = vadd.s32 %v1380, %v1370
      %v1382 = vadd.s32 %v1381, %v1372
      %v1383 = vshrl.u32 %v1382, 4
      %v1384 = vmul.u32 %v1383, 18
      %v1385 = vsub.s32 %v1361, %v1384
      %v1386 = vsub.s32 0, %v1385
      %v1387 = vsel %vm1359, %v1386, %v1385
      %vm1388 = vcmp.lt.s32.totalorder %v456, 0
      %v1389 = vsub.s32 0, %v456
      %v1390 = vsel %vm1388, %v1389, %v456
      %v1391 = vand.u32 %v1390, 65535
      %v1392 = vshrl.u32 %v1390, 16
      %v1394 = vmul.u32 %v1391, 14564
      %v1395 = vmul.u32 %v1391, 58254
      %v1396 = vmul.u32 %v1392, 14564
      %v1397 = vmul.u32 %v1392, 58254
      %v1398 = vshll.u32 %v1395, 16
      %v1399 = vshrl.u32 %v1395, 16
      %v1400 = vshll.u32 %v1396, 16
      %v1401 = vshrl.u32 %v1396, 16
      %vm1402 = vc.u32 %v1394, %v1398
      %v1403 = vsel %vm1402, 1, 0
      %v1404 = vadd.s32 %v1394, %v1398
      %v1405 = vadd.s32 %v1397, %v1403
      %vm1406 = vc.u32 %v1404, %v1400
      %v1407 = vsel %vm1406, 1, 0
      %v1408 = vadd.s32 %v1404, %v1400
      %v1409 = vadd.s32 %v1405, %v1407
      %v1410 = vadd.s32 %v1409, %v1399
      %v1411 = vadd.s32 %v1410, %v1401
      %v1412 = vshrl.u32 %v1411, 4
      %v1413 = vmul.u32 %v1412, 18
      %v1414 = vsub.s32 %v1390, %v1413
      %v1415 = vsub.s32 0, %v1414
      %v1416 = vsel %vm1388, %v1415, %v1414
      %vm1417 = vcmp.lt.s32.totalorder %v457, 0
      %v1418 = vsub.s32 0, %v457
      %v1419 = vsel %vm1417, %v1418, %v457
      %v1420 = vand.u32 %v1419, 65535
      %v1421 = vshrl.u32 %v1419, 16
      %v1423 = vmul.u32 %v1420, 14564
      %v1424 = vmul.u32 %v1420, 58254
      %v1425 = vmul.u32 %v1421, 14564
      %v1426 = vmul.u32 %v1421, 58254
      %v1427 = vshll.u32 %v1424, 16
      %v1428 = vshrl.u32 %v1424, 16
      %v1429 = vshll.u32 %v1425, 16
      %v1430 = vshrl.u32 %v1425, 16
      %vm1431 = vc.u32 %v1423, %v1427
      %v1432 = vsel %vm1431, 1, 0
      %v1433 = vadd.s32 %v1423, %v1427
      %v1434 = vadd.s32 %v1426, %v1432
      %vm1435 = vc.u32 %v1433, %v1429
      %v1436 = vsel %vm1435, 1, 0
      %v1437 = vadd.s32 %v1433, %v1429
      %v1438 = vadd.s32 %v1434, %v1436
      %v1439 = vadd.s32 %v1438, %v1428
      %v1440 = vadd.s32 %v1439, %v1430
      %v1441 = vshrl.u32 %v1440, 4
      %v1442 = vmul.u32 %v1441, 18
      %v1443 = vsub.s32 %v1419, %v1442
      %v1444 = vsub.s32 0, %v1443
      %v1445 = vsel %vm1417, %v1444, %v1443
      %vm1446 = vcmp.lt.s32.totalorder %v458, 0
      %v1447 = vsub.s32 0, %v458
      %v1448 = vsel %vm1446, %v1447, %v458
      %v1449 = vand.u32 %v1448, 65535
      %v1450 = vshrl.u32 %v1448, 16
      %v1452 = vmul.u32 %v1449, 14564
      %v1453 = vmul.u32 %v1449, 58254
      %v1454 = vmul.u32 %v1450, 14564
      %v1455 = vmul.u32 %v1450, 58254
      %v1456 = vshll.u32 %v1453, 16
      %v1457 = vshrl.u32 %v1453, 16
      %v1458 = vshll.u32 %v1454, 16
      %v1459 = vshrl.u32 %v1454, 16
      %vm1460 = vc.u32 %v1452, %v1456
      %v1461 = vsel %vm1460, 1, 0
      %v1462 = vadd.s32 %v1452, %v1456
      %v1463 = vadd.s32 %v1455, %v1461
      %vm1464 = vc.u32 %v1462, %v1458
      %v1465 = vsel %vm1464, 1, 0
      %v1466 = vadd.s32 %v1462, %v1458
      %v1467 = vadd.s32 %v1463, %v1465
      %v1468 = vadd.s32 %v1467, %v1457
      %v1469 = vadd.s32 %v1468, %v1459
      %v1470 = vshrl.u32 %v1469, 4
      %v1471 = vmul.u32 %v1470, 18
      %v1472 = vsub.s32 %v1448, %v1471
      %v1473 = vsub.s32 0, %v1472
      %v1474 = vsel %vm1446, %v1473, %v1472
      %vm1475 = vcmp.lt.s32.totalorder %v459, 0
      %v1476 = vsub.s32 0, %v459
      %v1477 = vsel %vm1475, %v1476, %v459
      %v1478 = vand.u32 %v1477, 65535
      %v1479 = vshrl.u32 %v1477, 16
      %v1481 = vmul.u32 %v1478, 14564
      %v1482 = vmul.u32 %v1478, 58254
      %v1483 = vmul.u32 %v1479, 14564
      %v1484 = vmul.u32 %v1479, 58254
      %v1485 = vshll.u32 %v1482, 16
      %v1486 = vshrl.u32 %v1482, 16
      %v1487 = vshll.u32 %v1483, 16
      %v1488 = vshrl.u32 %v1483, 16
      %vm1489 = vc.u32 %v1481, %v1485
      %v1490 = vsel %vm1489, 1, 0
      %v1491 = vadd.s32 %v1481, %v1485
      %v1492 = vadd.s32 %v1484, %v1490
      %vm1493 = vc.u32 %v1491, %v1487
      %v1494 = vsel %vm1493, 1, 0
      %v1495 = vadd.s32 %v1491, %v1487
      %v1496 = vadd.s32 %v1492, %v1494
      %v1497 = vadd.s32 %v1496, %v1486
      %v1498 = vadd.s32 %v1497, %v1488
      %v1499 = vshrl.u32 %v1498, 4
      %v1500 = vmul.u32 %v1499, 18
      %v1501 = vsub.s32 %v1477, %v1500
      %v1502 = vsub.s32 0, %v1501
      %v1503 = vsel %vm1475, %v1502, %v1501
      %vm1504 = vcmp.ne.s32.totalorder %v488, 0
      %vm1505 = vcmp.ne.s32.totalorder %v517, 0
      %vm1506 = vcmp.ne.s32.totalorder %v546, 0
      %vm1507 = vcmp.ne.s32.totalorder %v575, 0
      %vm1508 = vcmp.ne.s32.totalorder %v604, 0
      %vm1509 = vcmp.ne.s32.totalorder %v633, 0
      %vm1510 = vcmp.ne.s32.totalorder %v662, 0
      %vm1511 = vcmp.ne.s32.totalorder %v691, 0
      %vm1512 = vcmp.ne.s32.totalorder %v720, 0
      %vm1513 = vcmp.ne.s32.totalorder %v749, 0
      %vm1514 = vcmp.ne.s32.totalorder %v778, 0
      %vm1515 = vcmp.ne.s32.totalorder %v807, 0
      %vm1516 = vcmp.ne.s32.totalorder %v836, 0
      %vm1517 = vcmp.ne.s32.totalorder %v865, 0
      %vm1518 = vcmp.ne.s32.totalorder %v894, 0
      %vm1519 = vcmp.ne.s32.totalorder %v923, 0
      %vm1520 = vcmp.ne.s32.totalorder %v952, 0
      %vm1521 = vcmp.ne.s32.totalorder %v981, 0
      %vm1522 = vcmp.ne.s32.totalorder %v1010, 0
      %vm1523 = vcmp.ne.s32.totalorder %v1039, 0
      %vm1524 = vcmp.ne.s32.totalorder %v1068, 0
      %vm1525 = vcmp.ne.s32.totalorder %v1097, 0
      %vm1526 = vcmp.ne.s32.totalorder %v1126, 0
      %vm1527 = vcmp.ne.s32.totalorder %v1155, 0
      %vm1528 = vcmp.ne.s32.totalorder %v1184, 0
      %vm1529 = vcmp.ne.s32.totalorder %v1213, 0
      %vm1530 = vcmp.ne.s32.totalorder %v1242, 0
      %vm1531 = vcmp.ne.s32.totalorder %v1271, 0
      %vm1532 = vcmp.ne.s32.totalorder %v1300, 0
      %vm1533 = vcmp.ne.s32.totalorder %v1329, 0
      %vm1534 = vcmp.ne.s32.totalorder %v1358, 0
      %vm1535 = vcmp.ne.s32.totalorder %v1387, 0
      %vm1536 = vcmp.ne.s32.totalorder %v1416, 0
      %vm1537 = vcmp.ne.s32.totalorder %v1445, 0
      %vm1538 = vcmp.ne.s32.totalorder %v1474, 0
      %vm1539 = vcmp.ne.s32.totalorder %v1503, 0
      %vm1540 = vcmp.lt.s32.totalorder %v488, 0
      %vm1541 = vcmp.lt.s32.totalorder %v517, 0
      %vm1542 = vcmp.lt.s32.totalorder %v546, 0
      %vm1543 = vcmp.lt.s32.totalorder %v575, 0
      %vm1544 = vcmp.lt.s32.totalorder %v604, 0
      %vm1545 = vcmp.lt.s32.totalorder %v633, 0
      %vm1546 = vcmp.lt.s32.totalorder %v662, 0
      %vm1547 = vcmp.lt.s32.totalorder %v691, 0
      %vm1548 = vcmp.lt.s32.totalorder %v720, 0
      %vm1549 = vcmp.lt.s32.totalorder %v749, 0
      %vm1550 = vcmp.lt.s32.totalorder %v778, 0
      %vm1551 = vcmp.lt.s32.totalorder %v807, 0
      %vm1552 = vcmp.lt.s32.totalorder %v836, 0
      %vm1553 = vcmp.lt.s32.totalorder %v865, 0
      %vm1554 = vcmp.lt.s32.totalorder %v894, 0
      %vm1555 = vcmp.lt.s32.totalorder %v923, 0
      %vm1556 = vcmp.lt.s32.totalorder %v952, 0
      %vm1557 = vcmp.lt.s32.totalorder %v981, 0
      %vm1558 = vcmp.lt.s32.totalorder %v1010, 0
      %vm1559 = vcmp.lt.s32.totalorder %v1039, 0
      %vm1560 = vcmp.lt.s32.totalorder %v1068, 0
      %vm1561 = vcmp.lt.s32.totalorder %v1097, 0
      %vm1562 = vcmp.lt.s32.totalorder %v1126, 0
      %vm1563 = vcmp.lt.s32.totalorder %v1155, 0
      %vm1564 = vcmp.lt.s32.totalorder %v1184, 0
      %vm1565 = vcmp.lt.s32.totalorder %v1213, 0
      %vm1566 = vcmp.lt.s32.totalorder %v1242, 0
      %vm1567 = vcmp.lt.s32.totalorder %v1271, 0
      %vm1568 = vcmp.lt.s32.totalorder %v1300, 0
      %vm1569 = vcmp.lt.s32.totalorder %v1329, 0
      %vm1570 = vcmp.lt.s32.totalorder %v1358, 0
      %vm1571 = vcmp.lt.s32.totalorder %v1387, 0
      %vm1572 = vcmp.lt.s32.totalorder %v1416, 0
      %vm1573 = vcmp.lt.s32.totalorder %v1445, 0
      %vm1574 = vcmp.lt.s32.totalorder %v1474, 0
      %vm1575 = vcmp.lt.s32.totalorder %v1503, 0
      %vm1576 = vmand %vm1540, %vm1504
      %vm1577 = vmand %vm1541, %vm1505
      %vm1578 = vmand %vm1542, %vm1506
      %vm1579 = vmand %vm1543, %vm1507
      %vm1580 = vmand %vm1544, %vm1508
      %vm1581 = vmand %vm1545, %vm1509
      %vm1582 = vmand %vm1546, %vm1510
      %vm1583 = vmand %vm1547, %vm1511
      %vm1584 = vmand %vm1548, %vm1512
      %vm1585 = vmand %vm1549, %vm1513
      %vm1586 = vmand %vm1550, %vm1514
      %vm1587 = vmand %vm1551, %vm1515
      %vm1588 = vmand %vm1552, %vm1516
      %vm1589 = vmand %vm1553, %vm1517
      %vm1590 = vmand %vm1554, %vm1518
      %vm1591 = vmand %vm1555, %vm1519
      %vm1592 = vmand %vm1556, %vm1520
      %vm1593 = vmand %vm1557, %vm1521
      %vm1594 = vmand %vm1558, %vm1522
      %vm1595 = vmand %vm1559, %vm1523
      %vm1596 = vmand %vm1560, %vm1524
      %vm1597 = vmand %vm1561, %vm1525
      %vm1598 = vmand %vm1562, %vm1526
      %vm1599 = vmand %vm1563, %vm1527
      %vm1600 = vmand %vm1564, %vm1528
      %vm1601 = vmand %vm1565, %vm1529
      %vm1602 = vmand %vm1566, %vm1530
      %vm1603 = vmand %vm1567, %vm1531
      %vm1604 = vmand %vm1568, %vm1532
      %vm1605 = vmand %vm1569, %vm1533
      %vm1606 = vmand %vm1570, %vm1534
      %vm1607 = vmand %vm1571, %vm1535
      %vm1608 = vmand %vm1572, %vm1536
      %vm1609 = vmand %vm1573, %vm1537
      %vm1610 = vmand %vm1574, %vm1538
      %vm1611 = vmand %vm1575, %vm1539
      %v1612 = vadd.s32 %v488, 18
      %v1613 = vadd.s32 %v517, 18
      %v1614 = vadd.s32 %v546, 18
      %v1615 = vadd.s32 %v575, 18
      %v1616 = vadd.s32 %v604, 18
      %v1617 = vadd.s32 %v633, 18
      %v1618 = vadd.s32 %v662, 18
      %v1619 = vadd.s32 %v691, 18
      %v1620 = vadd.s32 %v720, 18
      %v1621 = vadd.s32 %v749, 18
      %v1622 = vadd.s32 %v778, 18
      %v1623 = vadd.s32 %v807, 18
      %v1624 = vadd.s32 %v836, 18
      %v1625 = vadd.s32 %v865, 18
      %v1626 = vadd.s32 %v894, 18
      %v1627 = vadd.s32 %v923, 18
      %v1628 = vadd.s32 %v952, 18
      %v1629 = vadd.s32 %v981, 18
      %v1630 = vadd.s32 %v1010, 18
      %v1631 = vadd.s32 %v1039, 18
      %v1632 = vadd.s32 %v1068, 18
      %v1633 = vadd.s32 %v1097, 18
      %v1634 = vadd.s32 %v1126, 18
      %v1635 = vadd.s32 %v1155, 18
      %v1636 = vadd.s32 %v1184, 18
      %v1637 = vadd.s32 %v1213, 18
      %v1638 = vadd.s32 %v1242, 18
      %v1639 = vadd.s32 %v1271, 18
      %v1640 = vadd.s32 %v1300, 18
      %v1641 = vadd.s32 %v1329, 18
      %v1642 = vadd.s32 %v1358, 18
      %v1643 = vadd.s32 %v1387, 18
      %v1644 = vadd.s32 %v1416, 18
      %v1645 = vadd.s32 %v1445, 18
      %v1646 = vadd.s32 %v1474, 18
      %v1647 = vadd.s32 %v1503, 18
      %v1648 = vsel %vm1576, %v1612, %v488
      %v1649 = vsel %vm1577, %v1613, %v517
      %v1650 = vsel %vm1578, %v1614, %v546
      %v1651 = vsel %vm1579, %v1615, %v575
      %v1652 = vsel %vm1580, %v1616, %v604
      %v1653 = vsel %vm1581, %v1617, %v633
      %v1654 = vsel %vm1582, %v1618, %v662
      %v1655 = vsel %vm1583, %v1619, %v691
      %v1656 = vsel %vm1584, %v1620, %v720
      %v1657 = vsel %vm1585, %v1621, %v749
      %v1658 = vsel %vm1586, %v1622, %v778
      %v1659 = vsel %vm1587, %v1623, %v807
      %v1660 = vsel %vm1588, %v1624, %v836
      %v1661 = vsel %vm1589, %v1625, %v865
      %v1662 = vsel %vm1590, %v1626, %v894
      %v1663 = vsel %vm1591, %v1627, %v923
      %v1664 = vsel %vm1592, %v1628, %v952
      %v1665 = vsel %vm1593, %v1629, %v981
      %v1666 = vsel %vm1594, %v1630, %v1010
      %v1667 = vsel %vm1595, %v1631, %v1039
      %v1668 = vsel %vm1596, %v1632, %v1068
      %v1669 = vsel %vm1597, %v1633, %v1097
      %v1670 = vsel %vm1598, %v1634, %v1126
      %v1671 = vsel %vm1599, %v1635, %v1155
      %v1672 = vsel %vm1600, %v1636, %v1184
      %v1673 = vsel %vm1601, %v1637, %v1213
      %v1674 = vsel %vm1602, %v1638, %v1242
      %v1675 = vsel %vm1603, %v1639, %v1271
      %v1676 = vsel %vm1604, %v1640, %v1300
      %v1677 = vsel %vm1605, %v1641, %v1329
      %v1678 = vsel %vm1606, %v1642, %v1358
      %v1679 = vsel %vm1607, %v1643, %v1387
      %v1680 = vsel %vm1608, %v1644, %v1416
      %v1681 = vsel %vm1609, %v1645, %v1445
      %v1682 = vsel %vm1610, %v1646, %v1474
      %v1683 = vsel %vm1611, %v1647, %v1503
      %vm1684 = vcmp.ge.s32.totalorder %v1648, 1
      %vm1685 = vcmp.ge.s32.totalorder %v1649, 1
      %vm1686 = vcmp.ge.s32.totalorder %v1650, 1
      %vm1687 = vcmp.ge.s32.totalorder %v1651, 1
      %vm1688 = vcmp.ge.s32.totalorder %v1652, 1
      %vm1689 = vcmp.ge.s32.totalorder %v1653, 1
      %vm1690 = vcmp.ge.s32.totalorder %v1654, 1
      %vm1691 = vcmp.ge.s32.totalorder %v1655, 1
      %vm1692 = vcmp.ge.s32.totalorder %v1656, 1
      %vm1693 = vcmp.ge.s32.totalorder %v1657, 1
      %vm1694 = vcmp.ge.s32.totalorder %v1658, 1
      %vm1695 = vcmp.ge.s32.totalorder %v1659, 1
      %vm1696 = vcmp.ge.s32.totalorder %v1660, 1
      %vm1697 = vcmp.ge.s32.totalorder %v1661, 1
      %vm1698 = vcmp.ge.s32.totalorder %v1662, 1
      %vm1699 = vcmp.ge.s32.totalorder %v1663, 1
      %vm1700 = vcmp.ge.s32.totalorder %v1664, 1
      %vm1701 = vcmp.ge.s32.totalorder %v1665, 1
      %vm1702 = vcmp.ge.s32.totalorder %v1666, 1
      %vm1703 = vcmp.ge.s32.totalorder %v1667, 1
      %vm1704 = vcmp.ge.s32.totalorder %v1668, 1
      %vm1705 = vcmp.ge.s32.totalorder %v1669, 1
      %vm1706 = vcmp.ge.s32.totalorder %v1670, 1
      %vm1707 = vcmp.ge.s32.totalorder %v1671, 1
      %vm1708 = vcmp.ge.s32.totalorder %v1672, 1
      %vm1709 = vcmp.ge.s32.totalorder %v1673, 1
      %vm1710 = vcmp.ge.s32.totalorder %v1674, 1
      %vm1711 = vcmp.ge.s32.totalorder %v1675, 1
      %vm1712 = vcmp.ge.s32.totalorder %v1676, 1
      %vm1713 = vcmp.ge.s32.totalorder %v1677, 1
      %vm1714 = vcmp.ge.s32.totalorder %v1678, 1
      %vm1715 = vcmp.ge.s32.totalorder %v1679, 1
      %vm1716 = vcmp.ge.s32.totalorder %v1680, 1
      %vm1717 = vcmp.ge.s32.totalorder %v1681, 1
      %vm1718 = vcmp.ge.s32.totalorder %v1682, 1
      %vm1719 = vcmp.ge.s32.totalorder %v1683, 1
      %vm1720 = vcmp.le.s32.totalorder %v1648, 16
      %vm1721 = vcmp.le.s32.totalorder %v1649, 16
      %vm1722 = vcmp.le.s32.totalorder %v1650, 16
      %vm1723 = vcmp.le.s32.totalorder %v1651, 16
      %vm1724 = vcmp.le.s32.totalorder %v1652, 16
      %vm1725 = vcmp.le.s32.totalorder %v1653, 16
      %vm1726 = vcmp.le.s32.totalorder %v1654, 16
      %vm1727 = vcmp.le.s32.totalorder %v1655, 16
      %vm1728 = vcmp.le.s32.totalorder %v1656, 16
      %vm1729 = vcmp.le.s32.totalorder %v1657, 16
      %vm1730 = vcmp.le.s32.totalorder %v1658, 16
      %vm1731 = vcmp.le.s32.totalorder %v1659, 16
      %vm1732 = vcmp.le.s32.totalorder %v1660, 16
      %vm1733 = vcmp.le.s32.totalorder %v1661, 16
      %vm1734 = vcmp.le.s32.totalorder %v1662, 16
      %vm1735 = vcmp.le.s32.totalorder %v1663, 16
      %vm1736 = vcmp.le.s32.totalorder %v1664, 16
      %vm1737 = vcmp.le.s32.totalorder %v1665, 16
      %vm1738 = vcmp.le.s32.totalorder %v1666, 16
      %vm1739 = vcmp.le.s32.totalorder %v1667, 16
      %vm1740 = vcmp.le.s32.totalorder %v1668, 16
      %vm1741 = vcmp.le.s32.totalorder %v1669, 16
      %vm1742 = vcmp.le.s32.totalorder %v1670, 16
      %vm1743 = vcmp.le.s32.totalorder %v1671, 16
      %vm1744 = vcmp.le.s32.totalorder %v1672, 16
      %vm1745 = vcmp.le.s32.totalorder %v1673, 16
      %vm1746 = vcmp.le.s32.totalorder %v1674, 16
      %vm1747 = vcmp.le.s32.totalorder %v1675, 16
      %vm1748 = vcmp.le.s32.totalorder %v1676, 16
      %vm1749 = vcmp.le.s32.totalorder %v1677, 16
      %vm1750 = vcmp.le.s32.totalorder %v1678, 16
      %vm1751 = vcmp.le.s32.totalorder %v1679, 16
      %vm1752 = vcmp.le.s32.totalorder %v1680, 16
      %vm1753 = vcmp.le.s32.totalorder %v1681, 16
      %vm1754 = vcmp.le.s32.totalorder %v1682, 16
      %vm1755 = vcmp.le.s32.totalorder %v1683, 16
      %vm1756 = vmand %vm1684, %vm1720
      %vm1757 = vmand %vm1685, %vm1721
      %vm1758 = vmand %vm1686, %vm1722
      %vm1759 = vmand %vm1687, %vm1723
      %vm1760 = vmand %vm1688, %vm1724
      %vm1761 = vmand %vm1689, %vm1725
      %vm1762 = vmand %vm1690, %vm1726
      %vm1763 = vmand %vm1691, %vm1727
      %vm1764 = vmand %vm1692, %vm1728
      %vm1765 = vmand %vm1693, %vm1729
      %vm1766 = vmand %vm1694, %vm1730
      %vm1767 = vmand %vm1695, %vm1731
      %vm1768 = vmand %vm1696, %vm1732
      %vm1769 = vmand %vm1697, %vm1733
      %vm1770 = vmand %vm1698, %vm1734
      %vm1771 = vmand %vm1699, %vm1735
      %vm1772 = vmand %vm1700, %vm1736
      %vm1773 = vmand %vm1701, %vm1737
      %vm1774 = vmand %vm1702, %vm1738
      %vm1775 = vmand %vm1703, %vm1739
      %vm1776 = vmand %vm1704, %vm1740
      %vm1777 = vmand %vm1705, %vm1741
      %vm1778 = vmand %vm1706, %vm1742
      %vm1779 = vmand %vm1707, %vm1743
      %vm1780 = vmand %vm1708, %vm1744
      %vm1781 = vmand %vm1709, %vm1745
      %vm1782 = vmand %vm1710, %vm1746
      %vm1783 = vmand %vm1711, %vm1747
      %vm1784 = vmand %vm1712, %vm1748
      %vm1785 = vmand %vm1713, %vm1749
      %vm1786 = vmand %vm1714, %vm1750
      %vm1787 = vmand %vm1715, %vm1751
      %vm1788 = vmand %vm1716, %vm1752
      %vm1789 = vmand %vm1717, %vm1753
      %vm1790 = vmand %vm1718, %vm1754
      %vm1791 = vmand %vm1719, %vm1755
      %v1792 = vld [vmem:[%s354] sm:$0xf]
      %v1793 = vld [vmem:[%s354 + $0x4] sm:$0xf]
      %v1794 = vld [vmem:[%s354 + $0x8] sm:$0xf]
      %v1795 = vld [vmem:[%s354 + $0xc] sm:$0xf]
      %v1796 = vld [vmem:[%s354 + $0x10] sm:$0xf]
      %v1797 = vld [vmem:[%s354 + $0x14] sm:$0xf]
      %v1798 = vld [vmem:[%s354 + $0x18] sm:$0xf]
      %v1799 = vld [vmem:[%s354 + $0x1c] sm:$0xf]
      %v1800 = vld [vmem:[%s354 + $0x20] sm:$0xf]
      %v1801 = vld [vmem:[%s354 + $0x24] sm:$0xf]
      %v1802 = vld [vmem:[%s354 + $0x28] sm:$0xf]
      %v1803 = vld [vmem:[%s354 + $0x2c] sm:$0xf]
      %v1804 = vld [vmem:[%s354 + $0x30] sm:$0xf]
      %v1805 = vld [vmem:[%s354 + $0x34] sm:$0xf]
      %v1806 = vld [vmem:[%s354 + $0x38] sm:$0xf]
      %v1807 = vld [vmem:[%s354 + $0x3c] sm:$0xf]
      %v1808 = vld [vmem:[%s354 + $0x40] sm:$0xf]
      %v1809 = vld [vmem:[%s354 + $0x44] sm:$0xf]
      %v1810 = vld [vmem:[%s354 + $0x48] sm:$0xf]
      %v1811 = vld [vmem:[%s354 + $0x4c] sm:$0xf]
      %v1812 = vld [vmem:[%s354 + $0x50] sm:$0xf]
      %v1813 = vld [vmem:[%s354 + $0x54] sm:$0xf]
      %v1814 = vld [vmem:[%s354 + $0x58] sm:$0xf]
      %v1815 = vld [vmem:[%s354 + $0x5c] sm:$0xf]
      %v1816 = vld [vmem:[%s354 + $0x60] sm:$0xf]
      %v1817 = vld [vmem:[%s354 + $0x64] sm:$0xf]
      %v1818 = vld [vmem:[%s354 + $0x68] sm:$0xf]
      %v1819 = vld [vmem:[%s354 + $0x6c] sm:$0xf]
      %v1820 = vld [vmem:[%s354 + $0x70] sm:$0xf]
      %v1821 = vld [vmem:[%s354 + $0x74] sm:$0xf]
      %v1822 = vld [vmem:[%s354 + $0x78] sm:$0xf]
      %v1823 = vld [vmem:[%s354 + $0x7c] sm:$0xf]
      %v1824 = vld [vmem:[%s354 + $0x80] sm:$0xf]
      %v1825 = vld [vmem:[%s354 + $0x84] sm:$0xf]
      %v1826 = vld [vmem:[%s354 + $0x88] sm:$0xf]
      %v1827 = vld [vmem:[%s354 + $0x8c] sm:$0x7]
      %v1828 = vld [vmem:[%s1] sm:$0xf]
      %v1829 = vld [vmem:[%s1 + $0x4] sm:$0xf]
      %v1830 = vld [vmem:[%s1 + $0x8] sm:$0xf]
      %v1831 = vld [vmem:[%s1 + $0xc] sm:$0xf]
      %v1832 = vld [vmem:[%s1 + $0x10] sm:$0xf]
      %v1833 = vld [vmem:[%s1 + $0x14] sm:$0xf]
      %v1834 = vld [vmem:[%s1 + $0x18] sm:$0xf]
      %v1835 = vld [vmem:[%s1 + $0x1c] sm:$0xf]
      %v1836 = vld [vmem:[%s1 + $0x20] sm:$0xf]
      %v1837 = vld [vmem:[%s1 + $0x24] sm:$0xf]
      %v1838 = vld [vmem:[%s1 + $0x28] sm:$0xf]
      %v1839 = vld [vmem:[%s1 + $0x2c] sm:$0xf]
      %v1840 = vld [vmem:[%s1 + $0x30] sm:$0xf]
      %v1841 = vld [vmem:[%s1 + $0x34] sm:$0xf]
      %v1842 = vld [vmem:[%s1 + $0x38] sm:$0xf]
      %v1843 = vld [vmem:[%s1 + $0x3c] sm:$0xf]
      %v1844 = vld [vmem:[%s354 + $0x8c] sm:$0xf]
      %s1845 = scalar_lea.vmem %s1, 64
      %v1846 = vld [vmem:[%s1845] sm:$0xf]
      %v1847 = vld [vmem:[%s1845 + $0x4] sm:$0xf]
      %v1848 = vld [vmem:[%s1845 + $0x8] sm:$0xf]
      %v1849 = vld [vmem:[%s1845 + $0xc] sm:$0xf]
      %v1850 = vld [vmem:[%s1845 + $0x10] sm:$0xf]
      %v1851 = vld [vmem:[%s1845 + $0x14] sm:$0xf]
      %v1852 = vld [vmem:[%s1845 + $0x18] sm:$0xf]
      %v1853 = vld [vmem:[%s1845 + $0x1c] sm:$0xf]
      %v1854 = vld [vmem:[%s1845 + $0x20] sm:$0xf]
      %v1855 = vld [vmem:[%s1845 + $0x24] sm:$0xf]
      %v1856 = vld [vmem:[%s1845 + $0x28] sm:$0xf]
      %v1857 = vld [vmem:[%s1845 + $0x2c] sm:$0xf]
      %v1858 = vld [vmem:[%s1845 + $0x30] sm:$0xf]
      %v1859 = vld [vmem:[%s1845 + $0x34] sm:$0xf]
      %v1860 = vld [vmem:[%s1845 + $0x38] sm:$0xf]
      %v1861 = vld [vmem:[%s1845 + $0x3c] sm:$0xf]
      %v1898 = vunpack.c.l.b16 %v1792
      %v1899 = vunpack.c.l.b16 %v1793
      %v1900 = vunpack.c.l.b16 %v1794
      %v1901 = vunpack.c.l.b16 %v1795
      %v1902 = vunpack.c.l.b16 %v1796
      %v1903 = vunpack.c.l.b16 %v1797
      %v1904 = vunpack.c.l.b16 %v1798
      %v1905 = vunpack.c.l.b16 %v1799
      %v1906 = vunpack.c.l.b16 %v1800
      %v1907 = vunpack.c.l.b16 %v1801
      %v1908 = vunpack.c.l.b16 %v1802
      %v1909 = vunpack.c.l.b16 %v1803
      %v1910 = vunpack.c.l.b16 %v1804
      %v1911 = vunpack.c.l.b16 %v1805
      %v1912 = vunpack.c.l.b16 %v1806
      %v1913 = vunpack.c.l.b16 %v1807
      %v1914 = vunpack.c.l.b16 %v1808
      %v1915 = vunpack.c.l.b16 %v1809
      %v1916 = vunpack.c.l.b16 %v1810
      %v1917 = vunpack.c.l.b16 %v1811
      %v1918 = vunpack.c.l.b16 %v1812
      %v1919 = vunpack.c.l.b16 %v1813
      %v1920 = vunpack.c.l.b16 %v1814
      %v1921 = vunpack.c.l.b16 %v1815
      %v1922 = vunpack.c.l.b16 %v1816
      %v1923 = vunpack.c.l.b16 %v1817
      %v1924 = vunpack.c.l.b16 %v1818
      %v1925 = vunpack.c.l.b16 %v1819
      %v1926 = vunpack.c.l.b16 %v1820
      %v1927 = vunpack.c.l.b16 %v1821
      %v1928 = vunpack.c.l.b16 %v1822
      %v1929 = vunpack.c.l.b16 %v1823
      %v1930 = vunpack.c.l.b16 %v1824
      %v1931 = vunpack.c.l.b16 %v1825
      %v1932 = vunpack.c.l.b16 %v1826
      %v1933 = vunpack.c.l.b16 %v1844
      %v1934 = vpack.c.b16 %v1899, %v1898
      %v1935 = vpack.c.b16 %v1901, %v1900
      %v1936 = vpack.c.b16 %v1903, %v1902
      %v1937 = vpack.c.b16 %v1905, %v1904
      %v1938 = vpack.c.b16 %v1907, %v1906
      %v1939 = vpack.c.b16 %v1909, %v1908
      %v1940 = vpack.c.b16 %v1911, %v1910
      %v1941 = vpack.c.b16 %v1913, %v1912
      %v1942 = vpack.c.b16 %v1915, %v1914
      %v1943 = vpack.c.b16 %v1917, %v1916
      %v1944 = vpack.c.b16 %v1919, %v1918
      %v1945 = vpack.c.b16 %v1921, %v1920
      %v1946 = vpack.c.b16 %v1923, %v1922
      %v1947 = vpack.c.b16 %v1925, %v1924
      %v1948 = vpack.c.b16 %v1927, %v1926
      %v1949 = vpack.c.b16 %v1929, %v1928
      %v1950 = vpack.c.b16 %v1931, %v1930
      %v1951 = vpack.c.b16 %v1933, %v1932
      %vm1952 = vsmask.f32 7424
      %v1954 = vshrl.u32 %v1934, 16
      %v1956 = vshll.u32 %v1934, 16
      %v1958 = vrot.slane %v1956, 1
      %v1959 = vor.u32 %v1954, %v1958
      %v1961 = vshll.u32 %v1935, 16
      %v1963 = vrot.slane %v1961, 1
      %v1964 = vsel %vm1952, %v1959, %v1963
      %v1965 = vshrl.u32 %v1935, 16
      %v1967 = vor.u32 %v1965, %v1963
      %v1969 = vshll.u32 %v1936, 16
      %v1971 = vrot.slane %v1969, 1
      %v1972 = vsel %vm1952, %v1967, %v1971
      %v1973 = vshrl.u32 %v1936, 16
      %v1975 = vor.u32 %v1973, %v1971
      %v1977 = vshll.u32 %v1937, 16
      %v1979 = vrot.slane %v1977, 1
      %v1980 = vsel %vm1952, %v1975, %v1979
      %v1981 = vshrl.u32 %v1937, 16
      %v1983 = vor.u32 %v1981, %v1979
      %v1985 = vshll.u32 %v1938, 16
      %v1987 = vrot.slane %v1985, 1
      %v1988 = vsel %vm1952, %v1983, %v1987
      %v1989 = vshrl.u32 %v1938, 16
      %v1991 = vor.u32 %v1989, %v1987
      %v1993 = vshll.u32 %v1939, 16
      %v1995 = vrot.slane %v1993, 1
      %v1996 = vsel %vm1952, %v1991, %v1995
      %v1997 = vshrl.u32 %v1939, 16
      %v1999 = vor.u32 %v1997, %v1995
      %v2001 = vshll.u32 %v1940, 16
      %v2003 = vrot.slane %v2001, 1
      %v2004 = vsel %vm1952, %v1999, %v2003
      %v2005 = vshrl.u32 %v1940, 16
      %v2007 = vor.u32 %v2005, %v2003
      %v2009 = vshll.u32 %v1941, 16
      %v2011 = vrot.slane %v2009, 1
      %v2012 = vsel %vm1952, %v2007, %v2011
      %v2013 = vshrl.u32 %v1941, 16
      %v2015 = vor.u32 %v2013, %v2011
      %v2017 = vshll.u32 %v1942, 16
      %v2019 = vrot.slane %v2017, 1
      %v2020 = vsel %vm1952, %v2015, %v2019
      %v2021 = vshrl.u32 %v1942, 16
      %v2023 = vor.u32 %v2021, %v2019
      %v2025 = vshll.u32 %v1943, 16
      %v2027 = vrot.slane %v2025, 1
      %v2028 = vsel %vm1952, %v2023, %v2027
      %v2029 = vshrl.u32 %v1943, 16
      %v2031 = vor.u32 %v2029, %v2027
      %v2033 = vshll.u32 %v1944, 16
      %v2035 = vrot.slane %v2033, 1
      %v2036 = vsel %vm1952, %v2031, %v2035
      %v2037 = vshrl.u32 %v1944, 16
      %v2039 = vor.u32 %v2037, %v2035
      %v2041 = vshll.u32 %v1945, 16
      %v2043 = vrot.slane %v2041, 1
      %v2044 = vsel %vm1952, %v2039, %v2043
      %v2045 = vshrl.u32 %v1945, 16
      %v2047 = vor.u32 %v2045, %v2043
      %v2049 = vshll.u32 %v1946, 16
      %v2051 = vrot.slane %v2049, 1
      %v2052 = vsel %vm1952, %v2047, %v2051
      %v2053 = vshrl.u32 %v1946, 16
      %v2055 = vor.u32 %v2053, %v2051
      %v2057 = vshll.u32 %v1947, 16
      %v2059 = vrot.slane %v2057, 1
      %v2060 = vsel %vm1952, %v2055, %v2059
      %v2061 = vshrl.u32 %v1947, 16
      %v2063 = vor.u32 %v2061, %v2059
      %v2065 = vshll.u32 %v1948, 16
      %v2067 = vrot.slane %v2065, 1
      %v2068 = vsel %vm1952, %v2063, %v2067
      %v2069 = vshrl.u32 %v1948, 16
      %v2071 = vor.u32 %v2069, %v2067
      %v2073 = vshll.u32 %v1949, 16
      %v2075 = vrot.slane %v2073, 1
      %v2076 = vsel %vm1952, %v2071, %v2075
      %v2077 = vshrl.u32 %v1949, 16
      %v2079 = vor.u32 %v2077, %v2075
      %v2081 = vshll.u32 %v1950, 16
      %v2083 = vrot.slane %v2081, 1
      %v2084 = vsel %vm1952, %v2079, %v2083
      %v2085 = vshrl.u32 %v1950, 16
      %v2087 = vor.u32 %v2085, %v2083
      %v2089 = vshll.u32 %v1951, 16
      %v2091 = vrot.slane %v2089, 1
      %v2092 = vsel %vm1952, %v2087, %v2091
      %v2093 = vshrl.u32 %v1951, 16
      %v2095 = vor.u32 %v2093, %v2091
      %v2130 = vunpack.c.l.b16 %v1846
      %v2131 = vunpack.c.l.b16 %v1847
      %v2132 = vunpack.c.l.b16 %v1848
      %v2133 = vunpack.c.l.b16 %v1849
      %v2134 = vunpack.c.l.b16 %v1850
      %v2135 = vunpack.c.l.b16 %v1851
      %v2136 = vunpack.c.l.b16 %v1852
      %v2137 = vunpack.c.l.b16 %v1853
      %v2138 = vunpack.c.l.b16 %v1854
      %v2139 = vunpack.c.l.b16 %v1855
      %v2140 = vunpack.c.l.b16 %v1856
      %v2141 = vunpack.c.l.b16 %v1857
      %v2142 = vunpack.c.l.b16 %v1858
      %v2143 = vunpack.c.l.b16 %v1859
      %v2144 = vunpack.c.l.b16 %v1860
      %v2145 = vunpack.c.l.b16 %v1861
      %v2146 = vpack.c.b16 %v2131, %v2130
      %v2147 = vpack.c.b16 %v2133, %v2132
      %v2148 = vpack.c.b16 %v2135, %v2134
      %v2149 = vpack.c.b16 %v2137, %v2136
      %v2150 = vpack.c.b16 %v2139, %v2138
      %v2151 = vpack.c.b16 %v2141, %v2140
      %v2152 = vpack.c.b16 %v2143, %v2142
      %v2153 = vpack.c.b16 %v2145, %v2144
      %2162 = vmatpush.bf16.msra.mxu0 %v2153
      %2163 = vmatpush.bf16.msra.mxu0 %v2152
      %2164 = vmatpush.bf16.msra.mxu0 %v2151
      %2165 = vmatpush.bf16.msra.mxu0 %v2150
      %2166 = vmatpush.bf16.msra.mxu0 %v2149
      %2167 = vmatpush.bf16.msra.mxu0 %v2148
      %2168 = vmatpush.bf16.msra.mxu0 %v2147
      %2169 = vmatpush.bf16.msra.mxu0 %v2146
      %2170 = vmatmul.bf16.gmra.mxu0 %v1964
      %v2171 = vpop.f32.mrf.mxu0
      %v2172 = vadd.f32 0.0, %v2171
      %v2173 = vpop.f32.mrf.mxu0
      %v2174 = vadd.f32 0.0, %v2173
      %2175 = vmatmul.bf16.gmra.mxu0 %v1972
      %v2176 = vpop.f32.mrf.mxu0
      %v2177 = vadd.f32 0.0, %v2176
      %v2178 = vpop.f32.mrf.mxu0
      %v2179 = vadd.f32 0.0, %v2178
      %2180 = vmatmul.bf16.gmra.mxu0 %v1980
      %v2181 = vpop.f32.mrf.mxu0
      %v2182 = vadd.f32 0.0, %v2181
      %v2183 = vpop.f32.mrf.mxu0
      %v2184 = vadd.f32 0.0, %v2183
      %2185 = vmatmul.bf16.gmra.mxu0 %v1988
      %v2186 = vpop.f32.mrf.mxu0
      %v2187 = vadd.f32 0.0, %v2186
      %v2188 = vpop.f32.mrf.mxu0
      %v2189 = vadd.f32 0.0, %v2188
      %2190 = vmatmul.bf16.gmra.mxu0 %v1996
      %v2191 = vpop.f32.mrf.mxu0
      %v2192 = vadd.f32 0.0, %v2191
      %v2193 = vpop.f32.mrf.mxu0
      %v2194 = vadd.f32 0.0, %v2193
      %2195 = vmatmul.bf16.gmra.mxu0 %v2004
      %v2196 = vpop.f32.mrf.mxu0
      %v2197 = vadd.f32 0.0, %v2196
      %v2198 = vpop.f32.mrf.mxu0
      %v2199 = vadd.f32 0.0, %v2198
      %2200 = vmatmul.bf16.gmra.mxu0 %v2012
      %v2201 = vpop.f32.mrf.mxu0
      %v2202 = vadd.f32 0.0, %v2201
      %v2203 = vpop.f32.mrf.mxu0
      %v2204 = vadd.f32 0.0, %v2203
      %2205 = vmatmul.bf16.gmra.mxu0 %v2020
      %v2206 = vpop.f32.mrf.mxu0
      %v2207 = vadd.f32 0.0, %v2206
      %v2208 = vpop.f32.mrf.mxu0
      %v2209 = vadd.f32 0.0, %v2208
      %2210 = vmatmul.bf16.gmra.mxu0 %v2028
      %v2211 = vpop.f32.mrf.mxu0
      %v2212 = vadd.f32 0.0, %v2211
      %v2213 = vpop.f32.mrf.mxu0
      %v2214 = vadd.f32 0.0, %v2213
      %2215 = vmatmul.bf16.gmra.mxu0 %v2036
      %v2216 = vpop.f32.mrf.mxu0
      %v2217 = vadd.f32 0.0, %v2216
      %v2218 = vpop.f32.mrf.mxu0
      %v2219 = vadd.f32 0.0, %v2218
      %2220 = vmatmul.bf16.gmra.mxu0 %v2044
      %v2221 = vpop.f32.mrf.mxu0
      %v2222 = vadd.f32 0.0, %v2221
      %v2223 = vpop.f32.mrf.mxu0
      %v2224 = vadd.f32 0.0, %v2223
      %2225 = vmatmul.bf16.gmra.mxu0 %v2052
      %v2226 = vpop.f32.mrf.mxu0
      %v2227 = vadd.f32 0.0, %v2226
      %v2228 = vpop.f32.mrf.mxu0
      %v2229 = vadd.f32 0.0, %v2228
      %2230 = vmatmul.bf16.gmra.mxu0 %v2060
      %v2231 = vpop.f32.mrf.mxu0
      %v2232 = vadd.f32 0.0, %v2231
      %v2233 = vpop.f32.mrf.mxu0
      %v2234 = vadd.f32 0.0, %v2233
      %2235 = vmatmul.bf16.gmra.mxu0 %v2068
      %v2236 = vpop.f32.mrf.mxu0
      %v2237 = vadd.f32 0.0, %v2236
      %v2238 = vpop.f32.mrf.mxu0
      %v2239 = vadd.f32 0.0, %v2238
      %2240 = vmatmul.bf16.gmra.mxu0 %v2076
      %v2241 = vpop.f32.mrf.mxu0
      %v2242 = vadd.f32 0.0, %v2241
      %v2243 = vpop.f32.mrf.mxu0
      %v2244 = vadd.f32 0.0, %v2243
      %2245 = vmatmul.bf16.gmra.mxu0 %v2084
      %v2246 = vpop.f32.mrf.mxu0
      %v2247 = vadd.f32 0.0, %v2246
      %v2248 = vpop.f32.mrf.mxu0
      %v2249 = vadd.f32 0.0, %v2248
      %2250 = vmatmul.bf16.gmra.mxu0 %v2092
      %v2251 = vpop.f32.mrf.mxu0
      %v2252 = vadd.f32 0.0, %v2251
      %v2253 = vpop.f32.mrf.mxu0
      %v2254 = vadd.f32 0.0, %v2253
      %2255 = vmatmul.bf16.gmra.mxu0 %v2095
      %v2256 = vpop.f32.mrf.mxu0
      %v2257 = vadd.f32 0.0, %v2256
      %v2258 = vpop.f32.mrf.mxu0
      %v2259 = vadd.f32 0.0, %v2258
      %2260 = vdwg.mxu0
      %v2262 = vunpack.c.l.b16 %v1827
      %v2263 = vpack.c.b16 %v2262, %v1932
      %v2298 = vunpack.c.l.b16 %v1828
      %v2299 = vunpack.c.l.b16 %v1829
      %v2300 = vunpack.c.l.b16 %v1830
      %v2301 = vunpack.c.l.b16 %v1831
      %v2302 = vunpack.c.l.b16 %v1832
      %v2303 = vunpack.c.l.b16 %v1833
      %v2304 = vunpack.c.l.b16 %v1834
      %v2305 = vunpack.c.l.b16 %v1835
      %v2306 = vunpack.c.l.b16 %v1836
      %v2307 = vunpack.c.l.b16 %v1837
      %v2308 = vunpack.c.l.b16 %v1838
      %v2309 = vunpack.c.l.b16 %v1839
      %v2310 = vunpack.c.l.b16 %v1840
      %v2311 = vunpack.c.l.b16 %v1841
      %v2312 = vunpack.c.l.b16 %v1842
      %v2313 = vunpack.c.l.b16 %v1843
      %v2314 = vpack.c.b16 %v2299, %v2298
      %v2315 = vpack.c.b16 %v2301, %v2300
      %v2316 = vpack.c.b16 %v2303, %v2302
      %v2317 = vpack.c.b16 %v2305, %v2304
      %v2318 = vpack.c.b16 %v2307, %v2306
      %v2319 = vpack.c.b16 %v2309, %v2308
      %v2320 = vpack.c.b16 %v2311, %v2310
      %v2321 = vpack.c.b16 %v2313, %v2312
      %2330 = vmatpush.bf16.msra.mxu0 %v2321
      %2331 = vmatpush.bf16.msra.mxu0 %v2320
      %2332 = vmatpush.bf16.msra.mxu0 %v2319
      %2333 = vmatpush.bf16.msra.mxu0 %v2318
      %2334 = vmatpush.bf16.msra.mxu0 %v2317
      %2335 = vmatpush.bf16.msra.mxu0 %v2316
      %2336 = vmatpush.bf16.msra.mxu0 %v2315
      %2337 = vmatpush.bf16.msra.mxu0 %v2314
      %2338 = vmatmul.bf16.gmra.mxu0 %v1934
      %v2339 = vpop.f32.mrf.mxu0
      %v2340 = vadd.f32 %v2172, %v2339
      %v2341 = vpop.f32.mrf.mxu0
      %v2342 = vadd.f32 %v2174, %v2341
      %2343 = vmatmul.bf16.gmra.mxu0 %v1935
      %v2344 = vpop.f32.mrf.mxu0
      %v2345 = vadd.f32 %v2177, %v2344
      %v2346 = vpop.f32.mrf.mxu0
      %v2347 = vadd.f32 %v2179, %v2346
      %2348 = vmatmul.bf16.gmra.mxu0 %v1936
      %v2349 = vpop.f32.mrf.mxu0
      %v2350 = vadd.f32 %v2182, %v2349
      %v2351 = vpop.f32.mrf.mxu0
      %v2352 = vadd.f32 %v2184, %v2351
      %2353 = vmatmul.bf16.gmra.mxu0 %v1937
      %v2354 = vpop.f32.mrf.mxu0
      %v2355 = vadd.f32 %v2187, %v2354
      %v2356 = vpop.f32.mrf.mxu0
      %v2357 = vadd.f32 %v2189, %v2356
      %2358 = vmatmul.bf16.gmra.mxu0 %v1938
      %v2359 = vpop.f32.mrf.mxu0
      %v2360 = vadd.f32 %v2192, %v2359
      %v2361 = vpop.f32.mrf.mxu0
      %v2362 = vadd.f32 %v2194, %v2361
      %2363 = vmatmul.bf16.gmra.mxu0 %v1939
      %v2364 = vpop.f32.mrf.mxu0
      %v2365 = vadd.f32 %v2197, %v2364
      %v2366 = vpop.f32.mrf.mxu0
      %v2367 = vadd.f32 %v2199, %v2366
      %2368 = vmatmul.bf16.gmra.mxu0 %v1940
      %v2369 = vpop.f32.mrf.mxu0
      %v2370 = vadd.f32 %v2202, %v2369
      %v2371 = vpop.f32.mrf.mxu0
      %v2372 = vadd.f32 %v2204, %v2371
      %2373 = vmatmul.bf16.gmra.mxu0 %v1941
      %v2374 = vpop.f32.mrf.mxu0
      %v2375 = vadd.f32 %v2207, %v2374
      %v2376 = vpop.f32.mrf.mxu0
      %v2377 = vadd.f32 %v2209, %v2376
      %2378 = vmatmul.bf16.gmra.mxu0 %v1942
      %v2379 = vpop.f32.mrf.mxu0
      %v2380 = vadd.f32 %v2212, %v2379
      %v2381 = vpop.f32.mrf.mxu0
      %v2382 = vadd.f32 %v2214, %v2381
      %2383 = vmatmul.bf16.gmra.mxu0 %v1943
      %v2384 = vpop.f32.mrf.mxu0
      %v2385 = vadd.f32 %v2217, %v2384
      %v2386 = vpop.f32.mrf.mxu0
      %v2387 = vadd.f32 %v2219, %v2386
      %2388 = vmatmul.bf16.gmra.mxu0 %v1944
      %v2389 = vpop.f32.mrf.mxu0
      %v2390 = vadd.f32 %v2222, %v2389
      %v2391 = vpop.f32.mrf.mxu0
      %v2392 = vadd.f32 %v2224, %v2391
      %2393 = vmatmul.bf16.gmra.mxu0 %v1945
      %v2394 = vpop.f32.mrf.mxu0
      %v2395 = vadd.f32 %v2227, %v2394
      %v2396 = vpop.f32.mrf.mxu0
      %v2397 = vadd.f32 %v2229, %v2396
      %2398 = vmatmul.bf16.gmra.mxu0 %v1946
      %v2399 = vpop.f32.mrf.mxu0
      %v2400 = vadd.f32 %v2232, %v2399
      %v2401 = vpop.f32.mrf.mxu0
      %v2402 = vadd.f32 %v2234, %v2401
      %2403 = vmatmul.bf16.gmra.mxu0 %v1947
      %v2404 = vpop.f32.mrf.mxu0
      %v2405 = vadd.f32 %v2237, %v2404
      %v2406 = vpop.f32.mrf.mxu0
      %v2407 = vadd.f32 %v2239, %v2406
      %2408 = vmatmul.bf16.gmra.mxu0 %v1948
      %v2409 = vpop.f32.mrf.mxu0
      %v2410 = vadd.f32 %v2242, %v2409
      %v2411 = vpop.f32.mrf.mxu0
      %v2412 = vadd.f32 %v2244, %v2411
      %2413 = vmatmul.bf16.gmra.mxu0 %v1949
      %v2414 = vpop.f32.mrf.mxu0
      %v2415 = vadd.f32 %v2247, %v2414
      %v2416 = vpop.f32.mrf.mxu0
      %v2417 = vadd.f32 %v2249, %v2416
      %2418 = vmatmul.bf16.gmra.mxu0 %v1950
      %v2419 = vpop.f32.mrf.mxu0
      %v2420 = vadd.f32 %v2252, %v2419
      %v2421 = vpop.f32.mrf.mxu0
      %v2422 = vadd.f32 %v2254, %v2421
      %2423 = vmatmul.bf16.gmra.mxu0 %v2263
      %v2424 = vpop.f32.mrf.mxu0
      %v2425 = vadd.f32 %v2257, %v2424
      %v2426 = vpop.f32.mrf.mxu0
      %v2427 = vadd.f32 %v2259, %v2426
      %2428 = vdwg.mxu0
      %v2429 = vld [vmem:[%s354] sm:$0xe]
      %s2430 = scalar_lea.vmem %s1, 128
      %v2431 = vld [vmem:[%s2430] sm:$0xf]
      %v2432 = vld [vmem:[%s2430 + $0x4] sm:$0xf]
      %v2433 = vld [vmem:[%s2430 + $0x8] sm:$0xf]
      %v2434 = vld [vmem:[%s2430 + $0xc] sm:$0xf]
      %v2435 = vld [vmem:[%s2430 + $0x10] sm:$0xf]
      %v2436 = vld [vmem:[%s2430 + $0x14] sm:$0xf]
      %v2437 = vld [vmem:[%s2430 + $0x18] sm:$0xf]
      %v2438 = vld [vmem:[%s2430 + $0x1c] sm:$0xf]
      %v2439 = vld [vmem:[%s2430 + $0x20] sm:$0xf]
      %v2440 = vld [vmem:[%s2430 + $0x24] sm:$0xf]
      %v2441 = vld [vmem:[%s2430 + $0x28] sm:$0xf]
      %v2442 = vld [vmem:[%s2430 + $0x2c] sm:$0xf]
      %v2443 = vld [vmem:[%s2430 + $0x30] sm:$0xf]
      %v2444 = vld [vmem:[%s2430 + $0x34] sm:$0xf]
      %v2445 = vld [vmem:[%s2430 + $0x38] sm:$0xf]
      %v2446 = vld [vmem:[%s2430 + $0x3c] sm:$0xf]
      %v2448 = vunpack.c.l.b16 %v2429
      %v2449 = vpack.c.b16 %v1899, %v2448
      %vm2450 = vcmask 1046528
      %v2451 = vrot.slane %v2449, 1
      %v2452 = vrot.slane %v1935, 1
      %v2453 = vsel %vm2450, %v2451, %v2452
      %v2454 = vrot.slane %v1936, 1
      %v2455 = vsel %vm2450, %v2452, %v2454
      %v2456 = vrot.slane %v1937, 1
      %v2457 = vsel %vm2450, %v2454, %v2456
      %v2458 = vrot.slane %v1938, 1
      %v2459 = vsel %vm2450, %v2456, %v2458
      %v2460 = vrot.slane %v1939, 1
      %v2461 = vsel %vm2450, %v2458, %v2460
      %v2462 = vrot.slane %v1940, 1
      %v2463 = vsel %vm2450, %v2460, %v2462
      %v2464 = vrot.slane %v1941, 1
      %v2465 = vsel %vm2450, %v2462, %v2464
      %v2466 = vrot.slane %v1942, 1
      %v2467 = vsel %vm2450, %v2464, %v2466
      %v2468 = vrot.slane %v1943, 1
      %v2469 = vsel %vm2450, %v2466, %v2468
      %v2470 = vrot.slane %v1944, 1
      %v2471 = vsel %vm2450, %v2468, %v2470
      %v2472 = vrot.slane %v1945, 1
      %v2473 = vsel %vm2450, %v2470, %v2472
      %v2474 = vrot.slane %v1946, 1
      %v2475 = vsel %vm2450, %v2472, %v2474
      %v2476 = vrot.slane %v1947, 1
      %v2477 = vsel %vm2450, %v2474, %v2476
      %v2478 = vrot.slane %v1948, 1
      %v2479 = vsel %vm2450, %v2476, %v2478
      %v2480 = vrot.slane %v1949, 1
      %v2481 = vsel %vm2450, %v2478, %v2480
      %v2482 = vrot.slane %v1950, 1
      %v2483 = vsel %vm2450, %v2480, %v2482
      %v2484 = vrot.slane %v1951, 1
      %v2485 = vsel %vm2450, %v2482, %v2484
      %v2520 = vunpack.c.l.b16 %v2431
      %v2521 = vunpack.c.l.b16 %v2432
      %v2522 = vunpack.c.l.b16 %v2433
      %v2523 = vunpack.c.l.b16 %v2434
      %v2524 = vunpack.c.l.b16 %v2435
      %v2525 = vunpack.c.l.b16 %v2436
      %v2526 = vunpack.c.l.b16 %v2437
      %v2527 = vunpack.c.l.b16 %v2438
      %v2528 = vunpack.c.l.b16 %v2439
      %v2529 = vunpack.c.l.b16 %v2440
      %v2530 = vunpack.c.l.b16 %v2441
      %v2531 = vunpack.c.l.b16 %v2442
      %v2532 = vunpack.c.l.b16 %v2443
      %v2533 = vunpack.c.l.b16 %v2444
      %v2534 = vunpack.c.l.b16 %v2445
      %v2535 = vunpack.c.l.b16 %v2446
      %v2536 = vpack.c.b16 %v2521, %v2520
      %v2537 = vpack.c.b16 %v2523, %v2522
      %v2538 = vpack.c.b16 %v2525, %v2524
      %v2539 = vpack.c.b16 %v2527, %v2526
      %v2540 = vpack.c.b16 %v2529, %v2528
      %v2541 = vpack.c.b16 %v2531, %v2530
      %v2542 = vpack.c.b16 %v2533, %v2532
      %v2543 = vpack.c.b16 %v2535, %v2534
      %2552 = vmatpush.bf16.msra.mxu0 %v2543
      %2553 = vmatpush.bf16.msra.mxu0 %v2542
      %2554 = vmatpush.bf16.msra.mxu0 %v2541
      %2555 = vmatpush.bf16.msra.mxu0 %v2540
      %2556 = vmatpush.bf16.msra.mxu0 %v2539
      %2557 = vmatpush.bf16.msra.mxu0 %v2538
      %2558 = vmatpush.bf16.msra.mxu0 %v2537
      %2559 = vmatpush.bf16.msra.mxu0 %v2536
      %2560 = vmatmul.bf16.gmra.mxu0 %v2453
      %v2561 = vpop.f32.mrf.mxu0
      %v2562 = vadd.f32 0.0, %v2561
      %v2563 = vpop.f32.mrf.mxu0
      %v2564 = vadd.f32 0.0, %v2563
      %2565 = vmatmul.bf16.gmra.mxu0 %v2455
      %v2566 = vpop.f32.mrf.mxu0
      %v2567 = vadd.f32 0.0, %v2566
      %v2568 = vpop.f32.mrf.mxu0
      %v2569 = vadd.f32 0.0, %v2568
      %2570 = vmatmul.bf16.gmra.mxu0 %v2457
      %v2571 = vpop.f32.mrf.mxu0
      %v2572 = vadd.f32 0.0, %v2571
      %v2573 = vpop.f32.mrf.mxu0
      %v2574 = vadd.f32 0.0, %v2573
      %2575 = vmatmul.bf16.gmra.mxu0 %v2459
      %v2576 = vpop.f32.mrf.mxu0
      %v2577 = vadd.f32 0.0, %v2576
      %v2578 = vpop.f32.mrf.mxu0
      %v2579 = vadd.f32 0.0, %v2578
      %2580 = vmatmul.bf16.gmra.mxu0 %v2461
      %v2581 = vpop.f32.mrf.mxu0
      %v2582 = vadd.f32 0.0, %v2581
      %v2583 = vpop.f32.mrf.mxu0
      %v2584 = vadd.f32 0.0, %v2583
      %2585 = vmatmul.bf16.gmra.mxu0 %v2463
      %v2586 = vpop.f32.mrf.mxu0
      %v2587 = vadd.f32 0.0, %v2586
      %v2588 = vpop.f32.mrf.mxu0
      %v2589 = vadd.f32 0.0, %v2588
      %2590 = vmatmul.bf16.gmra.mxu0 %v2465
      %v2591 = vpop.f32.mrf.mxu0
      %v2592 = vadd.f32 0.0, %v2591
      %v2593 = vpop.f32.mrf.mxu0
      %v2594 = vadd.f32 0.0, %v2593
      %2595 = vmatmul.bf16.gmra.mxu0 %v2467
      %v2596 = vpop.f32.mrf.mxu0
      %v2597 = vadd.f32 0.0, %v2596
      %v2598 = vpop.f32.mrf.mxu0
      %v2599 = vadd.f32 0.0, %v2598
      %2600 = vmatmul.bf16.gmra.mxu0 %v2469
      %v2601 = vpop.f32.mrf.mxu0
      %v2602 = vadd.f32 0.0, %v2601
      %v2603 = vpop.f32.mrf.mxu0
      %v2604 = vadd.f32 0.0, %v2603
      %2605 = vmatmul.bf16.gmra.mxu0 %v2471
      %v2606 = vpop.f32.mrf.mxu0
      %v2607 = vadd.f32 0.0, %v2606
      %v2608 = vpop.f32.mrf.mxu0
      %v2609 = vadd.f32 0.0, %v2608
      %2610 = vmatmul.bf16.gmra.mxu0 %v2473
      %v2611 = vpop.f32.mrf.mxu0
      %v2612 = vadd.f32 0.0, %v2611
      %v2613 = vpop.f32.mrf.mxu0
      %v2614 = vadd.f32 0.0, %v2613
      %2615 = vmatmul.bf16.gmra.mxu0 %v2475
      %v2616 = vpop.f32.mrf.mxu0
      %v2617 = vadd.f32 0.0, %v2616
      %v2618 = vpop.f32.mrf.mxu0
      %v2619 = vadd.f32 0.0, %v2618
      %2620 = vmatmul.bf16.gmra.mxu0 %v2477
      %v2621 = vpop.f32.mrf.mxu0
      %v2622 = vadd.f32 0.0, %v2621
      %v2623 = vpop.f32.mrf.mxu0
      %v2624 = vadd.f32 0.0, %v2623
      %2625 = vmatmul.bf16.gmra.mxu0 %v2479
      %v2626 = vpop.f32.mrf.mxu0
      %v2627 = vadd.f32 0.0, %v2626
      %v2628 = vpop.f32.mrf.mxu0
      %v2629 = vadd.f32 0.0, %v2628
      %2630 = vmatmul.bf16.gmra.mxu0 %v2481
      %v2631 = vpop.f32.mrf.mxu0
      %v2632 = vadd.f32 0.0, %v2631
      %v2633 = vpop.f32.mrf.mxu0
      %v2634 = vadd.f32 0.0, %v2633
      %2635 = vmatmul.bf16.gmra.mxu0 %v2483
      %v2636 = vpop.f32.mrf.mxu0
      %v2637 = vadd.f32 0.0, %v2636
      %v2638 = vpop.f32.mrf.mxu0
      %v2639 = vadd.f32 0.0, %v2638
      %2640 = vmatmul.bf16.gmra.mxu0 %v2485
      %v2641 = vpop.f32.mrf.mxu0
      %v2642 = vadd.f32 0.0, %v2641
      %v2643 = vpop.f32.mrf.mxu0
      %v2644 = vadd.f32 0.0, %v2643
      %2645 = vmatmul.bf16.gmra.mxu0 %v2484
      %v2646 = vpop.f32.mrf.mxu0
      %v2647 = vadd.f32 0.0, %v2646
      %v2648 = vpop.f32.mrf.mxu0
      %v2649 = vadd.f32 0.0, %v2648
      %2650 = vdwg.mxu0
      %v2651 = vadd.f32 %v2340, %v2562
      %v2652 = vadd.f32 %v2342, %v2564
      %v2653 = vadd.f32 %v2345, %v2567
      %v2654 = vadd.f32 %v2347, %v2569
      %v2655 = vadd.f32 %v2350, %v2572
      %v2656 = vadd.f32 %v2352, %v2574
      %v2657 = vadd.f32 %v2355, %v2577
      %v2658 = vadd.f32 %v2357, %v2579
      %v2659 = vadd.f32 %v2360, %v2582
      %v2660 = vadd.f32 %v2362, %v2584
      %v2661 = vadd.f32 %v2365, %v2587
      %v2662 = vadd.f32 %v2367, %v2589
      %v2663 = vadd.f32 %v2370, %v2592
      %v2664 = vadd.f32 %v2372, %v2594
      %v2665 = vadd.f32 %v2375, %v2597
      %v2666 = vadd.f32 %v2377, %v2599
      %v2667 = vadd.f32 %v2380, %v2602
      %v2668 = vadd.f32 %v2382, %v2604
      %v2669 = vadd.f32 %v2385, %v2607
      %v2670 = vadd.f32 %v2387, %v2609
      %v2671 = vadd.f32 %v2390, %v2612
      %v2672 = vadd.f32 %v2392, %v2614
      %v2673 = vadd.f32 %v2395, %v2617
      %v2674 = vadd.f32 %v2397, %v2619
      %v2675 = vadd.f32 %v2400, %v2622
      %v2676 = vadd.f32 %v2402, %v2624
      %v2677 = vadd.f32 %v2405, %v2627
      %v2678 = vadd.f32 %v2407, %v2629
      %v2679 = vadd.f32 %v2410, %v2632
      %v2680 = vadd.f32 %v2412, %v2634
      %v2681 = vadd.f32 %v2415, %v2637
      %v2682 = vadd.f32 %v2417, %v2639
      %v2683 = vadd.f32 %v2420, %v2642
      %v2684 = vadd.f32 %v2422, %v2644
      %v2685 = vadd.f32 %v2425, %v2647
      %v2686 = vadd.f32 %v2427, %v2649
      %v2687 = vld [vmem:[%s354 + $0x8] sm:$0xe]
      %v2688 = vld [vmem:[%s354 + $0xc] sm:$0xf]
      %v2689 = vld [vmem:[%s354 + $0x10] sm:$0xf]
      %v2690 = vld [vmem:[%s354 + $0x14] sm:$0xf]
      %v2691 = vld [vmem:[%s354 + $0x18] sm:$0xf]
      %v2692 = vld [vmem:[%s354 + $0x1c] sm:$0xf]
      %v2693 = vld [vmem:[%s354 + $0x20] sm:$0xf]
      %v2694 = vld [vmem:[%s354 + $0x24] sm:$0xf]
      %v2695 = vld [vmem:[%s354 + $0x28] sm:$0xf]
      %v2696 = vld [vmem:[%s354 + $0x2c] sm:$0xf]
      %v2697 = vld [vmem:[%s354 + $0x30] sm:$0xf]
      %v2698 = vld [vmem:[%s354 + $0x34] sm:$0xf]
      %v2699 = vld [vmem:[%s354 + $0x38] sm:$0xf]
      %v2700 = vld [vmem:[%s354 + $0x3c] sm:$0xf]
      %v2701 = vld [vmem:[%s354 + $0x40] sm:$0xf]
      %v2702 = vld [vmem:[%s354 + $0x44] sm:$0xf]
      %v2703 = vld [vmem:[%s354 + $0x48] sm:$0xf]
      %v2704 = vld [vmem:[%s354 + $0x4c] sm:$0xf]
      %v2705 = vld [vmem:[%s354 + $0x50] sm:$0xf]
      %v2706 = vld [vmem:[%s354 + $0x54] sm:$0xf]
      %v2707 = vld [vmem:[%s354 + $0x58] sm:$0xf]
      %v2708 = vld [vmem:[%s354 + $0x5c] sm:$0xf]
      %v2709 = vld [vmem:[%s354 + $0x60] sm:$0xf]
      %v2710 = vld [vmem:[%s354 + $0x64] sm:$0xf]
      %v2711 = vld [vmem:[%s354 + $0x68] sm:$0xf]
      %v2712 = vld [vmem:[%s354 + $0x6c] sm:$0xf]
      %v2713 = vld [vmem:[%s354 + $0x70] sm:$0xf]
      %v2714 = vld [vmem:[%s354 + $0x74] sm:$0xf]
      %v2715 = vld [vmem:[%s354 + $0x78] sm:$0xf]
      %v2716 = vld [vmem:[%s354 + $0x7c] sm:$0xf]
      %v2717 = vld [vmem:[%s354 + $0x80] sm:$0xf]
      %v2718 = vld [vmem:[%s354 + $0x84] sm:$0xf]
      %v2719 = vld [vmem:[%s354 + $0x88] sm:$0xf]
      %v2720 = vld [vmem:[%s354 + $0x8c] sm:$0xf]
      %v2721 = vld [vmem:[%s354 + $0x90] sm:$0xf]
      %v2722 = vld [vmem:[%s354 + $0x94] sm:$0xf]
      %s2723 = scalar_lea.vmem %s1, 192
      %v2724 = vld [vmem:[%s2723] sm:$0xf]
      %v2725 = vld [vmem:[%s2723 + $0x4] sm:$0xf]
      %v2726 = vld [vmem:[%s2723 + $0x8] sm:$0xf]
      %v2727 = vld [vmem:[%s2723 + $0xc] sm:$0xf]
      %v2728 = vld [vmem:[%s2723 + $0x10] sm:$0xf]
      %v2729 = vld [vmem:[%s2723 + $0x14] sm:$0xf]
      %v2730 = vld [vmem:[%s2723 + $0x18] sm:$0xf]
      %v2731 = vld [vmem:[%s2723 + $0x1c] sm:$0xf]
      %v2732 = vld [vmem:[%s2723 + $0x20] sm:$0xf]
      %v2733 = vld [vmem:[%s2723 + $0x24] sm:$0xf]
      %v2734 = vld [vmem:[%s2723 + $0x28] sm:$0xf]
      %v2735 = vld [vmem:[%s2723 + $0x2c] sm:$0xf]
      %v2736 = vld [vmem:[%s2723 + $0x30] sm:$0xf]
      %v2737 = vld [vmem:[%s2723 + $0x34] sm:$0xf]
      %v2738 = vld [vmem:[%s2723 + $0x38] sm:$0xf]
      %v2739 = vld [vmem:[%s2723 + $0x3c] sm:$0xf]
      %v2776 = vunpack.c.l.b16 %v2687
      %v2777 = vunpack.c.l.b16 %v2688
      %v2778 = vunpack.c.l.b16 %v2689
      %v2779 = vunpack.c.l.b16 %v2690
      %v2780 = vunpack.c.l.b16 %v2691
      %v2781 = vunpack.c.l.b16 %v2692
      %v2782 = vunpack.c.l.b16 %v2693
      %v2783 = vunpack.c.l.b16 %v2694
      %v2784 = vunpack.c.l.b16 %v2695
      %v2785 = vunpack.c.l.b16 %v2696
      %v2786 = vunpack.c.l.b16 %v2697
      %v2787 = vunpack.c.l.b16 %v2698
      %v2788 = vunpack.c.l.b16 %v2699
      %v2789 = vunpack.c.l.b16 %v2700
      %v2790 = vunpack.c.l.b16 %v2701
      %v2791 = vunpack.c.l.b16 %v2702
      %v2792 = vunpack.c.l.b16 %v2703
      %v2793 = vunpack.c.l.b16 %v2704
      %v2794 = vunpack.c.l.b16 %v2705
      %v2795 = vunpack.c.l.b16 %v2706
      %v2796 = vunpack.c.l.b16 %v2707
      %v2797 = vunpack.c.l.b16 %v2708
      %v2798 = vunpack.c.l.b16 %v2709
      %v2799 = vunpack.c.l.b16 %v2710
      %v2800 = vunpack.c.l.b16 %v2711
      %v2801 = vunpack.c.l.b16 %v2712
      %v2802 = vunpack.c.l.b16 %v2713
      %v2803 = vunpack.c.l.b16 %v2714
      %v2804 = vunpack.c.l.b16 %v2715
      %v2805 = vunpack.c.l.b16 %v2716
      %v2806 = vunpack.c.l.b16 %v2717
      %v2807 = vunpack.c.l.b16 %v2718
      %v2808 = vunpack.c.l.b16 %v2719
      %v2809 = vunpack.c.l.b16 %v2720
      %v2810 = vunpack.c.l.b16 %v2721
      %v2811 = vunpack.c.l.b16 %v2722
      %v2812 = vpack.c.b16 %v2777, %v2776
      %v2813 = vpack.c.b16 %v2779, %v2778
      %v2814 = vpack.c.b16 %v2781, %v2780
      %v2815 = vpack.c.b16 %v2783, %v2782
      %v2816 = vpack.c.b16 %v2785, %v2784
      %v2817 = vpack.c.b16 %v2787, %v2786
      %v2818 = vpack.c.b16 %v2789, %v2788
      %v2819 = vpack.c.b16 %v2791, %v2790
      %v2820 = vpack.c.b16 %v2793, %v2792
      %v2821 = vpack.c.b16 %v2795, %v2794
      %v2822 = vpack.c.b16 %v2797, %v2796
      %v2823 = vpack.c.b16 %v2799, %v2798
      %v2824 = vpack.c.b16 %v2801, %v2800
      %v2825 = vpack.c.b16 %v2803, %v2802
      %v2826 = vpack.c.b16 %v2805, %v2804
      %v2827 = vpack.c.b16 %v2807, %v2806
      %v2828 = vpack.c.b16 %v2809, %v2808
      %v2829 = vpack.c.b16 %v2811, %v2810
      %v2830 = vrot.slane %v2812, 1
      %v2831 = vrot.slane %v2813, 1
      %v2832 = vsel %vm2450, %v2830, %v2831
      %v2833 = vrot.slane %v2814, 1
      %v2834 = vsel %vm2450, %v2831, %v2833
      %v2835 = vrot.slane %v2815, 1
      %v2836 = vsel %vm2450, %v2833, %v2835
      %v2837 = vrot.slane %v2816, 1
      %v2838 = vsel %vm2450, %v2835, %v2837
      %v2839 = vrot.slane %v2817, 1
      %v2840 = vsel %vm2450, %v2837, %v2839
      %v2841 = vrot.slane %v2818, 1
      %v2842 = vsel %vm2450, %v2839, %v2841
      %v2843 = vrot.slane %v2819, 1
      %v2844 = vsel %vm2450, %v2841, %v2843
      %v2845 = vrot.slane %v2820, 1
      %v2846 = vsel %vm2450, %v2843, %v2845
      %v2847 = vrot.slane %v2821, 1
      %v2848 = vsel %vm2450, %v2845, %v2847
      %v2849 = vrot.slane %v2822, 1
      %v2850 = vsel %vm2450, %v2847, %v2849
      %v2851 = vrot.slane %v2823, 1
      %v2852 = vsel %vm2450, %v2849, %v2851
      %v2853 = vrot.slane %v2824, 1
      %v2854 = vsel %vm2450, %v2851, %v2853
      %v2855 = vrot.slane %v2825, 1
      %v2856 = vsel %vm2450, %v2853, %v2855
      %v2857 = vrot.slane %v2826, 1
      %v2858 = vsel %vm2450, %v2855, %v2857
      %v2859 = vrot.slane %v2827, 1
      %v2860 = vsel %vm2450, %v2857, %v2859
      %v2861 = vrot.slane %v2828, 1
      %v2862 = vsel %vm2450, %v2859, %v2861
      %v2863 = vrot.slane %v2829, 1
      %v2864 = vsel %vm2450, %v2861, %v2863
      %v2899 = vunpack.c.l.b16 %v2724
      %v2900 = vunpack.c.l.b16 %v2725
      %v2901 = vunpack.c.l.b16 %v2726
      %v2902 = vunpack.c.l.b16 %v2727
      %v2903 = vunpack.c.l.b16 %v2728
      %v2904 = vunpack.c.l.b16 %v2729
      %v2905 = vunpack.c.l.b16 %v2730
      %v2906 = vunpack.c.l.b16 %v2731
      %v2907 = vunpack.c.l.b16 %v2732
      %v2908 = vunpack.c.l.b16 %v2733
      %v2909 = vunpack.c.l.b16 %v2734
      %v2910 = vunpack.c.l.b16 %v2735
      %v2911 = vunpack.c.l.b16 %v2736
      %v2912 = vunpack.c.l.b16 %v2737
      %v2913 = vunpack.c.l.b16 %v2738
      %v2914 = vunpack.c.l.b16 %v2739
      %v2915 = vpack.c.b16 %v2900, %v2899
      %v2916 = vpack.c.b16 %v2902, %v2901
      %v2917 = vpack.c.b16 %v2904, %v2903
      %v2918 = vpack.c.b16 %v2906, %v2905
      %v2919 = vpack.c.b16 %v2908, %v2907
      %v2920 = vpack.c.b16 %v2910, %v2909
      %v2921 = vpack.c.b16 %v2912, %v2911
      %v2922 = vpack.c.b16 %v2914, %v2913
      %2931 = vmatpush.bf16.msra.mxu0 %v2922
      %2932 = vmatpush.bf16.msra.mxu0 %v2921
      %2933 = vmatpush.bf16.msra.mxu0 %v2920
      %2934 = vmatpush.bf16.msra.mxu0 %v2919
      %2935 = vmatpush.bf16.msra.mxu0 %v2918
      %2936 = vmatpush.bf16.msra.mxu0 %v2917
      %2937 = vmatpush.bf16.msra.mxu0 %v2916
      %2938 = vmatpush.bf16.msra.mxu0 %v2915
      %2939 = vmatmul.bf16.gmra.mxu0 %v2832
      %v2940 = vpop.f32.mrf.mxu0
      %v2941 = vadd.f32 0.0, %v2940
      %v2942 = vpop.f32.mrf.mxu0
      %v2943 = vadd.f32 0.0, %v2942
      %2944 = vmatmul.bf16.gmra.mxu0 %v2834
      %v2945 = vpop.f32.mrf.mxu0
      %v2946 = vadd.f32 0.0, %v2945
      %v2947 = vpop.f32.mrf.mxu0
      %v2948 = vadd.f32 0.0, %v2947
      %2949 = vmatmul.bf16.gmra.mxu0 %v2836
      %v2950 = vpop.f32.mrf.mxu0
      %v2951 = vadd.f32 0.0, %v2950
      %v2952 = vpop.f32.mrf.mxu0
      %v2953 = vadd.f32 0.0, %v2952
      %2954 = vmatmul.bf16.gmra.mxu0 %v2838
      %v2955 = vpop.f32.mrf.mxu0
      %v2956 = vadd.f32 0.0, %v2955
      %v2957 = vpop.f32.mrf.mxu0
      %v2958 = vadd.f32 0.0, %v2957
      %2959 = vmatmul.bf16.gmra.mxu0 %v2840
      %v2960 = vpop.f32.mrf.mxu0
      %v2961 = vadd.f32 0.0, %v2960
      %v2962 = vpop.f32.mrf.mxu0
      %v2963 = vadd.f32 0.0, %v2962
      %2964 = vmatmul.bf16.gmra.mxu0 %v2842
      %v2965 = vpop.f32.mrf.mxu0
      %v2966 = vadd.f32 0.0, %v2965
      %v2967 = vpop.f32.mrf.mxu0
      %v2968 = vadd.f32 0.0, %v2967
      %2969 = vmatmul.bf16.gmra.mxu0 %v2844
      %v2970 = vpop.f32.mrf.mxu0
      %v2971 = vadd.f32 0.0, %v2970
      %v2972 = vpop.f32.mrf.mxu0
      %v2973 = vadd.f32 0.0, %v2972
      %2974 = vmatmul.bf16.gmra.mxu0 %v2846
      %v2975 = vpop.f32.mrf.mxu0
      %v2976 = vadd.f32 0.0, %v2975
      %v2977 = vpop.f32.mrf.mxu0
      %v2978 = vadd.f32 0.0, %v2977
      %2979 = vmatmul.bf16.gmra.mxu0 %v2848
      %v2980 = vpop.f32.mrf.mxu0
      %v2981 = vadd.f32 0.0, %v2980
      %v2982 = vpop.f32.mrf.mxu0
      %v2983 = vadd.f32 0.0, %v2982
      %2984 = vmatmul.bf16.gmra.mxu0 %v2850
      %v2985 = vpop.f32.mrf.mxu0
      %v2986 = vadd.f32 0.0, %v2985
      %v2987 = vpop.f32.mrf.mxu0
      %v2988 = vadd.f32 0.0, %v2987
      %2989 = vmatmul.bf16.gmra.mxu0 %v2852
      %v2990 = vpop.f32.mrf.mxu0
      %v2991 = vadd.f32 0.0, %v2990
      %v2992 = vpop.f32.mrf.mxu0
      %v2993 = vadd.f32 0.0, %v2992
      %2994 = vmatmul.bf16.gmra.mxu0 %v2854
      %v2995 = vpop.f32.mrf.mxu0
      %v2996 = vadd.f32 0.0, %v2995
      %v2997 = vpop.f32.mrf.mxu0
      %v2998 = vadd.f32 0.0, %v2997
      %2999 = vmatmul.bf16.gmra.mxu0 %v2856
      %v3000 = vpop.f32.mrf.mxu0
      %v3001 = vadd.f32 0.0, %v3000
      %v3002 = vpop.f32.mrf.mxu0
      %v3003 = vadd.f32 0.0, %v3002
      %3004 = vmatmul.bf16.gmra.mxu0 %v2858
      %v3005 = vpop.f32.mrf.mxu0
      %v3006 = vadd.f32 0.0, %v3005
      %v3007 = vpop.f32.mrf.mxu0
      %v3008 = vadd.f32 0.0, %v3007
      %3009 = vmatmul.bf16.gmra.mxu0 %v2860
      %v3010 = vpop.f32.mrf.mxu0
      %v3011 = vadd.f32 0.0, %v3010
      %v3012 = vpop.f32.mrf.mxu0
      %v3013 = vadd.f32 0.0, %v3012
      %3014 = vmatmul.bf16.gmra.mxu0 %v2862
      %v3015 = vpop.f32.mrf.mxu0
      %v3016 = vadd.f32 0.0, %v3015
      %v3017 = vpop.f32.mrf.mxu0
      %v3018 = vadd.f32 0.0, %v3017
      %3019 = vmatmul.bf16.gmra.mxu0 %v2864
      %v3020 = vpop.f32.mrf.mxu0
      %v3021 = vadd.f32 0.0, %v3020
      %v3022 = vpop.f32.mrf.mxu0
      %v3023 = vadd.f32 0.0, %v3022
      %3024 = vmatmul.bf16.gmra.mxu0 %v2863
      %v3025 = vpop.f32.mrf.mxu0
      %v3026 = vadd.f32 0.0, %v3025
      %v3027 = vpop.f32.mrf.mxu0
      %v3028 = vadd.f32 0.0, %v3027
      %3029 = vdwg.mxu0
      %v3030 = vadd.f32 %v2651, %v2941
      %v3031 = vadd.f32 %v2652, %v2943
      %v3032 = vadd.f32 %v2653, %v2946
      %v3033 = vadd.f32 %v2654, %v2948
      %v3034 = vadd.f32 %v2655, %v2951
      %v3035 = vadd.f32 %v2656, %v2953
      %v3036 = vadd.f32 %v2657, %v2956
      %v3037 = vadd.f32 %v2658, %v2958
      %v3038 = vadd.f32 %v2659, %v2961
      %v3039 = vadd.f32 %v2660, %v2963
      %v3040 = vadd.f32 %v2661, %v2966
      %v3041 = vadd.f32 %v2662, %v2968
      %v3042 = vadd.f32 %v2663, %v2971
      %v3043 = vadd.f32 %v2664, %v2973
      %v3044 = vadd.f32 %v2665, %v2976
      %v3045 = vadd.f32 %v2666, %v2978
      %v3046 = vadd.f32 %v2667, %v2981
      %v3047 = vadd.f32 %v2668, %v2983
      %v3048 = vadd.f32 %v2669, %v2986
      %v3049 = vadd.f32 %v2670, %v2988
      %v3050 = vadd.f32 %v2671, %v2991
      %v3051 = vadd.f32 %v2672, %v2993
      %v3052 = vadd.f32 %v2673, %v2996
      %v3053 = vadd.f32 %v2674, %v2998
      %v3054 = vadd.f32 %v2675, %v3001
      %v3055 = vadd.f32 %v2676, %v3003
      %v3056 = vadd.f32 %v2677, %v3006
      %v3057 = vadd.f32 %v2678, %v3008
      %v3058 = vadd.f32 %v2679, %v3011
      %v3059 = vadd.f32 %v2680, %v3013
      %v3060 = vadd.f32 %v2681, %v3016
      %v3061 = vadd.f32 %v2682, %v3018
      %v3062 = vadd.f32 %v2683, %v3021
      %v3063 = vadd.f32 %v2684, %v3023
      %v3064 = vadd.f32 %v2685, %v3026
      %v3065 = vadd.f32 %v2686, %v3028
      %v3066 = vld [vmem:[%s354 + $0x8] sm:$0xe]
      %v3067 = vld [vmem:[%s354 + $0xc] sm:$0xf]
      %v3068 = vld [vmem:[%s354 + $0x10] sm:$0xf]
      %v3069 = vld [vmem:[%s354 + $0x14] sm:$0xf]
      %v3070 = vld [vmem:[%s354 + $0x18] sm:$0xf]
      %v3071 = vld [vmem:[%s354 + $0x1c] sm:$0xf]
      %v3072 = vld [vmem:[%s354 + $0x20] sm:$0xf]
      %v3073 = vld [vmem:[%s354 + $0x24] sm:$0xf]
      %v3074 = vld [vmem:[%s354 + $0x28] sm:$0xf]
      %v3075 = vld [vmem:[%s354 + $0x2c] sm:$0xf]
      %v3076 = vld [vmem:[%s354 + $0x30] sm:$0xf]
      %v3077 = vld [vmem:[%s354 + $0x34] sm:$0xf]
      %v3078 = vld [vmem:[%s354 + $0x38] sm:$0xf]
      %v3079 = vld [vmem:[%s354 + $0x3c] sm:$0xf]
      %v3080 = vld [vmem:[%s354 + $0x40] sm:$0xf]
      %v3081 = vld [vmem:[%s354 + $0x44] sm:$0xf]
      %v3082 = vld [vmem:[%s354 + $0x48] sm:$0xf]
      %v3083 = vld [vmem:[%s354 + $0x4c] sm:$0xf]
      %v3084 = vld [vmem:[%s354 + $0x50] sm:$0xf]
      %v3085 = vld [vmem:[%s354 + $0x54] sm:$0xf]
      %v3086 = vld [vmem:[%s354 + $0x58] sm:$0xf]
      %v3087 = vld [vmem:[%s354 + $0x5c] sm:$0xf]
      %v3088 = vld [vmem:[%s354 + $0x60] sm:$0xf]
      %v3089 = vld [vmem:[%s354 + $0x64] sm:$0xf]
      %v3090 = vld [vmem:[%s354 + $0x68] sm:$0xf]
      %v3091 = vld [vmem:[%s354 + $0x6c] sm:$0xf]
      %v3092 = vld [vmem:[%s354 + $0x70] sm:$0xf]
      %v3093 = vld [vmem:[%s354 + $0x74] sm:$0xf]
      %v3094 = vld [vmem:[%s354 + $0x78] sm:$0xf]
      %v3095 = vld [vmem:[%s354 + $0x7c] sm:$0xf]
      %v3096 = vld [vmem:[%s354 + $0x80] sm:$0xf]
      %v3097 = vld [vmem:[%s354 + $0x84] sm:$0xf]
      %v3098 = vld [vmem:[%s354 + $0x88] sm:$0xf]
      %v3099 = vld [vmem:[%s354 + $0x8c] sm:$0xf]
      %v3100 = vld [vmem:[%s354 + $0x90] sm:$0xf]
      %v3101 = vld [vmem:[%s354 + $0x94] sm:$0xf]
      %v3102 = vld [vmem:[%s354 + $0x98] sm:$0x1]
      %s3103 = scalar_lea.vmem %s1, 256
      %v3104 = vld [vmem:[%s3103] sm:$0xf]
      %v3105 = vld [vmem:[%s3103 + $0x4] sm:$0xf]
      %v3106 = vld [vmem:[%s3103 + $0x8] sm:$0xf]
      %v3107 = vld [vmem:[%s3103 + $0xc] sm:$0xf]
      %v3108 = vld [vmem:[%s3103 + $0x10] sm:$0xf]
      %v3109 = vld [vmem:[%s3103 + $0x14] sm:$0xf]
      %v3110 = vld [vmem:[%s3103 + $0x18] sm:$0xf]
      %v3111 = vld [vmem:[%s3103 + $0x1c] sm:$0xf]
      %v3112 = vld [vmem:[%s3103 + $0x20] sm:$0xf]
      %v3113 = vld [vmem:[%s3103 + $0x24] sm:$0xf]
      %v3114 = vld [vmem:[%s3103 + $0x28] sm:$0xf]
      %v3115 = vld [vmem:[%s3103 + $0x2c] sm:$0xf]
      %v3116 = vld [vmem:[%s3103 + $0x30] sm:$0xf]
      %v3117 = vld [vmem:[%s3103 + $0x34] sm:$0xf]
      %v3118 = vld [vmem:[%s3103 + $0x38] sm:$0xf]
      %v3119 = vld [vmem:[%s3103 + $0x3c] sm:$0xf]
      %v3157 = vunpack.c.l.b16 %v3066
      %v3158 = vunpack.c.l.b16 %v3067
      %v3159 = vunpack.c.l.b16 %v3068
      %v3160 = vunpack.c.l.b16 %v3069
      %v3161 = vunpack.c.l.b16 %v3070
      %v3162 = vunpack.c.l.b16 %v3071
      %v3163 = vunpack.c.l.b16 %v3072
      %v3164 = vunpack.c.l.b16 %v3073
      %v3165 = vunpack.c.l.b16 %v3074
      %v3166 = vunpack.c.l.b16 %v3075
      %v3167 = vunpack.c.l.b16 %v3076
      %v3168 = vunpack.c.l.b16 %v3077
      %v3169 = vunpack.c.l.b16 %v3078
      %v3170 = vunpack.c.l.b16 %v3079
      %v3171 = vunpack.c.l.b16 %v3080
      %v3172 = vunpack.c.l.b16 %v3081
      %v3173 = vunpack.c.l.b16 %v3082
      %v3174 = vunpack.c.l.b16 %v3083
      %v3175 = vunpack.c.l.b16 %v3084
      %v3176 = vunpack.c.l.b16 %v3085
      %v3177 = vunpack.c.l.b16 %v3086
      %v3178 = vunpack.c.l.b16 %v3087
      %v3179 = vunpack.c.l.b16 %v3088
      %v3180 = vunpack.c.l.b16 %v3089
      %v3181 = vunpack.c.l.b16 %v3090
      %v3182 = vunpack.c.l.b16 %v3091
      %v3183 = vunpack.c.l.b16 %v3092
      %v3184 = vunpack.c.l.b16 %v3093
      %v3185 = vunpack.c.l.b16 %v3094
      %v3186 = vunpack.c.l.b16 %v3095
      %v3187 = vunpack.c.l.b16 %v3096
      %v3188 = vunpack.c.l.b16 %v3097
      %v3189 = vunpack.c.l.b16 %v3098
      %v3190 = vunpack.c.l.b16 %v3099
      %v3191 = vunpack.c.l.b16 %v3100
      %v3192 = vunpack.c.l.b16 %v3101
      %v3193 = vunpack.c.l.b16 %v3102
      %v3194 = vpack.c.b16 %v3158, %v3157
      %v3195 = vpack.c.b16 %v3160, %v3159
      %v3196 = vpack.c.b16 %v3162, %v3161
      %v3197 = vpack.c.b16 %v3164, %v3163
      %v3198 = vpack.c.b16 %v3166, %v3165
      %v3199 = vpack.c.b16 %v3168, %v3167
      %v3200 = vpack.c.b16 %v3170, %v3169
      %v3201 = vpack.c.b16 %v3172, %v3171
      %v3202 = vpack.c.b16 %v3174, %v3173
      %v3203 = vpack.c.b16 %v3176, %v3175
      %v3204 = vpack.c.b16 %v3178, %v3177
      %v3205 = vpack.c.b16 %v3180, %v3179
      %v3206 = vpack.c.b16 %v3182, %v3181
      %v3207 = vpack.c.b16 %v3184, %v3183
      %v3208 = vpack.c.b16 %v3186, %v3185
      %v3209 = vpack.c.b16 %v3188, %v3187
      %v3210 = vpack.c.b16 %v3190, %v3189
      %v3211 = vpack.c.b16 %v3192, %v3191
      %v3212 = vpack.c.b16 %v3193, %v3193
      %vm3213 = vsmask.f32 6400
      %v3215 = vshrl.u32 %v3194, 16
      %v3217 = vrot.slane %v3215, 1
      %v3218 = vshll.u32 %v3194, 16
      %v3220 = vrot.slane %v3218, 2
      %v3221 = vor.u32 %v3217, %v3220
      %v3223 = vshrl.u32 %v3195, 16
      %v3225 = vrot.slane %v3223, 1
      %v3226 = vshll.u32 %v3195, 16
      %v3228 = vrot.slane %v3226, 2
      %v3229 = vor.u32 %v3225, %v3228
      %v3230 = vsel %vm3213, %v3221, %v3229
      %v3232 = vshrl.u32 %v3196, 16
      %v3234 = vrot.slane %v3232, 1
      %v3235 = vshll.u32 %v3196, 16
      %v3237 = vrot.slane %v3235, 2
      %v3238 = vor.u32 %v3234, %v3237
      %v3239 = vsel %vm3213, %v3229, %v3238
      %v3241 = vshrl.u32 %v3197, 16
      %v3243 = vrot.slane %v3241, 1
      %v3244 = vshll.u32 %v3197, 16
      %v3246 = vrot.slane %v3244, 2
      %v3247 = vor.u32 %v3243, %v3246
      %v3248 = vsel %vm3213, %v3238, %v3247
      %v3250 = vshrl.u32 %v3198, 16
      %v3252 = vrot.slane %v3250, 1
      %v3253 = vshll.u32 %v3198, 16
      %v3255 = vrot.slane %v3253, 2
      %v3256 = vor.u32 %v3252, %v3255
      %v3257 = vsel %vm3213, %v3247, %v3256
      %v3259 = vshrl.u32 %v3199, 16
      %v3261 = vrot.slane %v3259, 1
      %v3262 = vshll.u32 %v3199, 16
      %v3264 = vrot.slane %v3262, 2
      %v3265 = vor.u32 %v3261, %v3264
      %v3266 = vsel %vm3213, %v3256, %v3265
      %v3268 = vshrl.u32 %v3200, 16
      %v3270 = vrot.slane %v3268, 1
      %v3271 = vshll.u32 %v3200, 16
      %v3273 = vrot.slane %v3271, 2
      %v3274 = vor.u32 %v3270, %v3273
      %v3275 = vsel %vm3213, %v3265, %v3274
      %v3277 = vshrl.u32 %v3201, 16
      %v3279 = vrot.slane %v3277, 1
      %v3280 = vshll.u32 %v3201, 16
      %v3282 = vrot.slane %v3280, 2
      %v3283 = vor.u32 %v3279, %v3282
      %v3284 = vsel %vm3213, %v3274, %v3283
      %v3286 = vshrl.u32 %v3202, 16
      %v3288 = vrot.slane %v3286, 1
      %v3289 = vshll.u32 %v3202, 16
      %v3291 = vrot.slane %v3289, 2
      %v3292 = vor.u32 %v3288, %v3291
      %v3293 = vsel %vm3213, %v3283, %v3292
      %v3295 = vshrl.u32 %v3203, 16
      %v3297 = vrot.slane %v3295, 1
      %v3298 = vshll.u32 %v3203, 16
      %v3300 = vrot.slane %v3298, 2
      %v3301 = vor.u32 %v3297, %v3300
      %v3302 = vsel %vm3213, %v3292, %v3301
      %v3304 = vshrl.u32 %v3204, 16
      %v3306 = vrot.slane %v3304, 1
      %v3307 = vshll.u32 %v3204, 16
      %v3309 = vrot.slane %v3307, 2
      %v3310 = vor.u32 %v3306, %v3309
      %v3311 = vsel %vm3213, %v3301, %v3310
      %v3313 = vshrl.u32 %v3205, 16
      %v3315 = vrot.slane %v3313, 1
      %v3316 = vshll.u32 %v3205, 16
      %v3318 = vrot.slane %v3316, 2
      %v3319 = vor.u32 %v3315, %v3318
      %v3320 = vsel %vm3213, %v3310, %v3319
      %v3322 = vshrl.u32 %v3206, 16
      %v3324 = vrot.slane %v3322, 1
      %v3325 = vshll.u32 %v3206, 16
      %v3327 = vrot.slane %v3325, 2
      %v3328 = vor.u32 %v3324, %v3327
      %v3329 = vsel %vm3213, %v3319, %v3328
      %v3331 = vshrl.u32 %v3207, 16
      %v3333 = vrot.slane %v3331, 1
      %v3334 = vshll.u32 %v3207, 16
      %v3336 = vrot.slane %v3334, 2
      %v3337 = vor.u32 %v3333, %v3336
      %v3338 = vsel %vm3213, %v3328, %v3337
      %v3340 = vshrl.u32 %v3208, 16
      %v3342 = vrot.slane %v3340, 1
      %v3343 = vshll.u32 %v3208, 16
      %v3345 = vrot.slane %v3343, 2
      %v3346 = vor.u32 %v3342, %v3345
      %v3347 = vsel %vm3213, %v3337, %v3346
      %v3349 = vshrl.u32 %v3209, 16
      %v3351 = vrot.slane %v3349, 1
      %v3352 = vshll.u32 %v3209, 16
      %v3354 = vrot.slane %v3352, 2
      %v3355 = vor.u32 %v3351, %v3354
      %v3356 = vsel %vm3213, %v3346, %v3355
      %v3358 = vshrl.u32 %v3210, 16
      %v3360 = vrot.slane %v3358, 1
      %v3361 = vshll.u32 %v3210, 16
      %v3363 = vrot.slane %v3361, 2
      %v3364 = vor.u32 %v3360, %v3363
      %v3365 = vsel %vm3213, %v3355, %v3364
      %v3367 = vshrl.u32 %v3211, 16
      %v3369 = vrot.slane %v3367, 1
      %v3370 = vshll.u32 %v3211, 16
      %v3372 = vrot.slane %v3370, 2
      %v3373 = vor.u32 %v3369, %v3372
      %v3374 = vsel %vm3213, %v3364, %v3373
      %v3376 = vshll.u32 %v3212, 16
      %v3378 = vrot.slane %v3376, 2
      %v3379 = vsel %vm3213, %v3373, %v3378
      %v3414 = vunpack.c.l.b16 %v3104
      %v3415 = vunpack.c.l.b16 %v3105
      %v3416 = vunpack.c.l.b16 %v3106
      %v3417 = vunpack.c.l.b16 %v3107
      %v3418 = vunpack.c.l.b16 %v3108
      %v3419 = vunpack.c.l.b16 %v3109
      %v3420 = vunpack.c.l.b16 %v3110
      %v3421 = vunpack.c.l.b16 %v3111
      %v3422 = vunpack.c.l.b16 %v3112
      %v3423 = vunpack.c.l.b16 %v3113
      %v3424 = vunpack.c.l.b16 %v3114
      %v3425 = vunpack.c.l.b16 %v3115
      %v3426 = vunpack.c.l.b16 %v3116
      %v3427 = vunpack.c.l.b16 %v3117
      %v3428 = vunpack.c.l.b16 %v3118
      %v3429 = vunpack.c.l.b16 %v3119
      %v3430 = vpack.c.b16 %v3415, %v3414
      %v3431 = vpack.c.b16 %v3417, %v3416
      %v3432 = vpack.c.b16 %v3419, %v3418
      %v3433 = vpack.c.b16 %v3421, %v3420
      %v3434 = vpack.c.b16 %v3423, %v3422
      %v3435 = vpack.c.b16 %v3425, %v3424
      %v3436 = vpack.c.b16 %v3427, %v3426
      %v3437 = vpack.c.b16 %v3429, %v3428
      %3446 = vmatpush.bf16.msra.mxu0 %v3437
      %3447 = vmatpush.bf16.msra.mxu0 %v3436
      %3448 = vmatpush.bf16.msra.mxu0 %v3435
      %3449 = vmatpush.bf16.msra.mxu0 %v3434
      %3450 = vmatpush.bf16.msra.mxu0 %v3433
      %3451 = vmatpush.bf16.msra.mxu0 %v3432
      %3452 = vmatpush.bf16.msra.mxu0 %v3431
      %3453 = vmatpush.bf16.msra.mxu0 %v3430
      %3454 = vmatmul.bf16.gmra.mxu0 %v3230
      %v3455 = vpop.f32.mrf.mxu0
      %v3456 = vadd.f32 0.0, %v3455
      %v3457 = vpop.f32.mrf.mxu0
      %v3458 = vadd.f32 0.0, %v3457
      %3459 = vmatmul.bf16.gmra.mxu0 %v3239
      %v3460 = vpop.f32.mrf.mxu0
      %v3461 = vadd.f32 0.0, %v3460
      %v3462 = vpop.f32.mrf.mxu0
      %v3463 = vadd.f32 0.0, %v3462
      %3464 = vmatmul.bf16.gmra.mxu0 %v3248
      %v3465 = vpop.f32.mrf.mxu0
      %v3466 = vadd.f32 0.0, %v3465
      %v3467 = vpop.f32.mrf.mxu0
      %v3468 = vadd.f32 0.0, %v3467
      %3469 = vmatmul.bf16.gmra.mxu0 %v3257
      %v3470 = vpop.f32.mrf.mxu0
      %v3471 = vadd.f32 0.0, %v3470
      %v3472 = vpop.f32.mrf.mxu0
      %v3473 = vadd.f32 0.0, %v3472
      %3474 = vmatmul.bf16.gmra.mxu0 %v3266
      %v3475 = vpop.f32.mrf.mxu0
      %v3476 = vadd.f32 0.0, %v3475
      %v3477 = vpop.f32.mrf.mxu0
      %v3478 = vadd.f32 0.0, %v3477
      %3479 = vmatmul.bf16.gmra.mxu0 %v3275
      %v3480 = vpop.f32.mrf.mxu0
      %v3481 = vadd.f32 0.0, %v3480
      %v3482 = vpop.f32.mrf.mxu0
      %v3483 = vadd.f32 0.0, %v3482
      %3484 = vmatmul.bf16.gmra.mxu0 %v3284
      %v3485 = vpop.f32.mrf.mxu0
      %v3486 = vadd.f32 0.0, %v3485
      %v3487 = vpop.f32.mrf.mxu0
      %v3488 = vadd.f32 0.0, %v3487
      %3489 = vmatmul.bf16.gmra.mxu0 %v3293
      %v3490 = vpop.f32.mrf.mxu0
      %v3491 = vadd.f32 0.0, %v3490
      %v3492 = vpop.f32.mrf.mxu0
      %v3493 = vadd.f32 0.0, %v3492
      %3494 = vmatmul.bf16.gmra.mxu0 %v3302
      %v3495 = vpop.f32.mrf.mxu0
      %v3496 = vadd.f32 0.0, %v3495
      %v3497 = vpop.f32.mrf.mxu0
      %v3498 = vadd.f32 0.0, %v3497
      %3499 = vmatmul.bf16.gmra.mxu0 %v3311
      %v3500 = vpop.f32.mrf.mxu0
      %v3501 = vadd.f32 0.0, %v3500
      %v3502 = vpop.f32.mrf.mxu0
      %v3503 = vadd.f32 0.0, %v3502
      %3504 = vmatmul.bf16.gmra.mxu0 %v3320
      %v3505 = vpop.f32.mrf.mxu0
      %v3506 = vadd.f32 0.0, %v3505
      %v3507 = vpop.f32.mrf.mxu0
      %v3508 = vadd.f32 0.0, %v3507
      %3509 = vmatmul.bf16.gmra.mxu0 %v3329
      %v3510 = vpop.f32.mrf.mxu0
      %v3511 = vadd.f32 0.0, %v3510
      %v3512 = vpop.f32.mrf.mxu0
      %v3513 = vadd.f32 0.0, %v3512
      %3514 = vmatmul.bf16.gmra.mxu0 %v3338
      %v3515 = vpop.f32.mrf.mxu0
      %v3516 = vadd.f32 0.0, %v3515
      %v3517 = vpop.f32.mrf.mxu0
      %v3518 = vadd.f32 0.0, %v3517
      %3519 = vmatmul.bf16.gmra.mxu0 %v3347
      %v3520 = vpop.f32.mrf.mxu0
      %v3521 = vadd.f32 0.0, %v3520
      %v3522 = vpop.f32.mrf.mxu0
      %v3523 = vadd.f32 0.0, %v3522
      %3524 = vmatmul.bf16.gmra.mxu0 %v3356
      %v3525 = vpop.f32.mrf.mxu0
      %v3526 = vadd.f32 0.0, %v3525
      %v3527 = vpop.f32.mrf.mxu0
      %v3528 = vadd.f32 0.0, %v3527
      %3529 = vmatmul.bf16.gmra.mxu0 %v3365
      %v3530 = vpop.f32.mrf.mxu0
      %v3531 = vadd.f32 0.0, %v3530
      %v3532 = vpop.f32.mrf.mxu0
      %v3533 = vadd.f32 0.0, %v3532
      %3534 = vmatmul.bf16.gmra.mxu0 %v3374
      %v3535 = vpop.f32.mrf.mxu0
      %v3536 = vadd.f32 0.0, %v3535
      %v3537 = vpop.f32.mrf.mxu0
      %v3538 = vadd.f32 0.0, %v3537
      %3539 = vmatmul.bf16.gmra.mxu0 %v3379
      %v3540 = vpop.f32.mrf.mxu0
      %v3541 = vadd.f32 0.0, %v3540
      %v3542 = vpop.f32.mrf.mxu0
      %v3543 = vadd.f32 0.0, %v3542
      %3544 = vdwg.mxu0
      %v3545 = vadd.f32 %v3030, %v3456
      %v3546 = vadd.f32 %v3031, %v3458
      %v3547 = vadd.f32 %v3032, %v3461
      %v3548 = vadd.f32 %v3033, %v3463
      %v3549 = vadd.f32 %v3034, %v3466
      %v3550 = vadd.f32 %v3035, %v3468
      %v3551 = vadd.f32 %v3036, %v3471
      %v3552 = vadd.f32 %v3037, %v3473
      %v3553 = vadd.f32 %v3038, %v3476
      %v3554 = vadd.f32 %v3039, %v3478
      %v3555 = vadd.f32 %v3040, %v3481
      %v3556 = vadd.f32 %v3041, %v3483
      %v3557 = vadd.f32 %v3042, %v3486
      %v3558 = vadd.f32 %v3043, %v3488
      %v3559 = vadd.f32 %v3044, %v3491
      %v3560 = vadd.f32 %v3045, %v3493
      %v3561 = vadd.f32 %v3046, %v3496
      %v3562 = vadd.f32 %v3047, %v3498
      %v3563 = vadd.f32 %v3048, %v3501
      %v3564 = vadd.f32 %v3049, %v3503
      %v3565 = vadd.f32 %v3050, %v3506
      %v3566 = vadd.f32 %v3051, %v3508
      %v3567 = vadd.f32 %v3052, %v3511
      %v3568 = vadd.f32 %v3053, %v3513
      %v3569 = vadd.f32 %v3054, %v3516
      %v3570 = vadd.f32 %v3055, %v3518
      %v3571 = vadd.f32 %v3056, %v3521
      %v3572 = vadd.f32 %v3057, %v3523
      %v3573 = vadd.f32 %v3058, %v3526
      %v3574 = vadd.f32 %v3059, %v3528
      %v3575 = vadd.f32 %v3060, %v3531
      %v3576 = vadd.f32 %v3061, %v3533
      %v3577 = vadd.f32 %v3062, %v3536
      %v3578 = vadd.f32 %v3063, %v3538
      %v3579 = vadd.f32 %v3064, %v3541
      %v3580 = vadd.f32 %v3065, %v3543
      %v3581 = vld [vmem:[%s354 + $0x8] sm:$0xc]
      %s3582 = scalar_lea.vmem %s1, 320
      %v3583 = vld [vmem:[%s3582] sm:$0xf]
      %v3584 = vld [vmem:[%s3582 + $0x4] sm:$0xf]
      %v3585 = vld [vmem:[%s3582 + $0x8] sm:$0xf]
      %v3586 = vld [vmem:[%s3582 + $0xc] sm:$0xf]
      %v3587 = vld [vmem:[%s3582 + $0x10] sm:$0xf]
      %v3588 = vld [vmem:[%s3582 + $0x14] sm:$0xf]
      %v3589 = vld [vmem:[%s3582 + $0x18] sm:$0xf]
      %v3590 = vld [vmem:[%s3582 + $0x1c] sm:$0xf]
      %v3591 = vld [vmem:[%s3582 + $0x20] sm:$0xf]
      %v3592 = vld [vmem:[%s3582 + $0x24] sm:$0xf]
      %v3593 = vld [vmem:[%s3582 + $0x28] sm:$0xf]
      %v3594 = vld [vmem:[%s3582 + $0x2c] sm:$0xf]
      %v3595 = vld [vmem:[%s3582 + $0x30] sm:$0xf]
      %v3596 = vld [vmem:[%s3582 + $0x34] sm:$0xf]
      %v3597 = vld [vmem:[%s3582 + $0x38] sm:$0xf]
      %v3598 = vld [vmem:[%s3582 + $0x3c] sm:$0xf]
      %v3600 = vunpack.c.l.b16 %v3581
      %v3601 = vpack.c.b16 %v3158, %v3600
      %vm3602 = vcmask 1045504
      %v3603 = vrot.slane %v3601, 2
      %v3604 = vrot.slane %v3195, 2
      %v3605 = vsel %vm3602, %v3603, %v3604
      %v3606 = vrot.slane %v3196, 2
      %v3607 = vsel %vm3602, %v3604, %v3606
      %v3608 = vrot.slane %v3197, 2
      %v3609 = vsel %vm3602, %v3606, %v3608
      %v3610 = vrot.slane %v3198, 2
      %v3611 = vsel %vm3602, %v3608, %v3610
      %v3612 = vrot.slane %v3199, 2
      %v3613 = vsel %vm3602, %v3610, %v3612
      %v3614 = vrot.slane %v3200, 2
      %v3615 = vsel %vm3602, %v3612, %v3614
      %v3616 = vrot.slane %v3201, 2
      %v3617 = vsel %vm3602, %v3614, %v3616
      %v3618 = vrot.slane %v3202, 2
      %v3619 = vsel %vm3602, %v3616, %v3618
      %v3620 = vrot.slane %v3203, 2
      %v3621 = vsel %vm3602, %v3618, %v3620
      %v3622 = vrot.slane %v3204, 2
      %v3623 = vsel %vm3602, %v3620, %v3622
      %v3624 = vrot.slane %v3205, 2
      %v3625 = vsel %vm3602, %v3622, %v3624
      %v3626 = vrot.slane %v3206, 2
      %v3627 = vsel %vm3602, %v3624, %v3626
      %v3628 = vrot.slane %v3207, 2
      %v3629 = vsel %vm3602, %v3626, %v3628
      %v3630 = vrot.slane %v3208, 2
      %v3631 = vsel %vm3602, %v3628, %v3630
      %v3632 = vrot.slane %v3209, 2
      %v3633 = vsel %vm3602, %v3630, %v3632
      %v3634 = vrot.slane %v3210, 2
      %v3635 = vsel %vm3602, %v3632, %v3634
      %v3636 = vrot.slane %v3211, 2
      %v3637 = vsel %vm3602, %v3634, %v3636
      %v3638 = vrot.slane %v3212, 2
      %v3639 = vsel %vm3602, %v3636, %v3638
      %v3674 = vunpack.c.l.b16 %v3583
      %v3675 = vunpack.c.l.b16 %v3584
      %v3676 = vunpack.c.l.b16 %v3585
      %v3677 = vunpack.c.l.b16 %v3586
      %v3678 = vunpack.c.l.b16 %v3587
      %v3679 = vunpack.c.l.b16 %v3588
      %v3680 = vunpack.c.l.b16 %v3589
      %v3681 = vunpack.c.l.b16 %v3590
      %v3682 = vunpack.c.l.b16 %v3591
      %v3683 = vunpack.c.l.b16 %v3592
      %v3684 = vunpack.c.l.b16 %v3593
      %v3685 = vunpack.c.l.b16 %v3594
      %v3686 = vunpack.c.l.b16 %v3595
      %v3687 = vunpack.c.l.b16 %v3596
      %v3688 = vunpack.c.l.b16 %v3597
      %v3689 = vunpack.c.l.b16 %v3598
      %v3690 = vpack.c.b16 %v3675, %v3674
      %v3691 = vpack.c.b16 %v3677, %v3676
      %v3692 = vpack.c.b16 %v3679, %v3678
      %v3693 = vpack.c.b16 %v3681, %v3680
      %v3694 = vpack.c.b16 %v3683, %v3682
      %v3695 = vpack.c.b16 %v3685, %v3684
      %v3696 = vpack.c.b16 %v3687, %v3686
      %v3697 = vpack.c.b16 %v3689, %v3688
      %3706 = vmatpush.bf16.msra.mxu0 %v3697
      %3707 = vmatpush.bf16.msra.mxu0 %v3696
      %3708 = vmatpush.bf16.msra.mxu0 %v3695
      %3709 = vmatpush.bf16.msra.mxu0 %v3694
      %3710 = vmatpush.bf16.msra.mxu0 %v3693
      %3711 = vmatpush.bf16.msra.mxu0 %v3692
      %3712 = vmatpush.bf16.msra.mxu0 %v3691
      %3713 = vmatpush.bf16.msra.mxu0 %v3690
      %3714 = vmatmul.bf16.gmra.mxu0 %v3605
      %v3715 = vpop.f32.mrf.mxu0
      %v3716 = vadd.f32 0.0, %v3715
      %v3717 = vpop.f32.mrf.mxu0
      %v3718 = vadd.f32 0.0, %v3717
      %3719 = vmatmul.bf16.gmra.mxu0 %v3607
      %v3720 = vpop.f32.mrf.mxu0
      %v3721 = vadd.f32 0.0, %v3720
      %v3722 = vpop.f32.mrf.mxu0
      %v3723 = vadd.f32 0.0, %v3722
      %3724 = vmatmul.bf16.gmra.mxu0 %v3609
      %v3725 = vpop.f32.mrf.mxu0
      %v3726 = vadd.f32 0.0, %v3725
      %v3727 = vpop.f32.mrf.mxu0
      %v3728 = vadd.f32 0.0, %v3727
      %3729 = vmatmul.bf16.gmra.mxu0 %v3611
      %v3730 = vpop.f32.mrf.mxu0
      %v3731 = vadd.f32 0.0, %v3730
      %v3732 = vpop.f32.mrf.mxu0
      %v3733 = vadd.f32 0.0, %v3732
      %3734 = vmatmul.bf16.gmra.mxu0 %v3613
      %v3735 = vpop.f32.mrf.mxu0
      %v3736 = vadd.f32 0.0, %v3735
      %v3737 = vpop.f32.mrf.mxu0
      %v3738 = vadd.f32 0.0, %v3737
      %3739 = vmatmul.bf16.gmra.mxu0 %v3615
      %v3740 = vpop.f32.mrf.mxu0
      %v3741 = vadd.f32 0.0, %v3740
      %v3742 = vpop.f32.mrf.mxu0
      %v3743 = vadd.f32 0.0, %v3742
      %3744 = vmatmul.bf16.gmra.mxu0 %v3617
      %v3745 = vpop.f32.mrf.mxu0
      %v3746 = vadd.f32 0.0, %v3745
      %v3747 = vpop.f32.mrf.mxu0
      %v3748 = vadd.f32 0.0, %v3747
      %3749 = vmatmul.bf16.gmra.mxu0 %v3619
      %v3750 = vpop.f32.mrf.mxu0
      %v3751 = vadd.f32 0.0, %v3750
      %v3752 = vpop.f32.mrf.mxu0
      %v3753 = vadd.f32 0.0, %v3752
      %3754 = vmatmul.bf16.gmra.mxu0 %v3621
      %v3755 = vpop.f32.mrf.mxu0
      %v3756 = vadd.f32 0.0, %v3755
      %v3757 = vpop.f32.mrf.mxu0
      %v3758 = vadd.f32 0.0, %v3757
      %3759 = vmatmul.bf16.gmra.mxu0 %v3623
      %v3760 = vpop.f32.mrf.mxu0
      %v3761 = vadd.f32 0.0, %v3760
      %v3762 = vpop.f32.mrf.mxu0
      %v3763 = vadd.f32 0.0, %v3762
      %3764 = vmatmul.bf16.gmra.mxu0 %v3625
      %v3765 = vpop.f32.mrf.mxu0
      %v3766 = vadd.f32 0.0, %v3765
      %v3767 = vpop.f32.mrf.mxu0
      %v3768 = vadd.f32 0.0, %v3767
      %3769 = vmatmul.bf16.gmra.mxu0 %v3627
      %v3770 = vpop.f32.mrf.mxu0
      %v3771 = vadd.f32 0.0, %v3770
      %v3772 = vpop.f32.mrf.mxu0
      %v3773 = vadd.f32 0.0, %v3772
      %3774 = vmatmul.bf16.gmra.mxu0 %v3629
      %v3775 = vpop.f32.mrf.mxu0
      %v3776 = vadd.f32 0.0, %v3775
      %v3777 = vpop.f32.mrf.mxu0
      %v3778 = vadd.f32 0.0, %v3777
      %3779 = vmatmul.bf16.gmra.mxu0 %v3631
      %v3780 = vpop.f32.mrf.mxu0
      %v3781 = vadd.f32 0.0, %v3780
      %v3782 = vpop.f32.mrf.mxu0
      %v3783 = vadd.f32 0.0, %v3782
      %3784 = vmatmul.bf16.gmra.mxu0 %v3633
      %v3785 = vpop.f32.mrf.mxu0
      %v3786 = vadd.f32 0.0, %v3785
      %v3787 = vpop.f32.mrf.mxu0
      %v3788 = vadd.f32 0.0, %v3787
      %3789 = vmatmul.bf16.gmra.mxu0 %v3635
      %v3790 = vpop.f32.mrf.mxu0
      %v3791 = vadd.f32 0.0, %v3790
      %v3792 = vpop.f32.mrf.mxu0
      %v3793 = vadd.f32 0.0, %v3792
      %3794 = vmatmul.bf16.gmra.mxu0 %v3637
      %v3795 = vpop.f32.mrf.mxu0
      %v3796 = vadd.f32 0.0, %v3795
      %v3797 = vpop.f32.mrf.mxu0
      %v3798 = vadd.f32 0.0, %v3797
      %3799 = vmatmul.bf16.gmra.mxu0 %v3639
      %v3800 = vpop.f32.mrf.mxu0
      %v3801 = vadd.f32 0.0, %v3800
      %v3802 = vpop.f32.mrf.mxu0
      %v3803 = vadd.f32 0.0, %v3802
      %3804 = vdwg.mxu0
      %v3805 = vadd.f32 %v3545, %v3716
      %v3806 = vadd.f32 %v3546, %v3718
      %v3807 = vadd.f32 %v3547, %v3721
      %v3808 = vadd.f32 %v3548, %v3723
      %v3809 = vadd.f32 %v3549, %v3726
      %v3810 = vadd.f32 %v3550, %v3728
      %v3811 = vadd.f32 %v3551, %v3731
      %v3812 = vadd.f32 %v3552, %v3733
      %v3813 = vadd.f32 %v3553, %v3736
      %v3814 = vadd.f32 %v3554, %v3738
      %v3815 = vadd.f32 %v3555, %v3741
      %v3816 = vadd.f32 %v3556, %v3743
      %v3817 = vadd.f32 %v3557, %v3746
      %v3818 = vadd.f32 %v3558, %v3748
      %v3819 = vadd.f32 %v3559, %v3751
      %v3820 = vadd.f32 %v3560, %v3753
      %v3821 = vadd.f32 %v3561, %v3756
      %v3822 = vadd.f32 %v3562, %v3758
      %v3823 = vadd.f32 %v3563, %v3761
      %v3824 = vadd.f32 %v3564, %v3763
      %v3825 = vadd.f32 %v3565, %v3766
      %v3826 = vadd.f32 %v3566, %v3768
      %v3827 = vadd.f32 %v3567, %v3771
      %v3828 = vadd.f32 %v3568, %v3773
      %v3829 = vadd.f32 %v3569, %v3776
      %v3830 = vadd.f32 %v3570, %v3778
      %v3831 = vadd.f32 %v3571, %v3781
      %v3832 = vadd.f32 %v3572, %v3783
      %v3833 = vadd.f32 %v3573, %v3786
      %v3834 = vadd.f32 %v3574, %v3788
      %v3835 = vadd.f32 %v3575, %v3791
      %v3836 = vadd.f32 %v3576, %v3793
      %v3837 = vadd.f32 %v3577, %v3796
      %v3838 = vadd.f32 %v3578, %v3798
      %v3839 = vadd.f32 %v3579, %v3801
      %v3840 = vadd.f32 %v3580, %v3803
      %v3841 = vld [vmem:[%s354 + $0x10] sm:$0xc]
      %v3842 = vld [vmem:[%s354 + $0x14] sm:$0xf]
      %v3843 = vld [vmem:[%s354 + $0x18] sm:$0xf]
      %v3844 = vld [vmem:[%s354 + $0x1c] sm:$0xf]
      %v3845 = vld [vmem:[%s354 + $0x20] sm:$0xf]
      %v3846 = vld [vmem:[%s354 + $0x24] sm:$0xf]
      %v3847 = vld [vmem:[%s354 + $0x28] sm:$0xf]
      %v3848 = vld [vmem:[%s354 + $0x2c] sm:$0xf]
      %v3849 = vld [vmem:[%s354 + $0x30] sm:$0xf]
      %v3850 = vld [vmem:[%s354 + $0x34] sm:$0xf]
      %v3851 = vld [vmem:[%s354 + $0x38] sm:$0xf]
      %v3852 = vld [vmem:[%s354 + $0x3c] sm:$0xf]
      %v3853 = vld [vmem:[%s354 + $0x40] sm:$0xf]
      %v3854 = vld [vmem:[%s354 + $0x44] sm:$0xf]
      %v3855 = vld [vmem:[%s354 + $0x48] sm:$0xf]
      %v3856 = vld [vmem:[%s354 + $0x4c] sm:$0xf]
      %v3857 = vld [vmem:[%s354 + $0x50] sm:$0xf]
      %v3858 = vld [vmem:[%s354 + $0x54] sm:$0xf]
      %v3859 = vld [vmem:[%s354 + $0x58] sm:$0xf]
      %v3860 = vld [vmem:[%s354 + $0x5c] sm:$0xf]
      %v3861 = vld [vmem:[%s354 + $0x60] sm:$0xf]
      %v3862 = vld [vmem:[%s354 + $0x64] sm:$0xf]
      %v3863 = vld [vmem:[%s354 + $0x68] sm:$0xf]
      %v3864 = vld [vmem:[%s354 + $0x6c] sm:$0xf]
      %v3865 = vld [vmem:[%s354 + $0x70] sm:$0xf]
      %v3866 = vld [vmem:[%s354 + $0x74] sm:$0xf]
      %v3867 = vld [vmem:[%s354 + $0x78] sm:$0xf]
      %v3868 = vld [vmem:[%s354 + $0x7c] sm:$0xf]
      %v3869 = vld [vmem:[%s354 + $0x80] sm:$0xf]
      %v3870 = vld [vmem:[%s354 + $0x84] sm:$0xf]
      %v3871 = vld [vmem:[%s354 + $0x88] sm:$0xf]
      %v3872 = vld [vmem:[%s354 + $0x8c] sm:$0xf]
      %v3873 = vld [vmem:[%s354 + $0x90] sm:$0xf]
      %v3874 = vld [vmem:[%s354 + $0x94] sm:$0xf]
      %v3875 = vld [vmem:[%s354 + $0x98] sm:$0xf]
      %v3876 = vld [vmem:[%s354 + $0x9c] sm:$0xf]
      %v3877 = vld [vmem:[%s354 + $0xa0] sm:$0x1]
      %s3878 = scalar_lea.vmem %s1, 384
      %v3879 = vld [vmem:[%s3878] sm:$0xf]
      %v3880 = vld [vmem:[%s3878 + $0x4] sm:$0xf]
      %v3881 = vld [vmem:[%s3878 + $0x8] sm:$0xf]
      %v3882 = vld [vmem:[%s3878 + $0xc] sm:$0xf]
      %v3883 = vld [vmem:[%s3878 + $0x10] sm:$0xf]
      %v3884 = vld [vmem:[%s3878 + $0x14] sm:$0xf]
      %v3885 = vld [vmem:[%s3878 + $0x18] sm:$0xf]
      %v3886 = vld [vmem:[%s3878 + $0x1c] sm:$0xf]
      %v3887 = vld [vmem:[%s3878 + $0x20] sm:$0xf]
      %v3888 = vld [vmem:[%s3878 + $0x24] sm:$0xf]
      %v3889 = vld [vmem:[%s3878 + $0x28] sm:$0xf]
      %v3890 = vld [vmem:[%s3878 + $0x2c] sm:$0xf]
      %v3891 = vld [vmem:[%s3878 + $0x30] sm:$0xf]
      %v3892 = vld [vmem:[%s3878 + $0x34] sm:$0xf]
      %v3893 = vld [vmem:[%s3878 + $0x38] sm:$0xf]
      %v3894 = vld [vmem:[%s3878 + $0x3c] sm:$0xf]
      %v3932 = vunpack.c.l.b16 %v3841
      %v3933 = vunpack.c.l.b16 %v3842
      %v3934 = vunpack.c.l.b16 %v3843
      %v3935 = vunpack.c.l.b16 %v3844
      %v3936 = vunpack.c.l.b16 %v3845
      %v3937 = vunpack.c.l.b16 %v3846
      %v3938 = vunpack.c.l.b16 %v3847
      %v3939 = vunpack.c.l.b16 %v3848
      %v3940 = vunpack.c.l.b16 %v3849
      %v3941 = vunpack.c.l.b16 %v3850
      %v3942 = vunpack.c.l.b16 %v3851
      %v3943 = vunpack.c.l.b16 %v3852
      %v3944 = vunpack.c.l.b16 %v3853
      %v3945 = vunpack.c.l.b16 %v3854
      %v3946 = vunpack.c.l.b16 %v3855
      %v3947 = vunpack.c.l.b16 %v3856
      %v3948 = vunpack.c.l.b16 %v3857
      %v3949 = vunpack.c.l.b16 %v3858
      %v3950 = vunpack.c.l.b16 %v3859
      %v3951 = vunpack.c.l.b16 %v3860
      %v3952 = vunpack.c.l.b16 %v3861
      %v3953 = vunpack.c.l.b16 %v3862
      %v3954 = vunpack.c.l.b16 %v3863
      %v3955 = vunpack.c.l.b16 %v3864
      %v3956 = vunpack.c.l.b16 %v3865
      %v3957 = vunpack.c.l.b16 %v3866
      %v3958 = vunpack.c.l.b16 %v3867
      %v3959 = vunpack.c.l.b16 %v3868
      %v3960 = vunpack.c.l.b16 %v3869
      %v3961 = vunpack.c.l.b16 %v3870
      %v3962 = vunpack.c.l.b16 %v3871
      %v3963 = vunpack.c.l.b16 %v3872
      %v3964 = vunpack.c.l.b16 %v3873
      %v3965 = vunpack.c.l.b16 %v3874
      %v3966 = vunpack.c.l.b16 %v3875
      %v3967 = vunpack.c.l.b16 %v3876
      %v3968 = vunpack.c.l.b16 %v3877
      %v3969 = vpack.c.b16 %v3933, %v3932
      %v3970 = vpack.c.b16 %v3935, %v3934
      %v3971 = vpack.c.b16 %v3937, %v3936
      %v3972 = vpack.c.b16 %v3939, %v3938
      %v3973 = vpack.c.b16 %v3941, %v3940
      %v3974 = vpack.c.b16 %v3943, %v3942
      %v3975 = vpack.c.b16 %v3945, %v3944
      %v3976 = vpack.c.b16 %v3947, %v3946
      %v3977 = vpack.c.b16 %v3949, %v3948
      %v3978 = vpack.c.b16 %v3951, %v3950
      %v3979 = vpack.c.b16 %v3953, %v3952
      %v3980 = vpack.c.b16 %v3955, %v3954
      %v3981 = vpack.c.b16 %v3957, %v3956
      %v3982 = vpack.c.b16 %v3959, %v3958
      %v3983 = vpack.c.b16 %v3961, %v3960
      %v3984 = vpack.c.b16 %v3963, %v3962
      %v3985 = vpack.c.b16 %v3965, %v3964
      %v3986 = vpack.c.b16 %v3967, %v3966
      %v3987 = vpack.c.b16 %v3968, %v3968
      %v3988 = vrot.slane %v3969, 2
      %v3989 = vrot.slane %v3970, 2
      %v3990 = vsel %vm3602, %v3988, %v3989
      %v3991 = vrot.slane %v3971, 2
      %v3992 = vsel %vm3602, %v3989, %v3991
      %v3993 = vrot.slane %v3972, 2
      %v3994 = vsel %vm3602, %v3991, %v3993
      %v3995 = vrot.slane %v3973, 2
      %v3996 = vsel %vm3602, %v3993, %v3995
      %v3997 = vrot.slane %v3974, 2
      %v3998 = vsel %vm3602, %v3995, %v3997
      %v3999 = vrot.slane %v3975, 2
      %v4000 = vsel %vm3602, %v3997, %v3999
      %v4001 = vrot.slane %v3976, 2
      %v4002 = vsel %vm3602, %v3999, %v4001
      %v4003 = vrot.slane %v3977, 2
      %v4004 = vsel %vm3602, %v4001, %v4003
      %v4005 = vrot.slane %v3978, 2
      %v4006 = vsel %vm3602, %v4003, %v4005
      %v4007 = vrot.slane %v3979, 2
      %v4008 = vsel %vm3602, %v4005, %v4007
      %v4009 = vrot.slane %v3980, 2
      %v4010 = vsel %vm3602, %v4007, %v4009
      %v4011 = vrot.slane %v3981, 2
      %v4012 = vsel %vm3602, %v4009, %v4011
      %v4013 = vrot.slane %v3982, 2
      %v4014 = vsel %vm3602, %v4011, %v4013
      %v4015 = vrot.slane %v3983, 2
      %v4016 = vsel %vm3602, %v4013, %v4015
      %v4017 = vrot.slane %v3984, 2
      %v4018 = vsel %vm3602, %v4015, %v4017
      %v4019 = vrot.slane %v3985, 2
      %v4020 = vsel %vm3602, %v4017, %v4019
      %v4021 = vrot.slane %v3986, 2
      %v4022 = vsel %vm3602, %v4019, %v4021
      %v4023 = vrot.slane %v3987, 2
      %v4024 = vsel %vm3602, %v4021, %v4023
      %v4059 = vunpack.c.l.b16 %v3879
      %v4060 = vunpack.c.l.b16 %v3880
      %v4061 = vunpack.c.l.b16 %v3881
      %v4062 = vunpack.c.l.b16 %v3882
      %v4063 = vunpack.c.l.b16 %v3883
      %v4064 = vunpack.c.l.b16 %v3884
      %v4065 = vunpack.c.l.b16 %v3885
      %v4066 = vunpack.c.l.b16 %v3886
      %v4067 = vunpack.c.l.b16 %v3887
      %v4068 = vunpack.c.l.b16 %v3888
      %v4069 = vunpack.c.l.b16 %v3889
      %v4070 = vunpack.c.l.b16 %v3890
      %v4071 = vunpack.c.l.b16 %v3891
      %v4072 = vunpack.c.l.b16 %v3892
      %v4073 = vunpack.c.l.b16 %v3893
      %v4074 = vunpack.c.l.b16 %v3894
      %v4075 = vpack.c.b16 %v4060, %v4059
      %v4076 = vpack.c.b16 %v4062, %v4061
      %v4077 = vpack.c.b16 %v4064, %v4063
      %v4078 = vpack.c.b16 %v4066, %v4065
      %v4079 = vpack.c.b16 %v4068, %v4067
      %v4080 = vpack.c.b16 %v4070, %v4069
      %v4081 = vpack.c.b16 %v4072, %v4071
      %v4082 = vpack.c.b16 %v4074, %v4073
      %4091 = vmatpush.bf16.msra.mxu0 %v4082
      %4092 = vmatpush.bf16.msra.mxu0 %v4081
      %4093 = vmatpush.bf16.msra.mxu0 %v4080
      %4094 = vmatpush.bf16.msra.mxu0 %v4079
      %4095 = vmatpush.bf16.msra.mxu0 %v4078
      %4096 = vmatpush.bf16.msra.mxu0 %v4077
      %4097 = vmatpush.bf16.msra.mxu0 %v4076
      %4098 = vmatpush.bf16.msra.mxu0 %v4075
      %4099 = vmatmul.bf16.gmra.mxu0 %v3990
      %v4100 = vpop.f32.mrf.mxu0
      %v4101 = vadd.f32 0.0, %v4100
      %v4102 = vpop.f32.mrf.mxu0
      %v4103 = vadd.f32 0.0, %v4102
      %4104 = vmatmul.bf16.gmra.mxu0 %v3992
      %v4105 = vpop.f32.mrf.mxu0
      %v4106 = vadd.f32 0.0, %v4105
      %v4107 = vpop.f32.mrf.mxu0
      %v4108 = vadd.f32 0.0, %v4107
      %4109 = vmatmul.bf16.gmra.mxu0 %v3994
      %v4110 = vpop.f32.mrf.mxu0
      %v4111 = vadd.f32 0.0, %v4110
      %v4112 = vpop.f32.mrf.mxu0
      %v4113 = vadd.f32 0.0, %v4112
      %4114 = vmatmul.bf16.gmra.mxu0 %v3996
      %v4115 = vpop.f32.mrf.mxu0
      %v4116 = vadd.f32 0.0, %v4115
      %v4117 = vpop.f32.mrf.mxu0
      %v4118 = vadd.f32 0.0, %v4117
      %4119 = vmatmul.bf16.gmra.mxu0 %v3998
      %v4120 = vpop.f32.mrf.mxu0
      %v4121 = vadd.f32 0.0, %v4120
      %v4122 = vpop.f32.mrf.mxu0
      %v4123 = vadd.f32 0.0, %v4122
      %4124 = vmatmul.bf16.gmra.mxu0 %v4000
      %v4125 = vpop.f32.mrf.mxu0
      %v4126 = vadd.f32 0.0, %v4125
      %v4127 = vpop.f32.mrf.mxu0
      %v4128 = vadd.f32 0.0, %v4127
      %4129 = vmatmul.bf16.gmra.mxu0 %v4002
      %v4130 = vpop.f32.mrf.mxu0
      %v4131 = vadd.f32 0.0, %v4130
      %v4132 = vpop.f32.mrf.mxu0
      %v4133 = vadd.f32 0.0, %v4132
      %4134 = vmatmul.bf16.gmra.mxu0 %v4004
      %v4135 = vpop.f32.mrf.mxu0
      %v4136 = vadd.f32 0.0, %v4135
      %v4137 = vpop.f32.mrf.mxu0
      %v4138 = vadd.f32 0.0, %v4137
      %4139 = vmatmul.bf16.gmra.mxu0 %v4006
      %v4140 = vpop.f32.mrf.mxu0
      %v4141 = vadd.f32 0.0, %v4140
      %v4142 = vpop.f32.mrf.mxu0
      %v4143 = vadd.f32 0.0, %v4142
      %4144 = vmatmul.bf16.gmra.mxu0 %v4008
      %v4145 = vpop.f32.mrf.mxu0
      %v4146 = vadd.f32 0.0, %v4145
      %v4147 = vpop.f32.mrf.mxu0
      %v4148 = vadd.f32 0.0, %v4147
      %4149 = vmatmul.bf16.gmra.mxu0 %v4010
      %v4150 = vpop.f32.mrf.mxu0
      %v4151 = vadd.f32 0.0, %v4150
      %v4152 = vpop.f32.mrf.mxu0
      %v4153 = vadd.f32 0.0, %v4152
      %4154 = vmatmul.bf16.gmra.mxu0 %v4012
      %v4155 = vpop.f32.mrf.mxu0
      %v4156 = vadd.f32 0.0, %v4155
      %v4157 = vpop.f32.mrf.mxu0
      %v4158 = vadd.f32 0.0, %v4157
      %4159 = vmatmul.bf16.gmra.mxu0 %v4014
      %v4160 = vpop.f32.mrf.mxu0
      %v4161 = vadd.f32 0.0, %v4160
      %v4162 = vpop.f32.mrf.mxu0
      %v4163 = vadd.f32 0.0, %v4162
      %4164 = vmatmul.bf16.gmra.mxu0 %v4016
      %v4165 = vpop.f32.mrf.mxu0
      %v4166 = vadd.f32 0.0, %v4165
      %v4167 = vpop.f32.mrf.mxu0
      %v4168 = vadd.f32 0.0, %v4167
      %4169 = vmatmul.bf16.gmra.mxu0 %v4018
      %v4170 = vpop.f32.mrf.mxu0
      %v4171 = vadd.f32 0.0, %v4170
      %v4172 = vpop.f32.mrf.mxu0
      %v4173 = vadd.f32 0.0, %v4172
      %4174 = vmatmul.bf16.gmra.mxu0 %v4020
      %v4175 = vpop.f32.mrf.mxu0
      %v4176 = vadd.f32 0.0, %v4175
      %v4177 = vpop.f32.mrf.mxu0
      %v4178 = vadd.f32 0.0, %v4177
      %4179 = vmatmul.bf16.gmra.mxu0 %v4022
      %v4180 = vpop.f32.mrf.mxu0
      %v4181 = vadd.f32 0.0, %v4180
      %v4182 = vpop.f32.mrf.mxu0
      %v4183 = vadd.f32 0.0, %v4182
      %4184 = vmatmul.bf16.gmra.mxu0 %v4024
      %v4185 = vpop.f32.mrf.mxu0
      %v4186 = vadd.f32 0.0, %v4185
      %v4187 = vpop.f32.mrf.mxu0
      %v4188 = vadd.f32 0.0, %v4187
      %4189 = vdwg.mxu0
      %v4190 = vadd.f32 %v3805, %v4101
      %v4191 = vadd.f32 %v3806, %v4103
      %v4192 = vadd.f32 %v3807, %v4106
      %v4193 = vadd.f32 %v3808, %v4108
      %v4194 = vadd.f32 %v3809, %v4111
      %v4195 = vadd.f32 %v3810, %v4113
      %v4196 = vadd.f32 %v3811, %v4116
      %v4197 = vadd.f32 %v3812, %v4118
      %v4198 = vadd.f32 %v3813, %v4121
      %v4199 = vadd.f32 %v3814, %v4123
      %v4200 = vadd.f32 %v3815, %v4126
      %v4201 = vadd.f32 %v3816, %v4128
      %v4202 = vadd.f32 %v3817, %v4131
      %v4203 = vadd.f32 %v3818, %v4133
      %v4204 = vadd.f32 %v3819, %v4136
      %v4205 = vadd.f32 %v3820, %v4138
      %v4206 = vadd.f32 %v3821, %v4141
      %v4207 = vadd.f32 %v3822, %v4143
      %v4208 = vadd.f32 %v3823, %v4146
      %v4209 = vadd.f32 %v3824, %v4148
      %v4210 = vadd.f32 %v3825, %v4151
      %v4211 = vadd.f32 %v3826, %v4153
      %v4212 = vadd.f32 %v3827, %v4156
      %v4213 = vadd.f32 %v3828, %v4158
      %v4214 = vadd.f32 %v3829, %v4161
      %v4215 = vadd.f32 %v3830, %v4163
      %v4216 = vadd.f32 %v3831, %v4166
      %v4217 = vadd.f32 %v3832, %v4168
      %v4218 = vadd.f32 %v3833, %v4171
      %v4219 = vadd.f32 %v3834, %v4173
      %v4220 = vadd.f32 %v3835, %v4176
      %v4221 = vadd.f32 %v3836, %v4178
      %v4222 = vadd.f32 %v3837, %v4181
      %v4223 = vadd.f32 %v3838, %v4183
      %v4224 = vadd.f32 %v3839, %v4186
      %v4225 = vadd.f32 %v3840, %v4188
      %v4226 = vld [vmem:[%s354 + $0xa0] sm:$0x3]
      %s4227 = scalar_lea.vmem %s1, 448
      %v4228 = vld [vmem:[%s4227] sm:$0xf]
      %v4229 = vld [vmem:[%s4227 + $0x4] sm:$0xf]
      %v4230 = vld [vmem:[%s4227 + $0x8] sm:$0xf]
      %v4231 = vld [vmem:[%s4227 + $0xc] sm:$0xf]
      %v4232 = vld [vmem:[%s4227 + $0x10] sm:$0xf]
      %v4233 = vld [vmem:[%s4227 + $0x14] sm:$0xf]
      %v4234 = vld [vmem:[%s4227 + $0x18] sm:$0xf]
      %v4235 = vld [vmem:[%s4227 + $0x1c] sm:$0xf]
      %v4236 = vld [vmem:[%s4227 + $0x20] sm:$0xf]
      %v4237 = vld [vmem:[%s4227 + $0x24] sm:$0xf]
      %v4238 = vld [vmem:[%s4227 + $0x28] sm:$0xf]
      %v4239 = vld [vmem:[%s4227 + $0x2c] sm:$0xf]
      %v4240 = vld [vmem:[%s4227 + $0x30] sm:$0xf]
      %v4241 = vld [vmem:[%s4227 + $0x34] sm:$0xf]
      %v4242 = vld [vmem:[%s4227 + $0x38] sm:$0xf]
      %v4243 = vld [vmem:[%s4227 + $0x3c] sm:$0xf]
      %v4245 = vunpack.c.l.b16 %v4226
      %v4246 = vpack.c.b16 %v4245, %v4245
      %vm4247 = vsmask.f32 5376
      %v4249 = vshrl.u32 %v3969, 16
      %v4251 = vrot.slane %v4249, 2
      %v4252 = vshll.u32 %v3969, 16
      %v4254 = vrot.slane %v4252, 3
      %v4255 = vor.u32 %v4251, %v4254
      %v4257 = vshrl.u32 %v3970, 16
      %v4259 = vrot.slane %v4257, 2
      %v4260 = vshll.u32 %v3970, 16
      %v4262 = vrot.slane %v4260, 3
      %v4263 = vor.u32 %v4259, %v4262
      %v4264 = vsel %vm4247, %v4255, %v4263
      %v4266 = vshrl.u32 %v3971, 16
      %v4268 = vrot.slane %v4266, 2
      %v4269 = vshll.u32 %v3971, 16
      %v4271 = vrot.slane %v4269, 3
      %v4272 = vor.u32 %v4268, %v4271
      %v4273 = vsel %vm4247, %v4263, %v4272
      %v4275 = vshrl.u32 %v3972, 16
      %v4277 = vrot.slane %v4275, 2
      %v4278 = vshll.u32 %v3972, 16
      %v4280 = vrot.slane %v4278, 3
      %v4281 = vor.u32 %v4277, %v4280
      %v4282 = vsel %vm4247, %v4272, %v4281
      %v4284 = vshrl.u32 %v3973, 16
      %v4286 = vrot.slane %v4284, 2
      %v4287 = vshll.u32 %v3973, 16
      %v4289 = vrot.slane %v4287, 3
      %v4290 = vor.u32 %v4286, %v4289
      %v4291 = vsel %vm4247, %v4281, %v4290
      %v4293 = vshrl.u32 %v3974, 16
      %v4295 = vrot.slane %v4293, 2
      %v4296 = vshll.u32 %v3974, 16
      %v4298 = vrot.slane %v4296, 3
      %v4299 = vor.u32 %v4295, %v4298
      %v4300 = vsel %vm4247, %v4290, %v4299
      %v4302 = vshrl.u32 %v3975, 16
      %v4304 = vrot.slane %v4302, 2
      %v4305 = vshll.u32 %v3975, 16
      %v4307 = vrot.slane %v4305, 3
      %v4308 = vor.u32 %v4304, %v4307
      %v4309 = vsel %vm4247, %v4299, %v4308
      %v4311 = vshrl.u32 %v3976, 16
      %v4313 = vrot.slane %v4311, 2
      %v4314 = vshll.u32 %v3976, 16
      %v4316 = vrot.slane %v4314, 3
      %v4317 = vor.u32 %v4313, %v4316
      %v4318 = vsel %vm4247, %v4308, %v4317
      %v4320 = vshrl.u32 %v3977, 16
      %v4322 = vrot.slane %v4320, 2
      %v4323 = vshll.u32 %v3977, 16
      %v4325 = vrot.slane %v4323, 3
      %v4326 = vor.u32 %v4322, %v4325
      %v4327 = vsel %vm4247, %v4317, %v4326
      %v4329 = vshrl.u32 %v3978, 16
      %v4331 = vrot.slane %v4329, 2
      %v4332 = vshll.u32 %v3978, 16
      %v4334 = vrot.slane %v4332, 3
      %v4335 = vor.u32 %v4331, %v4334
      %v4336 = vsel %vm4247, %v4326, %v4335
      %v4338 = vshrl.u32 %v3979, 16
      %v4340 = vrot.slane %v4338, 2
      %v4341 = vshll.u32 %v3979, 16
      %v4343 = vrot.slane %v4341, 3
      %v4344 = vor.u32 %v4340, %v4343
      %v4345 = vsel %vm4247, %v4335, %v4344
      %v4347 = vshrl.u32 %v3980, 16
      %v4349 = vrot.slane %v4347, 2
      %v4350 = vshll.u32 %v3980, 16
      %v4352 = vrot.slane %v4350, 3
      %v4353 = vor.u32 %v4349, %v4352
      %v4354 = vsel %vm4247, %v4344, %v4353
      %v4356 = vshrl.u32 %v3981, 16
      %v4358 = vrot.slane %v4356, 2
      %v4359 = vshll.u32 %v3981, 16
      %v4361 = vrot.slane %v4359, 3
      %v4362 = vor.u32 %v4358, %v4361
      %v4363 = vsel %vm4247, %v4353, %v4362
      %v4365 = vshrl.u32 %v3982, 16
      %v4367 = vrot.slane %v4365, 2
      %v4368 = vshll.u32 %v3982, 16
      %v4370 = vrot.slane %v4368, 3
      %v4371 = vor.u32 %v4367, %v4370
      %v4372 = vsel %vm4247, %v4362, %v4371
      %v4374 = vshrl.u32 %v3983, 16
      %v4376 = vrot.slane %v4374, 2
      %v4377 = vshll.u32 %v3983, 16
      %v4379 = vrot.slane %v4377, 3
      %v4380 = vor.u32 %v4376, %v4379
      %v4381 = vsel %vm4247, %v4371, %v4380
      %v4383 = vshrl.u32 %v3984, 16
      %v4385 = vrot.slane %v4383, 2
      %v4386 = vshll.u32 %v3984, 16
      %v4388 = vrot.slane %v4386, 3
      %v4389 = vor.u32 %v4385, %v4388
      %v4390 = vsel %vm4247, %v4380, %v4389
      %v4392 = vshrl.u32 %v3985, 16
      %v4394 = vrot.slane %v4392, 2
      %v4395 = vshll.u32 %v3985, 16
      %v4397 = vrot.slane %v4395, 3
      %v4398 = vor.u32 %v4394, %v4397
      %v4399 = vsel %vm4247, %v4389, %v4398
      %v4401 = vshrl.u32 %v3986, 16
      %v4403 = vrot.slane %v4401, 2
      %v4404 = vshll.u32 %v3986, 16
      %v4406 = vrot.slane %v4404, 3
      %v4407 = vor.u32 %v4403, %v4406
      %v4408 = vsel %vm4247, %v4398, %v4407
      %v4410 = vshrl.u32 %v4246, 16
      %v4412 = vrot.slane %v4410, 2
      %v4413 = vshll.u32 %v4246, 16
      %v4415 = vrot.slane %v4413, 3
      %v4416 = vor.u32 %v4412, %v4415
      %v4417 = vsel %vm4247, %v4407, %v4416
      %v4452 = vunpack.c.l.b16 %v4228
      %v4453 = vunpack.c.l.b16 %v4229
      %v4454 = vunpack.c.l.b16 %v4230
      %v4455 = vunpack.c.l.b16 %v4231
      %v4456 = vunpack.c.l.b16 %v4232
      %v4457 = vunpack.c.l.b16 %v4233
      %v4458 = vunpack.c.l.b16 %v4234
      %v4459 = vunpack.c.l.b16 %v4235
      %v4460 = vunpack.c.l.b16 %v4236
      %v4461 = vunpack.c.l.b16 %v4237
      %v4462 = vunpack.c.l.b16 %v4238
      %v4463 = vunpack.c.l.b16 %v4239
      %v4464 = vunpack.c.l.b16 %v4240
      %v4465 = vunpack.c.l.b16 %v4241
      %v4466 = vunpack.c.l.b16 %v4242
      %v4467 = vunpack.c.l.b16 %v4243
      %v4468 = vpack.c.b16 %v4453, %v4452
      %v4469 = vpack.c.b16 %v4455, %v4454
      %v4470 = vpack.c.b16 %v4457, %v4456
      %v4471 = vpack.c.b16 %v4459, %v4458
      %v4472 = vpack.c.b16 %v4461, %v4460
      %v4473 = vpack.c.b16 %v4463, %v4462
      %v4474 = vpack.c.b16 %v4465, %v4464
      %v4475 = vpack.c.b16 %v4467, %v4466
      %4484 = vmatpush.bf16.msra.mxu0 %v4475
      %4485 = vmatpush.bf16.msra.mxu0 %v4474
      %4486 = vmatpush.bf16.msra.mxu0 %v4473
      %4487 = vmatpush.bf16.msra.mxu0 %v4472
      %4488 = vmatpush.bf16.msra.mxu0 %v4471
      %4489 = vmatpush.bf16.msra.mxu0 %v4470
      %4490 = vmatpush.bf16.msra.mxu0 %v4469
      %4491 = vmatpush.bf16.msra.mxu0 %v4468
      %4492 = vmatmul.bf16.gmra.mxu0 %v4264
      %v4493 = vpop.f32.mrf.mxu0
      %v4494 = vadd.f32 0.0, %v4493
      %v4495 = vpop.f32.mrf.mxu0
      %v4496 = vadd.f32 0.0, %v4495
      %4497 = vmatmul.bf16.gmra.mxu0 %v4273
      %v4498 = vpop.f32.mrf.mxu0
      %v4499 = vadd.f32 0.0, %v4498
      %v4500 = vpop.f32.mrf.mxu0
      %v4501 = vadd.f32 0.0, %v4500
      %4502 = vmatmul.bf16.gmra.mxu0 %v4282
      %v4503 = vpop.f32.mrf.mxu0
      %v4504 = vadd.f32 0.0, %v4503
      %v4505 = vpop.f32.mrf.mxu0
      %v4506 = vadd.f32 0.0, %v4505
      %4507 = vmatmul.bf16.gmra.mxu0 %v4291
      %v4508 = vpop.f32.mrf.mxu0
      %v4509 = vadd.f32 0.0, %v4508
      %v4510 = vpop.f32.mrf.mxu0
      %v4511 = vadd.f32 0.0, %v4510
      %4512 = vmatmul.bf16.gmra.mxu0 %v4300
      %v4513 = vpop.f32.mrf.mxu0
      %v4514 = vadd.f32 0.0, %v4513
      %v4515 = vpop.f32.mrf.mxu0
      %v4516 = vadd.f32 0.0, %v4515
      %4517 = vmatmul.bf16.gmra.mxu0 %v4309
      %v4518 = vpop.f32.mrf.mxu0
      %v4519 = vadd.f32 0.0, %v4518
      %v4520 = vpop.f32.mrf.mxu0
      %v4521 = vadd.f32 0.0, %v4520
      %4522 = vmatmul.bf16.gmra.mxu0 %v4318
      %v4523 = vpop.f32.mrf.mxu0
      %v4524 = vadd.f32 0.0, %v4523
      %v4525 = vpop.f32.mrf.mxu0
      %v4526 = vadd.f32 0.0, %v4525
      %4527 = vmatmul.bf16.gmra.mxu0 %v4327
      %v4528 = vpop.f32.mrf.mxu0
      %v4529 = vadd.f32 0.0, %v4528
      %v4530 = vpop.f32.mrf.mxu0
      %v4531 = vadd.f32 0.0, %v4530
      %4532 = vmatmul.bf16.gmra.mxu0 %v4336
      %v4533 = vpop.f32.mrf.mxu0
      %v4534 = vadd.f32 0.0, %v4533
      %v4535 = vpop.f32.mrf.mxu0
      %v4536 = vadd.f32 0.0, %v4535
      %4537 = vmatmul.bf16.gmra.mxu0 %v4345
      %v4538 = vpop.f32.mrf.mxu0
      %v4539 = vadd.f32 0.0, %v4538
      %v4540 = vpop.f32.mrf.mxu0
      %v4541 = vadd.f32 0.0, %v4540
      %4542 = vmatmul.bf16.gmra.mxu0 %v4354
      %v4543 = vpop.f32.mrf.mxu0
      %v4544 = vadd.f32 0.0, %v4543
      %v4545 = vpop.f32.mrf.mxu0
      %v4546 = vadd.f32 0.0, %v4545
      %4547 = vmatmul.bf16.gmra.mxu0 %v4363
      %v4548 = vpop.f32.mrf.mxu0
      %v4549 = vadd.f32 0.0, %v4548
      %v4550 = vpop.f32.mrf.mxu0
      %v4551 = vadd.f32 0.0, %v4550
      %4552 = vmatmul.bf16.gmra.mxu0 %v4372
      %v4553 = vpop.f32.mrf.mxu0
      %v4554 = vadd.f32 0.0, %v4553
      %v4555 = vpop.f32.mrf.mxu0
      %v4556 = vadd.f32 0.0, %v4555
      %4557 = vmatmul.bf16.gmra.mxu0 %v4381
      %v4558 = vpop.f32.mrf.mxu0
      %v4559 = vadd.f32 0.0, %v4558
      %v4560 = vpop.f32.mrf.mxu0
      %v4561 = vadd.f32 0.0, %v4560
      %4562 = vmatmul.bf16.gmra.mxu0 %v4390
      %v4563 = vpop.f32.mrf.mxu0
      %v4564 = vadd.f32 0.0, %v4563
      %v4565 = vpop.f32.mrf.mxu0
      %v4566 = vadd.f32 0.0, %v4565
      %4567 = vmatmul.bf16.gmra.mxu0 %v4399
      %v4568 = vpop.f32.mrf.mxu0
      %v4569 = vadd.f32 0.0, %v4568
      %v4570 = vpop.f32.mrf.mxu0
      %v4571 = vadd.f32 0.0, %v4570
      %4572 = vmatmul.bf16.gmra.mxu0 %v4408
      %v4573 = vpop.f32.mrf.mxu0
      %v4574 = vadd.f32 0.0, %v4573
      %v4575 = vpop.f32.mrf.mxu0
      %v4576 = vadd.f32 0.0, %v4575
      %4577 = vmatmul.bf16.gmra.mxu0 %v4417
      %v4578 = vpop.f32.mrf.mxu0
      %v4579 = vadd.f32 0.0, %v4578
      %v4580 = vpop.f32.mrf.mxu0
      %v4581 = vadd.f32 0.0, %v4580
      %4582 = vdwg.mxu0
      %v4583 = vadd.f32 %v4190, %v4494
      %v4584 = vadd.f32 %v4191, %v4496
      %v4585 = vadd.f32 %v4192, %v4499
      %v4586 = vadd.f32 %v4193, %v4501
      %v4587 = vadd.f32 %v4194, %v4504
      %v4588 = vadd.f32 %v4195, %v4506
      %v4589 = vadd.f32 %v4196, %v4509
      %v4590 = vadd.f32 %v4197, %v4511
      %v4591 = vadd.f32 %v4198, %v4514
      %v4592 = vadd.f32 %v4199, %v4516
      %v4593 = vadd.f32 %v4200, %v4519
      %v4594 = vadd.f32 %v4201, %v4521
      %v4595 = vadd.f32 %v4202, %v4524
      %v4596 = vadd.f32 %v4203, %v4526
      %v4597 = vadd.f32 %v4204, %v4529
      %v4598 = vadd.f32 %v4205, %v4531
      %v4599 = vadd.f32 %v4206, %v4534
      %v4600 = vadd.f32 %v4207, %v4536
      %v4601 = vadd.f32 %v4208, %v4539
      %v4602 = vadd.f32 %v4209, %v4541
      %v4603 = vadd.f32 %v4210, %v4544
      %v4604 = vadd.f32 %v4211, %v4546
      %v4605 = vadd.f32 %v4212, %v4549
      %v4606 = vadd.f32 %v4213, %v4551
      %v4607 = vadd.f32 %v4214, %v4554
      %v4608 = vadd.f32 %v4215, %v4556
      %v4609 = vadd.f32 %v4216, %v4559
      %v4610 = vadd.f32 %v4217, %v4561
      %v4611 = vadd.f32 %v4218, %v4564
      %v4612 = vadd.f32 %v4219, %v4566
      %v4613 = vadd.f32 %v4220, %v4569
      %v4614 = vadd.f32 %v4221, %v4571
      %v4615 = vadd.f32 %v4222, %v4574
      %v4616 = vadd.f32 %v4223, %v4576
      %v4617 = vadd.f32 %v4224, %v4579
      %v4618 = vadd.f32 %v4225, %v4581
      %v4619 = vld [vmem:[%s354 + $0x10] sm:$0x8]
      %s4620 = scalar_lea.vmem %s1, 512
      %v4621 = vld [vmem:[%s4620] sm:$0xf]
      %v4622 = vld [vmem:[%s4620 + $0x4] sm:$0xf]
      %v4623 = vld [vmem:[%s4620 + $0x8] sm:$0xf]
      %v4624 = vld [vmem:[%s4620 + $0xc] sm:$0xf]
      %v4625 = vld [vmem:[%s4620 + $0x10] sm:$0xf]
      %v4626 = vld [vmem:[%s4620 + $0x14] sm:$0xf]
      %v4627 = vld [vmem:[%s4620 + $0x18] sm:$0xf]
      %v4628 = vld [vmem:[%s4620 + $0x1c] sm:$0xf]
      %v4629 = vld [vmem:[%s4620 + $0x20] sm:$0xf]
      %v4630 = vld [vmem:[%s4620 + $0x24] sm:$0xf]
      %v4631 = vld [vmem:[%s4620 + $0x28] sm:$0xf]
      %v4632 = vld [vmem:[%s4620 + $0x2c] sm:$0xf]
      %v4633 = vld [vmem:[%s4620 + $0x30] sm:$0xf]
      %v4634 = vld [vmem:[%s4620 + $0x34] sm:$0xf]
      %v4635 = vld [vmem:[%s4620 + $0x38] sm:$0xf]
      %v4636 = vld [vmem:[%s4620 + $0x3c] sm:$0xf]
      %v4638 = vunpack.c.l.b16 %v4619
      %v4639 = vpack.c.b16 %v3933, %v4638
      %vm4640 = vcmask 1044480
      %v4641 = vrot.slane %v4639, 3
      %v4642 = vrot.slane %v3970, 3
      %v4643 = vsel %vm4640, %v4641, %v4642
      %v4644 = vrot.slane %v3971, 3
      %v4645 = vsel %vm4640, %v4642, %v4644
      %v4646 = vrot.slane %v3972, 3
      %v4647 = vsel %vm4640, %v4644, %v4646
      %v4648 = vrot.slane %v3973, 3
      %v4649 = vsel %vm4640, %v4646, %v4648
      %v4650 = vrot.slane %v3974, 3
      %v4651 = vsel %vm4640, %v4648, %v4650
      %v4652 = vrot.slane %v3975, 3
      %v4653 = vsel %vm4640, %v4650, %v4652
      %v4654 = vrot.slane %v3976, 3
      %v4655 = vsel %vm4640, %v4652, %v4654
      %v4656 = vrot.slane %v3977, 3
      %v4657 = vsel %vm4640, %v4654, %v4656
      %v4658 = vrot.slane %v3978, 3
      %v4659 = vsel %vm4640, %v4656, %v4658
      %v4660 = vrot.slane %v3979, 3
      %v4661 = vsel %vm4640, %v4658, %v4660
      %v4662 = vrot.slane %v3980, 3
      %v4663 = vsel %vm4640, %v4660, %v4662
      %v4664 = vrot.slane %v3981, 3
      %v4665 = vsel %vm4640, %v4662, %v4664
      %v4666 = vrot.slane %v3982, 3
      %v4667 = vsel %vm4640, %v4664, %v4666
      %v4668 = vrot.slane %v3983, 3
      %v4669 = vsel %vm4640, %v4666, %v4668
      %v4670 = vrot.slane %v3984, 3
      %v4671 = vsel %vm4640, %v4668, %v4670
      %v4672 = vrot.slane %v3985, 3
      %v4673 = vsel %vm4640, %v4670, %v4672
      %v4674 = vrot.slane %v3986, 3
      %v4675 = vsel %vm4640, %v4672, %v4674
      %v4676 = vrot.slane %v4246, 3
      %v4677 = vsel %vm4640, %v4674, %v4676
      %v4712 = vunpack.c.l.b16 %v4621
      %v4713 = vunpack.c.l.b16 %v4622
      %v4714 = vunpack.c.l.b16 %v4623
      %v4715 = vunpack.c.l.b16 %v4624
      %v4716 = vunpack.c.l.b16 %v4625
      %v4717 = vunpack.c.l.b16 %v4626
      %v4718 = vunpack.c.l.b16 %v4627
      %v4719 = vunpack.c.l.b16 %v4628
      %v4720 = vunpack.c.l.b16 %v4629
      %v4721 = vunpack.c.l.b16 %v4630
      %v4722 = vunpack.c.l.b16 %v4631
      %v4723 = vunpack.c.l.b16 %v4632
      %v4724 = vunpack.c.l.b16 %v4633
      %v4725 = vunpack.c.l.b16 %v4634
      %v4726 = vunpack.c.l.b16 %v4635
      %v4727 = vunpack.c.l.b16 %v4636
      %v4728 = vpack.c.b16 %v4713, %v4712
      %v4729 = vpack.c.b16 %v4715, %v4714
      %v4730 = vpack.c.b16 %v4717, %v4716
      %v4731 = vpack.c.b16 %v4719, %v4718
      %v4732 = vpack.c.b16 %v4721, %v4720
      %v4733 = vpack.c.b16 %v4723, %v4722
      %v4734 = vpack.c.b16 %v4725, %v4724
      %v4735 = vpack.c.b16 %v4727, %v4726
      %4744 = vmatpush.bf16.msra.mxu0 %v4735
      %4745 = vmatpush.bf16.msra.mxu0 %v4734
      %4746 = vmatpush.bf16.msra.mxu0 %v4733
      %4747 = vmatpush.bf16.msra.mxu0 %v4732
      %4748 = vmatpush.bf16.msra.mxu0 %v4731
      %4749 = vmatpush.bf16.msra.mxu0 %v4730
      %4750 = vmatpush.bf16.msra.mxu0 %v4729
      %4751 = vmatpush.bf16.msra.mxu0 %v4728
      %4752 = vmatmul.bf16.gmra.mxu0 %v4643
      %v4753 = vpop.f32.mrf.mxu0
      %v4754 = vadd.f32 0.0, %v4753
      %v4755 = vpop.f32.mrf.mxu0
      %v4756 = vadd.f32 0.0, %v4755
      %4757 = vmatmul.bf16.gmra.mxu0 %v4645
      %v4758 = vpop.f32.mrf.mxu0
      %v4759 = vadd.f32 0.0, %v4758
      %v4760 = vpop.f32.mrf.mxu0
      %v4761 = vadd.f32 0.0, %v4760
      %4762 = vmatmul.bf16.gmra.mxu0 %v4647
      %v4763 = vpop.f32.mrf.mxu0
      %v4764 = vadd.f32 0.0, %v4763
      %v4765 = vpop.f32.mrf.mxu0
      %v4766 = vadd.f32 0.0, %v4765
      %4767 = vmatmul.bf16.gmra.mxu0 %v4649
      %v4768 = vpop.f32.mrf.mxu0
      %v4769 = vadd.f32 0.0, %v4768
      %v4770 = vpop.f32.mrf.mxu0
      %v4771 = vadd.f32 0.0, %v4770
      %4772 = vmatmul.bf16.gmra.mxu0 %v4651
      %v4773 = vpop.f32.mrf.mxu0
      %v4774 = vadd.f32 0.0, %v4773
      %v4775 = vpop.f32.mrf.mxu0
      %v4776 = vadd.f32 0.0, %v4775
      %4777 = vmatmul.bf16.gmra.mxu0 %v4653
      %v4778 = vpop.f32.mrf.mxu0
      %v4779 = vadd.f32 0.0, %v4778
      %v4780 = vpop.f32.mrf.mxu0
      %v4781 = vadd.f32 0.0, %v4780
      %4782 = vmatmul.bf16.gmra.mxu0 %v4655
      %v4783 = vpop.f32.mrf.mxu0
      %v4784 = vadd.f32 0.0, %v4783
      %v4785 = vpop.f32.mrf.mxu0
      %v4786 = vadd.f32 0.0, %v4785
      %4787 = vmatmul.bf16.gmra.mxu0 %v4657
      %v4788 = vpop.f32.mrf.mxu0
      %v4789 = vadd.f32 0.0, %v4788
      %v4790 = vpop.f32.mrf.mxu0
      %v4791 = vadd.f32 0.0, %v4790
      %4792 = vmatmul.bf16.gmra.mxu0 %v4659
      %v4793 = vpop.f32.mrf.mxu0
      %v4794 = vadd.f32 0.0, %v4793
      %v4795 = vpop.f32.mrf.mxu0
      %v4796 = vadd.f32 0.0, %v4795
      %4797 = vmatmul.bf16.gmra.mxu0 %v4661
      %v4798 = vpop.f32.mrf.mxu0
      %v4799 = vadd.f32 0.0, %v4798
      %v4800 = vpop.f32.mrf.mxu0
      %v4801 = vadd.f32 0.0, %v4800
      %4802 = vmatmul.bf16.gmra.mxu0 %v4663
      %v4803 = vpop.f32.mrf.mxu0
      %v4804 = vadd.f32 0.0, %v4803
      %v4805 = vpop.f32.mrf.mxu0
      %v4806 = vadd.f32 0.0, %v4805
      %4807 = vmatmul.bf16.gmra.mxu0 %v4665
      %v4808 = vpop.f32.mrf.mxu0
      %v4809 = vadd.f32 0.0, %v4808
      %v4810 = vpop.f32.mrf.mxu0
      %v4811 = vadd.f32 0.0, %v4810
      %4812 = vmatmul.bf16.gmra.mxu0 %v4667
      %v4813 = vpop.f32.mrf.mxu0
      %v4814 = vadd.f32 0.0, %v4813
      %v4815 = vpop.f32.mrf.mxu0
      %v4816 = vadd.f32 0.0, %v4815
      %4817 = vmatmul.bf16.gmra.mxu0 %v4669
      %v4818 = vpop.f32.mrf.mxu0
      %v4819 = vadd.f32 0.0, %v4818
      %v4820 = vpop.f32.mrf.mxu0
      %v4821 = vadd.f32 0.0, %v4820
      %4822 = vmatmul.bf16.gmra.mxu0 %v4671
      %v4823 = vpop.f32.mrf.mxu0
      %v4824 = vadd.f32 0.0, %v4823
      %v4825 = vpop.f32.mrf.mxu0
      %v4826 = vadd.f32 0.0, %v4825
      %4827 = vmatmul.bf16.gmra.mxu0 %v4673
      %v4828 = vpop.f32.mrf.mxu0
      %v4829 = vadd.f32 0.0, %v4828
      %v4830 = vpop.f32.mrf.mxu0
      %v4831 = vadd.f32 0.0, %v4830
      %4832 = vmatmul.bf16.gmra.mxu0 %v4675
      %v4833 = vpop.f32.mrf.mxu0
      %v4834 = vadd.f32 0.0, %v4833
      %v4835 = vpop.f32.mrf.mxu0
      %v4836 = vadd.f32 0.0, %v4835
      %4837 = vmatmul.bf16.gmra.mxu0 %v4677
      %v4838 = vpop.f32.mrf.mxu0
      %v4839 = vadd.f32 0.0, %v4838
      %v4840 = vpop.f32.mrf.mxu0
      %v4841 = vadd.f32 0.0, %v4840
      %4842 = vdwg.mxu0
      %v4843 = vadd.f32 %v4583, %v4754
      %v4844 = vadd.f32 %v4584, %v4756
      %v4845 = vadd.f32 %v4585, %v4759
      %v4846 = vadd.f32 %v4586, %v4761
      %v4847 = vadd.f32 %v4587, %v4764
      %v4848 = vadd.f32 %v4588, %v4766
      %v4849 = vadd.f32 %v4589, %v4769
      %v4850 = vadd.f32 %v4590, %v4771
      %v4851 = vadd.f32 %v4591, %v4774
      %v4852 = vadd.f32 %v4592, %v4776
      %v4853 = vadd.f32 %v4593, %v4779
      %v4854 = vadd.f32 %v4594, %v4781
      %v4855 = vadd.f32 %v4595, %v4784
      %v4856 = vadd.f32 %v4596, %v4786
      %v4857 = vadd.f32 %v4597, %v4789
      %v4858 = vadd.f32 %v4598, %v4791
      %v4859 = vadd.f32 %v4599, %v4794
      %v4860 = vadd.f32 %v4600, %v4796
      %v4861 = vadd.f32 %v4601, %v4799
      %v4862 = vadd.f32 %v4602, %v4801
      %v4863 = vadd.f32 %v4603, %v4804
      %v4864 = vadd.f32 %v4604, %v4806
      %v4865 = vadd.f32 %v4605, %v4809
      %v4866 = vadd.f32 %v4606, %v4811
      %v4867 = vadd.f32 %v4607, %v4814
      %v4868 = vadd.f32 %v4608, %v4816
      %v4869 = vadd.f32 %v4609, %v4819
      %v4870 = vadd.f32 %v4610, %v4821
      %v4871 = vadd.f32 %v4611, %v4824
      %v4872 = vadd.f32 %v4612, %v4826
      %v4873 = vadd.f32 %v4613, %v4829
      %v4874 = vadd.f32 %v4614, %v4831
      %v4875 = vadd.f32 %v4615, %v4834
      %v4876 = vadd.f32 %v4616, %v4836
      %v4877 = vadd.f32 %v4617, %v4839
      %v4878 = vadd.f32 %v4618, %v4841
      %v4879 = vld [vmem:[%s4] sm:$0x1]
      %v4881 = vperm.slane %v4879, 0
      %v4883 = vmul.f32 %v4843, %v4881
      %v4884 = vmul.f32 %v4844, %v4881
      %v4885 = vmul.f32 %v4845, %v4881
      %v4886 = vmul.f32 %v4846, %v4881
      %v4887 = vmul.f32 %v4847, %v4881
      %v4888 = vmul.f32 %v4848, %v4881
      %v4889 = vmul.f32 %v4849, %v4881
      %v4890 = vmul.f32 %v4850, %v4881
      %v4891 = vmul.f32 %v4851, %v4881
      %v4892 = vmul.f32 %v4852, %v4881
      %v4893 = vmul.f32 %v4853, %v4881
      %v4894 = vmul.f32 %v4854, %v4881
      %v4895 = vmul.f32 %v4855, %v4881
      %v4896 = vmul.f32 %v4856, %v4881
      %v4897 = vmul.f32 %v4857, %v4881
      %v4898 = vmul.f32 %v4858, %v4881
      %v4899 = vmul.f32 %v4859, %v4881
      %v4900 = vmul.f32 %v4860, %v4881
      %v4901 = vmul.f32 %v4861, %v4881
      %v4902 = vmul.f32 %v4862, %v4881
      %v4903 = vmul.f32 %v4863, %v4881
      %v4904 = vmul.f32 %v4864, %v4881
      %v4905 = vmul.f32 %v4865, %v4881
      %v4906 = vmul.f32 %v4866, %v4881
      %v4907 = vmul.f32 %v4867, %v4881
      %v4908 = vmul.f32 %v4868, %v4881
      %v4909 = vmul.f32 %v4869, %v4881
      %v4910 = vmul.f32 %v4870, %v4881
      %v4911 = vmul.f32 %v4871, %v4881
      %v4912 = vmul.f32 %v4872, %v4881
      %v4913 = vmul.f32 %v4873, %v4881
      %v4914 = vmul.f32 %v4874, %v4881
      %v4915 = vmul.f32 %v4875, %v4881
      %v4916 = vmul.f32 %v4876, %v4881
      %v4917 = vmul.f32 %v4877, %v4881
      %v4918 = vmul.f32 %v4878, %v4881
      %v4919 = vld [vmem:[%s5] sm:$0x1]
      %v4921 = vperm.slane %v4919, 0
      %v4923 = vadd.f32 %v4883, %v4921
      %v4924 = vadd.f32 %v4884, %v4921
      %v4925 = vadd.f32 %v4885, %v4921
      %v4926 = vadd.f32 %v4886, %v4921
      %v4927 = vadd.f32 %v4887, %v4921
      %v4928 = vadd.f32 %v4888, %v4921
      %v4929 = vadd.f32 %v4889, %v4921
      %v4930 = vadd.f32 %v4890, %v4921
      %v4931 = vadd.f32 %v4891, %v4921
      %v4932 = vadd.f32 %v4892, %v4921
      %v4933 = vadd.f32 %v4893, %v4921
      %v4934 = vadd.f32 %v4894, %v4921
      %v4935 = vadd.f32 %v4895, %v4921
      %v4936 = vadd.f32 %v4896, %v4921
      %v4937 = vadd.f32 %v4897, %v4921
      %v4938 = vadd.f32 %v4898, %v4921
      %v4939 = vadd.f32 %v4899, %v4921
      %v4940 = vadd.f32 %v4900, %v4921
      %v4941 = vadd.f32 %v4901, %v4921
      %v4942 = vadd.f32 %v4902, %v4921
      %v4943 = vadd.f32 %v4903, %v4921
      %v4944 = vadd.f32 %v4904, %v4921
      %v4945 = vadd.f32 %v4905, %v4921
      %v4946 = vadd.f32 %v4906, %v4921
      %v4947 = vadd.f32 %v4907, %v4921
      %v4948 = vadd.f32 %v4908, %v4921
      %v4949 = vadd.f32 %v4909, %v4921
      %v4950 = vadd.f32 %v4910, %v4921
      %v4951 = vadd.f32 %v4911, %v4921
      %v4952 = vadd.f32 %v4912, %v4921
      %v4953 = vadd.f32 %v4913, %v4921
      %v4954 = vadd.f32 %v4914, %v4921
      %v4955 = vadd.f32 %v4915, %v4921
      %v4956 = vadd.f32 %v4916, %v4921
      %v4957 = vadd.f32 %v4917, %v4921
      %v4958 = vadd.f32 %v4918, %v4921
      %v4959 = vmax.f32 %v4923, 0.0
      %v4960 = vmax.f32 %v4924, 0.0
      %v4961 = vmax.f32 %v4925, 0.0
      %v4962 = vmax.f32 %v4926, 0.0
      %v4963 = vmax.f32 %v4927, 0.0
      %v4964 = vmax.f32 %v4928, 0.0
      %v4965 = vmax.f32 %v4929, 0.0
      %v4966 = vmax.f32 %v4930, 0.0
      %v4967 = vmax.f32 %v4931, 0.0
      %v4968 = vmax.f32 %v4932, 0.0
      %v4969 = vmax.f32 %v4933, 0.0
      %v4970 = vmax.f32 %v4934, 0.0
      %v4971 = vmax.f32 %v4935, 0.0
      %v4972 = vmax.f32 %v4936, 0.0
      %v4973 = vmax.f32 %v4937, 0.0
      %v4974 = vmax.f32 %v4938, 0.0
      %v4975 = vmax.f32 %v4939, 0.0
      %v4976 = vmax.f32 %v4940, 0.0
      %v4977 = vmax.f32 %v4941, 0.0
      %v4978 = vmax.f32 %v4942, 0.0
      %v4979 = vmax.f32 %v4943, 0.0
      %v4980 = vmax.f32 %v4944, 0.0
      %v4981 = vmax.f32 %v4945, 0.0
      %v4982 = vmax.f32 %v4946, 0.0
      %v4983 = vmax.f32 %v4947, 0.0
      %v4984 = vmax.f32 %v4948, 0.0
      %v4985 = vmax.f32 %v4949, 0.0
      %v4986 = vmax.f32 %v4950, 0.0
      %v4987 = vmax.f32 %v4951, 0.0
      %v4988 = vmax.f32 %v4952, 0.0
      %v4989 = vmax.f32 %v4953, 0.0
      %v4990 = vmax.f32 %v4954, 0.0
      %v4991 = vmax.f32 %v4955, 0.0
      %v4992 = vmax.f32 %v4956, 0.0
      %v4993 = vmax.f32 %v4957, 0.0
      %v4994 = vmax.f32 %v4958, 0.0
      %v4995 = vsel %vm1756, 1, 0
      %v4996 = vsel %vm1757, 1, 0
      %v4997 = vsel %vm1758, 1, 0
      %v4998 = vsel %vm1759, 1, 0
      %v4999 = vsel %vm1760, 1, 0
      %v5000 = vsel %vm1761, 1, 0
      %v5001 = vsel %vm1762, 1, 0
      %v5002 = vsel %vm1763, 1, 0
      %v5003 = vsel %vm1764, 1, 0
      %v5004 = vsel %vm1765, 1, 0
      %v5005 = vsel %vm1766, 1, 0
      %v5006 = vsel %vm1767, 1, 0
      %v5007 = vsel %vm1768, 1, 0
      %v5008 = vsel %vm1769, 1, 0
      %v5009 = vsel %vm1770, 1, 0
      %v5010 = vsel %vm1771, 1, 0
      %v5011 = vsel %vm1772, 1, 0
      %v5012 = vsel %vm1773, 1, 0
      %v5013 = vsel %vm1774, 1, 0
      %v5014 = vsel %vm1775, 1, 0
      %v5015 = vsel %vm1776, 1, 0
      %v5016 = vsel %vm1777, 1, 0
      %v5017 = vsel %vm1778, 1, 0
      %v5018 = vsel %vm1779, 1, 0
      %v5019 = vsel %vm1780, 1, 0
      %v5020 = vsel %vm1781, 1, 0
      %v5021 = vsel %vm1782, 1, 0
      %v5022 = vsel %vm1783, 1, 0
      %v5023 = vsel %vm1784, 1, 0
      %v5024 = vsel %vm1785, 1, 0
      %v5025 = vsel %vm1786, 1, 0
      %v5026 = vsel %vm1787, 1, 0
      %v5027 = vsel %vm1788, 1, 0
      %v5028 = vsel %vm1789, 1, 0
      %v5029 = vsel %vm1790, 1, 0
      %v5030 = vsel %vm1791, 1, 0
      %vm5031 = vcmp.eq.s32.totalorder %v4995, 1
      %vm5032 = vcmp.eq.s32.totalorder %v4996, 1
      %vm5033 = vcmp.eq.s32.totalorder %v4997, 1
      %vm5034 = vcmp.eq.s32.totalorder %v4998, 1
      %vm5035 = vcmp.eq.s32.totalorder %v4999, 1
      %vm5036 = vcmp.eq.s32.totalorder %v5000, 1
      %vm5037 = vcmp.eq.s32.totalorder %v5001, 1
      %vm5038 = vcmp.eq.s32.totalorder %v5002, 1
      %vm5039 = vcmp.eq.s32.totalorder %v5003, 1
      %vm5040 = vcmp.eq.s32.totalorder %v5004, 1
      %vm5041 = vcmp.eq.s32.totalorder %v5005, 1
      %vm5042 = vcmp.eq.s32.totalorder %v5006, 1
      %vm5043 = vcmp.eq.s32.totalorder %v5007, 1
      %vm5044 = vcmp.eq.s32.totalorder %v5008, 1
      %vm5045 = vcmp.eq.s32.totalorder %v5009, 1
      %vm5046 = vcmp.eq.s32.totalorder %v5010, 1
      %vm5047 = vcmp.eq.s32.totalorder %v5011, 1
      %vm5048 = vcmp.eq.s32.totalorder %v5012, 1
      %vm5049 = vcmp.eq.s32.totalorder %v5013, 1
      %vm5050 = vcmp.eq.s32.totalorder %v5014, 1
      %vm5051 = vcmp.eq.s32.totalorder %v5015, 1
      %vm5052 = vcmp.eq.s32.totalorder %v5016, 1
      %vm5053 = vcmp.eq.s32.totalorder %v5017, 1
      %vm5054 = vcmp.eq.s32.totalorder %v5018, 1
      %vm5055 = vcmp.eq.s32.totalorder %v5019, 1
      %vm5056 = vcmp.eq.s32.totalorder %v5020, 1
      %vm5057 = vcmp.eq.s32.totalorder %v5021, 1
      %vm5058 = vcmp.eq.s32.totalorder %v5022, 1
      %vm5059 = vcmp.eq.s32.totalorder %v5023, 1
      %vm5060 = vcmp.eq.s32.totalorder %v5024, 1
      %vm5061 = vcmp.eq.s32.totalorder %v5025, 1
      %vm5062 = vcmp.eq.s32.totalorder %v5026, 1
      %vm5063 = vcmp.eq.s32.totalorder %v5027, 1
      %vm5064 = vcmp.eq.s32.totalorder %v5028, 1
      %vm5065 = vcmp.eq.s32.totalorder %v5029, 1
      %vm5066 = vcmp.eq.s32.totalorder %v5030, 1
      %v5067 = vsel %vm5031, %v4959, 0.0
      %v5068 = vsel %vm5032, %v4960, 0.0
      %v5069 = vsel %vm5033, %v4961, 0.0
      %v5070 = vsel %vm5034, %v4962, 0.0
      %v5071 = vsel %vm5035, %v4963, 0.0
      %v5072 = vsel %vm5036, %v4964, 0.0
      %v5073 = vsel %vm5037, %v4965, 0.0
      %v5074 = vsel %vm5038, %v4966, 0.0
      %v5075 = vsel %vm5039, %v4967, 0.0
      %v5076 = vsel %vm5040, %v4968, 0.0
      %v5077 = vsel %vm5041, %v4969, 0.0
      %v5078 = vsel %vm5042, %v4970, 0.0
      %v5079 = vsel %vm5043, %v4971, 0.0
      %v5080 = vsel %vm5044, %v4972, 0.0
      %v5081 = vsel %vm5045, %v4973, 0.0
      %v5082 = vsel %vm5046, %v4974, 0.0
      %v5083 = vsel %vm5047, %v4975, 0.0
      %v5084 = vsel %vm5048, %v4976, 0.0
      %v5085 = vsel %vm5049, %v4977, 0.0
      %v5086 = vsel %vm5050, %v4978, 0.0
      %v5087 = vsel %vm5051, %v4979, 0.0
      %v5088 = vsel %vm5052, %v4980, 0.0
      %v5089 = vsel %vm5053, %v4981, 0.0
      %v5090 = vsel %vm5054, %v4982, 0.0
      %v5091 = vsel %vm5055, %v4983, 0.0
      %v5092 = vsel %vm5056, %v4984, 0.0
      %v5093 = vsel %vm5057, %v4985, 0.0
      %v5094 = vsel %vm5058, %v4986, 0.0
      %v5095 = vsel %vm5059, %v4987, 0.0
      %v5096 = vsel %vm5060, %v4988, 0.0
      %v5097 = vsel %vm5061, %v4989, 0.0
      %v5098 = vsel %vm5062, %v4990, 0.0
      %v5099 = vsel %vm5063, %v4991, 0.0
      %v5100 = vsel %vm5064, %v4992, 0.0
      %v5101 = vsel %vm5065, %v4993, 0.0
      %v5102 = vsel %vm5066, %v4994, 0.0
      %v5103 = vpack.c.bf16 %v5067, %v5067
      %v5104 = vpack.c.bf16 %v5068, %v5068
      %v5105 = vpack.c.bf16 %v5069, %v5069
      %v5106 = vpack.c.bf16 %v5070, %v5070
      %v5107 = vpack.c.bf16 %v5071, %v5071
      %v5108 = vpack.c.bf16 %v5072, %v5072
      %v5109 = vpack.c.bf16 %v5073, %v5073
      %v5110 = vpack.c.bf16 %v5074, %v5074
      %v5111 = vpack.c.bf16 %v5075, %v5075
      %v5112 = vpack.c.bf16 %v5076, %v5076
      %v5113 = vpack.c.bf16 %v5077, %v5077
      %v5114 = vpack.c.bf16 %v5078, %v5078
      %v5115 = vpack.c.bf16 %v5079, %v5079
      %v5116 = vpack.c.bf16 %v5080, %v5080
      %v5117 = vpack.c.bf16 %v5081, %v5081
      %v5118 = vpack.c.bf16 %v5082, %v5082
      %v5119 = vpack.c.bf16 %v5083, %v5083
      %v5120 = vpack.c.bf16 %v5084, %v5084
      %v5121 = vpack.c.bf16 %v5085, %v5085
      %v5122 = vpack.c.bf16 %v5086, %v5086
      %v5123 = vpack.c.bf16 %v5087, %v5087
      %v5124 = vpack.c.bf16 %v5088, %v5088
      %v5125 = vpack.c.bf16 %v5089, %v5089
      %v5126 = vpack.c.bf16 %v5090, %v5090
      %v5127 = vpack.c.bf16 %v5091, %v5091
      %v5128 = vpack.c.bf16 %v5092, %v5092
      %v5129 = vpack.c.bf16 %v5093, %v5093
      %v5130 = vpack.c.bf16 %v5094, %v5094
      %v5131 = vpack.c.bf16 %v5095, %v5095
      %v5132 = vpack.c.bf16 %v5096, %v5096
      %v5133 = vpack.c.bf16 %v5097, %v5097
      %v5134 = vpack.c.bf16 %v5098, %v5098
      %v5135 = vpack.c.bf16 %v5099, %v5099
      %v5136 = vpack.c.bf16 %v5100, %v5100
      %v5137 = vpack.c.bf16 %v5101, %v5101
      %v5138 = vpack.c.bf16 %v5102, %v5102
      %vm5139 = vsmask.f32 5392
      %vm5140 = vmor %vm364, %vm5139
      %v5142 = vshrl.u32 %v5103, 16
      %v5144 = vrot.slane %v5142, 6
      %v5145 = vshll.u32 %v5103, 16
      %v5147 = vrot.slane %v5145, 7
      %v5148 = vor.u32 %v5144, %v5147
      %v5149 = vrot.slane %v5148, 4
      %v5151 = vshrl.u32 %v5104, 16
      %v5153 = vrot.slane %v5151, 6
      %v5154 = vshll.u32 %v5104, 16
      %v5156 = vrot.slane %v5154, 7
      %v5157 = vor.u32 %v5153, %v5156
      %v5158 = vsel %vm5140, %v5149, %v5157
      %v5159 = vrot.slane %v5157, 4
      %v5161 = vshrl.u32 %v5105, 16
      %v5163 = vrot.slane %v5161, 6
      %v5164 = vshll.u32 %v5105, 16
      %v5166 = vrot.slane %v5164, 7
      %v5167 = vor.u32 %v5163, %v5166
      %v5168 = vsel %vm5140, %v5159, %v5167
      %v5169 = vrot.slane %v5167, 4
      %v5171 = vshrl.u32 %v5106, 16
      %v5173 = vrot.slane %v5171, 6
      %v5174 = vshll.u32 %v5106, 16
      %v5176 = vrot.slane %v5174, 7
      %v5177 = vor.u32 %v5173, %v5176
      %v5178 = vsel %vm5140, %v5169, %v5177
      %v5179 = vrot.slane %v5177, 4
      %v5181 = vshrl.u32 %v5107, 16
      %v5183 = vrot.slane %v5181, 6
      %v5184 = vshll.u32 %v5107, 16
      %v5186 = vrot.slane %v5184, 7
      %v5187 = vor.u32 %v5183, %v5186
      %v5188 = vsel %vm5140, %v5179, %v5187
      %v5189 = vrot.slane %v5187, 4
      %v5191 = vshrl.u32 %v5108, 16
      %v5193 = vrot.slane %v5191, 6
      %v5194 = vshll.u32 %v5108, 16
      %v5196 = vrot.slane %v5194, 7
      %v5197 = vor.u32 %v5193, %v5196
      %v5198 = vsel %vm5140, %v5189, %v5197
      %v5199 = vrot.slane %v5197, 4
      %v5201 = vshrl.u32 %v5109, 16
      %v5203 = vrot.slane %v5201, 6
      %v5204 = vshll.u32 %v5109, 16
      %v5206 = vrot.slane %v5204, 7
      %v5207 = vor.u32 %v5203, %v5206
      %v5208 = vsel %vm5140, %v5199, %v5207
      %v5209 = vrot.slane %v5207, 4
      %v5211 = vshrl.u32 %v5110, 16
      %v5213 = vrot.slane %v5211, 6
      %v5214 = vshll.u32 %v5110, 16
      %v5216 = vrot.slane %v5214, 7
      %v5217 = vor.u32 %v5213, %v5216
      %v5218 = vsel %vm5140, %v5209, %v5217
      %v5219 = vrot.slane %v5217, 4
      %v5221 = vshrl.u32 %v5111, 16
      %v5223 = vrot.slane %v5221, 6
      %v5224 = vshll.u32 %v5111, 16
      %v5226 = vrot.slane %v5224, 7
      %v5227 = vor.u32 %v5223, %v5226
      %v5228 = vsel %vm5140, %v5219, %v5227
      %v5229 = vrot.slane %v5227, 4
      %v5231 = vshrl.u32 %v5112, 16
      %v5233 = vrot.slane %v5231, 6
      %v5234 = vshll.u32 %v5112, 16
      %v5236 = vrot.slane %v5234, 7
      %v5237 = vor.u32 %v5233, %v5236
      %v5238 = vsel %vm5140, %v5229, %v5237
      %v5239 = vrot.slane %v5237, 4
      %v5241 = vshrl.u32 %v5113, 16
      %v5243 = vrot.slane %v5241, 6
      %v5244 = vshll.u32 %v5113, 16
      %v5246 = vrot.slane %v5244, 7
      %v5247 = vor.u32 %v5243, %v5246
      %v5248 = vsel %vm5140, %v5239, %v5247
      %v5249 = vrot.slane %v5247, 4
      %v5251 = vshrl.u32 %v5114, 16
      %v5253 = vrot.slane %v5251, 6
      %v5254 = vshll.u32 %v5114, 16
      %v5256 = vrot.slane %v5254, 7
      %v5257 = vor.u32 %v5253, %v5256
      %v5258 = vsel %vm5140, %v5249, %v5257
      %v5259 = vrot.slane %v5257, 4
      %v5261 = vshrl.u32 %v5115, 16
      %v5263 = vrot.slane %v5261, 6
      %v5264 = vshll.u32 %v5115, 16
      %v5266 = vrot.slane %v5264, 7
      %v5267 = vor.u32 %v5263, %v5266
      %v5268 = vsel %vm5140, %v5259, %v5267
      %v5269 = vrot.slane %v5267, 4
      %v5271 = vshrl.u32 %v5116, 16
      %v5273 = vrot.slane %v5271, 6
      %v5274 = vshll.u32 %v5116, 16
      %v5276 = vrot.slane %v5274, 7
      %v5277 = vor.u32 %v5273, %v5276
      %v5278 = vsel %vm5140, %v5269, %v5277
      %v5279 = vrot.slane %v5277, 4
      %v5281 = vshrl.u32 %v5117, 16
      %v5283 = vrot.slane %v5281, 6
      %v5284 = vshll.u32 %v5117, 16
      %v5286 = vrot.slane %v5284, 7
      %v5287 = vor.u32 %v5283, %v5286
      %v5288 = vsel %vm5140, %v5279, %v5287
      %v5289 = vrot.slane %v5287, 4
      %v5291 = vshrl.u32 %v5118, 16
      %v5293 = vrot.slane %v5291, 6
      %v5294 = vshll.u32 %v5118, 16
      %v5296 = vrot.slane %v5294, 7
      %v5297 = vor.u32 %v5293, %v5296
      %v5298 = vsel %vm5140, %v5289, %v5297
      %v5299 = vrot.slane %v5297, 4
      %v5301 = vshrl.u32 %v5119, 16
      %v5303 = vrot.slane %v5301, 6
      %v5304 = vshll.u32 %v5119, 16
      %v5306 = vrot.slane %v5304, 7
      %v5307 = vor.u32 %v5303, %v5306
      %v5308 = vsel %vm5140, %v5299, %v5307
      %v5309 = vrot.slane %v5307, 4
      %v5311 = vshrl.u32 %v5120, 16
      %v5313 = vrot.slane %v5311, 6
      %v5314 = vshll.u32 %v5120, 16
      %v5316 = vrot.slane %v5314, 7
      %v5317 = vor.u32 %v5313, %v5316
      %v5318 = vsel %vm5140, %v5309, %v5317
      %v5319 = vrot.slane %v5317, 4
      %v5321 = vshrl.u32 %v5121, 16
      %v5323 = vrot.slane %v5321, 6
      %v5324 = vshll.u32 %v5121, 16
      %v5326 = vrot.slane %v5324, 7
      %v5327 = vor.u32 %v5323, %v5326
      %v5328 = vsel %vm5140, %v5319, %v5327
      %v5329 = vrot.slane %v5327, 4
      %v5331 = vshrl.u32 %v5122, 16
      %v5333 = vrot.slane %v5331, 6
      %v5334 = vshll.u32 %v5122, 16
      %v5336 = vrot.slane %v5334, 7
      %v5337 = vor.u32 %v5333, %v5336
      %v5338 = vsel %vm5140, %v5329, %v5337
      %v5339 = vrot.slane %v5337, 4
      %v5341 = vshrl.u32 %v5123, 16
      %v5343 = vrot.slane %v5341, 6
      %v5344 = vshll.u32 %v5123, 16
      %v5346 = vrot.slane %v5344, 7
      %v5347 = vor.u32 %v5343, %v5346
      %v5348 = vsel %vm5140, %v5339, %v5347
      %v5349 = vrot.slane %v5347, 4
      %v5351 = vshrl.u32 %v5124, 16
      %v5353 = vrot.slane %v5351, 6
      %v5354 = vshll.u32 %v5124, 16
      %v5356 = vrot.slane %v5354, 7
      %v5357 = vor.u32 %v5353, %v5356
      %v5358 = vsel %vm5140, %v5349, %v5357
      %v5359 = vrot.slane %v5357, 4
      %v5361 = vshrl.u32 %v5125, 16
      %v5363 = vrot.slane %v5361, 6
      %v5364 = vshll.u32 %v5125, 16
      %v5366 = vrot.slane %v5364, 7
      %v5367 = vor.u32 %v5363, %v5366
      %v5368 = vsel %vm5140, %v5359, %v5367
      %v5369 = vrot.slane %v5367, 4
      %v5371 = vshrl.u32 %v5126, 16
      %v5373 = vrot.slane %v5371, 6
      %v5374 = vshll.u32 %v5126, 16
      %v5376 = vrot.slane %v5374, 7
      %v5377 = vor.u32 %v5373, %v5376
      %v5378 = vsel %vm5140, %v5369, %v5377
      %v5379 = vrot.slane %v5377, 4
      %v5381 = vshrl.u32 %v5127, 16
      %v5383 = vrot.slane %v5381, 6
      %v5384 = vshll.u32 %v5127, 16
      %v5386 = vrot.slane %v5384, 7
      %v5387 = vor.u32 %v5383, %v5386
      %v5388 = vsel %vm5140, %v5379, %v5387
      %v5389 = vrot.slane %v5387, 4
      %v5391 = vshrl.u32 %v5128, 16
      %v5393 = vrot.slane %v5391, 6
      %v5394 = vshll.u32 %v5128, 16
      %v5396 = vrot.slane %v5394, 7
      %v5397 = vor.u32 %v5393, %v5396
      %v5398 = vsel %vm5140, %v5389, %v5397
      %v5399 = vrot.slane %v5397, 4
      %v5401 = vshrl.u32 %v5129, 16
      %v5403 = vrot.slane %v5401, 6
      %v5404 = vshll.u32 %v5129, 16
      %v5406 = vrot.slane %v5404, 7
      %v5407 = vor.u32 %v5403, %v5406
      %v5408 = vsel %vm5140, %v5399, %v5407
      %v5409 = vrot.slane %v5407, 4
      %v5411 = vshrl.u32 %v5130, 16
      %v5413 = vrot.slane %v5411, 6
      %v5414 = vshll.u32 %v5130, 16
      %v5416 = vrot.slane %v5414, 7
      %v5417 = vor.u32 %v5413, %v5416
      %v5418 = vsel %vm5140, %v5409, %v5417
      %v5419 = vrot.slane %v5417, 4
      %v5421 = vshrl.u32 %v5131, 16
      %v5423 = vrot.slane %v5421, 6
      %v5424 = vshll.u32 %v5131, 16
      %v5426 = vrot.slane %v5424, 7
      %v5427 = vor.u32 %v5423, %v5426
      %v5428 = vsel %vm5140, %v5419, %v5427
      %v5429 = vrot.slane %v5427, 4
      %v5431 = vshrl.u32 %v5132, 16
      %v5433 = vrot.slane %v5431, 6
      %v5434 = vshll.u32 %v5132, 16
      %v5436 = vrot.slane %v5434, 7
      %v5437 = vor.u32 %v5433, %v5436
      %v5438 = vsel %vm5140, %v5429, %v5437
      %v5439 = vrot.slane %v5437, 4
      %v5441 = vshrl.u32 %v5133, 16
      %v5443 = vrot.slane %v5441, 6
      %v5444 = vshll.u32 %v5133, 16
      %v5446 = vrot.slane %v5444, 7
      %v5447 = vor.u32 %v5443, %v5446
      %v5448 = vsel %vm5140, %v5439, %v5447
      %v5449 = vrot.slane %v5447, 4
      %v5451 = vshrl.u32 %v5134, 16
      %v5453 = vrot.slane %v5451, 6
      %v5454 = vshll.u32 %v5134, 16
      %v5456 = vrot.slane %v5454, 7
      %v5457 = vor.u32 %v5453, %v5456
      %v5458 = vsel %vm5140, %v5449, %v5457
      %v5459 = vrot.slane %v5457, 4
      %v5461 = vshrl.u32 %v5135, 16
      %v5463 = vrot.slane %v5461, 6
      %v5464 = vshll.u32 %v5135, 16
      %v5466 = vrot.slane %v5464, 7
      %v5467 = vor.u32 %v5463, %v5466
      %v5468 = vsel %vm5140, %v5459, %v5467
      %v5469 = vrot.slane %v5467, 4
      %v5471 = vshrl.u32 %v5136, 16
      %v5473 = vrot.slane %v5471, 6
      %v5474 = vshll.u32 %v5136, 16
      %v5476 = vrot.slane %v5474, 7
      %v5477 = vor.u32 %v5473, %v5476
      %v5478 = vsel %vm5140, %v5469, %v5477
      %v5479 = vrot.slane %v5477, 4
      %v5481 = vshrl.u32 %v5137, 16
      %v5483 = vrot.slane %v5481, 6
      %v5484 = vshll.u32 %v5137, 16
      %v5486 = vrot.slane %v5484, 7
      %v5487 = vor.u32 %v5483, %v5486
      %v5488 = vsel %vm5140, %v5479, %v5487
      %v5489 = vrot.slane %v5487, 4
      %v5491 = vshrl.u32 %v5138, 16
      %v5493 = vrot.slane %v5491, 6
      %v5494 = vshll.u32 %v5138, 16
      %v5496 = vrot.slane %v5494, 7
      %v5497 = vor.u32 %v5493, %v5496
      %v5498 = vsel %vm5140, %v5489, %v5497
      %v5499 = vrot.slane %v5493, 4
      %vm5537 = vcmask 1043457
      %vm5538 = vsmask.f32 7942
      %vm5539 = vmand %vm5537, %vm5538
      %v5540 = vld [vmem:[#allocation2 + $0x8] sm:$0xe]
      %v5541 = vsel %vm5539, %v5148, %v5540
      %5542 = vst [vmem:[#allocation2 + $0x8] sm:$0xe] %v5541
      %5543 = vst [vmem:[#allocation2 + $0xc] sm:$0xf] %v5158
      %5544 = vst [vmem:[#allocation2 + $0x10] sm:$0xf] %v5168
      %5545 = vst [vmem:[#allocation2 + $0x14] sm:$0xf] %v5178
      %5546 = vst [vmem:[#allocation2 + $0x18] sm:$0xf] %v5188
      %5547 = vst [vmem:[#allocation2 + $0x1c] sm:$0xf] %v5198
      %5548 = vst [vmem:[#allocation2 + $0x20] sm:$0xf] %v5208
      %5549 = vst [vmem:[#allocation2 + $0x24] sm:$0xf] %v5218
      %5550 = vst [vmem:[#allocation2 + $0x28] sm:$0xf] %v5228
      %5551 = vst [vmem:[#allocation2 + $0x2c] sm:$0xf] %v5238
      %5552 = vst [vmem:[#allocation2 + $0x30] sm:$0xf] %v5248
      %5553 = vst [vmem:[#allocation2 + $0x34] sm:$0xf] %v5258
      %5554 = vst [vmem:[#allocation2 + $0x38] sm:$0xf] %v5268
      %5555 = vst [vmem:[#allocation2 + $0x3c] sm:$0xf] %v5278
      %5556 = vst [vmem:[#allocation2 + $0x40] sm:$0xf] %v5288
      %5557 = vst [vmem:[#allocation2 + $0x44] sm:$0xf] %v5298
      %5558 = vst [vmem:[#allocation2 + $0x48] sm:$0xf] %v5308
      %5559 = vst [vmem:[#allocation2 + $0x4c] sm:$0xf] %v5318
      %5560 = vst [vmem:[#allocation2 + $0x50] sm:$0xf] %v5328
      %5561 = vst [vmem:[#allocation2 + $0x54] sm:$0xf] %v5338
      %5562 = vst [vmem:[#allocation2 + $0x58] sm:$0xf] %v5348
      %5563 = vst [vmem:[#allocation2 + $0x5c] sm:$0xf] %v5358
      %5564 = vst [vmem:[#allocation2 + $0x60] sm:$0xf] %v5368
      %5565 = vst [vmem:[#allocation2 + $0x64] sm:$0xf] %v5378
      %5566 = vst [vmem:[#allocation2 + $0x68] sm:$0xf] %v5388
      %5567 = vst [vmem:[#allocation2 + $0x6c] sm:$0xf] %v5398
      %5568 = vst [vmem:[#allocation2 + $0x70] sm:$0xf] %v5408
      %5569 = vst [vmem:[#allocation2 + $0x74] sm:$0xf] %v5418
      %5570 = vst [vmem:[#allocation2 + $0x78] sm:$0xf] %v5428
      %5571 = vst [vmem:[#allocation2 + $0x7c] sm:$0xf] %v5438
      %5572 = vst [vmem:[#allocation2 + $0x80] sm:$0xf] %v5448
      %5573 = vst [vmem:[#allocation2 + $0x84] sm:$0xf] %v5458
      %5574 = vst [vmem:[#allocation2 + $0x88] sm:$0xf] %v5468
      %5575 = vst [vmem:[#allocation2 + $0x8c] sm:$0xf] %v5478
      %5576 = vst [vmem:[#allocation2 + $0x90] sm:$0xf] %v5488
      %5577 = vst [vmem:[#allocation2 + $0x94] sm:$0xf] %v5498
      %vm5578 = vcmask 1040384
      %vm5579 = vsmask.f32 256
      %vm5580 = vmand %vm5578, %vm5579
      %v5581 = vld [vmem:[#allocation2 + $0x98] sm:$0x1]
      %v5582 = vsel %vm5580, %v5499, %v5581
      %5583 = vst [vmem:[#allocation2 + $0x98] sm:$0x1] %v5582
      %v5584 = vld [vmem:[#allocation2] sm:$0xf]
      %v5585 = vld [vmem:[#allocation2 + $0x4] sm:$0xf]
      %v5586 = vld [vmem:[#allocation2 + $0x8] sm:$0xf]
      %v5587 = vld [vmem:[#allocation2 + $0xc] sm:$0xf]
      %v5588 = vld [vmem:[#allocation2 + $0x10] sm:$0xf]
      %v5589 = vld [vmem:[#allocation2 + $0x14] sm:$0xf]
      %v5590 = vld [vmem:[#allocation2 + $0x18] sm:$0xf]
      %v5591 = vld [vmem:[#allocation2 + $0x1c] sm:$0xf]
      %v5592 = vld [vmem:[#allocation2 + $0x20] sm:$0xf]
      %v5593 = vld [vmem:[#allocation2 + $0x24] sm:$0xf]
      %v5594 = vld [vmem:[#allocation2 + $0x28] sm:$0xf]
      %v5595 = vld [vmem:[#allocation2 + $0x2c] sm:$0xf]
      %v5596 = vld [vmem:[#allocation2 + $0x30] sm:$0xf]
      %v5597 = vld [vmem:[#allocation2 + $0x34] sm:$0xf]
      %v5598 = vld [vmem:[#allocation2 + $0x38] sm:$0xf]
      %v5599 = vld [vmem:[#allocation2 + $0x3c] sm:$0xf]
      %v5600 = vld [vmem:[#allocation2 + $0x40] sm:$0xf]
      %v5601 = vld [vmem:[#allocation2 + $0x44] sm:$0xf]
      %v5602 = vld [vmem:[#allocation2 + $0x48] sm:$0xf]
      %v5603 = vld [vmem:[#allocation2 + $0x4c] sm:$0xf]
      %v5604 = vld [vmem:[#allocation2 + $0x50] sm:$0xf]
      %v5605 = vld [vmem:[#allocation2 + $0x54] sm:$0xf]
      %v5606 = vld [vmem:[#allocation2 + $0x58] sm:$0xf]
      %v5607 = vld [vmem:[#allocation2 + $0x5c] sm:$0xf]
      %v5608 = vld [vmem:[#allocation2 + $0x60] sm:$0xf]
      %v5609 = vld [vmem:[#allocation2 + $0x64] sm:$0xf]
      %v5610 = vld [vmem:[#allocation2 + $0x68] sm:$0xf]
      %v5611 = vld [vmem:[#allocation2 + $0x6c] sm:$0xf]
      %v5612 = vld [vmem:[#allocation2 + $0x70] sm:$0xf]
      %v5613 = vld [vmem:[#allocation2 + $0x74] sm:$0xf]
      %v5614 = vld [vmem:[#allocation2 + $0x78] sm:$0xf]
      %v5615 = vld [vmem:[#allocation2 + $0x7c] sm:$0xf]
      %v5616 = vld [vmem:[#allocation2 + $0x80] sm:$0xf]
      %v5617 = vld [vmem:[#allocation2 + $0x84] sm:$0xf]
      %v5618 = vld [vmem:[#allocation2 + $0x88] sm:$0xf]
      %v5619 = vld [vmem:[#allocation2 + $0x8c] sm:$0x7]
      %v5620 = vld [vmem:[%s2] sm:$0xf]
      %v5621 = vld [vmem:[%s2 + $0x4] sm:$0xf]
      %v5622 = vld [vmem:[%s2 + $0x8] sm:$0xf]
      %v5623 = vld [vmem:[%s2 + $0xc] sm:$0xf]
      %v5624 = vld [vmem:[%s2 + $0x10] sm:$0xf]
      %v5625 = vld [vmem:[%s2 + $0x14] sm:$0xf]
      %v5626 = vld [vmem:[%s2 + $0x18] sm:$0xf]
      %v5627 = vld [vmem:[%s2 + $0x1c] sm:$0xf]
      %v5628 = vld [vmem:[%s2 + $0x20] sm:$0xf]
      %v5629 = vld [vmem:[%s2 + $0x24] sm:$0xf]
      %v5630 = vld [vmem:[%s2 + $0x28] sm:$0xf]
      %v5631 = vld [vmem:[%s2 + $0x2c] sm:$0xf]
      %v5632 = vld [vmem:[%s2 + $0x30] sm:$0xf]
      %v5633 = vld [vmem:[%s2 + $0x34] sm:$0xf]
      %v5634 = vld [vmem:[%s2 + $0x38] sm:$0xf]
      %v5635 = vld [vmem:[%s2 + $0x3c] sm:$0xf]
      %v5636 = vld [vmem:[#allocation2 + $0x8c] sm:$0xf]
      %s5637 = scalar_lea.vmem %s2, 64
      %v5638 = vld [vmem:[%s5637] sm:$0xf]
      %v5639 = vld [vmem:[%s5637 + $0x4] sm:$0xf]
      %v5640 = vld [vmem:[%s5637 + $0x8] sm:$0xf]
      %v5641 = vld [vmem:[%s5637 + $0xc] sm:$0xf]
      %v5642 = vld [vmem:[%s5637 + $0x10] sm:$0xf]
      %v5643 = vld [vmem:[%s5637 + $0x14] sm:$0xf]
      %v5644 = vld [vmem:[%s5637 + $0x18] sm:$0xf]
      %v5645 = vld [vmem:[%s5637 + $0x1c] sm:$0xf]
      %v5646 = vld [vmem:[%s5637 + $0x20] sm:$0xf]
      %v5647 = vld [vmem:[%s5637 + $0x24] sm:$0xf]
      %v5648 = vld [vmem:[%s5637 + $0x28] sm:$0xf]
      %v5649 = vld [vmem:[%s5637 + $0x2c] sm:$0xf]
      %v5650 = vld [vmem:[%s5637 + $0x30] sm:$0xf]
      %v5651 = vld [vmem:[%s5637 + $0x34] sm:$0xf]
      %v5652 = vld [vmem:[%s5637 + $0x38] sm:$0xf]
      %v5653 = vld [vmem:[%s5637 + $0x3c] sm:$0xf]
      %v5690 = vunpack.c.l.b16 %v5584
      %v5691 = vunpack.c.l.b16 %v5585
      %v5692 = vunpack.c.l.b16 %v5586
      %v5693 = vunpack.c.l.b16 %v5587
      %v5694 = vunpack.c.l.b16 %v5588
      %v5695 = vunpack.c.l.b16 %v5589
      %v5696 = vunpack.c.l.b16 %v5590
      %v5697 = vunpack.c.l.b16 %v5591
      %v5698 = vunpack.c.l.b16 %v5592
      %v5699 = vunpack.c.l.b16 %v5593
      %v5700 = vunpack.c.l.b16 %v5594
      %v5701 = vunpack.c.l.b16 %v5595
      %v5702 = vunpack.c.l.b16 %v5596
      %v5703 = vunpack.c.l.b16 %v5597
      %v5704 = vunpack.c.l.b16 %v5598
      %v5705 = vunpack.c.l.b16 %v5599
      %v5706 = vunpack.c.l.b16 %v5600
      %v5707 = vunpack.c.l.b16 %v5601
      %v5708 = vunpack.c.l.b16 %v5602
      %v5709 = vunpack.c.l.b16 %v5603
      %v5710 = vunpack.c.l.b16 %v5604
      %v5711 = vunpack.c.l.b16 %v5605
      %v5712 = vunpack.c.l.b16 %v5606
      %v5713 = vunpack.c.l.b16 %v5607
      %v5714 = vunpack.c.l.b16 %v5608
      %v5715 = vunpack.c.l.b16 %v5609
      %v5716 = vunpack.c.l.b16 %v5610
      %v5717 = vunpack.c.l.b16 %v5611
      %v5718 = vunpack.c.l.b16 %v5612
      %v5719 = vunpack.c.l.b16 %v5613
      %v5720 = vunpack.c.l.b16 %v5614
      %v5721 = vunpack.c.l.b16 %v5615
      %v5722 = vunpack.c.l.b16 %v5616
      %v5723 = vunpack.c.l.b16 %v5617
      %v5724 = vunpack.c.l.b16 %v5618
      %v5725 = vunpack.c.l.b16 %v5636
      %v5726 = vpack.c.b16 %v5691, %v5690
      %v5727 = vpack.c.b16 %v5693, %v5692
      %v5728 = vpack.c.b16 %v5695, %v5694
      %v5729 = vpack.c.b16 %v5697, %v5696
      %v5730 = vpack.c.b16 %v5699, %v5698
      %v5731 = vpack.c.b16 %v5701, %v5700
      %v5732 = vpack.c.b16 %v5703, %v5702
      %v5733 = vpack.c.b16 %v5705, %v5704
      %v5734 = vpack.c.b16 %v5707, %v5706
      %v5735 = vpack.c.b16 %v5709, %v5708
      %v5736 = vpack.c.b16 %v5711, %v5710
      %v5737 = vpack.c.b16 %v5713, %v5712
      %v5738 = vpack.c.b16 %v5715, %v5714
      %v5739 = vpack.c.b16 %v5717, %v5716
      %v5740 = vpack.c.b16 %v5719, %v5718
      %v5741 = vpack.c.b16 %v5721, %v5720
      %v5742 = vpack.c.b16 %v5723, %v5722
      %v5743 = vpack.c.b16 %v5725, %v5724
      %v5745 = vshrl.u32 %v5726, 16
      %v5747 = vshll.u32 %v5726, 16
      %v5749 = vrot.slane %v5747, 1
      %v5750 = vor.u32 %v5745, %v5749
      %v5752 = vshll.u32 %v5727, 16
      %v5754 = vrot.slane %v5752, 1
      %v5755 = vsel %vm1952, %v5750, %v5754
      %v5756 = vshrl.u32 %v5727, 16
      %v5758 = vor.u32 %v5756, %v5754
      %v5760 = vshll.u32 %v5728, 16
      %v5762 = vrot.slane %v5760, 1
      %v5763 = vsel %vm1952, %v5758, %v5762
      %v5764 = vshrl.u32 %v5728, 16
      %v5766 = vor.u32 %v5764, %v5762
      %v5768 = vshll.u32 %v5729, 16
      %v5770 = vrot.slane %v5768, 1
      %v5771 = vsel %vm1952, %v5766, %v5770
      %v5772 = vshrl.u32 %v5729, 16
      %v5774 = vor.u32 %v5772, %v5770
      %v5776 = vshll.u32 %v5730, 16
      %v5778 = vrot.slane %v5776, 1
      %v5779 = vsel %vm1952, %v5774, %v5778
      %v5780 = vshrl.u32 %v5730, 16
      %v5782 = vor.u32 %v5780, %v5778
      %v5784 = vshll.u32 %v5731, 16
      %v5786 = vrot.slane %v5784, 1
      %v5787 = vsel %vm1952, %v5782, %v5786
      %v5788 = vshrl.u32 %v5731, 16
      %v5790 = vor.u32 %v5788, %v5786
      %v5792 = vshll.u32 %v5732, 16
      %v5794 = vrot.slane %v5792, 1
      %v5795 = vsel %vm1952, %v5790, %v5794
      %v5796 = vshrl.u32 %v5732, 16
      %v5798 = vor.u32 %v5796, %v5794
      %v5800 = vshll.u32 %v5733, 16
      %v5802 = vrot.slane %v5800, 1
      %v5803 = vsel %vm1952, %v5798, %v5802
      %v5804 = vshrl.u32 %v5733, 16
      %v5806 = vor.u32 %v5804, %v5802
      %v5808 = vshll.u32 %v5734, 16
      %v5810 = vrot.slane %v5808, 1
      %v5811 = vsel %vm1952, %v5806, %v5810
      %v5812 = vshrl.u32 %v5734, 16
      %v5814 = vor.u32 %v5812, %v5810
      %v5816 = vshll.u32 %v5735, 16
      %v5818 = vrot.slane %v5816, 1
      %v5819 = vsel %vm1952, %v5814, %v5818
      %v5820 = vshrl.u32 %v5735, 16
      %v5822 = vor.u32 %v5820, %v5818
      %v5824 = vshll.u32 %v5736, 16
      %v5826 = vrot.slane %v5824, 1
      %v5827 = vsel %vm1952, %v5822, %v5826
      %v5828 = vshrl.u32 %v5736, 16
      %v5830 = vor.u32 %v5828, %v5826
      %v5832 = vshll.u32 %v5737, 16
      %v5834 = vrot.slane %v5832, 1
      %v5835 = vsel %vm1952, %v5830, %v5834
      %v5836 = vshrl.u32 %v5737, 16
      %v5838 = vor.u32 %v5836, %v5834
      %v5840 = vshll.u32 %v5738, 16
      %v5842 = vrot.slane %v5840, 1
      %v5843 = vsel %vm1952, %v5838, %v5842
      %v5844 = vshrl.u32 %v5738, 16
      %v5846 = vor.u32 %v5844, %v5842
      %v5848 = vshll.u32 %v5739, 16
      %v5850 = vrot.slane %v5848, 1
      %v5851 = vsel %vm1952, %v5846, %v5850
      %v5852 = vshrl.u32 %v5739, 16
      %v5854 = vor.u32 %v5852, %v5850
      %v5856 = vshll.u32 %v5740, 16
      %v5858 = vrot.slane %v5856, 1
      %v5859 = vsel %vm1952, %v5854, %v5858
      %v5860 = vshrl.u32 %v5740, 16
      %v5862 = vor.u32 %v5860, %v5858
      %v5864 = vshll.u32 %v5741, 16
      %v5866 = vrot.slane %v5864, 1
      %v5867 = vsel %vm1952, %v5862, %v5866
      %v5868 = vshrl.u32 %v5741, 16
      %v5870 = vor.u32 %v5868, %v5866
      %v5872 = vshll.u32 %v5742, 16
      %v5874 = vrot.slane %v5872, 1
      %v5875 = vsel %vm1952, %v5870, %v5874
      %v5876 = vshrl.u32 %v5742, 16
      %v5878 = vor.u32 %v5876, %v5874
      %v5880 = vshll.u32 %v5743, 16
      %v5882 = vrot.slane %v5880, 1
      %v5883 = vsel %vm1952, %v5878, %v5882
      %v5884 = vshrl.u32 %v5743, 16
      %v5886 = vor.u32 %v5884, %v5882
      %v5921 = vunpack.c.l.b16 %v5638
      %v5922 = vunpack.c.l.b16 %v5639
      %v5923 = vunpack.c.l.b16 %v5640
      %v5924 = vunpack.c.l.b16 %v5641
      %v5925 = vunpack.c.l.b16 %v5642
      %v5926 = vunpack.c.l.b16 %v5643
      %v5927 = vunpack.c.l.b16 %v5644
      %v5928 = vunpack.c.l.b16 %v5645
      %v5929 = vunpack.c.l.b16 %v5646
      %v5930 = vunpack.c.l.b16 %v5647
      %v5931 = vunpack.c.l.b16 %v5648
      %v5932 = vunpack.c.l.b16 %v5649
      %v5933 = vunpack.c.l.b16 %v5650
      %v5934 = vunpack.c.l.b16 %v5651
      %v5935 = vunpack.c.l.b16 %v5652
      %v5936 = vunpack.c.l.b16 %v5653
      %v5937 = vpack.c.b16 %v5922, %v5921
      %v5938 = vpack.c.b16 %v5924, %v5923
      %v5939 = vpack.c.b16 %v5926, %v5925
      %v5940 = vpack.c.b16 %v5928, %v5927
      %v5941 = vpack.c.b16 %v5930, %v5929
      %v5942 = vpack.c.b16 %v5932, %v5931
      %v5943 = vpack.c.b16 %v5934, %v5933
      %v5944 = vpack.c.b16 %v5936, %v5935
      %5953 = vmatpush.bf16.msra.mxu0 %v5944
      %5954 = vmatpush.bf16.msra.mxu0 %v5943
      %5955 = vmatpush.bf16.msra.mxu0 %v5942
      %5956 = vmatpush.bf16.msra.mxu0 %v5941
      %5957 = vmatpush.bf16.msra.mxu0 %v5940
      %5958 = vmatpush.bf16.msra.mxu0 %v5939
      %5959 = vmatpush.bf16.msra.mxu0 %v5938
      %5960 = vmatpush.bf16.msra.mxu0 %v5937
      %5961 = vmatmul.bf16.gmra.mxu0 %v5755
      %v5962 = vpop.f32.mrf.mxu0
      %v5963 = vadd.f32 0.0, %v5962
      %v5964 = vpop.f32.mrf.mxu0
      %v5965 = vadd.f32 0.0, %v5964
      %5966 = vmatmul.bf16.gmra.mxu0 %v5763
      %v5967 = vpop.f32.mrf.mxu0
      %v5968 = vadd.f32 0.0, %v5967
      %v5969 = vpop.f32.mrf.mxu0
      %v5970 = vadd.f32 0.0, %v5969
      %5971 = vmatmul.bf16.gmra.mxu0 %v5771
      %v5972 = vpop.f32.mrf.mxu0
      %v5973 = vadd.f32 0.0, %v5972
      %v5974 = vpop.f32.mrf.mxu0
      %v5975 = vadd.f32 0.0, %v5974
      %5976 = vmatmul.bf16.gmra.mxu0 %v5779
      %v5977 = vpop.f32.mrf.mxu0
      %v5978 = vadd.f32 0.0, %v5977
      %v5979 = vpop.f32.mrf.mxu0
      %v5980 = vadd.f32 0.0, %v5979
      %5981 = vmatmul.bf16.gmra.mxu0 %v5787
      %v5982 = vpop.f32.mrf.mxu0
      %v5983 = vadd.f32 0.0, %v5982
      %v5984 = vpop.f32.mrf.mxu0
      %v5985 = vadd.f32 0.0, %v5984
      %5986 = vmatmul.bf16.gmra.mxu0 %v5795
      %v5987 = vpop.f32.mrf.mxu0
      %v5988 = vadd.f32 0.0, %v5987
      %v5989 = vpop.f32.mrf.mxu0
      %v5990 = vadd.f32 0.0, %v5989
      %5991 = vmatmul.bf16.gmra.mxu0 %v5803
      %v5992 = vpop.f32.mrf.mxu0
      %v5993 = vadd.f32 0.0, %v5992
      %v5994 = vpop.f32.mrf.mxu0
      %v5995 = vadd.f32 0.0, %v5994
      %5996 = vmatmul.bf16.gmra.mxu0 %v5811
      %v5997 = vpop.f32.mrf.mxu0
      %v5998 = vadd.f32 0.0, %v5997
      %v5999 = vpop.f32.mrf.mxu0
      %v6000 = vadd.f32 0.0, %v5999
      %6001 = vmatmul.bf16.gmra.mxu0 %v5819
      %v6002 = vpop.f32.mrf.mxu0
      %v6003 = vadd.f32 0.0, %v6002
      %v6004 = vpop.f32.mrf.mxu0
      %v6005 = vadd.f32 0.0, %v6004
      %6006 = vmatmul.bf16.gmra.mxu0 %v5827
      %v6007 = vpop.f32.mrf.mxu0
      %v6008 = vadd.f32 0.0, %v6007
      %v6009 = vpop.f32.mrf.mxu0
      %v6010 = vadd.f32 0.0, %v6009
      %6011 = vmatmul.bf16.gmra.mxu0 %v5835
      %v6012 = vpop.f32.mrf.mxu0
      %v6013 = vadd.f32 0.0, %v6012
      %v6014 = vpop.f32.mrf.mxu0
      %v6015 = vadd.f32 0.0, %v6014
      %6016 = vmatmul.bf16.gmra.mxu0 %v5843
      %v6017 = vpop.f32.mrf.mxu0
      %v6018 = vadd.f32 0.0, %v6017
      %v6019 = vpop.f32.mrf.mxu0
      %v6020 = vadd.f32 0.0, %v6019
      %6021 = vmatmul.bf16.gmra.mxu0 %v5851
      %v6022 = vpop.f32.mrf.mxu0
      %v6023 = vadd.f32 0.0, %v6022
      %v6024 = vpop.f32.mrf.mxu0
      %v6025 = vadd.f32 0.0, %v6024
      %6026 = vmatmul.bf16.gmra.mxu0 %v5859
      %v6027 = vpop.f32.mrf.mxu0
      %v6028 = vadd.f32 0.0, %v6027
      %v6029 = vpop.f32.mrf.mxu0
      %v6030 = vadd.f32 0.0, %v6029
      %6031 = vmatmul.bf16.gmra.mxu0 %v5867
      %v6032 = vpop.f32.mrf.mxu0
      %v6033 = vadd.f32 0.0, %v6032
      %v6034 = vpop.f32.mrf.mxu0
      %v6035 = vadd.f32 0.0, %v6034
      %6036 = vmatmul.bf16.gmra.mxu0 %v5875
      %v6037 = vpop.f32.mrf.mxu0
      %v6038 = vadd.f32 0.0, %v6037
      %v6039 = vpop.f32.mrf.mxu0
      %v6040 = vadd.f32 0.0, %v6039
      %6041 = vmatmul.bf16.gmra.mxu0 %v5883
      %v6042 = vpop.f32.mrf.mxu0
      %v6043 = vadd.f32 0.0, %v6042
      %v6044 = vpop.f32.mrf.mxu0
      %v6045 = vadd.f32 0.0, %v6044
      %6046 = vmatmul.bf16.gmra.mxu0 %v5886
      %v6047 = vpop.f32.mrf.mxu0
      %v6048 = vadd.f32 0.0, %v6047
      %v6049 = vpop.f32.mrf.mxu0
      %v6050 = vadd.f32 0.0, %v6049
      %6051 = vdwg.mxu0
      %v6053 = vunpack.c.l.b16 %v5619
      %v6054 = vpack.c.b16 %v6053, %v5724
      %v6089 = vunpack.c.l.b16 %v5620
      %v6090 = vunpack.c.l.b16 %v5621
      %v6091 = vunpack.c.l.b16 %v5622
      %v6092 = vunpack.c.l.b16 %v5623
      %v6093 = vunpack.c.l.b16 %v5624
      %v6094 = vunpack.c.l.b16 %v5625
      %v6095 = vunpack.c.l.b16 %v5626
      %v6096 = vunpack.c.l.b16 %v5627
      %v6097 = vunpack.c.l.b16 %v5628
      %v6098 = vunpack.c.l.b16 %v5629
      %v6099 = vunpack.c.l.b16 %v5630
      %v6100 = vunpack.c.l.b16 %v5631
      %v6101 = vunpack.c.l.b16 %v5632
      %v6102 = vunpack.c.l.b16 %v5633
      %v6103 = vunpack.c.l.b16 %v5634
      %v6104 = vunpack.c.l.b16 %v5635
      %v6105 = vpack.c.b16 %v6090, %v6089
      %v6106 = vpack.c.b16 %v6092, %v6091
      %v6107 = vpack.c.b16 %v6094, %v6093
      %v6108 = vpack.c.b16 %v6096, %v6095
      %v6109 = vpack.c.b16 %v6098, %v6097
      %v6110 = vpack.c.b16 %v6100, %v6099
      %v6111 = vpack.c.b16 %v6102, %v6101
      %v6112 = vpack.c.b16 %v6104, %v6103
      %6121 = vmatpush.bf16.msra.mxu0 %v6112
      %6122 = vmatpush.bf16.msra.mxu0 %v6111
      %6123 = vmatpush.bf16.msra.mxu0 %v6110
      %6124 = vmatpush.bf16.msra.mxu0 %v6109
      %6125 = vmatpush.bf16.msra.mxu0 %v6108
      %6126 = vmatpush.bf16.msra.mxu0 %v6107
      %6127 = vmatpush.bf16.msra.mxu0 %v6106
      %6128 = vmatpush.bf16.msra.mxu0 %v6105
      %6129 = vmatmul.bf16.gmra.mxu0 %v5726
      %v6130 = vpop.f32.mrf.mxu0
      %v6131 = vadd.f32 %v5963, %v6130
      %v6132 = vpop.f32.mrf.mxu0
      %v6133 = vadd.f32 %v5965, %v6132
      %6134 = vmatmul.bf16.gmra.mxu0 %v5727
      %v6135 = vpop.f32.mrf.mxu0
      %v6136 = vadd.f32 %v5968, %v6135
      %v6137 = vpop.f32.mrf.mxu0
      %v6138 = vadd.f32 %v5970, %v6137
      %6139 = vmatmul.bf16.gmra.mxu0 %v5728
      %v6140 = vpop.f32.mrf.mxu0
      %v6141 = vadd.f32 %v5973, %v6140
      %v6142 = vpop.f32.mrf.mxu0
      %v6143 = vadd.f32 %v5975, %v6142
      %6144 = vmatmul.bf16.gmra.mxu0 %v5729
      %v6145 = vpop.f32.mrf.mxu0
      %v6146 = vadd.f32 %v5978, %v6145
      %v6147 = vpop.f32.mrf.mxu0
      %v6148 = vadd.f32 %v5980, %v6147
      %6149 = vmatmul.bf16.gmra.mxu0 %v5730
      %v6150 = vpop.f32.mrf.mxu0
      %v6151 = vadd.f32 %v5983, %v6150
      %v6152 = vpop.f32.mrf.mxu0
      %v6153 = vadd.f32 %v5985, %v6152
      %6154 = vmatmul.bf16.gmra.mxu0 %v5731
      %v6155 = vpop.f32.mrf.mxu0
      %v6156 = vadd.f32 %v5988, %v6155
      %v6157 = vpop.f32.mrf.mxu0
      %v6158 = vadd.f32 %v5990, %v6157
      %6159 = vmatmul.bf16.gmra.mxu0 %v5732
      %v6160 = vpop.f32.mrf.mxu0
      %v6161 = vadd.f32 %v5993, %v6160
      %v6162 = vpop.f32.mrf.mxu0
      %v6163 = vadd.f32 %v5995, %v6162
      %6164 = vmatmul.bf16.gmra.mxu0 %v5733
      %v6165 = vpop.f32.mrf.mxu0
      %v6166 = vadd.f32 %v5998, %v6165
      %v6167 = vpop.f32.mrf.mxu0
      %v6168 = vadd.f32 %v6000, %v6167
      %6169 = vmatmul.bf16.gmra.mxu0 %v5734
      %v6170 = vpop.f32.mrf.mxu0
      %v6171 = vadd.f32 %v6003, %v6170
      %v6172 = vpop.f32.mrf.mxu0
      %v6173 = vadd.f32 %v6005, %v6172
      %6174 = vmatmul.bf16.gmra.mxu0 %v5735
      %v6175 = vpop.f32.mrf.mxu0
      %v6176 = vadd.f32 %v6008, %v6175
      %v6177 = vpop.f32.mrf.mxu0
      %v6178 = vadd.f32 %v6010, %v6177
      %6179 = vmatmul.bf16.gmra.mxu0 %v5736
      %v6180 = vpop.f32.mrf.mxu0
      %v6181 = vadd.f32 %v6013, %v6180
      %v6182 = vpop.f32.mrf.mxu0
      %v6183 = vadd.f32 %v6015, %v6182
      %6184 = vmatmul.bf16.gmra.mxu0 %v5737
      %v6185 = vpop.f32.mrf.mxu0
      %v6186 = vadd.f32 %v6018, %v6185
      %v6187 = vpop.f32.mrf.mxu0
      %v6188 = vadd.f32 %v6020, %v6187
      %6189 = vmatmul.bf16.gmra.mxu0 %v5738
      %v6190 = vpop.f32.mrf.mxu0
      %v6191 = vadd.f32 %v6023, %v6190
      %v6192 = vpop.f32.mrf.mxu0
      %v6193 = vadd.f32 %v6025, %v6192
      %6194 = vmatmul.bf16.gmra.mxu0 %v5739
      %v6195 = vpop.f32.mrf.mxu0
      %v6196 = vadd.f32 %v6028, %v6195
      %v6197 = vpop.f32.mrf.mxu0
      %v6198 = vadd.f32 %v6030, %v6197
      %6199 = vmatmul.bf16.gmra.mxu0 %v5740
      %v6200 = vpop.f32.mrf.mxu0
      %v6201 = vadd.f32 %v6033, %v6200
      %v6202 = vpop.f32.mrf.mxu0
      %v6203 = vadd.f32 %v6035, %v6202
      %6204 = vmatmul.bf16.gmra.mxu0 %v5741
      %v6205 = vpop.f32.mrf.mxu0
      %v6206 = vadd.f32 %v6038, %v6205
      %v6207 = vpop.f32.mrf.mxu0
      %v6208 = vadd.f32 %v6040, %v6207
      %6209 = vmatmul.bf16.gmra.mxu0 %v5742
      %v6210 = vpop.f32.mrf.mxu0
      %v6211 = vadd.f32 %v6043, %v6210
      %v6212 = vpop.f32.mrf.mxu0
      %v6213 = vadd.f32 %v6045, %v6212
      %6214 = vmatmul.bf16.gmra.mxu0 %v6054
      %v6215 = vpop.f32.mrf.mxu0
      %v6216 = vadd.f32 %v6048, %v6215
      %v6217 = vpop.f32.mrf.mxu0
      %v6218 = vadd.f32 %v6050, %v6217
      %6219 = vdwg.mxu0
      %v6220 = vld [vmem:[#allocation2] sm:$0xe]
      %s6221 = scalar_lea.vmem %s2, 128
      %v6222 = vld [vmem:[%s6221] sm:$0xf]
      %v6223 = vld [vmem:[%s6221 + $0x4] sm:$0xf]
      %v6224 = vld [vmem:[%s6221 + $0x8] sm:$0xf]
      %v6225 = vld [vmem:[%s6221 + $0xc] sm:$0xf]
      %v6226 = vld [vmem:[%s6221 + $0x10] sm:$0xf]
      %v6227 = vld [vmem:[%s6221 + $0x14] sm:$0xf]
      %v6228 = vld [vmem:[%s6221 + $0x18] sm:$0xf]
      %v6229 = vld [vmem:[%s6221 + $0x1c] sm:$0xf]
      %v6230 = vld [vmem:[%s6221 + $0x20] sm:$0xf]
      %v6231 = vld [vmem:[%s6221 + $0x24] sm:$0xf]
      %v6232 = vld [vmem:[%s6221 + $0x28] sm:$0xf]
      %v6233 = vld [vmem:[%s6221 + $0x2c] sm:$0xf]
      %v6234 = vld [vmem:[%s6221 + $0x30] sm:$0xf]
      %v6235 = vld [vmem:[%s6221 + $0x34] sm:$0xf]
      %v6236 = vld [vmem:[%s6221 + $0x38] sm:$0xf]
      %v6237 = vld [vmem:[%s6221 + $0x3c] sm:$0xf]
      %v6239 = vunpack.c.l.b16 %v6220
      %v6240 = vpack.c.b16 %v5691, %v6239
      %v6241 = vrot.slane %v6240, 1
      %v6242 = vrot.slane %v5727, 1
      %v6243 = vsel %vm2450, %v6241, %v6242
      %v6244 = vrot.slane %v5728, 1
      %v6245 = vsel %vm2450, %v6242, %v6244
      %v6246 = vrot.slane %v5729, 1
      %v6247 = vsel %vm2450, %v6244, %v6246
      %v6248 = vrot.slane %v5730, 1
      %v6249 = vsel %vm2450, %v6246, %v6248
      %v6250 = vrot.slane %v5731, 1
      %v6251 = vsel %vm2450, %v6248, %v6250
      %v6252 = vrot.slane %v5732, 1
      %v6253 = vsel %vm2450, %v6250, %v6252
      %v6254 = vrot.slane %v5733, 1
      %v6255 = vsel %vm2450, %v6252, %v6254
      %v6256 = vrot.slane %v5734, 1
      %v6257 = vsel %vm2450, %v6254, %v6256
      %v6258 = vrot.slane %v5735, 1
      %v6259 = vsel %vm2450, %v6256, %v6258
      %v6260 = vrot.slane %v5736, 1
      %v6261 = vsel %vm2450, %v6258, %v6260
      %v6262 = vrot.slane %v5737, 1
      %v6263 = vsel %vm2450, %v6260, %v6262
      %v6264 = vrot.slane %v5738, 1
      %v6265 = vsel %vm2450, %v6262, %v6264
      %v6266 = vrot.slane %v5739, 1
      %v6267 = vsel %vm2450, %v6264, %v6266
      %v6268 = vrot.slane %v5740, 1
      %v6269 = vsel %vm2450, %v6266, %v6268
      %v6270 = vrot.slane %v5741, 1
      %v6271 = vsel %vm2450, %v6268, %v6270
      %v6272 = vrot.slane %v5742, 1
      %v6273 = vsel %vm2450, %v6270, %v6272
      %v6274 = vrot.slane %v5743, 1
      %v6275 = vsel %vm2450, %v6272, %v6274
      %v6310 = vunpack.c.l.b16 %v6222
      %v6311 = vunpack.c.l.b16 %v6223
      %v6312 = vunpack.c.l.b16 %v6224
      %v6313 = vunpack.c.l.b16 %v6225
      %v6314 = vunpack.c.l.b16 %v6226
      %v6315 = vunpack.c.l.b16 %v6227
      %v6316 = vunpack.c.l.b16 %v6228
      %v6317 = vunpack.c.l.b16 %v6229
      %v6318 = vunpack.c.l.b16 %v6230
      %v6319 = vunpack.c.l.b16 %v6231
      %v6320 = vunpack.c.l.b16 %v6232
      %v6321 = vunpack.c.l.b16 %v6233
      %v6322 = vunpack.c.l.b16 %v6234
      %v6323 = vunpack.c.l.b16 %v6235
      %v6324 = vunpack.c.l.b16 %v6236
      %v6325 = vunpack.c.l.b16 %v6237
      %v6326 = vpack.c.b16 %v6311, %v6310
      %v6327 = vpack.c.b16 %v6313, %v6312
      %v6328 = vpack.c.b16 %v6315, %v6314
      %v6329 = vpack.c.b16 %v6317, %v6316
      %v6330 = vpack.c.b16 %v6319, %v6318
      %v6331 = vpack.c.b16 %v6321, %v6320
      %v6332 = vpack.c.b16 %v6323, %v6322
      %v6333 = vpack.c.b16 %v6325, %v6324
      %6342 = vmatpush.bf16.msra.mxu0 %v6333
      %6343 = vmatpush.bf16.msra.mxu0 %v6332
      %6344 = vmatpush.bf16.msra.mxu0 %v6331
      %6345 = vmatpush.bf16.msra.mxu0 %v6330
      %6346 = vmatpush.bf16.msra.mxu0 %v6329
      %6347 = vmatpush.bf16.msra.mxu0 %v6328
      %6348 = vmatpush.bf16.msra.mxu0 %v6327
      %6349 = vmatpush.bf16.msra.mxu0 %v6326
      %6350 = vmatmul.bf16.gmra.mxu0 %v6243
      %v6351 = vpop.f32.mrf.mxu0
      %v6352 = vadd.f32 0.0, %v6351
      %v6353 = vpop.f32.mrf.mxu0
      %v6354 = vadd.f32 0.0, %v6353
      %6355 = vmatmul.bf16.gmra.mxu0 %v6245
      %v6356 = vpop.f32.mrf.mxu0
      %v6357 = vadd.f32 0.0, %v6356
      %v6358 = vpop.f32.mrf.mxu0
      %v6359 = vadd.f32 0.0, %v6358
      %6360 = vmatmul.bf16.gmra.mxu0 %v6247
      %v6361 = vpop.f32.mrf.mxu0
      %v6362 = vadd.f32 0.0, %v6361
      %v6363 = vpop.f32.mrf.mxu0
      %v6364 = vadd.f32 0.0, %v6363
      %6365 = vmatmul.bf16.gmra.mxu0 %v6249
      %v6366 = vpop.f32.mrf.mxu0
      %v6367 = vadd.f32 0.0, %v6366
      %v6368 = vpop.f32.mrf.mxu0
      %v6369 = vadd.f32 0.0, %v6368
      %6370 = vmatmul.bf16.gmra.mxu0 %v6251
      %v6371 = vpop.f32.mrf.mxu0
      %v6372 = vadd.f32 0.0, %v6371
      %v6373 = vpop.f32.mrf.mxu0
      %v6374 = vadd.f32 0.0, %v6373
      %6375 = vmatmul.bf16.gmra.mxu0 %v6253
      %v6376 = vpop.f32.mrf.mxu0
      %v6377 = vadd.f32 0.0, %v6376
      %v6378 = vpop.f32.mrf.mxu0
      %v6379 = vadd.f32 0.0, %v6378
      %6380 = vmatmul.bf16.gmra.mxu0 %v6255
      %v6381 = vpop.f32.mrf.mxu0
      %v6382 = vadd.f32 0.0, %v6381
      %v6383 = vpop.f32.mrf.mxu0
      %v6384 = vadd.f32 0.0, %v6383
      %6385 = vmatmul.bf16.gmra.mxu0 %v6257
      %v6386 = vpop.f32.mrf.mxu0
      %v6387 = vadd.f32 0.0, %v6386
      %v6388 = vpop.f32.mrf.mxu0
      %v6389 = vadd.f32 0.0, %v6388
      %6390 = vmatmul.bf16.gmra.mxu0 %v6259
      %v6391 = vpop.f32.mrf.mxu0
      %v6392 = vadd.f32 0.0, %v6391
      %v6393 = vpop.f32.mrf.mxu0
      %v6394 = vadd.f32 0.0, %v6393
      %6395 = vmatmul.bf16.gmra.mxu0 %v6261
      %v6396 = vpop.f32.mrf.mxu0
      %v6397 = vadd.f32 0.0, %v6396
      %v6398 = vpop.f32.mrf.mxu0
      %v6399 = vadd.f32 0.0, %v6398
      %6400 = vmatmul.bf16.gmra.mxu0 %v6263
      %v6401 = vpop.f32.mrf.mxu0
      %v6402 = vadd.f32 0.0, %v6401
      %v6403 = vpop.f32.mrf.mxu0
      %v6404 = vadd.f32 0.0, %v6403
      %6405 = vmatmul.bf16.gmra.mxu0 %v6265
      %v6406 = vpop.f32.mrf.mxu0
      %v6407 = vadd.f32 0.0, %v6406
      %v6408 = vpop.f32.mrf.mxu0
      %v6409 = vadd.f32 0.0, %v6408
      %6410 = vmatmul.bf16.gmra.mxu0 %v6267
      %v6411 = vpop.f32.mrf.mxu0
      %v6412 = vadd.f32 0.0, %v6411
      %v6413 = vpop.f32.mrf.mxu0
      %v6414 = vadd.f32 0.0, %v6413
      %6415 = vmatmul.bf16.gmra.mxu0 %v6269
      %v6416 = vpop.f32.mrf.mxu0
      %v6417 = vadd.f32 0.0, %v6416
      %v6418 = vpop.f32.mrf.mxu0
      %v6419 = vadd.f32 0.0, %v6418
      %6420 = vmatmul.bf16.gmra.mxu0 %v6271
      %v6421 = vpop.f32.mrf.mxu0
      %v6422 = vadd.f32 0.0, %v6421
      %v6423 = vpop.f32.mrf.mxu0
      %v6424 = vadd.f32 0.0, %v6423
      %6425 = vmatmul.bf16.gmra.mxu0 %v6273
      %v6426 = vpop.f32.mrf.mxu0
      %v6427 = vadd.f32 0.0, %v6426
      %v6428 = vpop.f32.mrf.mxu0
      %v6429 = vadd.f32 0.0, %v6428
      %6430 = vmatmul.bf16.gmra.mxu0 %v6275
      %v6431 = vpop.f32.mrf.mxu0
      %v6432 = vadd.f32 0.0, %v6431
      %v6433 = vpop.f32.mrf.mxu0
      %v6434 = vadd.f32 0.0, %v6433
      %6435 = vmatmul.bf16.gmra.mxu0 %v6274
      %v6436 = vpop.f32.mrf.mxu0
      %v6437 = vadd.f32 0.0, %v6436
      %v6438 = vpop.f32.mrf.mxu0
      %v6439 = vadd.f32 0.0, %v6438
      %6440 = vdwg.mxu0
      %v6441 = vadd.f32 %v6131, %v6352
      %v6442 = vadd.f32 %v6133, %v6354
      %v6443 = vadd.f32 %v6136, %v6357
      %v6444 = vadd.f32 %v6138, %v6359
      %v6445 = vadd.f32 %v6141, %v6362
      %v6446 = vadd.f32 %v6143, %v6364
      %v6447 = vadd.f32 %v6146, %v6367
      %v6448 = vadd.f32 %v6148, %v6369
      %v6449 = vadd.f32 %v6151, %v6372
      %v6450 = vadd.f32 %v6153, %v6374
      %v6451 = vadd.f32 %v6156, %v6377
      %v6452 = vadd.f32 %v6158, %v6379
      %v6453 = vadd.f32 %v6161, %v6382
      %v6454 = vadd.f32 %v6163, %v6384
      %v6455 = vadd.f32 %v6166, %v6387
      %v6456 = vadd.f32 %v6168, %v6389
      %v6457 = vadd.f32 %v6171, %v6392
      %v6458 = vadd.f32 %v6173, %v6394
      %v6459 = vadd.f32 %v6176, %v6397
      %v6460 = vadd.f32 %v6178, %v6399
      %v6461 = vadd.f32 %v6181, %v6402
      %v6462 = vadd.f32 %v6183, %v6404
      %v6463 = vadd.f32 %v6186, %v6407
      %v6464 = vadd.f32 %v6188, %v6409
      %v6465 = vadd.f32 %v6191, %v6412
      %v6466 = vadd.f32 %v6193, %v6414
      %v6467 = vadd.f32 %v6196, %v6417
      %v6468 = vadd.f32 %v6198, %v6419
      %v6469 = vadd.f32 %v6201, %v6422
      %v6470 = vadd.f32 %v6203, %v6424
      %v6471 = vadd.f32 %v6206, %v6427
      %v6472 = vadd.f32 %v6208, %v6429
      %v6473 = vadd.f32 %v6211, %v6432
      %v6474 = vadd.f32 %v6213, %v6434
      %v6475 = vadd.f32 %v6216, %v6437
      %v6476 = vadd.f32 %v6218, %v6439
      %v6477 = vld [vmem:[#allocation2 + $0x8] sm:$0xe]
      %v6478 = vld [vmem:[#allocation2 + $0xc] sm:$0xf]
      %v6479 = vld [vmem:[#allocation2 + $0x10] sm:$0xf]
      %v6480 = vld [vmem:[#allocation2 + $0x14] sm:$0xf]
      %v6481 = vld [vmem:[#allocation2 + $0x18] sm:$0xf]
      %v6482 = vld [vmem:[#allocation2 + $0x1c] sm:$0xf]
      %v6483 = vld [vmem:[#allocation2 + $0x20] sm:$0xf]
      %v6484 = vld [vmem:[#allocation2 + $0x24] sm:$0xf]
      %v6485 = vld [vmem:[#allocation2 + $0x28] sm:$0xf]
      %v6486 = vld [vmem:[#allocation2 + $0x2c] sm:$0xf]
      %v6487 = vld [vmem:[#allocation2 + $0x30] sm:$0xf]
      %v6488 = vld [vmem:[#allocation2 + $0x34] sm:$0xf]
      %v6489 = vld [vmem:[#allocation2 + $0x38] sm:$0xf]
      %v6490 = vld [vmem:[#allocation2 + $0x3c] sm:$0xf]
      %v6491 = vld [vmem:[#allocation2 + $0x40] sm:$0xf]
      %v6492 = vld [vmem:[#allocation2 + $0x44] sm:$0xf]
      %v6493 = vld [vmem:[#allocation2 + $0x48] sm:$0xf]
      %v6494 = vld [vmem:[#allocation2 + $0x4c] sm:$0xf]
      %v6495 = vld [vmem:[#allocation2 + $0x50] sm:$0xf]
      %v6496 = vld [vmem:[#allocation2 + $0x54] sm:$0xf]
      %v6497 = vld [vmem:[#allocation2 + $0x58] sm:$0xf]
      %v6498 = vld [vmem:[#allocation2 + $0x5c] sm:$0xf]
      %v6499 = vld [vmem:[#allocation2 + $0x60] sm:$0xf]
      %v6500 = vld [vmem:[#allocation2 + $0x64] sm:$0xf]
      %v6501 = vld [vmem:[#allocation2 + $0x68] sm:$0xf]
      %v6502 = vld [vmem:[#allocation2 + $0x6c] sm:$0xf]
      %v6503 = vld [vmem:[#allocation2 + $0x70] sm:$0xf]
      %v6504 = vld [vmem:[#allocation2 + $0x74] sm:$0xf]
      %v6505 = vld [vmem:[#allocation2 + $0x78] sm:$0xf]
      %v6506 = vld [vmem:[#allocation2 + $0x7c] sm:$0xf]
      %v6507 = vld [vmem:[#allocation2 + $0x80] sm:$0xf]
      %v6508 = vld [vmem:[#allocation2 + $0x84] sm:$0xf]
      %v6509 = vld [vmem:[#allocation2 + $0x88] sm:$0xf]
      %v6510 = vld [vmem:[#allocation2 + $0x8c] sm:$0xf]
      %v6511 = vld [vmem:[#allocation2 + $0x90] sm:$0xf]
      %v6512 = vld [vmem:[#allocation2 + $0x94] sm:$0xf]
      %s6513 = scalar_lea.vmem %s2, 192
      %v6514 = vld [vmem:[%s6513] sm:$0xf]
      %v6515 = vld [vmem:[%s6513 + $0x4] sm:$0xf]
      %v6516 = vld [vmem:[%s6513 + $0x8] sm:$0xf]
      %v6517 = vld [vmem:[%s6513 + $0xc] sm:$0xf]
      %v6518 = vld [vmem:[%s6513 + $0x10] sm:$0xf]
      %v6519 = vld [vmem:[%s6513 + $0x14] sm:$0xf]
      %v6520 = vld [vmem:[%s6513 + $0x18] sm:$0xf]
      %v6521 = vld [vmem:[%s6513 + $0x1c] sm:$0xf]
      %v6522 = vld [vmem:[%s6513 + $0x20] sm:$0xf]
      %v6523 = vld [vmem:[%s6513 + $0x24] sm:$0xf]
      %v6524 = vld [vmem:[%s6513 + $0x28] sm:$0xf]
      %v6525 = vld [vmem:[%s6513 + $0x2c] sm:$0xf]
      %v6526 = vld [vmem:[%s6513 + $0x30] sm:$0xf]
      %v6527 = vld [vmem:[%s6513 + $0x34] sm:$0xf]
      %v6528 = vld [vmem:[%s6513 + $0x38] sm:$0xf]
      %v6529 = vld [vmem:[%s6513 + $0x3c] sm:$0xf]
      %v6566 = vunpack.c.l.b16 %v6477
      %v6567 = vunpack.c.l.b16 %v6478
      %v6568 = vunpack.c.l.b16 %v6479
      %v6569 = vunpack.c.l.b16 %v6480
      %v6570 = vunpack.c.l.b16 %v6481
      %v6571 = vunpack.c.l.b16 %v6482
      %v6572 = vunpack.c.l.b16 %v6483
      %v6573 = vunpack.c.l.b16 %v6484
      %v6574 = vunpack.c.l.b16 %v6485
      %v6575 = vunpack.c.l.b16 %v6486
      %v6576 = vunpack.c.l.b16 %v6487
      %v6577 = vunpack.c.l.b16 %v6488
      %v6578 = vunpack.c.l.b16 %v6489
      %v6579 = vunpack.c.l.b16 %v6490
      %v6580 = vunpack.c.l.b16 %v6491
      %v6581 = vunpack.c.l.b16 %v6492
      %v6582 = vunpack.c.l.b16 %v6493
      %v6583 = vunpack.c.l.b16 %v6494
      %v6584 = vunpack.c.l.b16 %v6495
      %v6585 = vunpack.c.l.b16 %v6496
      %v6586 = vunpack.c.l.b16 %v6497
      %v6587 = vunpack.c.l.b16 %v6498
      %v6588 = vunpack.c.l.b16 %v6499
      %v6589 = vunpack.c.l.b16 %v6500
      %v6590 = vunpack.c.l.b16 %v6501
      %v6591 = vunpack.c.l.b16 %v6502
      %v6592 = vunpack.c.l.b16 %v6503
      %v6593 = vunpack.c.l.b16 %v6504
      %v6594 = vunpack.c.l.b16 %v6505
      %v6595 = vunpack.c.l.b16 %v6506
      %v6596 = vunpack.c.l.b16 %v6507
      %v6597 = vunpack.c.l.b16 %v6508
      %v6598 = vunpack.c.l.b16 %v6509
      %v6599 = vunpack.c.l.b16 %v6510
      %v6600 = vunpack.c.l.b16 %v6511
      %v6601 = vunpack.c.l.b16 %v6512
      %v6602 = vpack.c.b16 %v6567, %v6566
      %v6603 = vpack.c.b16 %v6569, %v6568
      %v6604 = vpack.c.b16 %v6571, %v6570
      %v6605 = vpack.c.b16 %v6573, %v6572
      %v6606 = vpack.c.b16 %v6575, %v6574
      %v6607 = vpack.c.b16 %v6577, %v6576
      %v6608 = vpack.c.b16 %v6579, %v6578
      %v6609 = vpack.c.b16 %v6581, %v6580
      %v6610 = vpack.c.b16 %v6583, %v6582
      %v6611 = vpack.c.b16 %v6585, %v6584
      %v6612 = vpack.c.b16 %v6587, %v6586
      %v6613 = vpack.c.b16 %v6589, %v6588
      %v6614 = vpack.c.b16 %v6591, %v6590
      %v6615 = vpack.c.b16 %v6593, %v6592
      %v6616 = vpack.c.b16 %v6595, %v6594
      %v6617 = vpack.c.b16 %v6597, %v6596
      %v6618 = vpack.c.b16 %v6599, %v6598
      %v6619 = vpack.c.b16 %v6601, %v6600
      %v6620 = vrot.slane %v6602, 1
      %v6621 = vrot.slane %v6603, 1
      %v6622 = vsel %vm2450, %v6620, %v6621
      %v6623 = vrot.slane %v6604, 1
      %v6624 = vsel %vm2450, %v6621, %v6623
      %v6625 = vrot.slane %v6605, 1
      %v6626 = vsel %vm2450, %v6623, %v6625
      %v6627 = vrot.slane %v6606, 1
      %v6628 = vsel %vm2450, %v6625, %v6627
      %v6629 = vrot.slane %v6607, 1
      %v6630 = vsel %vm2450, %v6627, %v6629
      %v6631 = vrot.slane %v6608, 1
      %v6632 = vsel %vm2450, %v6629, %v6631
      %v6633 = vrot.slane %v6609, 1
      %v6634 = vsel %vm2450, %v6631, %v6633
      %v6635 = vrot.slane %v6610, 1
      %v6636 = vsel %vm2450, %v6633, %v6635
      %v6637 = vrot.slane %v6611, 1
      %v6638 = vsel %vm2450, %v6635, %v6637
      %v6639 = vrot.slane %v6612, 1
      %v6640 = vsel %vm2450, %v6637, %v6639
      %v6641 = vrot.slane %v6613, 1
      %v6642 = vsel %vm2450, %v6639, %v6641
      %v6643 = vrot.slane %v6614, 1
      %v6644 = vsel %vm2450, %v6641, %v6643
      %v6645 = vrot.slane %v6615, 1
      %v6646 = vsel %vm2450, %v6643, %v6645
      %v6647 = vrot.slane %v6616, 1
      %v6648 = vsel %vm2450, %v6645, %v6647
      %v6649 = vrot.slane %v6617, 1
      %v6650 = vsel %vm2450, %v6647, %v6649
      %v6651 = vrot.slane %v6618, 1
      %v6652 = vsel %vm2450, %v6649, %v6651
      %v6653 = vrot.slane %v6619, 1
      %v6654 = vsel %vm2450, %v6651, %v6653
      %v6689 = vunpack.c.l.b16 %v6514
      %v6690 = vunpack.c.l.b16 %v6515
      %v6691 = vunpack.c.l.b16 %v6516
      %v6692 = vunpack.c.l.b16 %v6517
      %v6693 = vunpack.c.l.b16 %v6518
      %v6694 = vunpack.c.l.b16 %v6519
      %v6695 = vunpack.c.l.b16 %v6520
      %v6696 = vunpack.c.l.b16 %v6521
      %v6697 = vunpack.c.l.b16 %v6522
      %v6698 = vunpack.c.l.b16 %v6523
      %v6699 = vunpack.c.l.b16 %v6524
      %v6700 = vunpack.c.l.b16 %v6525
      %v6701 = vunpack.c.l.b16 %v6526
      %v6702 = vunpack.c.l.b16 %v6527
      %v6703 = vunpack.c.l.b16 %v6528
      %v6704 = vunpack.c.l.b16 %v6529
      %v6705 = vpack.c.b16 %v6690, %v6689
      %v6706 = vpack.c.b16 %v6692, %v6691
      %v6707 = vpack.c.b16 %v6694, %v6693
      %v6708 = vpack.c.b16 %v6696, %v6695
      %v6709 = vpack.c.b16 %v6698, %v6697
      %v6710 = vpack.c.b16 %v6700, %v6699
      %v6711 = vpack.c.b16 %v6702, %v6701
      %v6712 = vpack.c.b16 %v6704, %v6703
      %6721 = vmatpush.bf16.msra.mxu0 %v6712
      %6722 = vmatpush.bf16.msra.mxu0 %v6711
      %6723 = vmatpush.bf16.msra.mxu0 %v6710
      %6724 = vmatpush.bf16.msra.mxu0 %v6709
      %6725 = vmatpush.bf16.msra.mxu0 %v6708
      %6726 = vmatpush.bf16.msra.mxu0 %v6707
      %6727 = vmatpush.bf16.msra.mxu0 %v6706
      %6728 = vmatpush.bf16.msra.mxu0 %v6705
      %6729 = vmatmul.bf16.gmra.mxu0 %v6622
      %v6730 = vpop.f32.mrf.mxu0
      %v6731 = vadd.f32 0.0, %v6730
      %v6732 = vpop.f32.mrf.mxu0
      %v6733 = vadd.f32 0.0, %v6732
      %6734 = vmatmul.bf16.gmra.mxu0 %v6624
      %v6735 = vpop.f32.mrf.mxu0
      %v6736 = vadd.f32 0.0, %v6735
      %v6737 = vpop.f32.mrf.mxu0
      %v6738 = vadd.f32 0.0, %v6737
      %6739 = vmatmul.bf16.gmra.mxu0 %v6626
      %v6740 = vpop.f32.mrf.mxu0
      %v6741 = vadd.f32 0.0, %v6740
      %v6742 = vpop.f32.mrf.mxu0
      %v6743 = vadd.f32 0.0, %v6742
      %6744 = vmatmul.bf16.gmra.mxu0 %v6628
      %v6745 = vpop.f32.mrf.mxu0
      %v6746 = vadd.f32 0.0, %v6745
      %v6747 = vpop.f32.mrf.mxu0
      %v6748 = vadd.f32 0.0, %v6747
      %6749 = vmatmul.bf16.gmra.mxu0 %v6630
      %v6750 = vpop.f32.mrf.mxu0
      %v6751 = vadd.f32 0.0, %v6750
      %v6752 = vpop.f32.mrf.mxu0
      %v6753 = vadd.f32 0.0, %v6752
      %6754 = vmatmul.bf16.gmra.mxu0 %v6632
      %v6755 = vpop.f32.mrf.mxu0
      %v6756 = vadd.f32 0.0, %v6755
      %v6757 = vpop.f32.mrf.mxu0
      %v6758 = vadd.f32 0.0, %v6757
      %6759 = vmatmul.bf16.gmra.mxu0 %v6634
      %v6760 = vpop.f32.mrf.mxu0
      %v6761 = vadd.f32 0.0, %v6760
      %v6762 = vpop.f32.mrf.mxu0
      %v6763 = vadd.f32 0.0, %v6762
      %6764 = vmatmul.bf16.gmra.mxu0 %v6636
      %v6765 = vpop.f32.mrf.mxu0
      %v6766 = vadd.f32 0.0, %v6765
      %v6767 = vpop.f32.mrf.mxu0
      %v6768 = vadd.f32 0.0, %v6767
      %6769 = vmatmul.bf16.gmra.mxu0 %v6638
      %v6770 = vpop.f32.mrf.mxu0
      %v6771 = vadd.f32 0.0, %v6770
      %v6772 = vpop.f32.mrf.mxu0
      %v6773 = vadd.f32 0.0, %v6772
      %6774 = vmatmul.bf16.gmra.mxu0 %v6640
      %v6775 = vpop.f32.mrf.mxu0
      %v6776 = vadd.f32 0.0, %v6775
      %v6777 = vpop.f32.mrf.mxu0
      %v6778 = vadd.f32 0.0, %v6777
      %6779 = vmatmul.bf16.gmra.mxu0 %v6642
      %v6780 = vpop.f32.mrf.mxu0
      %v6781 = vadd.f32 0.0, %v6780
      %v6782 = vpop.f32.mrf.mxu0
      %v6783 = vadd.f32 0.0, %v6782
      %6784 = vmatmul.bf16.gmra.mxu0 %v6644
      %v6785 = vpop.f32.mrf.mxu0
      %v6786 = vadd.f32 0.0, %v6785
      %v6787 = vpop.f32.mrf.mxu0
      %v6788 = vadd.f32 0.0, %v6787
      %6789 = vmatmul.bf16.gmra.mxu0 %v6646
      %v6790 = vpop.f32.mrf.mxu0
      %v6791 = vadd.f32 0.0, %v6790
      %v6792 = vpop.f32.mrf.mxu0
      %v6793 = vadd.f32 0.0, %v6792
      %6794 = vmatmul.bf16.gmra.mxu0 %v6648
      %v6795 = vpop.f32.mrf.mxu0
      %v6796 = vadd.f32 0.0, %v6795
      %v6797 = vpop.f32.mrf.mxu0
      %v6798 = vadd.f32 0.0, %v6797
      %6799 = vmatmul.bf16.gmra.mxu0 %v6650
      %v6800 = vpop.f32.mrf.mxu0
      %v6801 = vadd.f32 0.0, %v6800
      %v6802 = vpop.f32.mrf.mxu0
      %v6803 = vadd.f32 0.0, %v6802
      %6804 = vmatmul.bf16.gmra.mxu0 %v6652
      %v6805 = vpop.f32.mrf.mxu0
      %v6806 = vadd.f32 0.0, %v6805
      %v6807 = vpop.f32.mrf.mxu0
      %v6808 = vadd.f32 0.0, %v6807
      %6809 = vmatmul.bf16.gmra.mxu0 %v6654
      %v6810 = vpop.f32.mrf.mxu0
      %v6811 = vadd.f32 0.0, %v6810
      %v6812 = vpop.f32.mrf.mxu0
      %v6813 = vadd.f32 0.0, %v6812
      %6814 = vmatmul.bf16.gmra.mxu0 %v6653
      %v6815 = vpop.f32.mrf.mxu0
      %v6816 = vadd.f32 0.0, %v6815
      %v6817 = vpop.f32.mrf.mxu0
      %v6818 = vadd.f32 0.0, %v6817
      %6819 = vdwg.mxu0
      %v6820 = vadd.f32 %v6441, %v6731
      %v6821 = vadd.f32 %v6442, %v6733
      %v6822 = vadd.f32 %v6443, %v6736
      %v6823 = vadd.f32 %v6444, %v6738
      %v6824 = vadd.f32 %v6445, %v6741
      %v6825 = vadd.f32 %v6446, %v6743
      %v6826 = vadd.f32 %v6447, %v6746
      %v6827 = vadd.f32 %v6448, %v6748
      %v6828 = vadd.f32 %v6449, %v6751
      %v6829 = vadd.f32 %v6450, %v6753
      %v6830 = vadd.f32 %v6451, %v6756
      %v6831 = vadd.f32 %v6452, %v6758
      %v6832 = vadd.f32 %v6453, %v6761
      %v6833 = vadd.f32 %v6454, %v6763
      %v6834 = vadd.f32 %v6455, %v6766
      %v6835 = vadd.f32 %v6456, %v6768
      %v6836 = vadd.f32 %v6457, %v6771
      %v6837 = vadd.f32 %v6458, %v6773
      %v6838 = vadd.f32 %v6459, %v6776
      %v6839 = vadd.f32 %v6460, %v6778
      %v6840 = vadd.f32 %v6461, %v6781
      %v6841 = vadd.f32 %v6462, %v6783
      %v6842 = vadd.f32 %v6463, %v6786
      %v6843 = vadd.f32 %v6464, %v6788
      %v6844 = vadd.f32 %v6465, %v6791
      %v6845 = vadd.f32 %v6466, %v6793
      %v6846 = vadd.f32 %v6467, %v6796
      %v6847 = vadd.f32 %v6468, %v6798
      %v6848 = vadd.f32 %v6469, %v6801
      %v6849 = vadd.f32 %v6470, %v6803
      %v6850 = vadd.f32 %v6471, %v6806
      %v6851 = vadd.f32 %v6472, %v6808
      %v6852 = vadd.f32 %v6473, %v6811
      %v6853 = vadd.f32 %v6474, %v6813
      %v6854 = vadd.f32 %v6475, %v6816
      %v6855 = vadd.f32 %v6476, %v6818
      %v6856 = vld [vmem:[#allocation2 + $0x8] sm:$0xe]
      %v6857 = vld [vmem:[#allocation2 + $0xc] sm:$0xf]
      %v6858 = vld [vmem:[#allocation2 + $0x10] sm:$0xf]
      %v6859 = vld [vmem:[#allocation2 + $0x14] sm:$0xf]
      %v6860 = vld [vmem:[#allocation2 + $0x18] sm:$0xf]
      %v6861 = vld [vmem:[#allocation2 + $0x1c] sm:$0xf]
      %v6862 = vld [vmem:[#allocation2 + $0x20] sm:$0xf]
      %v6863 = vld [vmem:[#allocation2 + $0x24] sm:$0xf]
      %v6864 = vld [vmem:[#allocation2 + $0x28] sm:$0xf]
      %v6865 = vld [vmem:[#allocation2 + $0x2c] sm:$0xf]
      %v6866 = vld [vmem:[#allocation2 + $0x30] sm:$0xf]
      %v6867 = vld [vmem:[#allocation2 + $0x34] sm:$0xf]
      %v6868 = vld [vmem:[#allocation2 + $0x38] sm:$0xf]
      %v6869 = vld [vmem:[#allocation2 + $0x3c] sm:$0xf]
      %v6870 = vld [vmem:[#allocation2 + $0x40] sm:$0xf]
      %v6871 = vld [vmem:[#allocation2 + $0x44] sm:$0xf]
      %v6872 = vld [vmem:[#allocation2 + $0x48] sm:$0xf]
      %v6873 = vld [vmem:[#allocation2 + $0x4c] sm:$0xf]
      %v6874 = vld [vmem:[#allocation2 + $0x50] sm:$0xf]
      %v6875 = vld [vmem:[#allocation2 + $0x54] sm:$0xf]
      %v6876 = vld [vmem:[#allocation2 + $0x58] sm:$0xf]
      %v6877 = vld [vmem:[#allocation2 + $0x5c] sm:$0xf]
      %v6878 = vld [vmem:[#allocation2 + $0x60] sm:$0xf]
      %v6879 = vld [vmem:[#allocation2 + $0x64] sm:$0xf]
      %v6880 = vld [vmem:[#allocation2 + $0x68] sm:$0xf]
      %v6881 = vld [vmem:[#allocation2 + $0x6c] sm:$0xf]
      %v6882 = vld [vmem:[#allocation2 + $0x70] sm:$0xf]
      %v6883 = vld [vmem:[#allocation2 + $0x74] sm:$0xf]
      %v6884 = vld [vmem:[#allocation2 + $0x78] sm:$0xf]
      %v6885 = vld [vmem:[#allocation2 + $0x7c] sm:$0xf]
      %v6886 = vld [vmem:[#allocation2 + $0x80] sm:$0xf]
      %v6887 = vld [vmem:[#allocation2 + $0x84] sm:$0xf]
      %v6888 = vld [vmem:[#allocation2 + $0x88] sm:$0xf]
      %v6889 = vld [vmem:[#allocation2 + $0x8c] sm:$0xf]
      %v6890 = vld [vmem:[#allocation2 + $0x90] sm:$0xf]
      %v6891 = vld [vmem:[#allocation2 + $0x94] sm:$0xf]
      %v6892 = vld [vmem:[#allocation2 + $0x98] sm:$0x1]
      %s6893 = scalar_lea.vmem %s2, 256
      %v6894 = vld [vmem:[%s6893] sm:$0xf]
      %v6895 = vld [vmem:[%s6893 + $0x4] sm:$0xf]
      %v6896 = vld [vmem:[%s6893 + $0x8] sm:$0xf]
      %v6897 = vld [vmem:[%s6893 + $0xc] sm:$0xf]
      %v6898 = vld [vmem:[%s6893 + $0x10] sm:$0xf]
      %v6899 = vld [vmem:[%s6893 + $0x14] sm:$0xf]
      %v6900 = vld [vmem:[%s6893 + $0x18] sm:$0xf]
      %v6901 = vld [vmem:[%s6893 + $0x1c] sm:$0xf]
      %v6902 = vld [vmem:[%s6893 + $0x20] sm:$0xf]
      %v6903 = vld [vmem:[%s6893 + $0x24] sm:$0xf]
      %v6904 = vld [vmem:[%s6893 + $0x28] sm:$0xf]
      %v6905 = vld [vmem:[%s6893 + $0x2c] sm:$0xf]
      %v6906 = vld [vmem:[%s6893 + $0x30] sm:$0xf]
      %v6907 = vld [vmem:[%s6893 + $0x34] sm:$0xf]
      %v6908 = vld [vmem:[%s6893 + $0x38] sm:$0xf]
      %v6909 = vld [vmem:[%s6893 + $0x3c] sm:$0xf]
      %v6947 = vunpack.c.l.b16 %v6856
      %v6948 = vunpack.c.l.b16 %v6857
      %v6949 = vunpack.c.l.b16 %v6858
      %v6950 = vunpack.c.l.b16 %v6859
      %v6951 = vunpack.c.l.b16 %v6860
      %v6952 = vunpack.c.l.b16 %v6861
      %v6953 = vunpack.c.l.b16 %v6862
      %v6954 = vunpack.c.l.b16 %v6863
      %v6955 = vunpack.c.l.b16 %v6864
      %v6956 = vunpack.c.l.b16 %v6865
      %v6957 = vunpack.c.l.b16 %v6866
      %v6958 = vunpack.c.l.b16 %v6867
      %v6959 = vunpack.c.l.b16 %v6868
      %v6960 = vunpack.c.l.b16 %v6869
      %v6961 = vunpack.c.l.b16 %v6870
      %v6962 = vunpack.c.l.b16 %v6871
      %v6963 = vunpack.c.l.b16 %v6872
      %v6964 = vunpack.c.l.b16 %v6873
      %v6965 = vunpack.c.l.b16 %v6874
      %v6966 = vunpack.c.l.b16 %v6875
      %v6967 = vunpack.c.l.b16 %v6876
      %v6968 = vunpack.c.l.b16 %v6877
      %v6969 = vunpack.c.l.b16 %v6878
      %v6970 = vunpack.c.l.b16 %v6879
      %v6971 = vunpack.c.l.b16 %v6880
      %v6972 = vunpack.c.l.b16 %v6881
      %v6973 = vunpack.c.l.b16 %v6882
      %v6974 = vunpack.c.l.b16 %v6883
      %v6975 = vunpack.c.l.b16 %v6884
      %v6976 = vunpack.c.l.b16 %v6885
      %v6977 = vunpack.c.l.b16 %v6886
      %v6978 = vunpack.c.l.b16 %v6887
      %v6979 = vunpack.c.l.b16 %v6888
      %v6980 = vunpack.c.l.b16 %v6889
      %v6981 = vunpack.c.l.b16 %v6890
      %v6982 = vunpack.c.l.b16 %v6891
      %v6983 = vunpack.c.l.b16 %v6892
      %v6984 = vpack.c.b16 %v6948, %v6947
      %v6985 = vpack.c.b16 %v6950, %v6949
      %v6986 = vpack.c.b16 %v6952, %v6951
      %v6987 = vpack.c.b16 %v6954, %v6953
      %v6988 = vpack.c.b16 %v6956, %v6955
      %v6989 = vpack.c.b16 %v6958, %v6957
      %v6990 = vpack.c.b16 %v6960, %v6959
      %v6991 = vpack.c.b16 %v6962, %v6961
      %v6992 = vpack.c.b16 %v6964, %v6963
      %v6993 = vpack.c.b16 %v6966, %v6965
      %v6994 = vpack.c.b16 %v6968, %v6967
      %v6995 = vpack.c.b16 %v6970, %v6969
      %v6996 = vpack.c.b16 %v6972, %v6971
      %v6997 = vpack.c.b16 %v6974, %v6973
      %v6998 = vpack.c.b16 %v6976, %v6975
      %v6999 = vpack.c.b16 %v6978, %v6977
      %v7000 = vpack.c.b16 %v6980, %v6979
      %v7001 = vpack.c.b16 %v6982, %v6981
      %v7002 = vpack.c.b16 %v6983, %v6983
      %v7004 = vshrl.u32 %v6984, 16
      %v7006 = vrot.slane %v7004, 1
      %v7007 = vshll.u32 %v6984, 16
      %v7009 = vrot.slane %v7007, 2
      %v7010 = vor.u32 %v7006, %v7009
      %v7012 = vshrl.u32 %v6985, 16
      %v7014 = vrot.slane %v7012, 1
      %v7015 = vshll.u32 %v6985, 16
      %v7017 = vrot.slane %v7015, 2
      %v7018 = vor.u32 %v7014, %v7017
      %v7019 = vsel %vm3213, %v7010, %v7018
      %v7021 = vshrl.u32 %v6986, 16
      %v7023 = vrot.slane %v7021, 1
      %v7024 = vshll.u32 %v6986, 16
      %v7026 = vrot.slane %v7024, 2
      %v7027 = vor.u32 %v7023, %v7026
      %v7028 = vsel %vm3213, %v7018, %v7027
      %v7030 = vshrl.u32 %v6987, 16
      %v7032 = vrot.slane %v7030, 1
      %v7033 = vshll.u32 %v6987, 16
      %v7035 = vrot.slane %v7033, 2
      %v7036 = vor.u32 %v7032, %v7035
      %v7037 = vsel %vm3213, %v7027, %v7036
      %v7039 = vshrl.u32 %v6988, 16
      %v7041 = vrot.slane %v7039, 1
      %v7042 = vshll.u32 %v6988, 16
      %v7044 = vrot.slane %v7042, 2
      %v7045 = vor.u32 %v7041, %v7044
      %v7046 = vsel %vm3213, %v7036, %v7045
      %v7048 = vshrl.u32 %v6989, 16
      %v7050 = vrot.slane %v7048, 1
      %v7051 = vshll.u32 %v6989, 16
      %v7053 = vrot.slane %v7051, 2
      %v7054 = vor.u32 %v7050, %v7053
      %v7055 = vsel %vm3213, %v7045, %v7054
      %v7057 = vshrl.u32 %v6990, 16
      %v7059 = vrot.slane %v7057, 1
      %v7060 = vshll.u32 %v6990, 16
      %v7062 = vrot.slane %v7060, 2
      %v7063 = vor.u32 %v7059, %v7062
      %v7064 = vsel %vm3213, %v7054, %v7063
      %v7066 = vshrl.u32 %v6991, 16
      %v7068 = vrot.slane %v7066, 1
      %v7069 = vshll.u32 %v6991, 16
      %v7071 = vrot.slane %v7069, 2
      %v7072 = vor.u32 %v7068, %v7071
      %v7073 = vsel %vm3213, %v7063, %v7072
      %v7075 = vshrl.u32 %v6992, 16
      %v7077 = vrot.slane %v7075, 1
      %v7078 = vshll.u32 %v6992, 16
      %v7080 = vrot.slane %v7078, 2
      %v7081 = vor.u32 %v7077, %v7080
      %v7082 = vsel %vm3213, %v7072, %v7081
      %v7084 = vshrl.u32 %v6993, 16
      %v7086 = vrot.slane %v7084, 1
      %v7087 = vshll.u32 %v6993, 16
      %v7089 = vrot.slane %v7087, 2
      %v7090 = vor.u32 %v7086, %v7089
      %v7091 = vsel %vm3213, %v7081, %v7090
      %v7093 = vshrl.u32 %v6994, 16
      %v7095 = vrot.slane %v7093, 1
      %v7096 = vshll.u32 %v6994, 16
      %v7098 = vrot.slane %v7096, 2
      %v7099 = vor.u32 %v7095, %v7098
      %v7100 = vsel %vm3213, %v7090, %v7099
      %v7102 = vshrl.u32 %v6995, 16
      %v7104 = vrot.slane %v7102, 1
      %v7105 = vshll.u32 %v6995, 16
      %v7107 = vrot.slane %v7105, 2
      %v7108 = vor.u32 %v7104, %v7107
      %v7109 = vsel %vm3213, %v7099, %v7108
      %v7111 = vshrl.u32 %v6996, 16
      %v7113 = vrot.slane %v7111, 1
      %v7114 = vshll.u32 %v6996, 16
      %v7116 = vrot.slane %v7114, 2
      %v7117 = vor.u32 %v7113, %v7116
      %v7118 = vsel %vm3213, %v7108, %v7117
      %v7120 = vshrl.u32 %v6997, 16
      %v7122 = vrot.slane %v7120, 1
      %v7123 = vshll.u32 %v6997, 16
      %v7125 = vrot.slane %v7123, 2
      %v7126 = vor.u32 %v7122, %v7125
      %v7127 = vsel %vm3213, %v7117, %v7126
      %v7129 = vshrl.u32 %v6998, 16
      %v7131 = vrot.slane %v7129, 1
      %v7132 = vshll.u32 %v6998, 16
      %v7134 = vrot.slane %v7132, 2
      %v7135 = vor.u32 %v7131, %v7134
      %v7136 = vsel %vm3213, %v7126, %v7135
      %v7138 = vshrl.u32 %v6999, 16
      %v7140 = vrot.slane %v7138, 1
      %v7141 = vshll.u32 %v6999, 16
      %v7143 = vrot.slane %v7141, 2
      %v7144 = vor.u32 %v7140, %v7143
      %v7145 = vsel %vm3213, %v7135, %v7144
      %v7147 = vshrl.u32 %v7000, 16
      %v7149 = vrot.slane %v7147, 1
      %v7150 = vshll.u32 %v7000, 16
      %v7152 = vrot.slane %v7150, 2
      %v7153 = vor.u32 %v7149, %v7152
      %v7154 = vsel %vm3213, %v7144, %v7153
      %v7156 = vshrl.u32 %v7001, 16
      %v7158 = vrot.slane %v7156, 1
      %v7159 = vshll.u32 %v7001, 16
      %v7161 = vrot.slane %v7159, 2
      %v7162 = vor.u32 %v7158, %v7161
      %v7163 = vsel %vm3213, %v7153, %v7162
      %v7165 = vshll.u32 %v7002, 16
      %v7167 = vrot.slane %v7165, 2
      %v7168 = vsel %vm3213, %v7162, %v7167
      %v7203 = vunpack.c.l.b16 %v6894
      %v7204 = vunpack.c.l.b16 %v6895
      %v7205 = vunpack.c.l.b16 %v6896
      %v7206 = vunpack.c.l.b16 %v6897
      %v7207 = vunpack.c.l.b16 %v6898
      %v7208 = vunpack.c.l.b16 %v6899
      %v7209 = vunpack.c.l.b16 %v6900
      %v7210 = vunpack.c.l.b16 %v6901
      %v7211 = vunpack.c.l.b16 %v6902
      %v7212 = vunpack.c.l.b16 %v6903
      %v7213 = vunpack.c.l.b16 %v6904
      %v7214 = vunpack.c.l.b16 %v6905
      %v7215 = vunpack.c.l.b16 %v6906
      %v7216 = vunpack.c.l.b16 %v6907
      %v7217 = vunpack.c.l.b16 %v6908
      %v7218 = vunpack.c.l.b16 %v6909
      %v7219 = vpack.c.b16 %v7204, %v7203
      %v7220 = vpack.c.b16 %v7206, %v7205
      %v7221 = vpack.c.b16 %v7208, %v7207
      %v7222 = vpack.c.b16 %v7210, %v7209
      %v7223 = vpack.c.b16 %v7212, %v7211
      %v7224 = vpack.c.b16 %v7214, %v7213
      %v7225 = vpack.c.b16 %v7216, %v7215
      %v7226 = vpack.c.b16 %v7218, %v7217
      %7235 = vmatpush.bf16.msra.mxu0 %v7226
      %7236 = vmatpush.bf16.msra.mxu0 %v7225
      %7237 = vmatpush.bf16.msra.mxu0 %v7224
      %7238 = vmatpush.bf16.msra.mxu0 %v7223
      %7239 = vmatpush.bf16.msra.mxu0 %v7222
      %7240 = vmatpush.bf16.msra.mxu0 %v7221
      %7241 = vmatpush.bf16.msra.mxu0 %v7220
      %7242 = vmatpush.bf16.msra.mxu0 %v7219
      %7243 = vmatmul.bf16.gmra.mxu0 %v7019
      %v7244 = vpop.f32.mrf.mxu0
      %v7245 = vadd.f32 0.0, %v7244
      %v7246 = vpop.f32.mrf.mxu0
      %v7247 = vadd.f32 0.0, %v7246
      %7248 = vmatmul.bf16.gmra.mxu0 %v7028
      %v7249 = vpop.f32.mrf.mxu0
      %v7250 = vadd.f32 0.0, %v7249
      %v7251 = vpop.f32.mrf.mxu0
      %v7252 = vadd.f32 0.0, %v7251
      %7253 = vmatmul.bf16.gmra.mxu0 %v7037
      %v7254 = vpop.f32.mrf.mxu0
      %v7255 = vadd.f32 0.0, %v7254
      %v7256 = vpop.f32.mrf.mxu0
      %v7257 = vadd.f32 0.0, %v7256
      %7258 = vmatmul.bf16.gmra.mxu0 %v7046
      %v7259 = vpop.f32.mrf.mxu0
      %v7260 = vadd.f32 0.0, %v7259
      %v7261 = vpop.f32.mrf.mxu0
      %v7262 = vadd.f32 0.0, %v7261
      %7263 = vmatmul.bf16.gmra.mxu0 %v7055
      %v7264 = vpop.f32.mrf.mxu0
      %v7265 = vadd.f32 0.0, %v7264
      %v7266 = vpop.f32.mrf.mxu0
      %v7267 = vadd.f32 0.0, %v7266
      %7268 = vmatmul.bf16.gmra.mxu0 %v7064
      %v7269 = vpop.f32.mrf.mxu0
      %v7270 = vadd.f32 0.0, %v7269
      %v7271 = vpop.f32.mrf.mxu0
      %v7272 = vadd.f32 0.0, %v7271
      %7273 = vmatmul.bf16.gmra.mxu0 %v7073
      %v7274 = vpop.f32.mrf.mxu0
      %v7275 = vadd.f32 0.0, %v7274
      %v7276 = vpop.f32.mrf.mxu0
      %v7277 = vadd.f32 0.0, %v7276
      %7278 = vmatmul.bf16.gmra.mxu0 %v7082
      %v7279 = vpop.f32.mrf.mxu0
      %v7280 = vadd.f32 0.0, %v7279
      %v7281 = vpop.f32.mrf.mxu0
      %v7282 = vadd.f32 0.0, %v7281
      %7283 = vmatmul.bf16.gmra.mxu0 %v7091
      %v7284 = vpop.f32.mrf.mxu0
      %v7285 = vadd.f32 0.0, %v7284
      %v7286 = vpop.f32.mrf.mxu0
      %v7287 = vadd.f32 0.0, %v7286
      %7288 = vmatmul.bf16.gmra.mxu0 %v7100
      %v7289 = vpop.f32.mrf.mxu0
      %v7290 = vadd.f32 0.0, %v7289
      %v7291 = vpop.f32.mrf.mxu0
      %v7292 = vadd.f32 0.0, %v7291
      %7293 = vmatmul.bf16.gmra.mxu0 %v7109
      %v7294 = vpop.f32.mrf.mxu0
      %v7295 = vadd.f32 0.0, %v7294
      %v7296 = vpop.f32.mrf.mxu0
      %v7297 = vadd.f32 0.0, %v7296
      %7298 = vmatmul.bf16.gmra.mxu0 %v7118
      %v7299 = vpop.f32.mrf.mxu0
      %v7300 = vadd.f32 0.0, %v7299
      %v7301 = vpop.f32.mrf.mxu0
      %v7302 = vadd.f32 0.0, %v7301
      %7303 = vmatmul.bf16.gmra.mxu0 %v7127
      %v7304 = vpop.f32.mrf.mxu0
      %v7305 = vadd.f32 0.0, %v7304
      %v7306 = vpop.f32.mrf.mxu0
      %v7307 = vadd.f32 0.0, %v7306
      %7308 = vmatmul.bf16.gmra.mxu0 %v7136
      %v7309 = vpop.f32.mrf.mxu0
      %v7310 = vadd.f32 0.0, %v7309
      %v7311 = vpop.f32.mrf.mxu0
      %v7312 = vadd.f32 0.0, %v7311
      %7313 = vmatmul.bf16.gmra.mxu0 %v7145
      %v7314 = vpop.f32.mrf.mxu0
      %v7315 = vadd.f32 0.0, %v7314
      %v7316 = vpop.f32.mrf.mxu0
      %v7317 = vadd.f32 0.0, %v7316
      %7318 = vmatmul.bf16.gmra.mxu0 %v7154
      %v7319 = vpop.f32.mrf.mxu0
      %v7320 = vadd.f32 0.0, %v7319
      %v7321 = vpop.f32.mrf.mxu0
      %v7322 = vadd.f32 0.0, %v7321
      %7323 = vmatmul.bf16.gmra.mxu0 %v7163
      %v7324 = vpop.f32.mrf.mxu0
      %v7325 = vadd.f32 0.0, %v7324
      %v7326 = vpop.f32.mrf.mxu0
      %v7327 = vadd.f32 0.0, %v7326
      %7328 = vmatmul.bf16.gmra.mxu0 %v7168
      %v7329 = vpop.f32.mrf.mxu0
      %v7330 = vadd.f32 0.0, %v7329
      %v7331 = vpop.f32.mrf.mxu0
      %v7332 = vadd.f32 0.0, %v7331
      %7333 = vdwg.mxu0
      %v7334 = vadd.f32 %v6820, %v7245
      %v7335 = vadd.f32 %v6821, %v7247
      %v7336 = vadd.f32 %v6822, %v7250
      %v7337 = vadd.f32 %v6823, %v7252
      %v7338 = vadd.f32 %v6824, %v7255
      %v7339 = vadd.f32 %v6825, %v7257
      %v7340 = vadd.f32 %v6826, %v7260
      %v7341 = vadd.f32 %v6827, %v7262
      %v7342 = vadd.f32 %v6828, %v7265
      %v7343 = vadd.f32 %v6829, %v7267
      %v7344 = vadd.f32 %v6830, %v7270
      %v7345 = vadd.f32 %v6831, %v7272
      %v7346 = vadd.f32 %v6832, %v7275
      %v7347 = vadd.f32 %v6833, %v7277
      %v7348 = vadd.f32 %v6834, %v7280
      %v7349 = vadd.f32 %v6835, %v7282
      %v7350 = vadd.f32 %v6836, %v7285
      %v7351 = vadd.f32 %v6837, %v7287
      %v7352 = vadd.f32 %v6838, %v7290
      %v7353 = vadd.f32 %v6839, %v7292
      %v7354 = vadd.f32 %v6840, %v7295
      %v7355 = vadd.f32 %v6841, %v7297
      %v7356 = vadd.f32 %v6842, %v7300
      %v7357 = vadd.f32 %v6843, %v7302
      %v7358 = vadd.f32 %v6844, %v7305
      %v7359 = vadd.f32 %v6845, %v7307
      %v7360 = vadd.f32 %v6846, %v7310
      %v7361 = vadd.f32 %v6847, %v7312
      %v7362 = vadd.f32 %v6848, %v7315
      %v7363 = vadd.f32 %v6849, %v7317
      %v7364 = vadd.f32 %v6850, %v7320
      %v7365 = vadd.f32 %v6851, %v7322
      %v7366 = vadd.f32 %v6852, %v7325
      %v7367 = vadd.f32 %v6853, %v7327
      %v7368 = vadd.f32 %v6854, %v7330
      %v7369 = vadd.f32 %v6855, %v7332
      %v7370 = vld [vmem:[#allocation2 + $0x8] sm:$0xc]
      %s7371 = scalar_lea.vmem %s2, 320
      %v7372 = vld [vmem:[%s7371] sm:$0xf]
      %v7373 = vld [vmem:[%s7371 + $0x4] sm:$0xf]
      %v7374 = vld [vmem:[%s7371 + $0x8] sm:$0xf]
      %v7375 = vld [vmem:[%s7371 + $0xc] sm:$0xf]
      %v7376 = vld [vmem:[%s7371 + $0x10] sm:$0xf]
      %v7377 = vld [vmem:[%s7371 + $0x14] sm:$0xf]
      %v7378 = vld [vmem:[%s7371 + $0x18] sm:$0xf]
      %v7379 = vld [vmem:[%s7371 + $0x1c] sm:$0xf]
      %v7380 = vld [vmem:[%s7371 + $0x20] sm:$0xf]
      %v7381 = vld [vmem:[%s7371 + $0x24] sm:$0xf]
      %v7382 = vld [vmem:[%s7371 + $0x28] sm:$0xf]
      %v7383 = vld [vmem:[%s7371 + $0x2c] sm:$0xf]
      %v7384 = vld [vmem:[%s7371 + $0x30] sm:$0xf]
      %v7385 = vld [vmem:[%s7371 + $0x34] sm:$0xf]
      %v7386 = vld [vmem:[%s7371 + $0x38] sm:$0xf]
      %v7387 = vld [vmem:[%s7371 + $0x3c] sm:$0xf]
      %v7389 = vunpack.c.l.b16 %v7370
      %v7390 = vpack.c.b16 %v6948, %v7389
      %v7391 = vrot.slane %v7390, 2
      %v7392 = vrot.slane %v6985, 2
      %v7393 = vsel %vm3602, %v7391, %v7392
      %v7394 = vrot.slane %v6986, 2
      %v7395 = vsel %vm3602, %v7392, %v7394
      %v7396 = vrot.slane %v6987, 2
      %v7397 = vsel %vm3602, %v7394, %v7396
      %v7398 = vrot.slane %v6988, 2
      %v7399 = vsel %vm3602, %v7396, %v7398
      %v7400 = vrot.slane %v6989, 2
      %v7401 = vsel %vm3602, %v7398, %v7400
      %v7402 = vrot.slane %v6990, 2
      %v7403 = vsel %vm3602, %v7400, %v7402
      %v7404 = vrot.slane %v6991, 2
      %v7405 = vsel %vm3602, %v7402, %v7404
      %v7406 = vrot.slane %v6992, 2
      %v7407 = vsel %vm3602, %v7404, %v7406
      %v7408 = vrot.slane %v6993, 2
      %v7409 = vsel %vm3602, %v7406, %v7408
      %v7410 = vrot.slane %v6994, 2
      %v7411 = vsel %vm3602, %v7408, %v7410
      %v7412 = vrot.slane %v6995, 2
      %v7413 = vsel %vm3602, %v7410, %v7412
      %v7414 = vrot.slane %v6996, 2
      %v7415 = vsel %vm3602, %v7412, %v7414
      %v7416 = vrot.slane %v6997, 2
      %v7417 = vsel %vm3602, %v7414, %v7416
      %v7418 = vrot.slane %v6998, 2
      %v7419 = vsel %vm3602, %v7416, %v7418
      %v7420 = vrot.slane %v6999, 2
      %v7421 = vsel %vm3602, %v7418, %v7420
      %v7422 = vrot.slane %v7000, 2
      %v7423 = vsel %vm3602, %v7420, %v7422
      %v7424 = vrot.slane %v7001, 2
      %v7425 = vsel %vm3602, %v7422, %v7424
      %v7426 = vrot.slane %v7002, 2
      %v7427 = vsel %vm3602, %v7424, %v7426
      %v7462 = vunpack.c.l.b16 %v7372
      %v7463 = vunpack.c.l.b16 %v7373
      %v7464 = vunpack.c.l.b16 %v7374
      %v7465 = vunpack.c.l.b16 %v7375
      %v7466 = vunpack.c.l.b16 %v7376
      %v7467 = vunpack.c.l.b16 %v7377
      %v7468 = vunpack.c.l.b16 %v7378
      %v7469 = vunpack.c.l.b16 %v7379
      %v7470 = vunpack.c.l.b16 %v7380
      %v7471 = vunpack.c.l.b16 %v7381
      %v7472 = vunpack.c.l.b16 %v7382
      %v7473 = vunpack.c.l.b16 %v7383
      %v7474 = vunpack.c.l.b16 %v7384
      %v7475 = vunpack.c.l.b16 %v7385
      %v7476 = vunpack.c.l.b16 %v7386
      %v7477 = vunpack.c.l.b16 %v7387
      %v7478 = vpack.c.b16 %v7463, %v7462
      %v7479 = vpack.c.b16 %v7465, %v7464
      %v7480 = vpack.c.b16 %v7467, %v7466
      %v7481 = vpack.c.b16 %v7469, %v7468
      %v7482 = vpack.c.b16 %v7471, %v7470
      %v7483 = vpack.c.b16 %v7473, %v7472
      %v7484 = vpack.c.b16 %v7475, %v7474
      %v7485 = vpack.c.b16 %v7477, %v7476
      %7494 = vmatpush.bf16.msra.mxu0 %v7485
      %7495 = vmatpush.bf16.msra.mxu0 %v7484
      %7496 = vmatpush.bf16.msra.mxu0 %v7483
      %7497 = vmatpush.bf16.msra.mxu0 %v7482
      %7498 = vmatpush.bf16.msra.mxu0 %v7481
      %7499 = vmatpush.bf16.msra.mxu0 %v7480
      %7500 = vmatpush.bf16.msra.mxu0 %v7479
      %7501 = vmatpush.bf16.msra.mxu0 %v7478
      %7502 = vmatmul.bf16.gmra.mxu0 %v7393
      %v7503 = vpop.f32.mrf.mxu0
      %v7504 = vadd.f32 0.0, %v7503
      %v7505 = vpop.f32.mrf.mxu0
      %v7506 = vadd.f32 0.0, %v7505
      %7507 = vmatmul.bf16.gmra.mxu0 %v7395
      %v7508 = vpop.f32.mrf.mxu0
      %v7509 = vadd.f32 0.0, %v7508
      %v7510 = vpop.f32.mrf.mxu0
      %v7511 = vadd.f32 0.0, %v7510
      %7512 = vmatmul.bf16.gmra.mxu0 %v7397
      %v7513 = vpop.f32.mrf.mxu0
      %v7514 = vadd.f32 0.0, %v7513
      %v7515 = vpop.f32.mrf.mxu0
      %v7516 = vadd.f32 0.0, %v7515
      %7517 = vmatmul.bf16.gmra.mxu0 %v7399
      %v7518 = vpop.f32.mrf.mxu0
      %v7519 = vadd.f32 0.0, %v7518
      %v7520 = vpop.f32.mrf.mxu0
      %v7521 = vadd.f32 0.0, %v7520
      %7522 = vmatmul.bf16.gmra.mxu0 %v7401
      %v7523 = vpop.f32.mrf.mxu0
      %v7524 = vadd.f32 0.0, %v7523
      %v7525 = vpop.f32.mrf.mxu0
      %v7526 = vadd.f32 0.0, %v7525
      %7527 = vmatmul.bf16.gmra.mxu0 %v7403
      %v7528 = vpop.f32.mrf.mxu0
      %v7529 = vadd.f32 0.0, %v7528
      %v7530 = vpop.f32.mrf.mxu0
      %v7531 = vadd.f32 0.0, %v7530
      %7532 = vmatmul.bf16.gmra.mxu0 %v7405
      %v7533 = vpop.f32.mrf.mxu0
      %v7534 = vadd.f32 0.0, %v7533
      %v7535 = vpop.f32.mrf.mxu0
      %v7536 = vadd.f32 0.0, %v7535
      %7537 = vmatmul.bf16.gmra.mxu0 %v7407
      %v7538 = vpop.f32.mrf.mxu0
      %v7539 = vadd.f32 0.0, %v7538
      %v7540 = vpop.f32.mrf.mxu0
      %v7541 = vadd.f32 0.0, %v7540
      %7542 = vmatmul.bf16.gmra.mxu0 %v7409
      %v7543 = vpop.f32.mrf.mxu0
      %v7544 = vadd.f32 0.0, %v7543
      %v7545 = vpop.f32.mrf.mxu0
      %v7546 = vadd.f32 0.0, %v7545
      %7547 = vmatmul.bf16.gmra.mxu0 %v7411
      %v7548 = vpop.f32.mrf.mxu0
      %v7549 = vadd.f32 0.0, %v7548
      %v7550 = vpop.f32.mrf.mxu0
      %v7551 = vadd.f32 0.0, %v7550
      %7552 = vmatmul.bf16.gmra.mxu0 %v7413
      %v7553 = vpop.f32.mrf.mxu0
      %v7554 = vadd.f32 0.0, %v7553
      %v7555 = vpop.f32.mrf.mxu0
      %v7556 = vadd.f32 0.0, %v7555
      %7557 = vmatmul.bf16.gmra.mxu0 %v7415
      %v7558 = vpop.f32.mrf.mxu0
      %v7559 = vadd.f32 0.0, %v7558
      %v7560 = vpop.f32.mrf.mxu0
      %v7561 = vadd.f32 0.0, %v7560
      %7562 = vmatmul.bf16.gmra.mxu0 %v7417
      %v7563 = vpop.f32.mrf.mxu0
      %v7564 = vadd.f32 0.0, %v7563
      %v7565 = vpop.f32.mrf.mxu0
      %v7566 = vadd.f32 0.0, %v7565
      %7567 = vmatmul.bf16.gmra.mxu0 %v7419
      %v7568 = vpop.f32.mrf.mxu0
      %v7569 = vadd.f32 0.0, %v7568
      %v7570 = vpop.f32.mrf.mxu0
      %v7571 = vadd.f32 0.0, %v7570
      %7572 = vmatmul.bf16.gmra.mxu0 %v7421
      %v7573 = vpop.f32.mrf.mxu0
      %v7574 = vadd.f32 0.0, %v7573
      %v7575 = vpop.f32.mrf.mxu0
      %v7576 = vadd.f32 0.0, %v7575
      %7577 = vmatmul.bf16.gmra.mxu0 %v7423
      %v7578 = vpop.f32.mrf.mxu0
      %v7579 = vadd.f32 0.0, %v7578
      %v7580 = vpop.f32.mrf.mxu0
      %v7581 = vadd.f32 0.0, %v7580
      %7582 = vmatmul.bf16.gmra.mxu0 %v7425
      %v7583 = vpop.f32.mrf.mxu0
      %v7584 = vadd.f32 0.0, %v7583
      %v7585 = vpop.f32.mrf.mxu0
      %v7586 = vadd.f32 0.0, %v7585
      %7587 = vmatmul.bf16.gmra.mxu0 %v7427
      %v7588 = vpop.f32.mrf.mxu0
      %v7589 = vadd.f32 0.0, %v7588
      %v7590 = vpop.f32.mrf.mxu0
      %v7591 = vadd.f32 0.0, %v7590
      %7592 = vdwg.mxu0
      %v7593 = vadd.f32 %v7334, %v7504
      %v7594 = vadd.f32 %v7335, %v7506
      %v7595 = vadd.f32 %v7336, %v7509
      %v7596 = vadd.f32 %v7337, %v7511
      %v7597 = vadd.f32 %v7338, %v7514
      %v7598 = vadd.f32 %v7339, %v7516
      %v7599 = vadd.f32 %v7340, %v7519
      %v7600 = vadd.f32 %v7341, %v7521
      %v7601 = vadd.f32 %v7342, %v7524
      %v7602 = vadd.f32 %v7343, %v7526
      %v7603 = vadd.f32 %v7344, %v7529
      %v7604 = vadd.f32 %v7345, %v7531
      %v7605 = vadd.f32 %v7346, %v7534
      %v7606 = vadd.f32 %v7347, %v7536
      %v7607 = vadd.f32 %v7348, %v7539
      %v7608 = vadd.f32 %v7349, %v7541
      %v7609 = vadd.f32 %v7350, %v7544
      %v7610 = vadd.f32 %v7351, %v7546
      %v7611 = vadd.f32 %v7352, %v7549
      %v7612 = vadd.f32 %v7353, %v7551
      %v7613 = vadd.f32 %v7354, %v7554
      %v7614 = vadd.f32 %v7355, %v7556
      %v7615 = vadd.f32 %v7356, %v7559
      %v7616 = vadd.f32 %v7357, %v7561
      %v7617 = vadd.f32 %v7358, %v7564
      %v7618 = vadd.f32 %v7359, %v7566
      %v7619 = vadd.f32 %v7360, %v7569
      %v7620 = vadd.f32 %v7361, %v7571
      %v7621 = vadd.f32 %v7362, %v7574
      %v7622 = vadd.f32 %v7363, %v7576
      %v7623 = vadd.f32 %v7364, %v7579
      %v7624 = vadd.f32 %v7365, %v7581
      %v7625 = vadd.f32 %v7366, %v7584
      %v7626 = vadd.f32 %v7367, %v7586
      %v7627 = vadd.f32 %v7368, %v7589
      %v7628 = vadd.f32 %v7369, %v7591
      %v7629 = vld [vmem:[#allocation2 + $0x10] sm:$0xc]
      %v7630 = vld [vmem:[#allocation2 + $0x14] sm:$0xf]
      %v7631 = vld [vmem:[#allocation2 + $0x18] sm:$0xf]
      %v7632 = vld [vmem:[#allocation2 + $0x1c] sm:$0xf]
      %v7633 = vld [vmem:[#allocation2 + $0x20] sm:$0xf]
      %v7634 = vld [vmem:[#allocation2 + $0x24] sm:$0xf]
      %v7635 = vld [vmem:[#allocation2 + $0x28] sm:$0xf]
      %v7636 = vld [vmem:[#allocation2 + $0x2c] sm:$0xf]
      %v7637 = vld [vmem:[#allocation2 + $0x30] sm:$0xf]
      %v7638 = vld [vmem:[#allocation2 + $0x34] sm:$0xf]
      %v7639 = vld [vmem:[#allocation2 + $0x38] sm:$0xf]
      %v7640 = vld [vmem:[#allocation2 + $0x3c] sm:$0xf]
      %v7641 = vld [vmem:[#allocation2 + $0x40] sm:$0xf]
      %v7642 = vld [vmem:[#allocation2 + $0x44] sm:$0xf]
      %v7643 = vld [vmem:[#allocation2 + $0x48] sm:$0xf]
      %v7644 = vld [vmem:[#allocation2 + $0x4c] sm:$0xf]
      %v7645 = vld [vmem:[#allocation2 + $0x50] sm:$0xf]
      %v7646 = vld [vmem:[#allocation2 + $0x54] sm:$0xf]
      %v7647 = vld [vmem:[#allocation2 + $0x58] sm:$0xf]
      %v7648 = vld [vmem:[#allocation2 + $0x5c] sm:$0xf]
      %v7649 = vld [vmem:[#allocation2 + $0x60] sm:$0xf]
      %v7650 = vld [vmem:[#allocation2 + $0x64] sm:$0xf]
      %v7651 = vld [vmem:[#allocation2 + $0x68] sm:$0xf]
      %v7652 = vld [vmem:[#allocation2 + $0x6c] sm:$0xf]
      %v7653 = vld [vmem:[#allocation2 + $0x70] sm:$0xf]
      %v7654 = vld [vmem:[#allocation2 + $0x74] sm:$0xf]
      %v7655 = vld [vmem:[#allocation2 + $0x78] sm:$0xf]
      %v7656 = vld [vmem:[#allocation2 + $0x7c] sm:$0xf]
      %v7657 = vld [vmem:[#allocation2 + $0x80] sm:$0xf]
      %v7658 = vld [vmem:[#allocation2 + $0x84] sm:$0xf]
      %v7659 = vld [vmem:[#allocation2 + $0x88] sm:$0xf]
      %v7660 = vld [vmem:[#allocation2 + $0x8c] sm:$0xf]
      %v7661 = vld [vmem:[#allocation2 + $0x90] sm:$0xf]
      %v7662 = vld [vmem:[#allocation2 + $0x94] sm:$0xf]
      %v7663 = vld [vmem:[#allocation2 + $0x98] sm:$0xf]
      %v7664 = vld [vmem:[#allocation2 + $0x9c] sm:$0xf]
      %v7665 = vld [vmem:[#allocation2 + $0xa0] sm:$0x1]
      %s7666 = scalar_lea.vmem %s2, 384
      %v7667 = vld [vmem:[%s7666] sm:$0xf]
      %v7668 = vld [vmem:[%s7666 + $0x4] sm:$0xf]
      %v7669 = vld [vmem:[%s7666 + $0x8] sm:$0xf]
      %v7670 = vld [vmem:[%s7666 + $0xc] sm:$0xf]
      %v7671 = vld [vmem:[%s7666 + $0x10] sm:$0xf]
      %v7672 = vld [vmem:[%s7666 + $0x14] sm:$0xf]
      %v7673 = vld [vmem:[%s7666 + $0x18] sm:$0xf]
      %v7674 = vld [vmem:[%s7666 + $0x1c] sm:$0xf]
      %v7675 = vld [vmem:[%s7666 + $0x20] sm:$0xf]
      %v7676 = vld [vmem:[%s7666 + $0x24] sm:$0xf]
      %v7677 = vld [vmem:[%s7666 + $0x28] sm:$0xf]
      %v7678 = vld [vmem:[%s7666 + $0x2c] sm:$0xf]
      %v7679 = vld [vmem:[%s7666 + $0x30] sm:$0xf]
      %v7680 = vld [vmem:[%s7666 + $0x34] sm:$0xf]
      %v7681 = vld [vmem:[%s7666 + $0x38] sm:$0xf]
      %v7682 = vld [vmem:[%s7666 + $0x3c] sm:$0xf]
      %v7720 = vunpack.c.l.b16 %v7629
      %v7721 = vunpack.c.l.b16 %v7630
      %v7722 = vunpack.c.l.b16 %v7631
      %v7723 = vunpack.c.l.b16 %v7632
      %v7724 = vunpack.c.l.b16 %v7633
      %v7725 = vunpack.c.l.b16 %v7634
      %v7726 = vunpack.c.l.b16 %v7635
      %v7727 = vunpack.c.l.b16 %v7636
      %v7728 = vunpack.c.l.b16 %v7637
      %v7729 = vunpack.c.l.b16 %v7638
      %v7730 = vunpack.c.l.b16 %v7639
      %v7731 = vunpack.c.l.b16 %v7640
      %v7732 = vunpack.c.l.b16 %v7641
      %v7733 = vunpack.c.l.b16 %v7642
      %v7734 = vunpack.c.l.b16 %v7643
      %v7735 = vunpack.c.l.b16 %v7644
      %v7736 = vunpack.c.l.b16 %v7645
      %v7737 = vunpack.c.l.b16 %v7646
      %v7738 = vunpack.c.l.b16 %v7647
      %v7739 = vunpack.c.l.b16 %v7648
      %v7740 = vunpack.c.l.b16 %v7649
      %v7741 = vunpack.c.l.b16 %v7650
      %v7742 = vunpack.c.l.b16 %v7651
      %v7743 = vunpack.c.l.b16 %v7652
      %v7744 = vunpack.c.l.b16 %v7653
      %v7745 = vunpack.c.l.b16 %v7654
      %v7746 = vunpack.c.l.b16 %v7655
      %v7747 = vunpack.c.l.b16 %v7656
      %v7748 = vunpack.c.l.b16 %v7657
      %v7749 = vunpack.c.l.b16 %v7658
      %v7750 = vunpack.c.l.b16 %v7659
      %v7751 = vunpack.c.l.b16 %v7660
      %v7752 = vunpack.c.l.b16 %v7661
      %v7753 = vunpack.c.l.b16 %v7662
      %v7754 = vunpack.c.l.b16 %v7663
      %v7755 = vunpack.c.l.b16 %v7664
      %v7756 = vunpack.c.l.b16 %v7665
      %v7757 = vpack.c.b16 %v7721, %v7720
      %v7758 = vpack.c.b16 %v7723, %v7722
      %v7759 = vpack.c.b16 %v7725, %v7724
      %v7760 = vpack.c.b16 %v7727, %v7726
      %v7761 = vpack.c.b16 %v7729, %v7728
      %v7762 = vpack.c.b16 %v7731, %v7730
      %v7763 = vpack.c.b16 %v7733, %v7732
      %v7764 = vpack.c.b16 %v7735, %v7734
      %v7765 = vpack.c.b16 %v7737, %v7736
      %v7766 = vpack.c.b16 %v7739, %v7738
      %v7767 = vpack.c.b16 %v7741, %v7740
      %v7768 = vpack.c.b16 %v7743, %v7742
      %v7769 = vpack.c.b16 %v7745, %v7744
      %v7770 = vpack.c.b16 %v7747, %v7746
      %v7771 = vpack.c.b16 %v7749, %v7748
      %v7772 = vpack.c.b16 %v7751, %v7750
      %v7773 = vpack.c.b16 %v7753, %v7752
      %v7774 = vpack.c.b16 %v7755, %v7754
      %v7775 = vpack.c.b16 %v7756, %v7756
      %v7776 = vrot.slane %v7757, 2
      %v7777 = vrot.slane %v7758, 2
      %v7778 = vsel %vm3602, %v7776, %v7777
      %v7779 = vrot.slane %v7759, 2
      %v7780 = vsel %vm3602, %v7777, %v7779
      %v7781 = vrot.slane %v7760, 2
      %v7782 = vsel %vm3602, %v7779, %v7781
      %v7783 = vrot.slane %v7761, 2
      %v7784 = vsel %vm3602, %v7781, %v7783
      %v7785 = vrot.slane %v7762, 2
      %v7786 = vsel %vm3602, %v7783, %v7785
      %v7787 = vrot.slane %v7763, 2
      %v7788 = vsel %vm3602, %v7785, %v7787
      %v7789 = vrot.slane %v7764, 2
      %v7790 = vsel %vm3602, %v7787, %v7789
      %v7791 = vrot.slane %v7765, 2
      %v7792 = vsel %vm3602, %v7789, %v7791
      %v7793 = vrot.slane %v7766, 2
      %v7794 = vsel %vm3602, %v7791, %v7793
      %v7795 = vrot.slane %v7767, 2
      %v7796 = vsel %vm3602, %v7793, %v7795
      %v7797 = vrot.slane %v7768, 2
      %v7798 = vsel %vm3602, %v7795, %v7797
      %v7799 = vrot.slane %v7769, 2
      %v7800 = vsel %vm3602, %v7797, %v7799
      %v7801 = vrot.slane %v7770, 2
      %v7802 = vsel %vm3602, %v7799, %v7801
      %v7803 = vrot.slane %v7771, 2
      %v7804 = vsel %vm3602, %v7801, %v7803
      %v7805 = vrot.slane %v7772, 2
      %v7806 = vsel %vm3602, %v7803, %v7805
      %v7807 = vrot.slane %v7773, 2
      %v7808 = vsel %vm3602, %v7805, %v7807
      %v7809 = vrot.slane %v7774, 2
      %v7810 = vsel %vm3602, %v7807, %v7809
      %v7811 = vrot.slane %v7775, 2
      %v7812 = vsel %vm3602, %v7809, %v7811
      %v7847 = vunpack.c.l.b16 %v7667
      %v7848 = vunpack.c.l.b16 %v7668
      %v7849 = vunpack.c.l.b16 %v7669
      %v7850 = vunpack.c.l.b16 %v7670
      %v7851 = vunpack.c.l.b16 %v7671
      %v7852 = vunpack.c.l.b16 %v7672
      %v7853 = vunpack.c.l.b16 %v7673
      %v7854 = vunpack.c.l.b16 %v7674
      %v7855 = vunpack.c.l.b16 %v7675
      %v7856 = vunpack.c.l.b16 %v7676
      %v7857 = vunpack.c.l.b16 %v7677
      %v7858 = vunpack.c.l.b16 %v7678
      %v7859 = vunpack.c.l.b16 %v7679
      %v7860 = vunpack.c.l.b16 %v7680
      %v7861 = vunpack.c.l.b16 %v7681
      %v7862 = vunpack.c.l.b16 %v7682
      %v7863 = vpack.c.b16 %v7848, %v7847
      %v7864 = vpack.c.b16 %v7850, %v7849
      %v7865 = vpack.c.b16 %v7852, %v7851
      %v7866 = vpack.c.b16 %v7854, %v7853
      %v7867 = vpack.c.b16 %v7856, %v7855
      %v7868 = vpack.c.b16 %v7858, %v7857
      %v7869 = vpack.c.b16 %v7860, %v7859
      %v7870 = vpack.c.b16 %v7862, %v7861
      %7879 = vmatpush.bf16.msra.mxu0 %v7870
      %7880 = vmatpush.bf16.msra.mxu0 %v7869
      %7881 = vmatpush.bf16.msra.mxu0 %v7868
      %7882 = vmatpush.bf16.msra.mxu0 %v7867
      %7883 = vmatpush.bf16.msra.mxu0 %v7866
      %7884 = vmatpush.bf16.msra.mxu0 %v7865
      %7885 = vmatpush.bf16.msra.mxu0 %v7864
      %7886 = vmatpush.bf16.msra.mxu0 %v7863
      %7887 = vmatmul.bf16.gmra.mxu0 %v7778
      %v7888 = vpop.f32.mrf.mxu0
      %v7889 = vadd.f32 0.0, %v7888
      %v7890 = vpop.f32.mrf.mxu0
      %v7891 = vadd.f32 0.0, %v7890
      %7892 = vmatmul.bf16.gmra.mxu0 %v7780
      %v7893 = vpop.f32.mrf.mxu0
      %v7894 = vadd.f32 0.0, %v7893
      %v7895 = vpop.f32.mrf.mxu0
      %v7896 = vadd.f32 0.0, %v7895
      %7897 = vmatmul.bf16.gmra.mxu0 %v7782
      %v7898 = vpop.f32.mrf.mxu0
      %v7899 = vadd.f32 0.0, %v7898
      %v7900 = vpop.f32.mrf.mxu0
      %v7901 = vadd.f32 0.0, %v7900
      %7902 = vmatmul.bf16.gmra.mxu0 %v7784
      %v7903 = vpop.f32.mrf.mxu0
      %v7904 = vadd.f32 0.0, %v7903
      %v7905 = vpop.f32.mrf.mxu0
      %v7906 = vadd.f32 0.0, %v7905
      %7907 = vmatmul.bf16.gmra.mxu0 %v7786
      %v7908 = vpop.f32.mrf.mxu0
      %v7909 = vadd.f32 0.0, %v7908
      %v7910 = vpop.f32.mrf.mxu0
      %v7911 = vadd.f32 0.0, %v7910
      %7912 = vmatmul.bf16.gmra.mxu0 %v7788
      %v7913 = vpop.f32.mrf.mxu0
      %v7914 = vadd.f32 0.0, %v7913
      %v7915 = vpop.f32.mrf.mxu0
      %v7916 = vadd.f32 0.0, %v7915
      %7917 = vmatmul.bf16.gmra.mxu0 %v7790
      %v7918 = vpop.f32.mrf.mxu0
      %v7919 = vadd.f32 0.0, %v7918
      %v7920 = vpop.f32.mrf.mxu0
      %v7921 = vadd.f32 0.0, %v7920
      %7922 = vmatmul.bf16.gmra.mxu0 %v7792
      %v7923 = vpop.f32.mrf.mxu0
      %v7924 = vadd.f32 0.0, %v7923
      %v7925 = vpop.f32.mrf.mxu0
      %v7926 = vadd.f32 0.0, %v7925
      %7927 = vmatmul.bf16.gmra.mxu0 %v7794
      %v7928 = vpop.f32.mrf.mxu0
      %v7929 = vadd.f32 0.0, %v7928
      %v7930 = vpop.f32.mrf.mxu0
      %v7931 = vadd.f32 0.0, %v7930
      %7932 = vmatmul.bf16.gmra.mxu0 %v7796
      %v7933 = vpop.f32.mrf.mxu0
      %v7934 = vadd.f32 0.0, %v7933
      %v7935 = vpop.f32.mrf.mxu0
      %v7936 = vadd.f32 0.0, %v7935
      %7937 = vmatmul.bf16.gmra.mxu0 %v7798
      %v7938 = vpop.f32.mrf.mxu0
      %v7939 = vadd.f32 0.0, %v7938
      %v7940 = vpop.f32.mrf.mxu0
      %v7941 = vadd.f32 0.0, %v7940
      %7942 = vmatmul.bf16.gmra.mxu0 %v7800
      %v7943 = vpop.f32.mrf.mxu0
      %v7944 = vadd.f32 0.0, %v7943
      %v7945 = vpop.f32.mrf.mxu0
      %v7946 = vadd.f32 0.0, %v7945
      %7947 = vmatmul.bf16.gmra.mxu0 %v7802
      %v7948 = vpop.f32.mrf.mxu0
      %v7949 = vadd.f32 0.0, %v7948
      %v7950 = vpop.f32.mrf.mxu0
      %v7951 = vadd.f32 0.0, %v7950
      %7952 = vmatmul.bf16.gmra.mxu0 %v7804
      %v7953 = vpop.f32.mrf.mxu0
      %v7954 = vadd.f32 0.0, %v7953
      %v7955 = vpop.f32.mrf.mxu0
      %v7956 = vadd.f32 0.0, %v7955
      %7957 = vmatmul.bf16.gmra.mxu0 %v7806
      %v7958 = vpop.f32.mrf.mxu0
      %v7959 = vadd.f32 0.0, %v7958
      %v7960 = vpop.f32.mrf.mxu0
      %v7961 = vadd.f32 0.0, %v7960
      %7962 = vmatmul.bf16.gmra.mxu0 %v7808
      %v7963 = vpop.f32.mrf.mxu0
      %v7964 = vadd.f32 0.0, %v7963
      %v7965 = vpop.f32.mrf.mxu0
      %v7966 = vadd.f32 0.0, %v7965
      %7967 = vmatmul.bf16.gmra.mxu0 %v7810
      %v7968 = vpop.f32.mrf.mxu0
      %v7969 = vadd.f32 0.0, %v7968
      %v7970 = vpop.f32.mrf.mxu0
      %v7971 = vadd.f32 0.0, %v7970
      %7972 = vmatmul.bf16.gmra.mxu0 %v7812
      %v7973 = vpop.f32.mrf.mxu0
      %v7974 = vadd.f32 0.0, %v7973
      %v7975 = vpop.f32.mrf.mxu0
      %v7976 = vadd.f32 0.0, %v7975
      %7977 = vdwg.mxu0
      %v7978 = vadd.f32 %v7593, %v7889
      %v7979 = vadd.f32 %v7594, %v7891
      %v7980 = vadd.f32 %v7595, %v7894
      %v7981 = vadd.f32 %v7596, %v7896
      %v7982 = vadd.f32 %v7597, %v7899
      %v7983 = vadd.f32 %v7598, %v7901
      %v7984 = vadd.f32 %v7599, %v7904
      %v7985 = vadd.f32 %v7600, %v7906
      %v7986 = vadd.f32 %v7601, %v7909
      %v7987 = vadd.f32 %v7602, %v7911
      %v7988 = vadd.f32 %v7603, %v7914
      %v7989 = vadd.f32 %v7604, %v7916
      %v7990 = vadd.f32 %v7605, %v7919
      %v7991 = vadd.f32 %v7606, %v7921
      %v7992 = vadd.f32 %v7607, %v7924
      %v7993 = vadd.f32 %v7608, %v7926
      %v7994 = vadd.f32 %v7609, %v7929
      %v7995 = vadd.f32 %v7610, %v7931
      %v7996 = vadd.f32 %v7611, %v7934
      %v7997 = vadd.f32 %v7612, %v7936
      %v7998 = vadd.f32 %v7613, %v7939
      %v7999 = vadd.f32 %v7614, %v7941
      %v8000 = vadd.f32 %v7615, %v7944
      %v8001 = vadd.f32 %v7616, %v7946
      %v8002 = vadd.f32 %v7617, %v7949
      %v8003 = vadd.f32 %v7618, %v7951
      %v8004 = vadd.f32 %v7619, %v7954
      %v8005 = vadd.f32 %v7620, %v7956
      %v8006 = vadd.f32 %v7621, %v7959
      %v8007 = vadd.f32 %v7622, %v7961
      %v8008 = vadd.f32 %v7623, %v7964
      %v8009 = vadd.f32 %v7624, %v7966
      %v8010 = vadd.f32 %v7625, %v7969
      %v8011 = vadd.f32 %v7626, %v7971
      %v8012 = vadd.f32 %v7627, %v7974
      %v8013 = vadd.f32 %v7628, %v7976
      %v8014 = vld [vmem:[#allocation2 + $0xa0] sm:$0x3]
      %s8015 = scalar_lea.vmem %s2, 448
      %v8016 = vld [vmem:[%s8015] sm:$0xf]
      %v8017 = vld [vmem:[%s8015 + $0x4] sm:$0xf]
      %v8018 = vld [vmem:[%s8015 + $0x8] sm:$0xf]
      %v8019 = vld [vmem:[%s8015 + $0xc] sm:$0xf]
      %v8020 = vld [vmem:[%s8015 + $0x10] sm:$0xf]
      %v8021 = vld [vmem:[%s8015 + $0x14] sm:$0xf]
      %v8022 = vld [vmem:[%s8015 + $0x18] sm:$0xf]
      %v8023 = vld [vmem:[%s8015 + $0x1c] sm:$0xf]
      %v8024 = vld [vmem:[%s8015 + $0x20] sm:$0xf]
      %v8025 = vld [vmem:[%s8015 + $0x24] sm:$0xf]
      %v8026 = vld [vmem:[%s8015 + $0x28] sm:$0xf]
      %v8027 = vld [vmem:[%s8015 + $0x2c] sm:$0xf]
      %v8028 = vld [vmem:[%s8015 + $0x30] sm:$0xf]
      %v8029 = vld [vmem:[%s8015 + $0x34] sm:$0xf]
      %v8030 = vld [vmem:[%s8015 + $0x38] sm:$0xf]
      %v8031 = vld [vmem:[%s8015 + $0x3c] sm:$0xf]
      %v8033 = vunpack.c.l.b16 %v8014
      %v8034 = vpack.c.b16 %v8033, %v8033
      %v8036 = vshrl.u32 %v7757, 16
      %v8038 = vrot.slane %v8036, 2
      %v8039 = vshll.u32 %v7757, 16
      %v8041 = vrot.slane %v8039, 3
      %v8042 = vor.u32 %v8038, %v8041
      %v8044 = vshrl.u32 %v7758, 16
      %v8046 = vrot.slane %v8044, 2
      %v8047 = vshll.u32 %v7758, 16
      %v8049 = vrot.slane %v8047, 3
      %v8050 = vor.u32 %v8046, %v8049
      %v8051 = vsel %vm4247, %v8042, %v8050
      %v8053 = vshrl.u32 %v7759, 16
      %v8055 = vrot.slane %v8053, 2
      %v8056 = vshll.u32 %v7759, 16
      %v8058 = vrot.slane %v8056, 3
      %v8059 = vor.u32 %v8055, %v8058
      %v8060 = vsel %vm4247, %v8050, %v8059
      %v8062 = vshrl.u32 %v7760, 16
      %v8064 = vrot.slane %v8062, 2
      %v8065 = vshll.u32 %v7760, 16
      %v8067 = vrot.slane %v8065, 3
      %v8068 = vor.u32 %v8064, %v8067
      %v8069 = vsel %vm4247, %v8059, %v8068
      %v8071 = vshrl.u32 %v7761, 16
      %v8073 = vrot.slane %v8071, 2
      %v8074 = vshll.u32 %v7761, 16
      %v8076 = vrot.slane %v8074, 3
      %v8077 = vor.u32 %v8073, %v8076
      %v8078 = vsel %vm4247, %v8068, %v8077
      %v8080 = vshrl.u32 %v7762, 16
      %v8082 = vrot.slane %v8080, 2
      %v8083 = vshll.u32 %v7762, 16
      %v8085 = vrot.slane %v8083, 3
      %v8086 = vor.u32 %v8082, %v8085
      %v8087 = vsel %vm4247, %v8077, %v8086
      %v8089 = vshrl.u32 %v7763, 16
      %v8091 = vrot.slane %v8089, 2
      %v8092 = vshll.u32 %v7763, 16
      %v8094 = vrot.slane %v8092, 3
      %v8095 = vor.u32 %v8091, %v8094
      %v8096 = vsel %vm4247, %v8086, %v8095
      %v8098 = vshrl.u32 %v7764, 16
      %v8100 = vrot.slane %v8098, 2
      %v8101 = vshll.u32 %v7764, 16
      %v8103 = vrot.slane %v8101, 3
      %v8104 = vor.u32 %v8100, %v8103
      %v8105 = vsel %vm4247, %v8095, %v8104
      %v8107 = vshrl.u32 %v7765, 16
      %v8109 = vrot.slane %v8107, 2
      %v8110 = vshll.u32 %v7765, 16
      %v8112 = vrot.slane %v8110, 3
      %v8113 = vor.u32 %v8109, %v8112
      %v8114 = vsel %vm4247, %v8104, %v8113
      %v8116 = vshrl.u32 %v7766, 16
      %v8118 = vrot.slane %v8116, 2
      %v8119 = vshll.u32 %v7766, 16
      %v8121 = vrot.slane %v8119, 3
      %v8122 = vor.u32 %v8118, %v8121
      %v8123 = vsel %vm4247, %v8113, %v8122
      %v8125 = vshrl.u32 %v7767, 16
      %v8127 = vrot.slane %v8125, 2
      %v8128 = vshll.u32 %v7767, 16
      %v8130 = vrot.slane %v8128, 3
      %v8131 = vor.u32 %v8127, %v8130
      %v8132 = vsel %vm4247, %v8122, %v8131
      %v8134 = vshrl.u32 %v7768, 16
      %v8136 = vrot.slane %v8134, 2
      %v8137 = vshll.u32 %v7768, 16
      %v8139 = vrot.slane %v8137, 3
      %v8140 = vor.u32 %v8136, %v8139
      %v8141 = vsel %vm4247, %v8131, %v8140
      %v8143 = vshrl.u32 %v7769, 16
      %v8145 = vrot.slane %v8143, 2
      %v8146 = vshll.u32 %v7769, 16
      %v8148 = vrot.slane %v8146, 3
      %v8149 = vor.u32 %v8145, %v8148
      %v8150 = vsel %vm4247, %v8140, %v8149
      %v8152 = vshrl.u32 %v7770, 16
      %v8154 = vrot.slane %v8152, 2
      %v8155 = vshll.u32 %v7770, 16
      %v8157 = vrot.slane %v8155, 3
      %v8158 = vor.u32 %v8154, %v8157
      %v8159 = vsel %vm4247, %v8149, %v8158
      %v8161 = vshrl.u32 %v7771, 16
      %v8163 = vrot.slane %v8161, 2
      %v8164 = vshll.u32 %v7771, 16
      %v8166 = vrot.slane %v8164, 3
      %v8167 = vor.u32 %v8163, %v8166
      %v8168 = vsel %vm4247, %v8158, %v8167
      %v8170 = vshrl.u32 %v7772, 16
      %v8172 = vrot.slane %v8170, 2
      %v8173 = vshll.u32 %v7772, 16
      %v8175 = vrot.slane %v8173, 3
      %v8176 = vor.u32 %v8172, %v8175
      %v8177 = vsel %vm4247, %v8167, %v8176
      %v8179 = vshrl.u32 %v7773, 16
      %v8181 = vrot.slane %v8179, 2
      %v8182 = vshll.u32 %v7773, 16
      %v8184 = vrot.slane %v8182, 3
      %v8185 = vor.u32 %v8181, %v8184
      %v8186 = vsel %vm4247, %v8176, %v8185
      %v8188 = vshrl.u32 %v7774, 16
      %v8190 = vrot.slane %v8188, 2
      %v8191 = vshll.u32 %v7774, 16
      %v8193 = vrot.slane %v8191, 3
      %v8194 = vor.u32 %v8190, %v8193
      %v8195 = vsel %vm4247, %v8185, %v8194
      %v8197 = vshrl.u32 %v8034, 16
      %v8199 = vrot.slane %v8197, 2
      %v8200 = vshll.u32 %v8034, 16
      %v8202 = vrot.slane %v8200, 3
      %v8203 = vor.u32 %v8199, %v8202
      %v8204 = vsel %vm4247, %v8194, %v8203
      %v8239 = vunpack.c.l.b16 %v8016
      %v8240 = vunpack.c.l.b16 %v8017
      %v8241 = vunpack.c.l.b16 %v8018
      %v8242 = vunpack.c.l.b16 %v8019
      %v8243 = vunpack.c.l.b16 %v8020
      %v8244 = vunpack.c.l.b16 %v8021
      %v8245 = vunpack.c.l.b16 %v8022
      %v8246 = vunpack.c.l.b16 %v8023
      %v8247 = vunpack.c.l.b16 %v8024
      %v8248 = vunpack.c.l.b16 %v8025
      %v8249 = vunpack.c.l.b16 %v8026
      %v8250 = vunpack.c.l.b16 %v8027
      %v8251 = vunpack.c.l.b16 %v8028
      %v8252 = vunpack.c.l.b16 %v8029
      %v8253 = vunpack.c.l.b16 %v8030
      %v8254 = vunpack.c.l.b16 %v8031
      %v8255 = vpack.c.b16 %v8240, %v8239
      %v8256 = vpack.c.b16 %v8242, %v8241
      %v8257 = vpack.c.b16 %v8244, %v8243
      %v8258 = vpack.c.b16 %v8246, %v8245
      %v8259 = vpack.c.b16 %v8248, %v8247
      %v8260 = vpack.c.b16 %v8250, %v8249
      %v8261 = vpack.c.b16 %v8252, %v8251
      %v8262 = vpack.c.b16 %v8254, %v8253
      %8271 = vmatpush.bf16.msra.mxu0 %v8262
      %8272 = vmatpush.bf16.msra.mxu0 %v8261
      %8273 = vmatpush.bf16.msra.mxu0 %v8260
      %8274 = vmatpush.bf16.msra.mxu0 %v8259
      %8275 = vmatpush.bf16.msra.mxu0 %v8258
      %8276 = vmatpush.bf16.msra.mxu0 %v8257
      %8277 = vmatpush.bf16.msra.mxu0 %v8256
      %8278 = vmatpush.bf16.msra.mxu0 %v8255
      %8279 = vmatmul.bf16.gmra.mxu0 %v8051
      %v8280 = vpop.f32.mrf.mxu0
      %v8281 = vadd.f32 0.0, %v8280
      %v8282 = vpop.f32.mrf.mxu0
      %v8283 = vadd.f32 0.0, %v8282
      %8284 = vmatmul.bf16.gmra.mxu0 %v8060
      %v8285 = vpop.f32.mrf.mxu0
      %v8286 = vadd.f32 0.0, %v8285
      %v8287 = vpop.f32.mrf.mxu0
      %v8288 = vadd.f32 0.0, %v8287
      %8289 = vmatmul.bf16.gmra.mxu0 %v8069
      %v8290 = vpop.f32.mrf.mxu0
      %v8291 = vadd.f32 0.0, %v8290
      %v8292 = vpop.f32.mrf.mxu0
      %v8293 = vadd.f32 0.0, %v8292
      %8294 = vmatmul.bf16.gmra.mxu0 %v8078
      %v8295 = vpop.f32.mrf.mxu0
      %v8296 = vadd.f32 0.0, %v8295
      %v8297 = vpop.f32.mrf.mxu0
      %v8298 = vadd.f32 0.0, %v8297
      %8299 = vmatmul.bf16.gmra.mxu0 %v8087
      %v8300 = vpop.f32.mrf.mxu0
      %v8301 = vadd.f32 0.0, %v8300
      %v8302 = vpop.f32.mrf.mxu0
      %v8303 = vadd.f32 0.0, %v8302
      %8304 = vmatmul.bf16.gmra.mxu0 %v8096
      %v8305 = vpop.f32.mrf.mxu0
      %v8306 = vadd.f32 0.0, %v8305
      %v8307 = vpop.f32.mrf.mxu0
      %v8308 = vadd.f32 0.0, %v8307
      %8309 = vmatmul.bf16.gmra.mxu0 %v8105
      %v8310 = vpop.f32.mrf.mxu0
      %v8311 = vadd.f32 0.0, %v8310
      %v8312 = vpop.f32.mrf.mxu0
      %v8313 = vadd.f32 0.0, %v8312
      %8314 = vmatmul.bf16.gmra.mxu0 %v8114
      %v8315 = vpop.f32.mrf.mxu0
      %v8316 = vadd.f32 0.0, %v8315
      %v8317 = vpop.f32.mrf.mxu0
      %v8318 = vadd.f32 0.0, %v8317
      %8319 = vmatmul.bf16.gmra.mxu0 %v8123
      %v8320 = vpop.f32.mrf.mxu0
      %v8321 = vadd.f32 0.0, %v8320
      %v8322 = vpop.f32.mrf.mxu0
      %v8323 = vadd.f32 0.0, %v8322
      %8324 = vmatmul.bf16.gmra.mxu0 %v8132
      %v8325 = vpop.f32.mrf.mxu0
      %v8326 = vadd.f32 0.0, %v8325
      %v8327 = vpop.f32.mrf.mxu0
      %v8328 = vadd.f32 0.0, %v8327
      %8329 = vmatmul.bf16.gmra.mxu0 %v8141
      %v8330 = vpop.f32.mrf.mxu0
      %v8331 = vadd.f32 0.0, %v8330
      %v8332 = vpop.f32.mrf.mxu0
      %v8333 = vadd.f32 0.0, %v8332
      %8334 = vmatmul.bf16.gmra.mxu0 %v8150
      %v8335 = vpop.f32.mrf.mxu0
      %v8336 = vadd.f32 0.0, %v8335
      %v8337 = vpop.f32.mrf.mxu0
      %v8338 = vadd.f32 0.0, %v8337
      %8339 = vmatmul.bf16.gmra.mxu0 %v8159
      %v8340 = vpop.f32.mrf.mxu0
      %v8341 = vadd.f32 0.0, %v8340
      %v8342 = vpop.f32.mrf.mxu0
      %v8343 = vadd.f32 0.0, %v8342
      %8344 = vmatmul.bf16.gmra.mxu0 %v8168
      %v8345 = vpop.f32.mrf.mxu0
      %v8346 = vadd.f32 0.0, %v8345
      %v8347 = vpop.f32.mrf.mxu0
      %v8348 = vadd.f32 0.0, %v8347
      %8349 = vmatmul.bf16.gmra.mxu0 %v8177
      %v8350 = vpop.f32.mrf.mxu0
      %v8351 = vadd.f32 0.0, %v8350
      %v8352 = vpop.f32.mrf.mxu0
      %v8353 = vadd.f32 0.0, %v8352
      %8354 = vmatmul.bf16.gmra.mxu0 %v8186
      %v8355 = vpop.f32.mrf.mxu0
      %v8356 = vadd.f32 0.0, %v8355
      %v8357 = vpop.f32.mrf.mxu0
      %v8358 = vadd.f32 0.0, %v8357
      %8359 = vmatmul.bf16.gmra.mxu0 %v8195
      %v8360 = vpop.f32.mrf.mxu0
      %v8361 = vadd.f32 0.0, %v8360
      %v8362 = vpop.f32.mrf.mxu0
      %v8363 = vadd.f32 0.0, %v8362
      %8364 = vmatmul.bf16.gmra.mxu0 %v8204
      %v8365 = vpop.f32.mrf.mxu0
      %v8366 = vadd.f32 0.0, %v8365
      %v8367 = vpop.f32.mrf.mxu0
      %v8368 = vadd.f32 0.0, %v8367
      %8369 = vdwg.mxu0
      %v8370 = vadd.f32 %v7978, %v8281
      %v8371 = vadd.f32 %v7979, %v8283
      %v8372 = vadd.f32 %v7980, %v8286
      %v8373 = vadd.f32 %v7981, %v8288
      %v8374 = vadd.f32 %v7982, %v8291
      %v8375 = vadd.f32 %v7983, %v8293
      %v8376 = vadd.f32 %v7984, %v8296
      %v8377 = vadd.f32 %v7985, %v8298
      %v8378 = vadd.f32 %v7986, %v8301
      %v8379 = vadd.f32 %v7987, %v8303
      %v8380 = vadd.f32 %v7988, %v8306
      %v8381 = vadd.f32 %v7989, %v8308
      %v8382 = vadd.f32 %v7990, %v8311
      %v8383 = vadd.f32 %v7991, %v8313
      %v8384 = vadd.f32 %v7992, %v8316
      %v8385 = vadd.f32 %v7993, %v8318
      %v8386 = vadd.f32 %v7994, %v8321
      %v8387 = vadd.f32 %v7995, %v8323
      %v8388 = vadd.f32 %v7996, %v8326
      %v8389 = vadd.f32 %v7997, %v8328
      %v8390 = vadd.f32 %v7998, %v8331
      %v8391 = vadd.f32 %v7999, %v8333
      %v8392 = vadd.f32 %v8000, %v8336
      %v8393 = vadd.f32 %v8001, %v8338
      %v8394 = vadd.f32 %v8002, %v8341
      %v8395 = vadd.f32 %v8003, %v8343
      %v8396 = vadd.f32 %v8004, %v8346
      %v8397 = vadd.f32 %v8005, %v8348
      %v8398 = vadd.f32 %v8006, %v8351
      %v8399 = vadd.f32 %v8007, %v8353
      %v8400 = vadd.f32 %v8008, %v8356
      %v8401 = vadd.f32 %v8009, %v8358
      %v8402 = vadd.f32 %v8010, %v8361
      %v8403 = vadd.f32 %v8011, %v8363
      %v8404 = vadd.f32 %v8012, %v8366
      %v8405 = vadd.f32 %v8013, %v8368
      %v8406 = vld [vmem:[#allocation2 + $0x10] sm:$0x8]
      %s8407 = scalar_lea.vmem %s2, 512
      %v8408 = vld [vmem:[%s8407] sm:$0xf]
      %v8409 = vld [vmem:[%s8407 + $0x4] sm:$0xf]
      %v8410 = vld [vmem:[%s8407 + $0x8] sm:$0xf]
      %v8411 = vld [vmem:[%s8407 + $0xc] sm:$0xf]
      %v8412 = vld [vmem:[%s8407 + $0x10] sm:$0xf]
      %v8413 = vld [vmem:[%s8407 + $0x14] sm:$0xf]
      %v8414 = vld [vmem:[%s8407 + $0x18] sm:$0xf]
      %v8415 = vld [vmem:[%s8407 + $0x1c] sm:$0xf]
      %v8416 = vld [vmem:[%s8407 + $0x20] sm:$0xf]
      %v8417 = vld [vmem:[%s8407 + $0x24] sm:$0xf]
      %v8418 = vld [vmem:[%s8407 + $0x28] sm:$0xf]
      %v8419 = vld [vmem:[%s8407 + $0x2c] sm:$0xf]
      %v8420 = vld [vmem:[%s8407 + $0x30] sm:$0xf]
      %v8421 = vld [vmem:[%s8407 + $0x34] sm:$0xf]
      %v8422 = vld [vmem:[%s8407 + $0x38] sm:$0xf]
      %v8423 = vld [vmem:[%s8407 + $0x3c] sm:$0xf]
      %v8425 = vunpack.c.l.b16 %v8406
      %v8426 = vpack.c.b16 %v7721, %v8425
      %v8427 = vrot.slane %v8426, 3
      %v8428 = vrot.slane %v7758, 3
      %v8429 = vsel %vm4640, %v8427, %v8428
      %v8430 = vrot.slane %v7759, 3
      %v8431 = vsel %vm4640, %v8428, %v8430
      %v8432 = vrot.slane %v7760, 3
      %v8433 = vsel %vm4640, %v8430, %v8432
      %v8434 = vrot.slane %v7761, 3
      %v8435 = vsel %vm4640, %v8432, %v8434
      %v8436 = vrot.slane %v7762, 3
      %v8437 = vsel %vm4640, %v8434, %v8436
      %v8438 = vrot.slane %v7763, 3
      %v8439 = vsel %vm4640, %v8436, %v8438
      %v8440 = vrot.slane %v7764, 3
      %v8441 = vsel %vm4640, %v8438, %v8440
      %v8442 = vrot.slane %v7765, 3
      %v8443 = vsel %vm4640, %v8440, %v8442
      %v8444 = vrot.slane %v7766, 3
      %v8445 = vsel %vm4640, %v8442, %v8444
      %v8446 = vrot.slane %v7767, 3
      %v8447 = vsel %vm4640, %v8444, %v8446
      %v8448 = vrot.slane %v7768, 3
      %v8449 = vsel %vm4640, %v8446, %v8448
      %v8450 = vrot.slane %v7769, 3
      %v8451 = vsel %vm4640, %v8448, %v8450
      %v8452 = vrot.slane %v7770, 3
      %v8453 = vsel %vm4640, %v8450, %v8452
      %v8454 = vrot.slane %v7771, 3
      %v8455 = vsel %vm4640, %v8452, %v8454
      %v8456 = vrot.slane %v7772, 3
      %v8457 = vsel %vm4640, %v8454, %v8456
      %v8458 = vrot.slane %v7773, 3
      %v8459 = vsel %vm4640, %v8456, %v8458
      %v8460 = vrot.slane %v7774, 3
      %v8461 = vsel %vm4640, %v8458, %v8460
      %v8462 = vrot.slane %v8034, 3
      %v8463 = vsel %vm4640, %v8460, %v8462
      %v8498 = vunpack.c.l.b16 %v8408
      %v8499 = vunpack.c.l.b16 %v8409
      %v8500 = vunpack.c.l.b16 %v8410
      %v8501 = vunpack.c.l.b16 %v8411
      %v8502 = vunpack.c.l.b16 %v8412
      %v8503 = vunpack.c.l.b16 %v8413
      %v8504 = vunpack.c.l.b16 %v8414
      %v8505 = vunpack.c.l.b16 %v8415
      %v8506 = vunpack.c.l.b16 %v8416
      %v8507 = vunpack.c.l.b16 %v8417
      %v8508 = vunpack.c.l.b16 %v8418
      %v8509 = vunpack.c.l.b16 %v8419
      %v8510 = vunpack.c.l.b16 %v8420
      %v8511 = vunpack.c.l.b16 %v8421
      %v8512 = vunpack.c.l.b16 %v8422
      %v8513 = vunpack.c.l.b16 %v8423
      %v8514 = vpack.c.b16 %v8499, %v8498
      %v8515 = vpack.c.b16 %v8501, %v8500
      %v8516 = vpack.c.b16 %v8503, %v8502
      %v8517 = vpack.c.b16 %v8505, %v8504
      %v8518 = vpack.c.b16 %v8507, %v8506
      %v8519 = vpack.c.b16 %v8509, %v8508
      %v8520 = vpack.c.b16 %v8511, %v8510
      %v8521 = vpack.c.b16 %v8513, %v8512
      %8530 = vmatpush.bf16.msra.mxu0 %v8521
      %8531 = vmatpush.bf16.msra.mxu0 %v8520
      %8532 = vmatpush.bf16.msra.mxu0 %v8519
      %8533 = vmatpush.bf16.msra.mxu0 %v8518
      %8534 = vmatpush.bf16.msra.mxu0 %v8517
      %8535 = vmatpush.bf16.msra.mxu0 %v8516
      %8536 = vmatpush.bf16.msra.mxu0 %v8515
      %8537 = vmatpush.bf16.msra.mxu0 %v8514
      %8538 = vmatmul.bf16.gmra.mxu0 %v8429
      %v8539 = vpop.f32.mrf.mxu0
      %v8540 = vadd.f32 0.0, %v8539
      %v8541 = vpop.f32.mrf.mxu0
      %v8542 = vadd.f32 0.0, %v8541
      %8543 = vmatmul.bf16.gmra.mxu0 %v8431
      %v8544 = vpop.f32.mrf.mxu0
      %v8545 = vadd.f32 0.0, %v8544
      %v8546 = vpop.f32.mrf.mxu0
      %v8547 = vadd.f32 0.0, %v8546
      %8548 = vmatmul.bf16.gmra.mxu0 %v8433
      %v8549 = vpop.f32.mrf.mxu0
      %v8550 = vadd.f32 0.0, %v8549
      %v8551 = vpop.f32.mrf.mxu0
      %v8552 = vadd.f32 0.0, %v8551
      %8553 = vmatmul.bf16.gmra.mxu0 %v8435
      %v8554 = vpop.f32.mrf.mxu0
      %v8555 = vadd.f32 0.0, %v8554
      %v8556 = vpop.f32.mrf.mxu0
      %v8557 = vadd.f32 0.0, %v8556
      %8558 = vmatmul.bf16.gmra.mxu0 %v8437
      %v8559 = vpop.f32.mrf.mxu0
      %v8560 = vadd.f32 0.0, %v8559
      %v8561 = vpop.f32.mrf.mxu0
      %v8562 = vadd.f32 0.0, %v8561
      %8563 = vmatmul.bf16.gmra.mxu0 %v8439
      %v8564 = vpop.f32.mrf.mxu0
      %v8565 = vadd.f32 0.0, %v8564
      %v8566 = vpop.f32.mrf.mxu0
      %v8567 = vadd.f32 0.0, %v8566
      %8568 = vmatmul.bf16.gmra.mxu0 %v8441
      %v8569 = vpop.f32.mrf.mxu0
      %v8570 = vadd.f32 0.0, %v8569
      %v8571 = vpop.f32.mrf.mxu0
      %v8572 = vadd.f32 0.0, %v8571
      %8573 = vmatmul.bf16.gmra.mxu0 %v8443
      %v8574 = vpop.f32.mrf.mxu0
      %v8575 = vadd.f32 0.0, %v8574
      %v8576 = vpop.f32.mrf.mxu0
      %v8577 = vadd.f32 0.0, %v8576
      %8578 = vmatmul.bf16.gmra.mxu0 %v8445
      %v8579 = vpop.f32.mrf.mxu0
      %v8580 = vadd.f32 0.0, %v8579
      %v8581 = vpop.f32.mrf.mxu0
      %v8582 = vadd.f32 0.0, %v8581
      %8583 = vmatmul.bf16.gmra.mxu0 %v8447
      %v8584 = vpop.f32.mrf.mxu0
      %v8585 = vadd.f32 0.0, %v8584
      %v8586 = vpop.f32.mrf.mxu0
      %v8587 = vadd.f32 0.0, %v8586
      %8588 = vmatmul.bf16.gmra.mxu0 %v8449
      %v8589 = vpop.f32.mrf.mxu0
      %v8590 = vadd.f32 0.0, %v8589
      %v8591 = vpop.f32.mrf.mxu0
      %v8592 = vadd.f32 0.0, %v8591
      %8593 = vmatmul.bf16.gmra.mxu0 %v8451
      %v8594 = vpop.f32.mrf.mxu0
      %v8595 = vadd.f32 0.0, %v8594
      %v8596 = vpop.f32.mrf.mxu0
      %v8597 = vadd.f32 0.0, %v8596
      %8598 = vmatmul.bf16.gmra.mxu0 %v8453
      %v8599 = vpop.f32.mrf.mxu0
      %v8600 = vadd.f32 0.0, %v8599
      %v8601 = vpop.f32.mrf.mxu0
      %v8602 = vadd.f32 0.0, %v8601
      %8603 = vmatmul.bf16.gmra.mxu0 %v8455
      %v8604 = vpop.f32.mrf.mxu0
      %v8605 = vadd.f32 0.0, %v8604
      %v8606 = vpop.f32.mrf.mxu0
      %v8607 = vadd.f32 0.0, %v8606
      %8608 = vmatmul.bf16.gmra.mxu0 %v8457
      %v8609 = vpop.f32.mrf.mxu0
      %v8610 = vadd.f32 0.0, %v8609
      %v8611 = vpop.f32.mrf.mxu0
      %v8612 = vadd.f32 0.0, %v8611
      %8613 = vmatmul.bf16.gmra.mxu0 %v8459
      %v8614 = vpop.f32.mrf.mxu0
      %v8615 = vadd.f32 0.0, %v8614
      %v8616 = vpop.f32.mrf.mxu0
      %v8617 = vadd.f32 0.0, %v8616
      %8618 = vmatmul.bf16.gmra.mxu0 %v8461
      %v8619 = vpop.f32.mrf.mxu0
      %v8620 = vadd.f32 0.0, %v8619
      %v8621 = vpop.f32.mrf.mxu0
      %v8622 = vadd.f32 0.0, %v8621
      %8623 = vmatmul.bf16.gmra.mxu0 %v8463
      %v8624 = vpop.f32.mrf.mxu0
      %v8625 = vadd.f32 0.0, %v8624
      %v8626 = vpop.f32.mrf.mxu0
      %v8627 = vadd.f32 0.0, %v8626
      %8628 = vdwg.mxu0
      %v8629 = vadd.f32 %v8370, %v8540
      %v8630 = vadd.f32 %v8371, %v8542
      %v8631 = vadd.f32 %v8372, %v8545
      %v8632 = vadd.f32 %v8373, %v8547
      %v8633 = vadd.f32 %v8374, %v8550
      %v8634 = vadd.f32 %v8375, %v8552
      %v8635 = vadd.f32 %v8376, %v8555
      %v8636 = vadd.f32 %v8377, %v8557
      %v8637 = vadd.f32 %v8378, %v8560
      %v8638 = vadd.f32 %v8379, %v8562
      %v8639 = vadd.f32 %v8380, %v8565
      %v8640 = vadd.f32 %v8381, %v8567
      %v8641 = vadd.f32 %v8382, %v8570
      %v8642 = vadd.f32 %v8383, %v8572
      %v8643 = vadd.f32 %v8384, %v8575
      %v8644 = vadd.f32 %v8385, %v8577
      %v8645 = vadd.f32 %v8386, %v8580
      %v8646 = vadd.f32 %v8387, %v8582
      %v8647 = vadd.f32 %v8388, %v8585
      %v8648 = vadd.f32 %v8389, %v8587
      %v8649 = vadd.f32 %v8390, %v8590
      %v8650 = vadd.f32 %v8391, %v8592
      %v8651 = vadd.f32 %v8392, %v8595
      %v8652 = vadd.f32 %v8393, %v8597
      %v8653 = vadd.f32 %v8394, %v8600
      %v8654 = vadd.f32 %v8395, %v8602
      %v8655 = vadd.f32 %v8396, %v8605
      %v8656 = vadd.f32 %v8397, %v8607
      %v8657 = vadd.f32 %v8398, %v8610
      %v8658 = vadd.f32 %v8399, %v8612
      %v8659 = vadd.f32 %v8400, %v8615
      %v8660 = vadd.f32 %v8401, %v8617
      %v8661 = vadd.f32 %v8402, %v8620
      %v8662 = vadd.f32 %v8403, %v8622
      %v8663 = vadd.f32 %v8404, %v8625
      %v8664 = vadd.f32 %v8405, %v8627
      %v8665 = vld [vmem:[%s6] sm:$0x1]
      %v8667 = vperm.slane %v8665, 0
      %v8669 = vmul.f32 %v8629, %v8667
      %v8670 = vmul.f32 %v8630, %v8667
      %v8671 = vmul.f32 %v8631, %v8667
      %v8672 = vmul.f32 %v8632, %v8667
      %v8673 = vmul.f32 %v8633, %v8667
      %v8674 = vmul.f32 %v8634, %v8667
      %v8675 = vmul.f32 %v8635, %v8667
      %v8676 = vmul.f32 %v8636, %v8667
      %v8677 = vmul.f32 %v8637, %v8667
      %v8678 = vmul.f32 %v8638, %v8667
      %v8679 = vmul.f32 %v8639, %v8667
      %v8680 = vmul.f32 %v8640, %v8667
      %v8681 = vmul.f32 %v8641, %v8667
      %v8682 = vmul.f32 %v8642, %v8667
      %v8683 = vmul.f32 %v8643, %v8667
      %v8684 = vmul.f32 %v8644, %v8667
      %v8685 = vmul.f32 %v8645, %v8667
      %v8686 = vmul.f32 %v8646, %v8667
      %v8687 = vmul.f32 %v8647, %v8667
      %v8688 = vmul.f32 %v8648, %v8667
      %v8689 = vmul.f32 %v8649, %v8667
      %v8690 = vmul.f32 %v8650, %v8667
      %v8691 = vmul.f32 %v8651, %v8667
      %v8692 = vmul.f32 %v8652, %v8667
      %v8693 = vmul.f32 %v8653, %v8667
      %v8694 = vmul.f32 %v8654, %v8667
      %v8695 = vmul.f32 %v8655, %v8667
      %v8696 = vmul.f32 %v8656, %v8667
      %v8697 = vmul.f32 %v8657, %v8667
      %v8698 = vmul.f32 %v8658, %v8667
      %v8699 = vmul.f32 %v8659, %v8667
      %v8700 = vmul.f32 %v8660, %v8667
      %v8701 = vmul.f32 %v8661, %v8667
      %v8702 = vmul.f32 %v8662, %v8667
      %v8703 = vmul.f32 %v8663, %v8667
      %v8704 = vmul.f32 %v8664, %v8667
      %v8705 = vld [vmem:[%s7] sm:$0x1]
      %v8707 = vperm.slane %v8705, 0
      %v8709 = vadd.f32 %v8669, %v8707
      %v8710 = vadd.f32 %v8670, %v8707
      %v8711 = vadd.f32 %v8671, %v8707
      %v8712 = vadd.f32 %v8672, %v8707
      %v8713 = vadd.f32 %v8673, %v8707
      %v8714 = vadd.f32 %v8674, %v8707
      %v8715 = vadd.f32 %v8675, %v8707
      %v8716 = vadd.f32 %v8676, %v8707
      %v8717 = vadd.f32 %v8677, %v8707
      %v8718 = vadd.f32 %v8678, %v8707
      %v8719 = vadd.f32 %v8679, %v8707
      %v8720 = vadd.f32 %v8680, %v8707
      %v8721 = vadd.f32 %v8681, %v8707
      %v8722 = vadd.f32 %v8682, %v8707
      %v8723 = vadd.f32 %v8683, %v8707
      %v8724 = vadd.f32 %v8684, %v8707
      %v8725 = vadd.f32 %v8685, %v8707
      %v8726 = vadd.f32 %v8686, %v8707
      %v8727 = vadd.f32 %v8687, %v8707
      %v8728 = vadd.f32 %v8688, %v8707
      %v8729 = vadd.f32 %v8689, %v8707
      %v8730 = vadd.f32 %v8690, %v8707
      %v8731 = vadd.f32 %v8691, %v8707
      %v8732 = vadd.f32 %v8692, %v8707
      %v8733 = vadd.f32 %v8693, %v8707
      %v8734 = vadd.f32 %v8694, %v8707
      %v8735 = vadd.f32 %v8695, %v8707
      %v8736 = vadd.f32 %v8696, %v8707
      %v8737 = vadd.f32 %v8697, %v8707
      %v8738 = vadd.f32 %v8698, %v8707
      %v8739 = vadd.f32 %v8699, %v8707
      %v8740 = vadd.f32 %v8700, %v8707
      %v8741 = vadd.f32 %v8701, %v8707
      %v8742 = vadd.f32 %v8702, %v8707
      %v8743 = vadd.f32 %v8703, %v8707
      %v8744 = vadd.f32 %v8704, %v8707
      %v8745 = vmax.f32 %v8709, 0.0
      %v8746 = vmax.f32 %v8710, 0.0
      %v8747 = vmax.f32 %v8711, 0.0
      %v8748 = vmax.f32 %v8712, 0.0
      %v8749 = vmax.f32 %v8713, 0.0
      %v8750 = vmax.f32 %v8714, 0.0
      %v8751 = vmax.f32 %v8715, 0.0
      %v8752 = vmax.f32 %v8716, 0.0
      %v8753 = vmax.f32 %v8717, 0.0
      %v8754 = vmax.f32 %v8718, 0.0
      %v8755 = vmax.f32 %v8719, 0.0
      %v8756 = vmax.f32 %v8720, 0.0
      %v8757 = vmax.f32 %v8721, 0.0
      %v8758 = vmax.f32 %v8722, 0.0
      %v8759 = vmax.f32 %v8723, 0.0
      %v8760 = vmax.f32 %v8724, 0.0
      %v8761 = vmax.f32 %v8725, 0.0
      %v8762 = vmax.f32 %v8726, 0.0
      %v8763 = vmax.f32 %v8727, 0.0
      %v8764 = vmax.f32 %v8728, 0.0
      %v8765 = vmax.f32 %v8729, 0.0
      %v8766 = vmax.f32 %v8730, 0.0
      %v8767 = vmax.f32 %v8731, 0.0
      %v8768 = vmax.f32 %v8732, 0.0
      %v8769 = vmax.f32 %v8733, 0.0
      %v8770 = vmax.f32 %v8734, 0.0
      %v8771 = vmax.f32 %v8735, 0.0
      %v8772 = vmax.f32 %v8736, 0.0
      %v8773 = vmax.f32 %v8737, 0.0
      %v8774 = vmax.f32 %v8738, 0.0
      %v8775 = vmax.f32 %v8739, 0.0
      %v8776 = vmax.f32 %v8740, 0.0
      %v8777 = vmax.f32 %v8741, 0.0
      %v8778 = vmax.f32 %v8742, 0.0
      %v8779 = vmax.f32 %v8743, 0.0
      %v8780 = vmax.f32 %v8744, 0.0
      %v8781 = vsel %vm5031, %v8745, 0.0
      %v8782 = vsel %vm5032, %v8746, 0.0
      %v8783 = vsel %vm5033, %v8747, 0.0
      %v8784 = vsel %vm5034, %v8748, 0.0
      %v8785 = vsel %vm5035, %v8749, 0.0
      %v8786 = vsel %vm5036, %v8750, 0.0
      %v8787 = vsel %vm5037, %v8751, 0.0
      %v8788 = vsel %vm5038, %v8752, 0.0
      %v8789 = vsel %vm5039, %v8753, 0.0
      %v8790 = vsel %vm5040, %v8754, 0.0
      %v8791 = vsel %vm5041, %v8755, 0.0
      %v8792 = vsel %vm5042, %v8756, 0.0
      %v8793 = vsel %vm5043, %v8757, 0.0
      %v8794 = vsel %vm5044, %v8758, 0.0
      %v8795 = vsel %vm5045, %v8759, 0.0
      %v8796 = vsel %vm5046, %v8760, 0.0
      %v8797 = vsel %vm5047, %v8761, 0.0
      %v8798 = vsel %vm5048, %v8762, 0.0
      %v8799 = vsel %vm5049, %v8763, 0.0
      %v8800 = vsel %vm5050, %v8764, 0.0
      %v8801 = vsel %vm5051, %v8765, 0.0
      %v8802 = vsel %vm5052, %v8766, 0.0
      %v8803 = vsel %vm5053, %v8767, 0.0
      %v8804 = vsel %vm5054, %v8768, 0.0
      %v8805 = vsel %vm5055, %v8769, 0.0
      %v8806 = vsel %vm5056, %v8770, 0.0
      %v8807 = vsel %vm5057, %v8771, 0.0
      %v8808 = vsel %vm5058, %v8772, 0.0
      %v8809 = vsel %vm5059, %v8773, 0.0
      %v8810 = vsel %vm5060, %v8774, 0.0
      %v8811 = vsel %vm5061, %v8775, 0.0
      %v8812 = vsel %vm5062, %v8776, 0.0
      %v8813 = vsel %vm5063, %v8777, 0.0
      %v8814 = vsel %vm5064, %v8778, 0.0
      %v8815 = vsel %vm5065, %v8779, 0.0
      %v8816 = vsel %vm5066, %v8780, 0.0
      %v8817 = vpack.c.bf16 %v8781, %v8781
      %v8818 = vpack.c.bf16 %v8782, %v8782
      %v8819 = vpack.c.bf16 %v8783, %v8783
      %v8820 = vpack.c.bf16 %v8784, %v8784
      %v8821 = vpack.c.bf16 %v8785, %v8785
      %v8822 = vpack.c.bf16 %v8786, %v8786
      %v8823 = vpack.c.bf16 %v8787, %v8787
      %v8824 = vpack.c.bf16 %v8788, %v8788
      %v8825 = vpack.c.bf16 %v8789, %v8789
      %v8826 = vpack.c.bf16 %v8790, %v8790
      %v8827 = vpack.c.bf16 %v8791, %v8791
      %v8828 = vpack.c.bf16 %v8792, %v8792
      %v8829 = vpack.c.bf16 %v8793, %v8793
      %v8830 = vpack.c.bf16 %v8794, %v8794
      %v8831 = vpack.c.bf16 %v8795, %v8795
      %v8832 = vpack.c.bf16 %v8796, %v8796
      %v8833 = vpack.c.bf16 %v8797, %v8797
      %v8834 = vpack.c.bf16 %v8798, %v8798
      %v8835 = vpack.c.bf16 %v8799, %v8799
      %v8836 = vpack.c.bf16 %v8800, %v8800
      %v8837 = vpack.c.bf16 %v8801, %v8801
      %v8838 = vpack.c.bf16 %v8802, %v8802
      %v8839 = vpack.c.bf16 %v8803, %v8803
      %v8840 = vpack.c.bf16 %v8804, %v8804
      %v8841 = vpack.c.bf16 %v8805, %v8805
      %v8842 = vpack.c.bf16 %v8806, %v8806
      %v8843 = vpack.c.bf16 %v8807, %v8807
      %v8844 = vpack.c.bf16 %v8808, %v8808
      %v8845 = vpack.c.bf16 %v8809, %v8809
      %v8846 = vpack.c.bf16 %v8810, %v8810
      %v8847 = vpack.c.bf16 %v8811, %v8811
      %v8848 = vpack.c.bf16 %v8812, %v8812
      %v8849 = vpack.c.bf16 %v8813, %v8813
      %v8850 = vpack.c.bf16 %v8814, %v8814
      %v8851 = vpack.c.bf16 %v8815, %v8815
      %v8852 = vpack.c.bf16 %v8816, %v8816
      %v8854 = vshrl.u32 %v8817, 16
      %v8856 = vrot.slane %v8854, 6
      %v8857 = vshll.u32 %v8817, 16
      %v8859 = vrot.slane %v8857, 7
      %v8860 = vor.u32 %v8856, %v8859
      %v8861 = vrot.slane %v8860, 4
      %v8863 = vshrl.u32 %v8818, 16
      %v8865 = vrot.slane %v8863, 6
      %v8866 = vshll.u32 %v8818, 16
      %v8868 = vrot.slane %v8866, 7
      %v8869 = vor.u32 %v8865, %v8868
      %v8870 = vsel %vm5140, %v8861, %v8869
      %v8871 = vrot.slane %v8869, 4
      %v8873 = vshrl.u32 %v8819, 16
      %v8875 = vrot.slane %v8873, 6
      %v8876 = vshll.u32 %v8819, 16
      %v8878 = vrot.slane %v8876, 7
      %v8879 = vor.u32 %v8875, %v8878
      %v8880 = vsel %vm5140, %v8871, %v8879
      %v8881 = vrot.slane %v8879, 4
      %v8883 = vshrl.u32 %v8820, 16
      %v8885 = vrot.slane %v8883, 6
      %v8886 = vshll.u32 %v8820, 16
      %v8888 = vrot.slane %v8886, 7
      %v8889 = vor.u32 %v8885, %v8888
      %v8890 = vsel %vm5140, %v8881, %v8889
      %v8891 = vrot.slane %v8889, 4
      %v8893 = vshrl.u32 %v8821, 16
      %v8895 = vrot.slane %v8893, 6
      %v8896 = vshll.u32 %v8821, 16
      %v8898 = vrot.slane %v8896, 7
      %v8899 = vor.u32 %v8895, %v8898
      %v8900 = vsel %vm5140, %v8891, %v8899
      %v8901 = vrot.slane %v8899, 4
      %v8903 = vshrl.u32 %v8822, 16
      %v8905 = vrot.slane %v8903, 6
      %v8906 = vshll.u32 %v8822, 16
      %v8908 = vrot.slane %v8906, 7
      %v8909 = vor.u32 %v8905, %v8908
      %v8910 = vsel %vm5140, %v8901, %v8909
      %v8911 = vrot.slane %v8909, 4
      %v8913 = vshrl.u32 %v8823, 16
      %v8915 = vrot.slane %v8913, 6
      %v8916 = vshll.u32 %v8823, 16
      %v8918 = vrot.slane %v8916, 7
      %v8919 = vor.u32 %v8915, %v8918
      %v8920 = vsel %vm5140, %v8911, %v8919
      %v8921 = vrot.slane %v8919, 4
      %v8923 = vshrl.u32 %v8824, 16
      %v8925 = vrot.slane %v8923, 6
      %v8926 = vshll.u32 %v8824, 16
      %v8928 = vrot.slane %v8926, 7
      %v8929 = vor.u32 %v8925, %v8928
      %v8930 = vsel %vm5140, %v8921, %v8929
      %v8931 = vrot.slane %v8929, 4
      %v8933 = vshrl.u32 %v8825, 16
      %v8935 = vrot.slane %v8933, 6
      %v8936 = vshll.u32 %v8825, 16
      %v8938 = vrot.slane %v8936, 7
      %v8939 = vor.u32 %v8935, %v8938
      %v8940 = vsel %vm5140, %v8931, %v8939
      %v8941 = vrot.slane %v8939, 4
      %v8943 = vshrl.u32 %v8826, 16
      %v8945 = vrot.slane %v8943, 6
      %v8946 = vshll.u32 %v8826, 16
      %v8948 = vrot.slane %v8946, 7
      %v8949 = vor.u32 %v8945, %v8948
      %v8950 = vsel %vm5140, %v8941, %v8949
      %v8951 = vrot.slane %v8949, 4
      %v8953 = vshrl.u32 %v8827, 16
      %v8955 = vrot.slane %v8953, 6
      %v8956 = vshll.u32 %v8827, 16
      %v8958 = vrot.slane %v8956, 7
      %v8959 = vor.u32 %v8955, %v8958
      %v8960 = vsel %vm5140, %v8951, %v8959
      %v8961 = vrot.slane %v8959, 4
      %v8963 = vshrl.u32 %v8828, 16
      %v8965 = vrot.slane %v8963, 6
      %v8966 = vshll.u32 %v8828, 16
      %v8968 = vrot.slane %v8966, 7
      %v8969 = vor.u32 %v8965, %v8968
      %v8970 = vsel %vm5140, %v8961, %v8969
      %v8971 = vrot.slane %v8969, 4
      %v8973 = vshrl.u32 %v8829, 16
      %v8975 = vrot.slane %v8973, 6
      %v8976 = vshll.u32 %v8829, 16
      %v8978 = vrot.slane %v8976, 7
      %v8979 = vor.u32 %v8975, %v8978
      %v8980 = vsel %vm5140, %v8971, %v8979
      %v8981 = vrot.slane %v8979, 4
      %v8983 = vshrl.u32 %v8830, 16
      %v8985 = vrot.slane %v8983, 6
      %v8986 = vshll.u32 %v8830, 16
      %v8988 = vrot.slane %v8986, 7
      %v8989 = vor.u32 %v8985, %v8988
      %v8990 = vsel %vm5140, %v8981, %v8989
      %v8991 = vrot.slane %v8989, 4
      %v8993 = vshrl.u32 %v8831, 16
      %v8995 = vrot.slane %v8993, 6
      %v8996 = vshll.u32 %v8831, 16
      %v8998 = vrot.slane %v8996, 7
      %v8999 = vor.u32 %v8995, %v8998
      %v9000 = vsel %vm5140, %v8991, %v8999
      %v9001 = vrot.slane %v8999, 4
      %v9003 = vshrl.u32 %v8832, 16
      %v9005 = vrot.slane %v9003, 6
      %v9006 = vshll.u32 %v8832, 16
      %v9008 = vrot.slane %v9006, 7
      %v9009 = vor.u32 %v9005, %v9008
      %v9010 = vsel %vm5140, %v9001, %v9009
      %v9011 = vrot.slane %v9009, 4
      %v9013 = vshrl.u32 %v8833, 16
      %v9015 = vrot.slane %v9013, 6
      %v9016 = vshll.u32 %v8833, 16
      %v9018 = vrot.slane %v9016, 7
      %v9019 = vor.u32 %v9015, %v9018
      %v9020 = vsel %vm5140, %v9011, %v9019
      %v9021 = vrot.slane %v9019, 4
      %v9023 = vshrl.u32 %v8834, 16
      %v9025 = vrot.slane %v9023, 6
      %v9026 = vshll.u32 %v8834, 16
      %v9028 = vrot.slane %v9026, 7
      %v9029 = vor.u32 %v9025, %v9028
      %v9030 = vsel %vm5140, %v9021, %v9029
      %v9031 = vrot.slane %v9029, 4
      %v9033 = vshrl.u32 %v8835, 16
      %v9035 = vrot.slane %v9033, 6
      %v9036 = vshll.u32 %v8835, 16
      %v9038 = vrot.slane %v9036, 7
      %v9039 = vor.u32 %v9035, %v9038
      %v9040 = vsel %vm5140, %v9031, %v9039
      %v9041 = vrot.slane %v9039, 4
      %v9043 = vshrl.u32 %v8836, 16
      %v9045 = vrot.slane %v9043, 6
      %v9046 = vshll.u32 %v8836, 16
      %v9048 = vrot.slane %v9046, 7
      %v9049 = vor.u32 %v9045, %v9048
      %v9050 = vsel %vm5140, %v9041, %v9049
      %v9051 = vrot.slane %v9049, 4
      %v9053 = vshrl.u32 %v8837, 16
      %v9055 = vrot.slane %v9053, 6
      %v9056 = vshll.u32 %v8837, 16
      %v9058 = vrot.slane %v9056, 7
      %v9059 = vor.u32 %v9055, %v9058
      %v9060 = vsel %vm5140, %v9051, %v9059
      %v9061 = vrot.slane %v9059, 4
      %v9063 = vshrl.u32 %v8838, 16
      %v9065 = vrot.slane %v9063, 6
      %v9066 = vshll.u32 %v8838, 16
      %v9068 = vrot.slane %v9066, 7
      %v9069 = vor.u32 %v9065, %v9068
      %v9070 = vsel %vm5140, %v9061, %v9069
      %v9071 = vrot.slane %v9069, 4
      %v9073 = vshrl.u32 %v8839, 16
      %v9075 = vrot.slane %v9073, 6
      %v9076 = vshll.u32 %v8839, 16
      %v9078 = vrot.slane %v9076, 7
      %v9079 = vor.u32 %v9075, %v9078
      %v9080 = vsel %vm5140, %v9071, %v9079
      %v9081 = vrot.slane %v9079, 4
      %v9083 = vshrl.u32 %v8840, 16
      %v9085 = vrot.slane %v9083, 6
      %v9086 = vshll.u32 %v8840, 16
      %v9088 = vrot.slane %v9086, 7
      %v9089 = vor.u32 %v9085, %v9088
      %v9090 = vsel %vm5140, %v9081, %v9089
      %v9091 = vrot.slane %v9089, 4
      %v9093 = vshrl.u32 %v8841, 16
      %v9095 = vrot.slane %v9093, 6
      %v9096 = vshll.u32 %v8841, 16
      %v9098 = vrot.slane %v9096, 7
      %v9099 = vor.u32 %v9095, %v9098
      %v9100 = vsel %vm5140, %v9091, %v9099
      %v9101 = vrot.slane %v9099, 4
      %v9103 = vshrl.u32 %v8842, 16
      %v9105 = vrot.slane %v9103, 6
      %v9106 = vshll.u32 %v8842, 16
      %v9108 = vrot.slane %v9106, 7
      %v9109 = vor.u32 %v9105, %v9108
      %v9110 = vsel %vm5140, %v9101, %v9109
      %v9111 = vrot.slane %v9109, 4
      %v9113 = vshrl.u32 %v8843, 16
      %v9115 = vrot.slane %v9113, 6
      %v9116 = vshll.u32 %v8843, 16
      %v9118 = vrot.slane %v9116, 7
      %v9119 = vor.u32 %v9115, %v9118
      %v9120 = vsel %vm5140, %v9111, %v9119
      %v9121 = vrot.slane %v9119, 4
      %v9123 = vshrl.u32 %v8844, 16
      %v9125 = vrot.slane %v9123, 6
      %v9126 = vshll.u32 %v8844, 16
      %v9128 = vrot.slane %v9126, 7
      %v9129 = vor.u32 %v9125, %v9128
      %v9130 = vsel %vm5140, %v9121, %v9129
      %v9131 = vrot.slane %v9129, 4
      %v9133 = vshrl.u32 %v8845, 16
      %v9135 = vrot.slane %v9133, 6
      %v9136 = vshll.u32 %v8845, 16
      %v9138 = vrot.slane %v9136, 7
      %v9139 = vor.u32 %v9135, %v9138
      %v9140 = vsel %vm5140, %v9131, %v9139
      %v9141 = vrot.slane %v9139, 4
      %v9143 = vshrl.u32 %v8846, 16
      %v9145 = vrot.slane %v9143, 6
      %v9146 = vshll.u32 %v8846, 16
      %v9148 = vrot.slane %v9146, 7
      %v9149 = vor.u32 %v9145, %v9148
      %v9150 = vsel %vm5140, %v9141, %v9149
      %v9151 = vrot.slane %v9149, 4
      %v9153 = vshrl.u32 %v8847, 16
      %v9155 = vrot.slane %v9153, 6
      %v9156 = vshll.u32 %v8847, 16
      %v9158 = vrot.slane %v9156, 7
      %v9159 = vor.u32 %v9155, %v9158
      %v9160 = vsel %vm5140, %v9151, %v9159
      %v9161 = vrot.slane %v9159, 4
      %v9163 = vshrl.u32 %v8848, 16
      %v9165 = vrot.slane %v9163, 6
      %v9166 = vshll.u32 %v8848, 16
      %v9168 = vrot.slane %v9166, 7
      %v9169 = vor.u32 %v9165, %v9168
      %v9170 = vsel %vm5140, %v9161, %v9169
      %v9171 = vrot.slane %v9169, 4
      %v9173 = vshrl.u32 %v8849, 16
      %v9175 = vrot.slane %v9173, 6
      %v9176 = vshll.u32 %v8849, 16
      %v9178 = vrot.slane %v9176, 7
      %v9179 = vor.u32 %v9175, %v9178
      %v9180 = vsel %vm5140, %v9171, %v9179
      %v9181 = vrot.slane %v9179, 4
      %v9183 = vshrl.u32 %v8850, 16
      %v9185 = vrot.slane %v9183, 6
      %v9186 = vshll.u32 %v8850, 16
      %v9188 = vrot.slane %v9186, 7
      %v9189 = vor.u32 %v9185, %v9188
      %v9190 = vsel %vm5140, %v9181, %v9189
      %v9191 = vrot.slane %v9189, 4
      %v9193 = vshrl.u32 %v8851, 16
      %v9195 = vrot.slane %v9193, 6
      %v9196 = vshll.u32 %v8851, 16
      %v9198 = vrot.slane %v9196, 7
      %v9199 = vor.u32 %v9195, %v9198
      %v9200 = vsel %vm5140, %v9191, %v9199
      %v9201 = vrot.slane %v9199, 4
      %v9203 = vshrl.u32 %v8852, 16
      %v9205 = vrot.slane %v9203, 6
      %v9206 = vshll.u32 %v8852, 16
      %v9208 = vrot.slane %v9206, 7
      %v9209 = vor.u32 %v9205, %v9208
      %v9210 = vsel %vm5140, %v9201, %v9209
      %v9211 = vrot.slane %v9205, 4
      %v9249 = vld [vmem:[#allocation3 + $0x8] sm:$0xe]
      %v9250 = vsel %vm5539, %v8860, %v9249
      %9251 = vst [vmem:[#allocation3 + $0x8] sm:$0xe] %v9250
      %9252 = vst [vmem:[#allocation3 + $0xc] sm:$0xf] %v8870
      %9253 = vst [vmem:[#allocation3 + $0x10] sm:$0xf] %v8880
      %9254 = vst [vmem:[#allocation3 + $0x14] sm:$0xf] %v8890
      %9255 = vst [vmem:[#allocation3 + $0x18] sm:$0xf] %v8900
      %9256 = vst [vmem:[#allocation3 + $0x1c] sm:$0xf] %v8910
      %9257 = vst [vmem:[#allocation3 + $0x20] sm:$0xf] %v8920
      %9258 = vst [vmem:[#allocation3 + $0x24] sm:$0xf] %v8930
      %9259 = vst [vmem:[#allocation3 + $0x28] sm:$0xf] %v8940
      %9260 = vst [vmem:[#allocation3 + $0x2c] sm:$0xf] %v8950
      %9261 = vst [vmem:[#allocation3 + $0x30] sm:$0xf] %v8960
      %9262 = vst [vmem:[#allocation3 + $0x34] sm:$0xf] %v8970
      %9263 = vst [vmem:[#allocation3 + $0x38] sm:$0xf] %v8980
      %9264 = vst [vmem:[#allocation3 + $0x3c] sm:$0xf] %v8990
      %9265 = vst [vmem:[#allocation3 + $0x40] sm:$0xf] %v9000
      %9266 = vst [vmem:[#allocation3 + $0x44] sm:$0xf] %v9010
      %9267 = vst [vmem:[#allocation3 + $0x48] sm:$0xf] %v9020
      %9268 = vst [vmem:[#allocation3 + $0x4c] sm:$0xf] %v9030
      %9269 = vst [vmem:[#allocation3 + $0x50] sm:$0xf] %v9040
      %9270 = vst [vmem:[#allocation3 + $0x54] sm:$0xf] %v9050
      %9271 = vst [vmem:[#allocation3 + $0x58] sm:$0xf] %v9060
      %9272 = vst [vmem:[#allocation3 + $0x5c] sm:$0xf] %v9070
      %9273 = vst [vmem:[#allocation3 + $0x60] sm:$0xf] %v9080
      %9274 = vst [vmem:[#allocation3 + $0x64] sm:$0xf] %v9090
      %9275 = vst [vmem:[#allocation3 + $0x68] sm:$0xf] %v9100
      %9276 = vst [vmem:[#allocation3 + $0x6c] sm:$0xf] %v9110
      %9277 = vst [vmem:[#allocation3 + $0x70] sm:$0xf] %v9120
      %9278 = vst [vmem:[#allocation3 + $0x74] sm:$0xf] %v9130
      %9279 = vst [vmem:[#allocation3 + $0x78] sm:$0xf] %v9140
      %9280 = vst [vmem:[#allocation3 + $0x7c] sm:$0xf] %v9150
      %9281 = vst [vmem:[#allocation3 + $0x80] sm:$0xf] %v9160
      %9282 = vst [vmem:[#allocation3 + $0x84] sm:$0xf] %v9170
      %9283 = vst [vmem:[#allocation3 + $0x88] sm:$0xf] %v9180
      %9284 = vst [vmem:[#allocation3 + $0x8c] sm:$0xf] %v9190
      %9285 = vst [vmem:[#allocation3 + $0x90] sm:$0xf] %v9200
      %9286 = vst [vmem:[#allocation3 + $0x94] sm:$0xf] %v9210
      %v9287 = vld [vmem:[#allocation3 + $0x98] sm:$0x1]
      %v9288 = vsel %vm5580, %v9211, %v9287
      %9289 = vst [vmem:[#allocation3 + $0x98] sm:$0x1] %v9288
      %v9290 = vld [vmem:[#allocation3] sm:$0xf]
      %v9291 = vld [vmem:[#allocation3 + $0x4] sm:$0xf]
      %v9292 = vld [vmem:[#allocation3 + $0x8] sm:$0xf]
      %v9293 = vld [vmem:[#allocation3 + $0xc] sm:$0xf]
      %v9294 = vld [vmem:[#allocation3 + $0x10] sm:$0xf]
      %v9295 = vld [vmem:[#allocation3 + $0x14] sm:$0xf]
      %v9296 = vld [vmem:[#allocation3 + $0x18] sm:$0xf]
      %v9297 = vld [vmem:[#allocation3 + $0x1c] sm:$0xf]
      %v9298 = vld [vmem:[#allocation3 + $0x20] sm:$0xf]
      %v9299 = vld [vmem:[#allocation3 + $0x24] sm:$0xf]
      %v9300 = vld [vmem:[#allocation3 + $0x28] sm:$0xf]
      %v9301 = vld [vmem:[#allocation3 + $0x2c] sm:$0xf]
      %v9302 = vld [vmem:[#allocation3 + $0x30] sm:$0xf]
      %v9303 = vld [vmem:[#allocation3 + $0x34] sm:$0xf]
      %v9304 = vld [vmem:[#allocation3 + $0x38] sm:$0xf]
      %v9305 = vld [vmem:[#allocation3 + $0x3c] sm:$0xf]
      %v9306 = vld [vmem:[#allocation3 + $0x40] sm:$0xf]
      %v9307 = vld [vmem:[#allocation3 + $0x44] sm:$0xf]
      %v9308 = vld [vmem:[#allocation3 + $0x48] sm:$0xf]
      %v9309 = vld [vmem:[#allocation3 + $0x4c] sm:$0xf]
      %v9310 = vld [vmem:[#allocation3 + $0x50] sm:$0xf]
      %v9311 = vld [vmem:[#allocation3 + $0x54] sm:$0xf]
      %v9312 = vld [vmem:[#allocation3 + $0x58] sm:$0xf]
      %v9313 = vld [vmem:[#allocation3 + $0x5c] sm:$0xf]
      %v9314 = vld [vmem:[#allocation3 + $0x60] sm:$0xf]
      %v9315 = vld [vmem:[#allocation3 + $0x64] sm:$0xf]
      %v9316 = vld [vmem:[#allocation3 + $0x68] sm:$0xf]
      %v9317 = vld [vmem:[#allocation3 + $0x6c] sm:$0xf]
      %v9318 = vld [vmem:[#allocation3 + $0x70] sm:$0xf]
      %v9319 = vld [vmem:[#allocation3 + $0x74] sm:$0xf]
      %v9320 = vld [vmem:[#allocation3 + $0x78] sm:$0xf]
      %v9321 = vld [vmem:[#allocation3 + $0x7c] sm:$0xf]
      %v9322 = vld [vmem:[#allocation3 + $0x80] sm:$0xf]
      %v9323 = vld [vmem:[#allocation3 + $0x84] sm:$0xf]
      %v9324 = vld [vmem:[#allocation3 + $0x88] sm:$0xf]
      %v9325 = vld [vmem:[#allocation3 + $0x8c] sm:$0x7]
      %v9326 = vld [vmem:[%s3] sm:$0xf]
      %v9327 = vld [vmem:[%s3 + $0x4] sm:$0xf]
      %v9328 = vld [vmem:[%s3 + $0x8] sm:$0xf]
      %v9329 = vld [vmem:[%s3 + $0xc] sm:$0xf]
      %v9330 = vld [vmem:[%s3 + $0x10] sm:$0xf]
      %v9331 = vld [vmem:[%s3 + $0x14] sm:$0xf]
      %v9332 = vld [vmem:[%s3 + $0x18] sm:$0xf]
      %v9333 = vld [vmem:[%s3 + $0x1c] sm:$0xf]
      %v9334 = vld [vmem:[%s3 + $0x20] sm:$0xf]
      %v9335 = vld [vmem:[%s3 + $0x24] sm:$0xf]
      %v9336 = vld [vmem:[%s3 + $0x28] sm:$0xf]
      %v9337 = vld [vmem:[%s3 + $0x2c] sm:$0xf]
      %v9338 = vld [vmem:[%s3 + $0x30] sm:$0xf]
      %v9339 = vld [vmem:[%s3 + $0x34] sm:$0xf]
      %v9340 = vld [vmem:[%s3 + $0x38] sm:$0xf]
      %v9341 = vld [vmem:[%s3 + $0x3c] sm:$0xf]
      %v9342 = vld [vmem:[#allocation3 + $0x8c] sm:$0xf]
      %s9343 = scalar_lea.vmem %s3, 64
      %v9344 = vld [vmem:[%s9343] sm:$0xf]
      %v9345 = vld [vmem:[%s9343 + $0x4] sm:$0xf]
      %v9346 = vld [vmem:[%s9343 + $0x8] sm:$0xf]
      %v9347 = vld [vmem:[%s9343 + $0xc] sm:$0xf]
      %v9348 = vld [vmem:[%s9343 + $0x10] sm:$0xf]
      %v9349 = vld [vmem:[%s9343 + $0x14] sm:$0xf]
      %v9350 = vld [vmem:[%s9343 + $0x18] sm:$0xf]
      %v9351 = vld [vmem:[%s9343 + $0x1c] sm:$0xf]
      %v9352 = vld [vmem:[%s9343 + $0x20] sm:$0xf]
      %v9353 = vld [vmem:[%s9343 + $0x24] sm:$0xf]
      %v9354 = vld [vmem:[%s9343 + $0x28] sm:$0xf]
      %v9355 = vld [vmem:[%s9343 + $0x2c] sm:$0xf]
      %v9356 = vld [vmem:[%s9343 + $0x30] sm:$0xf]
      %v9357 = vld [vmem:[%s9343 + $0x34] sm:$0xf]
      %v9358 = vld [vmem:[%s9343 + $0x38] sm:$0xf]
      %v9359 = vld [vmem:[%s9343 + $0x3c] sm:$0xf]
      %v9396 = vunpack.c.l.b16 %v9290
      %v9397 = vunpack.c.l.b16 %v9291
      %v9398 = vunpack.c.l.b16 %v9292
      %v9399 = vunpack.c.l.b16 %v9293
      %v9400 = vunpack.c.l.b16 %v9294
      %v9401 = vunpack.c.l.b16 %v9295
      %v9402 = vunpack.c.l.b16 %v9296
      %v9403 = vunpack.c.l.b16 %v9297
      %v9404 = vunpack.c.l.b16 %v9298
      %v9405 = vunpack.c.l.b16 %v9299
      %v9406 = vunpack.c.l.b16 %v9300
      %v9407 = vunpack.c.l.b16 %v9301
      %v9408 = vunpack.c.l.b16 %v9302
      %v9409 = vunpack.c.l.b16 %v9303
      %v9410 = vunpack.c.l.b16 %v9304
      %v9411 = vunpack.c.l.b16 %v9305
      %v9412 = vunpack.c.l.b16 %v9306
      %v9413 = vunpack.c.l.b16 %v9307
      %v9414 = vunpack.c.l.b16 %v9308
      %v9415 = vunpack.c.l.b16 %v9309
      %v9416 = vunpack.c.l.b16 %v9310
      %v9417 = vunpack.c.l.b16 %v9311
      %v9418 = vunpack.c.l.b16 %v9312
      %v9419 = vunpack.c.l.b16 %v9313
      %v9420 = vunpack.c.l.b16 %v9314
      %v9421 = vunpack.c.l.b16 %v9315
      %v9422 = vunpack.c.l.b16 %v9316
      %v9423 = vunpack.c.l.b16 %v9317
      %v9424 = vunpack.c.l.b16 %v9318
      %v9425 = vunpack.c.l.b16 %v9319
      %v9426 = vunpack.c.l.b16 %v9320
      %v9427 = vunpack.c.l.b16 %v9321
      %v9428 = vunpack.c.l.b16 %v9322
      %v9429 = vunpack.c.l.b16 %v9323
      %v9430 = vunpack.c.l.b16 %v9324
      %v9431 = vunpack.c.l.b16 %v9342
      %v9432 = vpack.c.b16 %v9397, %v9396
      %v9433 = vpack.c.b16 %v9399, %v9398
      %v9434 = vpack.c.b16 %v9401, %v9400
      %v9435 = vpack.c.b16 %v9403, %v9402
      %v9436 = vpack.c.b16 %v9405, %v9404
      %v9437 = vpack.c.b16 %v9407, %v9406
      %v9438 = vpack.c.b16 %v9409, %v9408
      %v9439 = vpack.c.b16 %v9411, %v9410
      %v9440 = vpack.c.b16 %v9413, %v9412
      %v9441 = vpack.c.b16 %v9415, %v9414
      %v9442 = vpack.c.b16 %v9417, %v9416
      %v9443 = vpack.c.b16 %v9419, %v9418
      %v9444 = vpack.c.b16 %v9421, %v9420
      %v9445 = vpack.c.b16 %v9423, %v9422
      %v9446 = vpack.c.b16 %v9425, %v9424
      %v9447 = vpack.c.b16 %v9427, %v9426
      %v9448 = vpack.c.b16 %v9429, %v9428
      %v9449 = vpack.c.b16 %v9431, %v9430
      %v9451 = vshrl.u32 %v9432, 16
      %v9453 = vshll.u32 %v9432, 16
      %v9455 = vrot.slane %v9453, 1
      %v9456 = vor.u32 %v9451, %v9455
      %v9458 = vshll.u32 %v9433, 16
      %v9460 = vrot.slane %v9458, 1
      %v9461 = vsel %vm1952, %v9456, %v9460
      %v9462 = vshrl.u32 %v9433, 16
      %v9464 = vor.u32 %v9462, %v9460
      %v9466 = vshll.u32 %v9434, 16
      %v9468 = vrot.slane %v9466, 1
      %v9469 = vsel %vm1952, %v9464, %v9468
      %v9470 = vshrl.u32 %v9434, 16
      %v9472 = vor.u32 %v9470, %v9468
      %v9474 = vshll.u32 %v9435, 16
      %v9476 = vrot.slane %v9474, 1
      %v9477 = vsel %vm1952, %v9472, %v9476
      %v9478 = vshrl.u32 %v9435, 16
      %v9480 = vor.u32 %v9478, %v9476
      %v9482 = vshll.u32 %v9436, 16
      %v9484 = vrot.slane %v9482, 1
      %v9485 = vsel %vm1952, %v9480, %v9484
      %v9486 = vshrl.u32 %v9436, 16
      %v9488 = vor.u32 %v9486, %v9484
      %v9490 = vshll.u32 %v9437, 16
      %v9492 = vrot.slane %v9490, 1
      %v9493 = vsel %vm1952, %v9488, %v9492
      %v9494 = vshrl.u32 %v9437, 16
      %v9496 = vor.u32 %v9494, %v9492
      %v9498 = vshll.u32 %v9438, 16
      %v9500 = vrot.slane %v9498, 1
      %v9501 = vsel %vm1952, %v9496, %v9500
      %v9502 = vshrl.u32 %v9438, 16
      %v9504 = vor.u32 %v9502, %v9500
      %v9506 = vshll.u32 %v9439, 16
      %v9508 = vrot.slane %v9506, 1
      %v9509 = vsel %vm1952, %v9504, %v9508
      %v9510 = vshrl.u32 %v9439, 16
      %v9512 = vor.u32 %v9510, %v9508
      %v9514 = vshll.u32 %v9440, 16
      %v9516 = vrot.slane %v9514, 1
      %v9517 = vsel %vm1952, %v9512, %v9516
      %v9518 = vshrl.u32 %v9440, 16
      %v9520 = vor.u32 %v9518, %v9516
      %v9522 = vshll.u32 %v9441, 16
      %v9524 = vrot.slane %v9522, 1
      %v9525 = vsel %vm1952, %v9520, %v9524
      %v9526 = vshrl.u32 %v9441, 16
      %v9528 = vor.u32 %v9526, %v9524
      %v9530 = vshll.u32 %v9442, 16
      %v9532 = vrot.slane %v9530, 1
      %v9533 = vsel %vm1952, %v9528, %v9532
      %v9534 = vshrl.u32 %v9442, 16
      %v9536 = vor.u32 %v9534, %v9532
      %v9538 = vshll.u32 %v9443, 16
      %v9540 = vrot.slane %v9538, 1
      %v9541 = vsel %vm1952, %v9536, %v9540
      %v9542 = vshrl.u32 %v9443, 16
      %v9544 = vor.u32 %v9542, %v9540
      %v9546 = vshll.u32 %v9444, 16
      %v9548 = vrot.slane %v9546, 1
      %v9549 = vsel %vm1952, %v9544, %v9548
      %v9550 = vshrl.u32 %v9444, 16
      %v9552 = vor.u32 %v9550, %v9548
      %v9554 = vshll.u32 %v9445, 16
      %v9556 = vrot.slane %v9554, 1
      %v9557 = vsel %vm1952, %v9552, %v9556
      %v9558 = vshrl.u32 %v9445, 16
      %v9560 = vor.u32 %v9558, %v9556
      %v9562 = vshll.u32 %v9446, 16
      %v9564 = vrot.slane %v9562, 1
      %v9565 = vsel %vm1952, %v9560, %v9564
      %v9566 = vshrl.u32 %v9446, 16
      %v9568 = vor.u32 %v9566, %v9564
      %v9570 = vshll.u32 %v9447, 16
      %v9572 = vrot.slane %v9570, 1
      %v9573 = vsel %vm1952, %v9568, %v9572
      %v9574 = vshrl.u32 %v9447, 16
      %v9576 = vor.u32 %v9574, %v9572
      %v9578 = vshll.u32 %v9448, 16
      %v9580 = vrot.slane %v9578, 1
      %v9581 = vsel %vm1952, %v9576, %v9580
      %v9582 = vshrl.u32 %v9448, 16
      %v9584 = vor.u32 %v9582, %v9580
      %v9586 = vshll.u32 %v9449, 16
      %v9588 = vrot.slane %v9586, 1
      %v9589 = vsel %vm1952, %v9584, %v9588
      %v9590 = vshrl.u32 %v9449, 16
      %v9592 = vor.u32 %v9590, %v9588
      %v9627 = vunpack.c.l.b16 %v9344
      %v9628 = vunpack.c.l.b16 %v9345
      %v9629 = vunpack.c.l.b16 %v9346
      %v9630 = vunpack.c.l.b16 %v9347
      %v9631 = vunpack.c.l.b16 %v9348
      %v9632 = vunpack.c.l.b16 %v9349
      %v9633 = vunpack.c.l.b16 %v9350
      %v9634 = vunpack.c.l.b16 %v9351
      %v9635 = vunpack.c.l.b16 %v9352
      %v9636 = vunpack.c.l.b16 %v9353
      %v9637 = vunpack.c.l.b16 %v9354
      %v9638 = vunpack.c.l.b16 %v9355
      %v9639 = vunpack.c.l.b16 %v9356
      %v9640 = vunpack.c.l.b16 %v9357
      %v9641 = vunpack.c.l.b16 %v9358
      %v9642 = vunpack.c.l.b16 %v9359
      %v9643 = vpack.c.b16 %v9628, %v9627
      %v9644 = vpack.c.b16 %v9630, %v9629
      %v9645 = vpack.c.b16 %v9632, %v9631
      %v9646 = vpack.c.b16 %v9634, %v9633
      %v9647 = vpack.c.b16 %v9636, %v9635
      %v9648 = vpack.c.b16 %v9638, %v9637
      %v9649 = vpack.c.b16 %v9640, %v9639
      %v9650 = vpack.c.b16 %v9642, %v9641
      %9659 = vmatpush.bf16.msra.mxu0 %v9650
      %9660 = vmatpush.bf16.msra.mxu0 %v9649
      %9661 = vmatpush.bf16.msra.mxu0 %v9648
      %9662 = vmatpush.bf16.msra.mxu0 %v9647
      %9663 = vmatpush.bf16.msra.mxu0 %v9646
      %9664 = vmatpush.bf16.msra.mxu0 %v9645
      %9665 = vmatpush.bf16.msra.mxu0 %v9644
      %9666 = vmatpush.bf16.msra.mxu0 %v9643
      %9667 = vmatmul.bf16.gmra.mxu0 %v9461
      %v9668 = vpop.f32.mrf.mxu0
      %v9669 = vadd.f32 0.0, %v9668
      %v9670 = vpop.f32.mrf.mxu0
      %v9671 = vadd.f32 0.0, %v9670
      %9672 = vmatmul.bf16.gmra.mxu0 %v9469
      %v9673 = vpop.f32.mrf.mxu0
      %v9674 = vadd.f32 0.0, %v9673
      %v9675 = vpop.f32.mrf.mxu0
      %v9676 = vadd.f32 0.0, %v9675
      %9677 = vmatmul.bf16.gmra.mxu0 %v9477
      %v9678 = vpop.f32.mrf.mxu0
      %v9679 = vadd.f32 0.0, %v9678
      %v9680 = vpop.f32.mrf.mxu0
      %v9681 = vadd.f32 0.0, %v9680
      %9682 = vmatmul.bf16.gmra.mxu0 %v9485
      %v9683 = vpop.f32.mrf.mxu0
      %v9684 = vadd.f32 0.0, %v9683
      %v9685 = vpop.f32.mrf.mxu0
      %v9686 = vadd.f32 0.0, %v9685
      %9687 = vmatmul.bf16.gmra.mxu0 %v9493
      %v9688 = vpop.f32.mrf.mxu0
      %v9689 = vadd.f32 0.0, %v9688
      %v9690 = vpop.f32.mrf.mxu0
      %v9691 = vadd.f32 0.0, %v9690
      %9692 = vmatmul.bf16.gmra.mxu0 %v9501
      %v9693 = vpop.f32.mrf.mxu0
      %v9694 = vadd.f32 0.0, %v9693
      %v9695 = vpop.f32.mrf.mxu0
      %v9696 = vadd.f32 0.0, %v9695
      %9697 = vmatmul.bf16.gmra.mxu0 %v9509
      %v9698 = vpop.f32.mrf.mxu0
      %v9699 = vadd.f32 0.0, %v9698
      %v9700 = vpop.f32.mrf.mxu0
      %v9701 = vadd.f32 0.0, %v9700
      %9702 = vmatmul.bf16.gmra.mxu0 %v9517
      %v9703 = vpop.f32.mrf.mxu0
      %v9704 = vadd.f32 0.0, %v9703
      %v9705 = vpop.f32.mrf.mxu0
      %v9706 = vadd.f32 0.0, %v9705
      %9707 = vmatmul.bf16.gmra.mxu0 %v9525
      %v9708 = vpop.f32.mrf.mxu0
      %v9709 = vadd.f32 0.0, %v9708
      %v9710 = vpop.f32.mrf.mxu0
      %v9711 = vadd.f32 0.0, %v9710
      %9712 = vmatmul.bf16.gmra.mxu0 %v9533
      %v9713 = vpop.f32.mrf.mxu0
      %v9714 = vadd.f32 0.0, %v9713
      %v9715 = vpop.f32.mrf.mxu0
      %v9716 = vadd.f32 0.0, %v9715
      %9717 = vmatmul.bf16.gmra.mxu0 %v9541
      %v9718 = vpop.f32.mrf.mxu0
      %v9719 = vadd.f32 0.0, %v9718
      %v9720 = vpop.f32.mrf.mxu0
      %v9721 = vadd.f32 0.0, %v9720
      %9722 = vmatmul.bf16.gmra.mxu0 %v9549
      %v9723 = vpop.f32.mrf.mxu0
      %v9724 = vadd.f32 0.0, %v9723
      %v9725 = vpop.f32.mrf.mxu0
      %v9726 = vadd.f32 0.0, %v9725
      %9727 = vmatmul.bf16.gmra.mxu0 %v9557
      %v9728 = vpop.f32.mrf.mxu0
      %v9729 = vadd.f32 0.0, %v9728
      %v9730 = vpop.f32.mrf.mxu0
      %v9731 = vadd.f32 0.0, %v9730
      %9732 = vmatmul.bf16.gmra.mxu0 %v9565
      %v9733 = vpop.f32.mrf.mxu0
      %v9734 = vadd.f32 0.0, %v9733
      %v9735 = vpop.f32.mrf.mxu0
      %v9736 = vadd.f32 0.0, %v9735
      %9737 = vmatmul.bf16.gmra.mxu0 %v9573
      %v9738 = vpop.f32.mrf.mxu0
      %v9739 = vadd.f32 0.0, %v9738
      %v9740 = vpop.f32.mrf.mxu0
      %v9741 = vadd.f32 0.0, %v9740
      %9742 = vmatmul.bf16.gmra.mxu0 %v9581
      %v9743 = vpop.f32.mrf.mxu0
      %v9744 = vadd.f32 0.0, %v9743
      %v9745 = vpop.f32.mrf.mxu0
      %v9746 = vadd.f32 0.0, %v9745
      %9747 = vmatmul.bf16.gmra.mxu0 %v9589
      %v9748 = vpop.f32.mrf.mxu0
      %v9749 = vadd.f32 0.0, %v9748
      %v9750 = vpop.f32.mrf.mxu0
      %v9751 = vadd.f32 0.0, %v9750
      %9752 = vmatmul.bf16.gmra.mxu0 %v9592
      %v9753 = vpop.f32.mrf.mxu0
      %v9754 = vadd.f32 0.0, %v9753
      %v9755 = vpop.f32.mrf.mxu0
      %v9756 = vadd.f32 0.0, %v9755
      %9757 = vdwg.mxu0
      %v9759 = vunpack.c.l.b16 %v9325
      %v9760 = vpack.c.b16 %v9759, %v9430
      %v9795 = vunpack.c.l.b16 %v9326
      %v9796 = vunpack.c.l.b16 %v9327
      %v9797 = vunpack.c.l.b16 %v9328
      %v9798 = vunpack.c.l.b16 %v9329
      %v9799 = vunpack.c.l.b16 %v9330
      %v9800 = vunpack.c.l.b16 %v9331
      %v9801 = vunpack.c.l.b16 %v9332
      %v9802 = vunpack.c.l.b16 %v9333
      %v9803 = vunpack.c.l.b16 %v9334
      %v9804 = vunpack.c.l.b16 %v9335
      %v9805 = vunpack.c.l.b16 %v9336
      %v9806 = vunpack.c.l.b16 %v9337
      %v9807 = vunpack.c.l.b16 %v9338
      %v9808 = vunpack.c.l.b16 %v9339
      %v9809 = vunpack.c.l.b16 %v9340
      %v9810 = vunpack.c.l.b16 %v9341
      %v9811 = vpack.c.b16 %v9796, %v9795
      %v9812 = vpack.c.b16 %v9798, %v9797
      %v9813 = vpack.c.b16 %v9800, %v9799
      %v9814 = vpack.c.b16 %v9802, %v9801
      %v9815 = vpack.c.b16 %v9804, %v9803
      %v9816 = vpack.c.b16 %v9806, %v9805
      %v9817 = vpack.c.b16 %v9808, %v9807
      %v9818 = vpack.c.b16 %v9810, %v9809
      %9827 = vmatpush.bf16.msra.mxu0 %v9818
      %9828 = vmatpush.bf16.msra.mxu0 %v9817
      %9829 = vmatpush.bf16.msra.mxu0 %v9816
      %9830 = vmatpush.bf16.msra.mxu0 %v9815
      %9831 = vmatpush.bf16.msra.mxu0 %v9814
      %9832 = vmatpush.bf16.msra.mxu0 %v9813
      %9833 = vmatpush.bf16.msra.mxu0 %v9812
      %9834 = vmatpush.bf16.msra.mxu0 %v9811
      %9835 = vmatmul.bf16.gmra.mxu0 %v9432
      %v9836 = vpop.f32.mrf.mxu0
      %v9837 = vadd.f32 %v9669, %v9836
      %v9838 = vpop.f32.mrf.mxu0
      %v9839 = vadd.f32 %v9671, %v9838
      %9840 = vmatmul.bf16.gmra.mxu0 %v9433
      %v9841 = vpop.f32.mrf.mxu0
      %v9842 = vadd.f32 %v9674, %v9841
      %v9843 = vpop.f32.mrf.mxu0
      %v9844 = vadd.f32 %v9676, %v9843
      %9845 = vmatmul.bf16.gmra.mxu0 %v9434
      %v9846 = vpop.f32.mrf.mxu0
      %v9847 = vadd.f32 %v9679, %v9846
      %v9848 = vpop.f32.mrf.mxu0
      %v9849 = vadd.f32 %v9681, %v9848
      %9850 = vmatmul.bf16.gmra.mxu0 %v9435
      %v9851 = vpop.f32.mrf.mxu0
      %v9852 = vadd.f32 %v9684, %v9851
      %v9853 = vpop.f32.mrf.mxu0
      %v9854 = vadd.f32 %v9686, %v9853
      %9855 = vmatmul.bf16.gmra.mxu0 %v9436
      %v9856 = vpop.f32.mrf.mxu0
      %v9857 = vadd.f32 %v9689, %v9856
      %v9858 = vpop.f32.mrf.mxu0
      %v9859 = vadd.f32 %v9691, %v9858
      %9860 = vmatmul.bf16.gmra.mxu0 %v9437
      %v9861 = vpop.f32.mrf.mxu0
      %v9862 = vadd.f32 %v9694, %v9861
      %v9863 = vpop.f32.mrf.mxu0
      %v9864 = vadd.f32 %v9696, %v9863
      %9865 = vmatmul.bf16.gmra.mxu0 %v9438
      %v9866 = vpop.f32.mrf.mxu0
      %v9867 = vadd.f32 %v9699, %v9866
      %v9868 = vpop.f32.mrf.mxu0
      %v9869 = vadd.f32 %v9701, %v9868
      %9870 = vmatmul.bf16.gmra.mxu0 %v9439
      %v9871 = vpop.f32.mrf.mxu0
      %v9872 = vadd.f32 %v9704, %v9871
      %v9873 = vpop.f32.mrf.mxu0
      %v9874 = vadd.f32 %v9706, %v9873
      %9875 = vmatmul.bf16.gmra.mxu0 %v9440
      %v9876 = vpop.f32.mrf.mxu0
      %v9877 = vadd.f32 %v9709, %v9876
      %v9878 = vpop.f32.mrf.mxu0
      %v9879 = vadd.f32 %v9711, %v9878
      %9880 = vmatmul.bf16.gmra.mxu0 %v9441
      %v9881 = vpop.f32.mrf.mxu0
      %v9882 = vadd.f32 %v9714, %v9881
      %v9883 = vpop.f32.mrf.mxu0
      %v9884 = vadd.f32 %v9716, %v9883
      %9885 = vmatmul.bf16.gmra.mxu0 %v9442
      %v9886 = vpop.f32.mrf.mxu0
      %v9887 = vadd.f32 %v9719, %v9886
      %v9888 = vpop.f32.mrf.mxu0
      %v9889 = vadd.f32 %v9721, %v9888
      %9890 = vmatmul.bf16.gmra.mxu0 %v9443
      %v9891 = vpop.f32.mrf.mxu0
      %v9892 = vadd.f32 %v9724, %v9891
      %v9893 = vpop.f32.mrf.mxu0
      %v9894 = vadd.f32 %v9726, %v9893
      %9895 = vmatmul.bf16.gmra.mxu0 %v9444
      %v9896 = vpop.f32.mrf.mxu0
      %v9897 = vadd.f32 %v9729, %v9896
      %v9898 = vpop.f32.mrf.mxu0
      %v9899 = vadd.f32 %v9731, %v9898
      %9900 = vmatmul.bf16.gmra.mxu0 %v9445
      %v9901 = vpop.f32.mrf.mxu0
      %v9902 = vadd.f32 %v9734, %v9901
      %v9903 = vpop.f32.mrf.mxu0
      %v9904 = vadd.f32 %v9736, %v9903
      %9905 = vmatmul.bf16.gmra.mxu0 %v9446
      %v9906 = vpop.f32.mrf.mxu0
      %v9907 = vadd.f32 %v9739, %v9906
      %v9908 = vpop.f32.mrf.mxu0
      %v9909 = vadd.f32 %v9741, %v9908
      %9910 = vmatmul.bf16.gmra.mxu0 %v9447
      %v9911 = vpop.f32.mrf.mxu0
      %v9912 = vadd.f32 %v9744, %v9911
      %v9913 = vpop.f32.mrf.mxu0
      %v9914 = vadd.f32 %v9746, %v9913
      %9915 = vmatmul.bf16.gmra.mxu0 %v9448
      %v9916 = vpop.f32.mrf.mxu0
      %v9917 = vadd.f32 %v9749, %v9916
      %v9918 = vpop.f32.mrf.mxu0
      %v9919 = vadd.f32 %v9751, %v9918
      %9920 = vmatmul.bf16.gmra.mxu0 %v9760
      %v9921 = vpop.f32.mrf.mxu0
      %v9922 = vadd.f32 %v9754, %v9921
      %v9923 = vpop.f32.mrf.mxu0
      %v9924 = vadd.f32 %v9756, %v9923
      %9925 = vdwg.mxu0
      %v9926 = vld [vmem:[#allocation3] sm:$0xe]
      %s9927 = scalar_lea.vmem %s3, 128
      %v9928 = vld [vmem:[%s9927] sm:$0xf]
      %v9929 = vld [vmem:[%s9927 + $0x4] sm:$0xf]
      %v9930 = vld [vmem:[%s9927 + $0x8] sm:$0xf]
      %v9931 = vld [vmem:[%s9927 + $0xc] sm:$0xf]
      %v9932 = vld [vmem:[%s9927 + $0x10] sm:$0xf]
      %v9933 = vld [vmem:[%s9927 + $0x14] sm:$0xf]
      %v9934 = vld [vmem:[%s9927 + $0x18] sm:$0xf]
      %v9935 = vld [vmem:[%s9927 + $0x1c] sm:$0xf]
      %v9936 = vld [vmem:[%s9927 + $0x20] sm:$0xf]
      %v9937 = vld [vmem:[%s9927 + $0x24] sm:$0xf]
      %v9938 = vld [vmem:[%s9927 + $0x28] sm:$0xf]
      %v9939 = vld [vmem:[%s9927 + $0x2c] sm:$0xf]
      %v9940 = vld [vmem:[%s9927 + $0x30] sm:$0xf]
      %v9941 = vld [vmem:[%s9927 + $0x34] sm:$0xf]
      %v9942 = vld [vmem:[%s9927 + $0x38] sm:$0xf]
      %v9943 = vld [vmem:[%s9927 + $0x3c] sm:$0xf]
      %v9945 = vunpack.c.l.b16 %v9926
      %v9946 = vpack.c.b16 %v9397, %v9945
      %v9947 = vrot.slane %v9946, 1
      %v9948 = vrot.slane %v9433, 1
      %v9949 = vsel %vm2450, %v9947, %v9948
      %v9950 = vrot.slane %v9434, 1
      %v9951 = vsel %vm2450, %v9948, %v9950
      %v9952 = vrot.slane %v9435, 1
      %v9953 = vsel %vm2450, %v9950, %v9952
      %v9954 = vrot.slane %v9436, 1
      %v9955 = vsel %vm2450, %v9952, %v9954
      %v9956 = vrot.slane %v9437, 1
      %v9957 = vsel %vm2450, %v9954, %v9956
      %v9958 = vrot.slane %v9438, 1
      %v9959 = vsel %vm2450, %v9956, %v9958
      %v9960 = vrot.slane %v9439, 1
      %v9961 = vsel %vm2450, %v9958, %v9960
      %v9962 = vrot.slane %v9440, 1
      %v9963 = vsel %vm2450, %v9960, %v9962
      %v9964 = vrot.slane %v9441, 1
      %v9965 = vsel %vm2450, %v9962, %v9964
      %v9966 = vrot.slane %v9442, 1
      %v9967 = vsel %vm2450, %v9964, %v9966
      %v9968 = vrot.slane %v9443, 1
      %v9969 = vsel %vm2450, %v9966, %v9968
      %v9970 = vrot.slane %v9444, 1
      %v9971 = vsel %vm2450, %v9968, %v9970
      %v9972 = vrot.slane %v9445, 1
      %v9973 = vsel %vm2450, %v9970, %v9972
      %v9974 = vrot.slane %v9446, 1
      %v9975 = vsel %vm2450, %v9972, %v9974
      %v9976 = vrot.slane %v9447, 1
      %v9977 = vsel %vm2450, %v9974, %v9976
      %v9978 = vrot.slane %v9448, 1
      %v9979 = vsel %vm2450, %v9976, %v9978
      %v9980 = vrot.slane %v9449, 1
      %v9981 = vsel %vm2450, %v9978, %v9980
      %v10016 = vunpack.c.l.b16 %v9928
      %v10017 = vunpack.c.l.b16 %v9929
      %v10018 = vunpack.c.l.b16 %v9930
      %v10019 = vunpack.c.l.b16 %v9931
      %v10020 = vunpack.c.l.b16 %v9932
      %v10021 = vunpack.c.l.b16 %v9933
      %v10022 = vunpack.c.l.b16 %v9934
      %v10023 = vunpack.c.l.b16 %v9935
      %v10024 = vunpack.c.l.b16 %v9936
      %v10025 = vunpack.c.l.b16 %v9937
      %v10026 = vunpack.c.l.b16 %v9938
      %v10027 = vunpack.c.l.b16 %v9939
      %v10028 = vunpack.c.l.b16 %v9940
      %v10029 = vunpack.c.l.b16 %v9941
      %v10030 = vunpack.c.l.b16 %v9942
      %v10031 = vunpack.c.l.b16 %v9943
      %v10032 = vpack.c.b16 %v10017, %v10016
      %v10033 = vpack.c.b16 %v10019, %v10018
      %v10034 = vpack.c.b16 %v10021, %v10020
      %v10035 = vpack.c.b16 %v10023, %v10022
      %v10036 = vpack.c.b16 %v10025, %v10024
      %v10037 = vpack.c.b16 %v10027, %v10026
      %v10038 = vpack.c.b16 %v10029, %v10028
      %v10039 = vpack.c.b16 %v10031, %v10030
      %10048 = vmatpush.bf16.msra.mxu0 %v10039
      %10049 = vmatpush.bf16.msra.mxu0 %v10038
      %10050 = vmatpush.bf16.msra.mxu0 %v10037
      %10051 = vmatpush.bf16.msra.mxu0 %v10036
      %10052 = vmatpush.bf16.msra.mxu0 %v10035
      %10053 = vmatpush.bf16.msra.mxu0 %v10034
      %10054 = vmatpush.bf16.msra.mxu0 %v10033
      %10055 = vmatpush.bf16.msra.mxu0 %v10032
      %10056 = vmatmul.bf16.gmra.mxu0 %v9949
      %v10057 = vpop.f32.mrf.mxu0
      %v10058 = vadd.f32 0.0, %v10057
      %v10059 = vpop.f32.mrf.mxu0
      %v10060 = vadd.f32 0.0, %v10059
      %10061 = vmatmul.bf16.gmra.mxu0 %v9951
      %v10062 = vpop.f32.mrf.mxu0
      %v10063 = vadd.f32 0.0, %v10062
      %v10064 = vpop.f32.mrf.mxu0
      %v10065 = vadd.f32 0.0, %v10064
      %10066 = vmatmul.bf16.gmra.mxu0 %v9953
      %v10067 = vpop.f32.mrf.mxu0
      %v10068 = vadd.f32 0.0, %v10067
      %v10069 = vpop.f32.mrf.mxu0
      %v10070 = vadd.f32 0.0, %v10069
      %10071 = vmatmul.bf16.gmra.mxu0 %v9955
      %v10072 = vpop.f32.mrf.mxu0
      %v10073 = vadd.f32 0.0, %v10072
      %v10074 = vpop.f32.mrf.mxu0
      %v10075 = vadd.f32 0.0, %v10074
      %10076 = vmatmul.bf16.gmra.mxu0 %v9957
      %v10077 = vpop.f32.mrf.mxu0
      %v10078 = vadd.f32 0.0, %v10077
      %v10079 = vpop.f32.mrf.mxu0
      %v10080 = vadd.f32 0.0, %v10079
      %10081 = vmatmul.bf16.gmra.mxu0 %v9959
      %v10082 = vpop.f32.mrf.mxu0
      %v10083 = vadd.f32 0.0, %v10082
      %v10084 = vpop.f32.mrf.mxu0
      %v10085 = vadd.f32 0.0, %v10084
      %10086 = vmatmul.bf16.gmra.mxu0 %v9961
      %v10087 = vpop.f32.mrf.mxu0
      %v10088 = vadd.f32 0.0, %v10087
      %v10089 = vpop.f32.mrf.mxu0
      %v10090 = vadd.f32 0.0, %v10089
      %10091 = vmatmul.bf16.gmra.mxu0 %v9963
      %v10092 = vpop.f32.mrf.mxu0
      %v10093 = vadd.f32 0.0, %v10092
      %v10094 = vpop.f32.mrf.mxu0
      %v10095 = vadd.f32 0.0, %v10094
      %10096 = vmatmul.bf16.gmra.mxu0 %v9965
      %v10097 = vpop.f32.mrf.mxu0
      %v10098 = vadd.f32 0.0, %v10097
      %v10099 = vpop.f32.mrf.mxu0
      %v10100 = vadd.f32 0.0, %v10099
      %10101 = vmatmul.bf16.gmra.mxu0 %v9967
      %v10102 = vpop.f32.mrf.mxu0
      %v10103 = vadd.f32 0.0, %v10102
      %v10104 = vpop.f32.mrf.mxu0
      %v10105 = vadd.f32 0.0, %v10104
      %10106 = vmatmul.bf16.gmra.mxu0 %v9969
      %v10107 = vpop.f32.mrf.mxu0
      %v10108 = vadd.f32 0.0, %v10107
      %v10109 = vpop.f32.mrf.mxu0
      %v10110 = vadd.f32 0.0, %v10109
      %10111 = vmatmul.bf16.gmra.mxu0 %v9971
      %v10112 = vpop.f32.mrf.mxu0
      %v10113 = vadd.f32 0.0, %v10112
      %v10114 = vpop.f32.mrf.mxu0
      %v10115 = vadd.f32 0.0, %v10114
      %10116 = vmatmul.bf16.gmra.mxu0 %v9973
      %v10117 = vpop.f32.mrf.mxu0
      %v10118 = vadd.f32 0.0, %v10117
      %v10119 = vpop.f32.mrf.mxu0
      %v10120 = vadd.f32 0.0, %v10119
      %10121 = vmatmul.bf16.gmra.mxu0 %v9975
      %v10122 = vpop.f32.mrf.mxu0
      %v10123 = vadd.f32 0.0, %v10122
      %v10124 = vpop.f32.mrf.mxu0
      %v10125 = vadd.f32 0.0, %v10124
      %10126 = vmatmul.bf16.gmra.mxu0 %v9977
      %v10127 = vpop.f32.mrf.mxu0
      %v10128 = vadd.f32 0.0, %v10127
      %v10129 = vpop.f32.mrf.mxu0
      %v10130 = vadd.f32 0.0, %v10129
      %10131 = vmatmul.bf16.gmra.mxu0 %v9979
      %v10132 = vpop.f32.mrf.mxu0
      %v10133 = vadd.f32 0.0, %v10132
      %v10134 = vpop.f32.mrf.mxu0
      %v10135 = vadd.f32 0.0, %v10134
      %10136 = vmatmul.bf16.gmra.mxu0 %v9981
      %v10137 = vpop.f32.mrf.mxu0
      %v10138 = vadd.f32 0.0, %v10137
      %v10139 = vpop.f32.mrf.mxu0
      %v10140 = vadd.f32 0.0, %v10139
      %10141 = vmatmul.bf16.gmra.mxu0 %v9980
      %v10142 = vpop.f32.mrf.mxu0
      %v10143 = vadd.f32 0.0, %v10142
      %v10144 = vpop.f32.mrf.mxu0
      %v10145 = vadd.f32 0.0, %v10144
      %10146 = vdwg.mxu0
      %v10147 = vadd.f32 %v9837, %v10058
      %v10148 = vadd.f32 %v9839, %v10060
      %v10149 = vadd.f32 %v9842, %v10063
      %v10150 = vadd.f32 %v9844, %v10065
      %v10151 = vadd.f32 %v9847, %v10068
      %v10152 = vadd.f32 %v9849, %v10070
      %v10153 = vadd.f32 %v9852, %v10073
      %v10154 = vadd.f32 %v9854, %v10075
      %v10155 = vadd.f32 %v9857, %v10078
      %v10156 = vadd.f32 %v9859, %v10080
      %v10157 = vadd.f32 %v9862, %v10083
      %v10158 = vadd.f32 %v9864, %v10085
      %v10159 = vadd.f32 %v9867, %v10088
      %v10160 = vadd.f32 %v9869, %v10090
      %v10161 = vadd.f32 %v9872, %v10093
      %v10162 = vadd.f32 %v9874, %v10095
      %v10163 = vadd.f32 %v9877, %v10098
      %v10164 = vadd.f32 %v9879, %v10100
      %v10165 = vadd.f32 %v9882, %v10103
      %v10166 = vadd.f32 %v9884, %v10105
      %v10167 = vadd.f32 %v9887, %v10108
      %v10168 = vadd.f32 %v9889, %v10110
      %v10169 = vadd.f32 %v9892, %v10113
      %v10170 = vadd.f32 %v9894, %v10115
      %v10171 = vadd.f32 %v9897, %v10118
      %v10172 = vadd.f32 %v9899, %v10120
      %v10173 = vadd.f32 %v9902, %v10123
      %v10174 = vadd.f32 %v9904, %v10125
      %v10175 = vadd.f32 %v9907, %v10128
      %v10176 = vadd.f32 %v9909, %v10130
      %v10177 = vadd.f32 %v9912, %v10133
      %v10178 = vadd.f32 %v9914, %v10135
      %v10179 = vadd.f32 %v9917, %v10138
      %v10180 = vadd.f32 %v9919, %v10140
      %v10181 = vadd.f32 %v9922, %v10143
      %v10182 = vadd.f32 %v9924, %v10145
      %v10183 = vld [vmem:[#allocation3 + $0x8] sm:$0xe]
      %v10184 = vld [vmem:[#allocation3 + $0xc] sm:$0xf]
      %v10185 = vld [vmem:[#allocation3 + $0x10] sm:$0xf]
      %v10186 = vld [vmem:[#allocation3 + $0x14] sm:$0xf]
      %v10187 = vld [vmem:[#allocation3 + $0x18] sm:$0xf]
      %v10188 = vld [vmem:[#allocation3 + $0x1c] sm:$0xf]
      %v10189 = vld [vmem:[#allocation3 + $0x20] sm:$0xf]
      %v10190 = vld [vmem:[#allocation3 + $0x24] sm:$0xf]
      %v10191 = vld [vmem:[#allocation3 + $0x28] sm:$0xf]
      %v10192 = vld [vmem:[#allocation3 + $0x2c] sm:$0xf]
      %v10193 = vld [vmem:[#allocation3 + $0x30] sm:$0xf]
      %v10194 = vld [vmem:[#allocation3 + $0x34] sm:$0xf]
      %v10195 = vld [vmem:[#allocation3 + $0x38] sm:$0xf]
      %v10196 = vld [vmem:[#allocation3 + $0x3c] sm:$0xf]
      %v10197 = vld [vmem:[#allocation3 + $0x40] sm:$0xf]
      %v10198 = vld [vmem:[#allocation3 + $0x44] sm:$0xf]
      %v10199 = vld [vmem:[#allocation3 + $0x48] sm:$0xf]
      %v10200 = vld [vmem:[#allocation3 + $0x4c] sm:$0xf]
      %v10201 = vld [vmem:[#allocation3 + $0x50] sm:$0xf]
      %v10202 = vld [vmem:[#allocation3 + $0x54] sm:$0xf]
      %v10203 = vld [vmem:[#allocation3 + $0x58] sm:$0xf]
      %v10204 = vld [vmem:[#allocation3 + $0x5c] sm:$0xf]
      %v10205 = vld [vmem:[#allocation3 + $0x60] sm:$0xf]
      %v10206 = vld [vmem:[#allocation3 + $0x64] sm:$0xf]
      %v10207 = vld [vmem:[#allocation3 + $0x68] sm:$0xf]
      %v10208 = vld [vmem:[#allocation3 + $0x6c] sm:$0xf]
      %v10209 = vld [vmem:[#allocation3 + $0x70] sm:$0xf]
      %v10210 = vld [vmem:[#allocation3 + $0x74] sm:$0xf]
      %v10211 = vld [vmem:[#allocation3 + $0x78] sm:$0xf]
      %v10212 = vld [vmem:[#allocation3 + $0x7c] sm:$0xf]
      %v10213 = vld [vmem:[#allocation3 + $0x80] sm:$0xf]
      %v10214 = vld [vmem:[#allocation3 + $0x84] sm:$0xf]
      %v10215 = vld [vmem:[#allocation3 + $0x88] sm:$0xf]
      %v10216 = vld [vmem:[#allocation3 + $0x8c] sm:$0xf]
      %v10217 = vld [vmem:[#allocation3 + $0x90] sm:$0xf]
      %v10218 = vld [vmem:[#allocation3 + $0x94] sm:$0xf]
      %s10219 = scalar_lea.vmem %s3, 192
      %v10220 = vld [vmem:[%s10219] sm:$0xf]
      %v10221 = vld [vmem:[%s10219 + $0x4] sm:$0xf]
      %v10222 = vld [vmem:[%s10219 + $0x8] sm:$0xf]
      %v10223 = vld [vmem:[%s10219 + $0xc] sm:$0xf]
      %v10224 = vld [vmem:[%s10219 + $0x10] sm:$0xf]
      %v10225 = vld [vmem:[%s10219 + $0x14] sm:$0xf]
      %v10226 = vld [vmem:[%s10219 + $0x18] sm:$0xf]
      %v10227 = vld [vmem:[%s10219 + $0x1c] sm:$0xf]
      %v10228 = vld [vmem:[%s10219 + $0x20] sm:$0xf]
      %v10229 = vld [vmem:[%s10219 + $0x24] sm:$0xf]
      %v10230 = vld [vmem:[%s10219 + $0x28] sm:$0xf]
      %v10231 = vld [vmem:[%s10219 + $0x2c] sm:$0xf]
      %v10232 = vld [vmem:[%s10219 + $0x30] sm:$0xf]
      %v10233 = vld [vmem:[%s10219 + $0x34] sm:$0xf]
      %v10234 = vld [vmem:[%s10219 + $0x38] sm:$0xf]
      %v10235 = vld [vmem:[%s10219 + $0x3c] sm:$0xf]
      %v10272 = vunpack.c.l.b16 %v10183
      %v10273 = vunpack.c.l.b16 %v10184
      %v10274 = vunpack.c.l.b16 %v10185
      %v10275 = vunpack.c.l.b16 %v10186
      %v10276 = vunpack.c.l.b16 %v10187
      %v10277 = vunpack.c.l.b16 %v10188
      %v10278 = vunpack.c.l.b16 %v10189
      %v10279 = vunpack.c.l.b16 %v10190
      %v10280 = vunpack.c.l.b16 %v10191
      %v10281 = vunpack.c.l.b16 %v10192
      %v10282 = vunpack.c.l.b16 %v10193
      %v10283 = vunpack.c.l.b16 %v10194
      %v10284 = vunpack.c.l.b16 %v10195
      %v10285 = vunpack.c.l.b16 %v10196
      %v10286 = vunpack.c.l.b16 %v10197
      %v10287 = vunpack.c.l.b16 %v10198
      %v10288 = vunpack.c.l.b16 %v10199
      %v10289 = vunpack.c.l.b16 %v10200
      %v10290 = vunpack.c.l.b16 %v10201
      %v10291 = vunpack.c.l.b16 %v10202
      %v10292 = vunpack.c.l.b16 %v10203
      %v10293 = vunpack.c.l.b16 %v10204
      %v10294 = vunpack.c.l.b16 %v10205
      %v10295 = vunpack.c.l.b16 %v10206
      %v10296 = vunpack.c.l.b16 %v10207
      %v10297 = vunpack.c.l.b16 %v10208
      %v10298 = vunpack.c.l.b16 %v10209
      %v10299 = vunpack.c.l.b16 %v10210
      %v10300 = vunpack.c.l.b16 %v10211
      %v10301 = vunpack.c.l.b16 %v10212
      %v10302 = vunpack.c.l.b16 %v10213
      %v10303 = vunpack.c.l.b16 %v10214
      %v10304 = vunpack.c.l.b16 %v10215
      %v10305 = vunpack.c.l.b16 %v10216
      %v10306 = vunpack.c.l.b16 %v10217
      %v10307 = vunpack.c.l.b16 %v10218
      %v10308 = vpack.c.b16 %v10273, %v10272
      %v10309 = vpack.c.b16 %v10275, %v10274
      %v10310 = vpack.c.b16 %v10277, %v10276
      %v10311 = vpack.c.b16 %v10279, %v10278
      %v10312 = vpack.c.b16 %v10281, %v10280
      %v10313 = vpack.c.b16 %v10283, %v10282
      %v10314 = vpack.c.b16 %v10285, %v10284
      %v10315 = vpack.c.b16 %v10287, %v10286
      %v10316 = vpack.c.b16 %v10289, %v10288
      %v10317 = vpack.c.b16 %v10291, %v10290
      %v10318 = vpack.c.b16 %v10293, %v10292
      %v10319 = vpack.c.b16 %v10295, %v10294
      %v10320 = vpack.c.b16 %v10297, %v10296
      %v10321 = vpack.c.b16 %v10299, %v10298
      %v10322 = vpack.c.b16 %v10301, %v10300
      %v10323 = vpack.c.b16 %v10303, %v10302
      %v10324 = vpack.c.b16 %v10305, %v10304
      %v10325 = vpack.c.b16 %v10307, %v10306
      %v10326 = vrot.slane %v10308, 1
      %v10327 = vrot.slane %v10309, 1
      %v10328 = vsel %vm2450, %v10326, %v10327
      %v10329 = vrot.slane %v10310, 1
      %v10330 = vsel %vm2450, %v10327, %v10329
      %v10331 = vrot.slane %v10311, 1
      %v10332 = vsel %vm2450, %v10329, %v10331
      %v10333 = vrot.slane %v10312, 1
      %v10334 = vsel %vm2450, %v10331, %v10333
      %v10335 = vrot.slane %v10313, 1
      %v10336 = vsel %vm2450, %v10333, %v10335
      %v10337 = vrot.slane %v10314, 1
      %v10338 = vsel %vm2450, %v10335, %v10337
      %v10339 = vrot.slane %v10315, 1
      %v10340 = vsel %vm2450, %v10337, %v10339
      %v10341 = vrot.slane %v10316, 1
      %v10342 = vsel %vm2450, %v10339, %v10341
      %v10343 = vrot.slane %v10317, 1
      %v10344 = vsel %vm2450, %v10341, %v10343
      %v10345 = vrot.slane %v10318, 1
      %v10346 = vsel %vm2450, %v10343, %v10345
      %v10347 = vrot.slane %v10319, 1
      %v10348 = vsel %vm2450, %v10345, %v10347
      %v10349 = vrot.slane %v10320, 1
      %v10350 = vsel %vm2450, %v10347, %v10349
      %v10351 = vrot.slane %v10321, 1
      %v10352 = vsel %vm2450, %v10349, %v10351
      %v10353 = vrot.slane %v10322, 1
      %v10354 = vsel %vm2450, %v10351, %v10353
      %v10355 = vrot.slane %v10323, 1
      %v10356 = vsel %vm2450, %v10353, %v10355
      %v10357 = vrot.slane %v10324, 1
      %v10358 = vsel %vm2450, %v10355, %v10357
      %v10359 = vrot.slane %v10325, 1
      %v10360 = vsel %vm2450, %v10357, %v10359
      %v10395 = vunpack.c.l.b16 %v10220
      %v10396 = vunpack.c.l.b16 %v10221
      %v10397 = vunpack.c.l.b16 %v10222
      %v10398 = vunpack.c.l.b16 %v10223
      %v10399 = vunpack.c.l.b16 %v10224
      %v10400 = vunpack.c.l.b16 %v10225
      %v10401 = vunpack.c.l.b16 %v10226
      %v10402 = vunpack.c.l.b16 %v10227
      %v10403 = vunpack.c.l.b16 %v10228
      %v10404 = vunpack.c.l.b16 %v10229
      %v10405 = vunpack.c.l.b16 %v10230
      %v10406 = vunpack.c.l.b16 %v10231
      %v10407 = vunpack.c.l.b16 %v10232
      %v10408 = vunpack.c.l.b16 %v10233
      %v10409 = vunpack.c.l.b16 %v10234
      %v10410 = vunpack.c.l.b16 %v10235
      %v10411 = vpack.c.b16 %v10396, %v10395
      %v10412 = vpack.c.b16 %v10398, %v10397
      %v10413 = vpack.c.b16 %v10400, %v10399
      %v10414 = vpack.c.b16 %v10402, %v10401
      %v10415 = vpack.c.b16 %v10404, %v10403
      %v10416 = vpack.c.b16 %v10406, %v10405
      %v10417 = vpack.c.b16 %v10408, %v10407
      %v10418 = vpack.c.b16 %v10410, %v10409
      %10427 = vmatpush.bf16.msra.mxu0 %v10418
      %10428 = vmatpush.bf16.msra.mxu0 %v10417
      %10429 = vmatpush.bf16.msra.mxu0 %v10416
      %10430 = vmatpush.bf16.msra.mxu0 %v10415
      %10431 = vmatpush.bf16.msra.mxu0 %v10414
      %10432 = vmatpush.bf16.msra.mxu0 %v10413
      %10433 = vmatpush.bf16.msra.mxu0 %v10412
      %10434 = vmatpush.bf16.msra.mxu0 %v10411
      %10435 = vmatmul.bf16.gmra.mxu0 %v10328
      %v10436 = vpop.f32.mrf.mxu0
      %v10437 = vadd.f32 0.0, %v10436
      %v10438 = vpop.f32.mrf.mxu0
      %v10439 = vadd.f32 0.0, %v10438
      %10440 = vmatmul.bf16.gmra.mxu0 %v10330
      %v10441 = vpop.f32.mrf.mxu0
      %v10442 = vadd.f32 0.0, %v10441
      %v10443 = vpop.f32.mrf.mxu0
      %v10444 = vadd.f32 0.0, %v10443
      %10445 = vmatmul.bf16.gmra.mxu0 %v10332
      %v10446 = vpop.f32.mrf.mxu0
      %v10447 = vadd.f32 0.0, %v10446
      %v10448 = vpop.f32.mrf.mxu0
      %v10449 = vadd.f32 0.0, %v10448
      %10450 = vmatmul.bf16.gmra.mxu0 %v10334
      %v10451 = vpop.f32.mrf.mxu0
      %v10452 = vadd.f32 0.0, %v10451
      %v10453 = vpop.f32.mrf.mxu0
      %v10454 = vadd.f32 0.0, %v10453
      %10455 = vmatmul.bf16.gmra.mxu0 %v10336
      %v10456 = vpop.f32.mrf.mxu0
      %v10457 = vadd.f32 0.0, %v10456
      %v10458 = vpop.f32.mrf.mxu0
      %v10459 = vadd.f32 0.0, %v10458
      %10460 = vmatmul.bf16.gmra.mxu0 %v10338
      %v10461 = vpop.f32.mrf.mxu0
      %v10462 = vadd.f32 0.0, %v10461
      %v10463 = vpop.f32.mrf.mxu0
      %v10464 = vadd.f32 0.0, %v10463
      %10465 = vmatmul.bf16.gmra.mxu0 %v10340
      %v10466 = vpop.f32.mrf.mxu0
      %v10467 = vadd.f32 0.0, %v10466
      %v10468 = vpop.f32.mrf.mxu0
      %v10469 = vadd.f32 0.0, %v10468
      %10470 = vmatmul.bf16.gmra.mxu0 %v10342
      %v10471 = vpop.f32.mrf.mxu0
      %v10472 = vadd.f32 0.0, %v10471
      %v10473 = vpop.f32.mrf.mxu0
      %v10474 = vadd.f32 0.0, %v10473
      %10475 = vmatmul.bf16.gmra.mxu0 %v10344
      %v10476 = vpop.f32.mrf.mxu0
      %v10477 = vadd.f32 0.0, %v10476
      %v10478 = vpop.f32.mrf.mxu0
      %v10479 = vadd.f32 0.0, %v10478
      %10480 = vmatmul.bf16.gmra.mxu0 %v10346
      %v10481 = vpop.f32.mrf.mxu0
      %v10482 = vadd.f32 0.0, %v10481
      %v10483 = vpop.f32.mrf.mxu0
      %v10484 = vadd.f32 0.0, %v10483
      %10485 = vmatmul.bf16.gmra.mxu0 %v10348
      %v10486 = vpop.f32.mrf.mxu0
      %v10487 = vadd.f32 0.0, %v10486
      %v10488 = vpop.f32.mrf.mxu0
      %v10489 = vadd.f32 0.0, %v10488
      %10490 = vmatmul.bf16.gmra.mxu0 %v10350
      %v10491 = vpop.f32.mrf.mxu0
      %v10492 = vadd.f32 0.0, %v10491
      %v10493 = vpop.f32.mrf.mxu0
      %v10494 = vadd.f32 0.0, %v10493
      %10495 = vmatmul.bf16.gmra.mxu0 %v10352
      %v10496 = vpop.f32.mrf.mxu0
      %v10497 = vadd.f32 0.0, %v10496
      %v10498 = vpop.f32.mrf.mxu0
      %v10499 = vadd.f32 0.0, %v10498
      %10500 = vmatmul.bf16.gmra.mxu0 %v10354
      %v10501 = vpop.f32.mrf.mxu0
      %v10502 = vadd.f32 0.0, %v10501
      %v10503 = vpop.f32.mrf.mxu0
      %v10504 = vadd.f32 0.0, %v10503
      %10505 = vmatmul.bf16.gmra.mxu0 %v10356
      %v10506 = vpop.f32.mrf.mxu0
      %v10507 = vadd.f32 0.0, %v10506
      %v10508 = vpop.f32.mrf.mxu0
      %v10509 = vadd.f32 0.0, %v10508
      %10510 = vmatmul.bf16.gmra.mxu0 %v10358
      %v10511 = vpop.f32.mrf.mxu0
      %v10512 = vadd.f32 0.0, %v10511
      %v10513 = vpop.f32.mrf.mxu0
      %v10514 = vadd.f32 0.0, %v10513
      %10515 = vmatmul.bf16.gmra.mxu0 %v10360
      %v10516 = vpop.f32.mrf.mxu0
      %v10517 = vadd.f32 0.0, %v10516
      %v10518 = vpop.f32.mrf.mxu0
      %v10519 = vadd.f32 0.0, %v10518
      %10520 = vmatmul.bf16.gmra.mxu0 %v10359
      %v10521 = vpop.f32.mrf.mxu0
      %v10522 = vadd.f32 0.0, %v10521
      %v10523 = vpop.f32.mrf.mxu0
      %v10524 = vadd.f32 0.0, %v10523
      %10525 = vdwg.mxu0
      %v10526 = vadd.f32 %v10147, %v10437
      %v10527 = vadd.f32 %v10148, %v10439
      %v10528 = vadd.f32 %v10149, %v10442
      %v10529 = vadd.f32 %v10150, %v10444
      %v10530 = vadd.f32 %v10151, %v10447
      %v10531 = vadd.f32 %v10152, %v10449
      %v10532 = vadd.f32 %v10153, %v10452
      %v10533 = vadd.f32 %v10154, %v10454
      %v10534 = vadd.f32 %v10155, %v10457
      %v10535 = vadd.f32 %v10156, %v10459
      %v10536 = vadd.f32 %v10157, %v10462
      %v10537 = vadd.f32 %v10158, %v10464
      %v10538 = vadd.f32 %v10159, %v10467
      %v10539 = vadd.f32 %v10160, %v10469
      %v10540 = vadd.f32 %v10161, %v10472
      %v10541 = vadd.f32 %v10162, %v10474
      %v10542 = vadd.f32 %v10163, %v10477
      %v10543 = vadd.f32 %v10164, %v10479
      %v10544 = vadd.f32 %v10165, %v10482
      %v10545 = vadd.f32 %v10166, %v10484
      %v10546 = vadd.f32 %v10167, %v10487
      %v10547 = vadd.f32 %v10168, %v10489
      %v10548 = vadd.f32 %v10169, %v10492
      %v10549 = vadd.f32 %v10170, %v10494
      %v10550 = vadd.f32 %v10171, %v10497
      %v10551 = vadd.f32 %v10172, %v10499
      %v10552 = vadd.f32 %v10173, %v10502
      %v10553 = vadd.f32 %v10174, %v10504
      %v10554 = vadd.f32 %v10175, %v10507
      %v10555 = vadd.f32 %v10176, %v10509
      %v10556 = vadd.f32 %v10177, %v10512
      %v10557 = vadd.f32 %v10178, %v10514
      %v10558 = vadd.f32 %v10179, %v10517
      %v10559 = vadd.f32 %v10180, %v10519
      %v10560 = vadd.f32 %v10181, %v10522
      %v10561 = vadd.f32 %v10182, %v10524
      %v10562 = vld [vmem:[#allocation3 + $0x8] sm:$0xe]
      %v10563 = vld [vmem:[#allocation3 + $0xc] sm:$0xf]
      %v10564 = vld [vmem:[#allocation3 + $0x10] sm:$0xf]
      %v10565 = vld [vmem:[#allocation3 + $0x14] sm:$0xf]
      %v10566 = vld [vmem:[#allocation3 + $0x18] sm:$0xf]
      %v10567 = vld [vmem:[#allocation3 + $0x1c] sm:$0xf]
      %v10568 = vld [vmem:[#allocation3 + $0x20] sm:$0xf]
      %v10569 = vld [vmem:[#allocation3 + $0x24] sm:$0xf]
      %v10570 = vld [vmem:[#allocation3 + $0x28] sm:$0xf]
      %v10571 = vld [vmem:[#allocation3 + $0x2c] sm:$0xf]
      %v10572 = vld [vmem:[#allocation3 + $0x30] sm:$0xf]
      %v10573 = vld [vmem:[#allocation3 + $0x34] sm:$0xf]
      %v10574 = vld [vmem:[#allocation3 + $0x38] sm:$0xf]
      %v10575 = vld [vmem:[#allocation3 + $0x3c] sm:$0xf]
      %v10576 = vld [vmem:[#allocation3 + $0x40] sm:$0xf]
      %v10577 = vld [vmem:[#allocation3 + $0x44] sm:$0xf]
      %v10578 = vld [vmem:[#allocation3 + $0x48] sm:$0xf]
      %v10579 = vld [vmem:[#allocation3 + $0x4c] sm:$0xf]
      %v10580 = vld [vmem:[#allocation3 + $0x50] sm:$0xf]
      %v10581 = vld [vmem:[#allocation3 + $0x54] sm:$0xf]
      %v10582 = vld [vmem:[#allocation3 + $0x58] sm:$0xf]
      %v10583 = vld [vmem:[#allocation3 + $0x5c] sm:$0xf]
      %v10584 = vld [vmem:[#allocation3 + $0x60] sm:$0xf]
      %v10585 = vld [vmem:[#allocation3 + $0x64] sm:$0xf]
      %v10586 = vld [vmem:[#allocation3 + $0x68] sm:$0xf]
      %v10587 = vld [vmem:[#allocation3 + $0x6c] sm:$0xf]
      %v10588 = vld [vmem:[#allocation3 + $0x70] sm:$0xf]
      %v10589 = vld [vmem:[#allocation3 + $0x74] sm:$0xf]
      %v10590 = vld [vmem:[#allocation3 + $0x78] sm:$0xf]
      %v10591 = vld [vmem:[#allocation3 + $0x7c] sm:$0xf]
      %v10592 = vld [vmem:[#allocation3 + $0x80] sm:$0xf]
      %v10593 = vld [vmem:[#allocation3 + $0x84] sm:$0xf]
      %v10594 = vld [vmem:[#allocation3 + $0x88] sm:$0xf]
      %v10595 = vld [vmem:[#allocation3 + $0x8c] sm:$0xf]
      %v10596 = vld [vmem:[#allocation3 + $0x90] sm:$0xf]
      %v10597 = vld [vmem:[#allocation3 + $0x94] sm:$0xf]
      %v10598 = vld [vmem:[#allocation3 + $0x98] sm:$0x1]
      %s10599 = scalar_lea.vmem %s3, 256
      %v10600 = vld [vmem:[%s10599] sm:$0xf]
      %v10601 = vld [vmem:[%s10599 + $0x4] sm:$0xf]
      %v10602 = vld [vmem:[%s10599 + $0x8] sm:$0xf]
      %v10603 = vld [vmem:[%s10599 + $0xc] sm:$0xf]
      %v10604 = vld [vmem:[%s10599 + $0x10] sm:$0xf]
      %v10605 = vld [vmem:[%s10599 + $0x14] sm:$0xf]
      %v10606 = vld [vmem:[%s10599 + $0x18] sm:$0xf]
      %v10607 = vld [vmem:[%s10599 + $0x1c] sm:$0xf]
      %v10608 = vld [vmem:[%s10599 + $0x20] sm:$0xf]
      %v10609 = vld [vmem:[%s10599 + $0x24] sm:$0xf]
      %v10610 = vld [vmem:[%s10599 + $0x28] sm:$0xf]
      %v10611 = vld [vmem:[%s10599 + $0x2c] sm:$0xf]
      %v10612 = vld [vmem:[%s10599 + $0x30] sm:$0xf]
      %v10613 = vld [vmem:[%s10599 + $0x34] sm:$0xf]
      %v10614 = vld [vmem:[%s10599 + $0x38] sm:$0xf]
      %v10615 = vld [vmem:[%s10599 + $0x3c] sm:$0xf]
      %v10653 = vunpack.c.l.b16 %v10562
      %v10654 = vunpack.c.l.b16 %v10563
      %v10655 = vunpack.c.l.b16 %v10564
      %v10656 = vunpack.c.l.b16 %v10565
      %v10657 = vunpack.c.l.b16 %v10566
      %v10658 = vunpack.c.l.b16 %v10567
      %v10659 = vunpack.c.l.b16 %v10568
      %v10660 = vunpack.c.l.b16 %v10569
      %v10661 = vunpack.c.l.b16 %v10570
      %v10662 = vunpack.c.l.b16 %v10571
      %v10663 = vunpack.c.l.b16 %v10572
      %v10664 = vunpack.c.l.b16 %v10573
      %v10665 = vunpack.c.l.b16 %v10574
      %v10666 = vunpack.c.l.b16 %v10575
      %v10667 = vunpack.c.l.b16 %v10576
      %v10668 = vunpack.c.l.b16 %v10577
      %v10669 = vunpack.c.l.b16 %v10578
      %v10670 = vunpack.c.l.b16 %v10579
      %v10671 = vunpack.c.l.b16 %v10580
      %v10672 = vunpack.c.l.b16 %v10581
      %v10673 = vunpack.c.l.b16 %v10582
      %v10674 = vunpack.c.l.b16 %v10583
      %v10675 = vunpack.c.l.b16 %v10584
      %v10676 = vunpack.c.l.b16 %v10585
      %v10677 = vunpack.c.l.b16 %v10586
      %v10678 = vunpack.c.l.b16 %v10587
      %v10679 = vunpack.c.l.b16 %v10588
      %v10680 = vunpack.c.l.b16 %v10589
      %v10681 = vunpack.c.l.b16 %v10590
      %v10682 = vunpack.c.l.b16 %v10591
      %v10683 = vunpack.c.l.b16 %v10592
      %v10684 = vunpack.c.l.b16 %v10593
      %v10685 = vunpack.c.l.b16 %v10594
      %v10686 = vunpack.c.l.b16 %v10595
      %v10687 = vunpack.c.l.b16 %v10596
      %v10688 = vunpack.c.l.b16 %v10597
      %v10689 = vunpack.c.l.b16 %v10598
      %v10690 = vpack.c.b16 %v10654, %v10653
      %v10691 = vpack.c.b16 %v10656, %v10655
      %v10692 = vpack.c.b16 %v10658, %v10657
      %v10693 = vpack.c.b16 %v10660, %v10659
      %v10694 = vpack.c.b16 %v10662, %v10661
      %v10695 = vpack.c.b16 %v10664, %v10663
      %v10696 = vpack.c.b16 %v10666, %v10665
      %v10697 = vpack.c.b16 %v10668, %v10667
      %v10698 = vpack.c.b16 %v10670, %v10669
      %v10699 = vpack.c.b16 %v10672, %v10671
      %v10700 = vpack.c.b16 %v10674, %v10673
      %v10701 = vpack.c.b16 %v10676, %v10675
      %v10702 = vpack.c.b16 %v10678, %v10677
      %v10703 = vpack.c.b16 %v10680, %v10679
      %v10704 = vpack.c.b16 %v10682, %v10681
      %v10705 = vpack.c.b16 %v10684, %v10683
      %v10706 = vpack.c.b16 %v10686, %v10685
      %v10707 = vpack.c.b16 %v10688, %v10687
      %v10708 = vpack.c.b16 %v10689, %v10689
      %v10710 = vshrl.u32 %v10690, 16
      %v10712 = vrot.slane %v10710, 1
      %v10713 = vshll.u32 %v10690, 16
      %v10715 = vrot.slane %v10713, 2
      %v10716 = vor.u32 %v10712, %v10715
      %v10718 = vshrl.u32 %v10691, 16
      %v10720 = vrot.slane %v10718, 1
      %v10721 = vshll.u32 %v10691, 16
      %v10723 = vrot.slane %v10721, 2
      %v10724 = vor.u32 %v10720, %v10723
      %v10725 = vsel %vm3213, %v10716, %v10724
      %v10727 = vshrl.u32 %v10692, 16
      %v10729 = vrot.slane %v10727, 1
      %v10730 = vshll.u32 %v10692, 16
      %v10732 = vrot.slane %v10730, 2
      %v10733 = vor.u32 %v10729, %v10732
      %v10734 = vsel %vm3213, %v10724, %v10733
      %v10736 = vshrl.u32 %v10693, 16
      %v10738 = vrot.slane %v10736, 1
      %v10739 = vshll.u32 %v10693, 16
      %v10741 = vrot.slane %v10739, 2
      %v10742 = vor.u32 %v10738, %v10741
      %v10743 = vsel %vm3213, %v10733, %v10742
      %v10745 = vshrl.u32 %v10694, 16
      %v10747 = vrot.slane %v10745, 1
      %v10748 = vshll.u32 %v10694, 16
      %v10750 = vrot.slane %v10748, 2
      %v10751 = vor.u32 %v10747, %v10750
      %v10752 = vsel %vm3213, %v10742, %v10751
      %v10754 = vshrl.u32 %v10695, 16
      %v10756 = vrot.slane %v10754, 1
      %v10757 = vshll.u32 %v10695, 16
      %v10759 = vrot.slane %v10757, 2
      %v10760 = vor.u32 %v10756, %v10759
      %v10761 = vsel %vm3213, %v10751, %v10760
      %v10763 = vshrl.u32 %v10696, 16
      %v10765 = vrot.slane %v10763, 1
      %v10766 = vshll.u32 %v10696, 16
      %v10768 = vrot.slane %v10766, 2
      %v10769 = vor.u32 %v10765, %v10768
      %v10770 = vsel %vm3213, %v10760, %v10769
      %v10772 = vshrl.u32 %v10697, 16
      %v10774 = vrot.slane %v10772, 1
      %v10775 = vshll.u32 %v10697, 16
      %v10777 = vrot.slane %v10775, 2
      %v10778 = vor.u32 %v10774, %v10777
      %v10779 = vsel %vm3213, %v10769, %v10778
      %v10781 = vshrl.u32 %v10698, 16
      %v10783 = vrot.slane %v10781, 1
      %v10784 = vshll.u32 %v10698, 16
      %v10786 = vrot.slane %v10784, 2
      %v10787 = vor.u32 %v10783, %v10786
      %v10788 = vsel %vm3213, %v10778, %v10787
      %v10790 = vshrl.u32 %v10699, 16
      %v10792 = vrot.slane %v10790, 1
      %v10793 = vshll.u32 %v10699, 16
      %v10795 = vrot.slane %v10793, 2
      %v10796 = vor.u32 %v10792, %v10795
      %v10797 = vsel %vm3213, %v10787, %v10796
      %v10799 = vshrl.u32 %v10700, 16
      %v10801 = vrot.slane %v10799, 1
      %v10802 = vshll.u32 %v10700, 16
      %v10804 = vrot.slane %v10802, 2
      %v10805 = vor.u32 %v10801, %v10804
      %v10806 = vsel %vm3213, %v10796, %v10805
      %v10808 = vshrl.u32 %v10701, 16
      %v10810 = vrot.slane %v10808, 1
      %v10811 = vshll.u32 %v10701, 16
      %v10813 = vrot.slane %v10811, 2
      %v10814 = vor.u32 %v10810, %v10813
      %v10815 = vsel %vm3213, %v10805, %v10814
      %v10817 = vshrl.u32 %v10702, 16
      %v10819 = vrot.slane %v10817, 1
      %v10820 = vshll.u32 %v10702, 16
      %v10822 = vrot.slane %v10820, 2
      %v10823 = vor.u32 %v10819, %v10822
      %v10824 = vsel %vm3213, %v10814, %v10823
      %v10826 = vshrl.u32 %v10703, 16
      %v10828 = vrot.slane %v10826, 1
      %v10829 = vshll.u32 %v10703, 16
      %v10831 = vrot.slane %v10829, 2
      %v10832 = vor.u32 %v10828, %v10831
      %v10833 = vsel %vm3213, %v10823, %v10832
      %v10835 = vshrl.u32 %v10704, 16
      %v10837 = vrot.slane %v10835, 1
      %v10838 = vshll.u32 %v10704, 16
      %v10840 = vrot.slane %v10838, 2
      %v10841 = vor.u32 %v10837, %v10840
      %v10842 = vsel %vm3213, %v10832, %v10841
      %v10844 = vshrl.u32 %v10705, 16
      %v10846 = vrot.slane %v10844, 1
      %v10847 = vshll.u32 %v10705, 16
      %v10849 = vrot.slane %v10847, 2
      %v10850 = vor.u32 %v10846, %v10849
      %v10851 = vsel %vm3213, %v10841, %v10850
      %v10853 = vshrl.u32 %v10706, 16
      %v10855 = vrot.slane %v10853, 1
      %v10856 = vshll.u32 %v10706, 16
      %v10858 = vrot.slane %v10856, 2
      %v10859 = vor.u32 %v10855, %v10858
      %v10860 = vsel %vm3213, %v10850, %v10859
      %v10862 = vshrl.u32 %v10707, 16
      %v10864 = vrot.slane %v10862, 1
      %v10865 = vshll.u32 %v10707, 16
      %v10867 = vrot.slane %v10865, 2
      %v10868 = vor.u32 %v10864, %v10867
      %v10869 = vsel %vm3213, %v10859, %v10868
      %v10871 = vshll.u32 %v10708, 16
      %v10873 = vrot.slane %v10871, 2
      %v10874 = vsel %vm3213, %v10868, %v10873
      %v10909 = vunpack.c.l.b16 %v10600
      %v10910 = vunpack.c.l.b16 %v10601
      %v10911 = vunpack.c.l.b16 %v10602
      %v10912 = vunpack.c.l.b16 %v10603
      %v10913 = vunpack.c.l.b16 %v10604
      %v10914 = vunpack.c.l.b16 %v10605
      %v10915 = vunpack.c.l.b16 %v10606
      %v10916 = vunpack.c.l.b16 %v10607
      %v10917 = vunpack.c.l.b16 %v10608
      %v10918 = vunpack.c.l.b16 %v10609
      %v10919 = vunpack.c.l.b16 %v10610
      %v10920 = vunpack.c.l.b16 %v10611
      %v10921 = vunpack.c.l.b16 %v10612
      %v10922 = vunpack.c.l.b16 %v10613
      %v10923 = vunpack.c.l.b16 %v10614
      %v10924 = vunpack.c.l.b16 %v10615
      %v10925 = vpack.c.b16 %v10910, %v10909
      %v10926 = vpack.c.b16 %v10912, %v10911
      %v10927 = vpack.c.b16 %v10914, %v10913
      %v10928 = vpack.c.b16 %v10916, %v10915
      %v10929 = vpack.c.b16 %v10918, %v10917
      %v10930 = vpack.c.b16 %v10920, %v10919
      %v10931 = vpack.c.b16 %v10922, %v10921
      %v10932 = vpack.c.b16 %v10924, %v10923
      %10941 = vmatpush.bf16.msra.mxu0 %v10932
      %10942 = vmatpush.bf16.msra.mxu0 %v10931
      %10943 = vmatpush.bf16.msra.mxu0 %v10930
      %10944 = vmatpush.bf16.msra.mxu0 %v10929
      %10945 = vmatpush.bf16.msra.mxu0 %v10928
      %10946 = vmatpush.bf16.msra.mxu0 %v10927
      %10947 = vmatpush.bf16.msra.mxu0 %v10926
      %10948 = vmatpush.bf16.msra.mxu0 %v10925
      %10949 = vmatmul.bf16.gmra.mxu0 %v10725
      %v10950 = vpop.f32.mrf.mxu0
      %v10951 = vadd.f32 0.0, %v10950
      %v10952 = vpop.f32.mrf.mxu0
      %v10953 = vadd.f32 0.0, %v10952
      %10954 = vmatmul.bf16.gmra.mxu0 %v10734
      %v10955 = vpop.f32.mrf.mxu0
      %v10956 = vadd.f32 0.0, %v10955
      %v10957 = vpop.f32.mrf.mxu0
      %v10958 = vadd.f32 0.0, %v10957
      %10959 = vmatmul.bf16.gmra.mxu0 %v10743
      %v10960 = vpop.f32.mrf.mxu0
      %v10961 = vadd.f32 0.0, %v10960
      %v10962 = vpop.f32.mrf.mxu0
      %v10963 = vadd.f32 0.0, %v10962
      %10964 = vmatmul.bf16.gmra.mxu0 %v10752
      %v10965 = vpop.f32.mrf.mxu0
      %v10966 = vadd.f32 0.0, %v10965
      %v10967 = vpop.f32.mrf.mxu0
      %v10968 = vadd.f32 0.0, %v10967
      %10969 = vmatmul.bf16.gmra.mxu0 %v10761
      %v10970 = vpop.f32.mrf.mxu0
      %v10971 = vadd.f32 0.0, %v10970
      %v10972 = vpop.f32.mrf.mxu0
      %v10973 = vadd.f32 0.0, %v10972
      %10974 = vmatmul.bf16.gmra.mxu0 %v10770
      %v10975 = vpop.f32.mrf.mxu0
      %v10976 = vadd.f32 0.0, %v10975
      %v10977 = vpop.f32.mrf.mxu0
      %v10978 = vadd.f32 0.0, %v10977
      %10979 = vmatmul.bf16.gmra.mxu0 %v10779
      %v10980 = vpop.f32.mrf.mxu0
      %v10981 = vadd.f32 0.0, %v10980
      %v10982 = vpop.f32.mrf.mxu0
      %v10983 = vadd.f32 0.0, %v10982
      %10984 = vmatmul.bf16.gmra.mxu0 %v10788
      %v10985 = vpop.f32.mrf.mxu0
      %v10986 = vadd.f32 0.0, %v10985
      %v10987 = vpop.f32.mrf.mxu0
      %v10988 = vadd.f32 0.0, %v10987
      %10989 = vmatmul.bf16.gmra.mxu0 %v10797
      %v10990 = vpop.f32.mrf.mxu0
      %v10991 = vadd.f32 0.0, %v10990
      %v10992 = vpop.f32.mrf.mxu0
      %v10993 = vadd.f32 0.0, %v10992
      %10994 = vmatmul.bf16.gmra.mxu0 %v10806
      %v10995 = vpop.f32.mrf.mxu0
      %v10996 = vadd.f32 0.0, %v10995
      %v10997 = vpop.f32.mrf.mxu0
      %v10998 = vadd.f32 0.0, %v10997
      %10999 = vmatmul.bf16.gmra.mxu0 %v10815
      %v11000 = vpop.f32.mrf.mxu0
      %v11001 = vadd.f32 0.0, %v11000
      %v11002 = vpop.f32.mrf.mxu0
      %v11003 = vadd.f32 0.0, %v11002
      %11004 = vmatmul.bf16.gmra.mxu0 %v10824
      %v11005 = vpop.f32.mrf.mxu0
      %v11006 = vadd.f32 0.0, %v11005
      %v11007 = vpop.f32.mrf.mxu0
      %v11008 = vadd.f32 0.0, %v11007
      %11009 = vmatmul.bf16.gmra.mxu0 %v10833
      %v11010 = vpop.f32.mrf.mxu0
      %v11011 = vadd.f32 0.0, %v11010
      %v11012 = vpop.f32.mrf.mxu0
      %v11013 = vadd.f32 0.0, %v11012
      %11014 = vmatmul.bf16.gmra.mxu0 %v10842
      %v11015 = vpop.f32.mrf.mxu0
      %v11016 = vadd.f32 0.0, %v11015
      %v11017 = vpop.f32.mrf.mxu0
      %v11018 = vadd.f32 0.0, %v11017
      %11019 = vmatmul.bf16.gmra.mxu0 %v10851
      %v11020 = vpop.f32.mrf.mxu0
      %v11021 = vadd.f32 0.0, %v11020
      %v11022 = vpop.f32.mrf.mxu0
      %v11023 = vadd.f32 0.0, %v11022
      %11024 = vmatmul.bf16.gmra.mxu0 %v10860
      %v11025 = vpop.f32.mrf.mxu0
      %v11026 = vadd.f32 0.0, %v11025
      %v11027 = vpop.f32.mrf.mxu0
      %v11028 = vadd.f32 0.0, %v11027
      %11029 = vmatmul.bf16.gmra.mxu0 %v10869
      %v11030 = vpop.f32.mrf.mxu0
      %v11031 = vadd.f32 0.0, %v11030
      %v11032 = vpop.f32.mrf.mxu0
      %v11033 = vadd.f32 0.0, %v11032
      %11034 = vmatmul.bf16.gmra.mxu0 %v10874
      %v11035 = vpop.f32.mrf.mxu0
      %v11036 = vadd.f32 0.0, %v11035
      %v11037 = vpop.f32.mrf.mxu0
      %v11038 = vadd.f32 0.0, %v11037
      %11039 = vdwg.mxu0
      %v11040 = vadd.f32 %v10526, %v10951
      %v11041 = vadd.f32 %v10527, %v10953
      %v11042 = vadd.f32 %v10528, %v10956
      %v11043 = vadd.f32 %v10529, %v10958
      %v11044 = vadd.f32 %v10530, %v10961
      %v11045 = vadd.f32 %v10531, %v10963
      %v11046 = vadd.f32 %v10532, %v10966
      %v11047 = vadd.f32 %v10533, %v10968
      %v11048 = vadd.f32 %v10534, %v10971
      %v11049 = vadd.f32 %v10535, %v10973
      %v11050 = vadd.f32 %v10536, %v10976
      %v11051 = vadd.f32 %v10537, %v10978
      %v11052 = vadd.f32 %v10538, %v10981
      %v11053 = vadd.f32 %v10539, %v10983
      %v11054 = vadd.f32 %v10540, %v10986
      %v11055 = vadd.f32 %v10541, %v10988
      %v11056 = vadd.f32 %v10542, %v10991
      %v11057 = vadd.f32 %v10543, %v10993
      %v11058 = vadd.f32 %v10544, %v10996
      %v11059 = vadd.f32 %v10545, %v10998
      %v11060 = vadd.f32 %v10546, %v11001
      %v11061 = vadd.f32 %v10547, %v11003
      %v11062 = vadd.f32 %v10548, %v11006
      %v11063 = vadd.f32 %v10549, %v11008
      %v11064 = vadd.f32 %v10550, %v11011
      %v11065 = vadd.f32 %v10551, %v11013
      %v11066 = vadd.f32 %v10552, %v11016
      %v11067 = vadd.f32 %v10553, %v11018
      %v11068 = vadd.f32 %v10554, %v11021
      %v11069 = vadd.f32 %v10555, %v11023
      %v11070 = vadd.f32 %v10556, %v11026
      %v11071 = vadd.f32 %v10557, %v11028
      %v11072 = vadd.f32 %v10558, %v11031
      %v11073 = vadd.f32 %v10559, %v11033
      %v11074 = vadd.f32 %v10560, %v11036
      %v11075 = vadd.f32 %v10561, %v11038
      %v11076 = vld [vmem:[#allocation3 + $0x8] sm:$0xc]
      %s11077 = scalar_lea.vmem %s3, 320
      %v11078 = vld [vmem:[%s11077] sm:$0xf]
      %v11079 = vld [vmem:[%s11077 + $0x4] sm:$0xf]
      %v11080 = vld [vmem:[%s11077 + $0x8] sm:$0xf]
      %v11081 = vld [vmem:[%s11077 + $0xc] sm:$0xf]
      %v11082 = vld [vmem:[%s11077 + $0x10] sm:$0xf]
      %v11083 = vld [vmem:[%s11077 + $0x14] sm:$0xf]
      %v11084 = vld [vmem:[%s11077 + $0x18] sm:$0xf]
      %v11085 = vld [vmem:[%s11077 + $0x1c] sm:$0xf]
      %v11086 = vld [vmem:[%s11077 + $0x20] sm:$0xf]
      %v11087 = vld [vmem:[%s11077 + $0x24] sm:$0xf]
      %v11088 = vld [vmem:[%s11077 + $0x28] sm:$0xf]
      %v11089 = vld [vmem:[%s11077 + $0x2c] sm:$0xf]
      %v11090 = vld [vmem:[%s11077 + $0x30] sm:$0xf]
      %v11091 = vld [vmem:[%s11077 + $0x34] sm:$0xf]
      %v11092 = vld [vmem:[%s11077 + $0x38] sm:$0xf]
      %v11093 = vld [vmem:[%s11077 + $0x3c] sm:$0xf]
      %v11095 = vunpack.c.l.b16 %v11076
      %v11096 = vpack.c.b16 %v10654, %v11095
      %v11097 = vrot.slane %v11096, 2
      %v11098 = vrot.slane %v10691, 2
      %v11099 = vsel %vm3602, %v11097, %v11098
      %v11100 = vrot.slane %v10692, 2
      %v11101 = vsel %vm3602, %v11098, %v11100
      %v11102 = vrot.slane %v10693, 2
      %v11103 = vsel %vm3602, %v11100, %v11102
      %v11104 = vrot.slane %v10694, 2
      %v11105 = vsel %vm3602, %v11102, %v11104
      %v11106 = vrot.slane %v10695, 2
      %v11107 = vsel %vm3602, %v11104, %v11106
      %v11108 = vrot.slane %v10696, 2
      %v11109 = vsel %vm3602, %v11106, %v11108
      %v11110 = vrot.slane %v10697, 2
      %v11111 = vsel %vm3602, %v11108, %v11110
      %v11112 = vrot.slane %v10698, 2
      %v11113 = vsel %vm3602, %v11110, %v11112
      %v11114 = vrot.slane %v10699, 2
      %v11115 = vsel %vm3602, %v11112, %v11114
      %v11116 = vrot.slane %v10700, 2
      %v11117 = vsel %vm3602, %v11114, %v11116
      %v11118 = vrot.slane %v10701, 2
      %v11119 = vsel %vm3602, %v11116, %v11118
      %v11120 = vrot.slane %v10702, 2
      %v11121 = vsel %vm3602, %v11118, %v11120
      %v11122 = vrot.slane %v10703, 2
      %v11123 = vsel %vm3602, %v11120, %v11122
      %v11124 = vrot.slane %v10704, 2
      %v11125 = vsel %vm3602, %v11122, %v11124
      %v11126 = vrot.slane %v10705, 2
      %v11127 = vsel %vm3602, %v11124, %v11126
      %v11128 = vrot.slane %v10706, 2
      %v11129 = vsel %vm3602, %v11126, %v11128
      %v11130 = vrot.slane %v10707, 2
      %v11131 = vsel %vm3602, %v11128, %v11130
      %v11132 = vrot.slane %v10708, 2
      %v11133 = vsel %vm3602, %v11130, %v11132
      %v11168 = vunpack.c.l.b16 %v11078
      %v11169 = vunpack.c.l.b16 %v11079
      %v11170 = vunpack.c.l.b16 %v11080
      %v11171 = vunpack.c.l.b16 %v11081
      %v11172 = vunpack.c.l.b16 %v11082
      %v11173 = vunpack.c.l.b16 %v11083
      %v11174 = vunpack.c.l.b16 %v11084
      %v11175 = vunpack.c.l.b16 %v11085
      %v11176 = vunpack.c.l.b16 %v11086
      %v11177 = vunpack.c.l.b16 %v11087
      %v11178 = vunpack.c.l.b16 %v11088
      %v11179 = vunpack.c.l.b16 %v11089
      %v11180 = vunpack.c.l.b16 %v11090
      %v11181 = vunpack.c.l.b16 %v11091
      %v11182 = vunpack.c.l.b16 %v11092
      %v11183 = vunpack.c.l.b16 %v11093
      %v11184 = vpack.c.b16 %v11169, %v11168
      %v11185 = vpack.c.b16 %v11171, %v11170
      %v11186 = vpack.c.b16 %v11173, %v11172
      %v11187 = vpack.c.b16 %v11175, %v11174
      %v11188 = vpack.c.b16 %v11177, %v11176
      %v11189 = vpack.c.b16 %v11179, %v11178
      %v11190 = vpack.c.b16 %v11181, %v11180
      %v11191 = vpack.c.b16 %v11183, %v11182
      %11200 = vmatpush.bf16.msra.mxu0 %v11191
      %11201 = vmatpush.bf16.msra.mxu0 %v11190
      %11202 = vmatpush.bf16.msra.mxu0 %v11189
      %11203 = vmatpush.bf16.msra.mxu0 %v11188
      %11204 = vmatpush.bf16.msra.mxu0 %v11187
      %11205 = vmatpush.bf16.msra.mxu0 %v11186
      %11206 = vmatpush.bf16.msra.mxu0 %v11185
      %11207 = vmatpush.bf16.msra.mxu0 %v11184
      %11208 = vmatmul.bf16.gmra.mxu0 %v11099
      %v11209 = vpop.f32.mrf.mxu0
      %v11210 = vadd.f32 0.0, %v11209
      %v11211 = vpop.f32.mrf.mxu0
      %v11212 = vadd.f32 0.0, %v11211
      %11213 = vmatmul.bf16.gmra.mxu0 %v11101
      %v11214 = vpop.f32.mrf.mxu0
      %v11215 = vadd.f32 0.0, %v11214
      %v11216 = vpop.f32.mrf.mxu0
      %v11217 = vadd.f32 0.0, %v11216
      %11218 = vmatmul.bf16.gmra.mxu0 %v11103
      %v11219 = vpop.f32.mrf.mxu0
      %v11220 = vadd.f32 0.0, %v11219
      %v11221 = vpop.f32.mrf.mxu0
      %v11222 = vadd.f32 0.0, %v11221
      %11223 = vmatmul.bf16.gmra.mxu0 %v11105
      %v11224 = vpop.f32.mrf.mxu0
      %v11225 = vadd.f32 0.0, %v11224
      %v11226 = vpop.f32.mrf.mxu0
      %v11227 = vadd.f32 0.0, %v11226
      %11228 = vmatmul.bf16.gmra.mxu0 %v11107
      %v11229 = vpop.f32.mrf.mxu0
      %v11230 = vadd.f32 0.0, %v11229
      %v11231 = vpop.f32.mrf.mxu0
      %v11232 = vadd.f32 0.0, %v11231
      %11233 = vmatmul.bf16.gmra.mxu0 %v11109
      %v11234 = vpop.f32.mrf.mxu0
      %v11235 = vadd.f32 0.0, %v11234
      %v11236 = vpop.f32.mrf.mxu0
      %v11237 = vadd.f32 0.0, %v11236
      %11238 = vmatmul.bf16.gmra.mxu0 %v11111
      %v11239 = vpop.f32.mrf.mxu0
      %v11240 = vadd.f32 0.0, %v11239
      %v11241 = vpop.f32.mrf.mxu0
      %v11242 = vadd.f32 0.0, %v11241
      %11243 = vmatmul.bf16.gmra.mxu0 %v11113
      %v11244 = vpop.f32.mrf.mxu0
      %v11245 = vadd.f32 0.0, %v11244
      %v11246 = vpop.f32.mrf.mxu0
      %v11247 = vadd.f32 0.0, %v11246
      %11248 = vmatmul.bf16.gmra.mxu0 %v11115
      %v11249 = vpop.f32.mrf.mxu0
      %v11250 = vadd.f32 0.0, %v11249
      %v11251 = vpop.f32.mrf.mxu0
      %v11252 = vadd.f32 0.0, %v11251
      %11253 = vmatmul.bf16.gmra.mxu0 %v11117
      %v11254 = vpop.f32.mrf.mxu0
      %v11255 = vadd.f32 0.0, %v11254
      %v11256 = vpop.f32.mrf.mxu0
      %v11257 = vadd.f32 0.0, %v11256
      %11258 = vmatmul.bf16.gmra.mxu0 %v11119
      %v11259 = vpop.f32.mrf.mxu0
      %v11260 = vadd.f32 0.0, %v11259
      %v11261 = vpop.f32.mrf.mxu0
      %v11262 = vadd.f32 0.0, %v11261
      %11263 = vmatmul.bf16.gmra.mxu0 %v11121
      %v11264 = vpop.f32.mrf.mxu0
      %v11265 = vadd.f32 0.0, %v11264
      %v11266 = vpop.f32.mrf.mxu0
      %v11267 = vadd.f32 0.0, %v11266
      %11268 = vmatmul.bf16.gmra.mxu0 %v11123
      %v11269 = vpop.f32.mrf.mxu0
      %v11270 = vadd.f32 0.0, %v11269
      %v11271 = vpop.f32.mrf.mxu0
      %v11272 = vadd.f32 0.0, %v11271
      %11273 = vmatmul.bf16.gmra.mxu0 %v11125
      %v11274 = vpop.f32.mrf.mxu0
      %v11275 = vadd.f32 0.0, %v11274
      %v11276 = vpop.f32.mrf.mxu0
      %v11277 = vadd.f32 0.0, %v11276
      %11278 = vmatmul.bf16.gmra.mxu0 %v11127
      %v11279 = vpop.f32.mrf.mxu0
      %v11280 = vadd.f32 0.0, %v11279
      %v11281 = vpop.f32.mrf.mxu0
      %v11282 = vadd.f32 0.0, %v11281
      %11283 = vmatmul.bf16.gmra.mxu0 %v11129
      %v11284 = vpop.f32.mrf.mxu0
      %v11285 = vadd.f32 0.0, %v11284
      %v11286 = vpop.f32.mrf.mxu0
      %v11287 = vadd.f32 0.0, %v11286
      %11288 = vmatmul.bf16.gmra.mxu0 %v11131
      %v11289 = vpop.f32.mrf.mxu0
      %v11290 = vadd.f32 0.0, %v11289
      %v11291 = vpop.f32.mrf.mxu0
      %v11292 = vadd.f32 0.0, %v11291
      %11293 = vmatmul.bf16.gmra.mxu0 %v11133
      %v11294 = vpop.f32.mrf.mxu0
      %v11295 = vadd.f32 0.0, %v11294
      %v11296 = vpop.f32.mrf.mxu0
      %v11297 = vadd.f32 0.0, %v11296
      %11298 = vdwg.mxu0
      %v11299 = vadd.f32 %v11040, %v11210
      %v11300 = vadd.f32 %v11041, %v11212
      %v11301 = vadd.f32 %v11042, %v11215
      %v11302 = vadd.f32 %v11043, %v11217
      %v11303 = vadd.f32 %v11044, %v11220
      %v11304 = vadd.f32 %v11045, %v11222
      %v11305 = vadd.f32 %v11046, %v11225
      %v11306 = vadd.f32 %v11047, %v11227
      %v11307 = vadd.f32 %v11048, %v11230
      %v11308 = vadd.f32 %v11049, %v11232
      %v11309 = vadd.f32 %v11050, %v11235
      %v11310 = vadd.f32 %v11051, %v11237
      %v11311 = vadd.f32 %v11052, %v11240
      %v11312 = vadd.f32 %v11053, %v11242
      %v11313 = vadd.f32 %v11054, %v11245
      %v11314 = vadd.f32 %v11055, %v11247
      %v11315 = vadd.f32 %v11056, %v11250
      %v11316 = vadd.f32 %v11057, %v11252
      %v11317 = vadd.f32 %v11058, %v11255
      %v11318 = vadd.f32 %v11059, %v11257
      %v11319 = vadd.f32 %v11060, %v11260
      %v11320 = vadd.f32 %v11061, %v11262
      %v11321 = vadd.f32 %v11062, %v11265
      %v11322 = vadd.f32 %v11063, %v11267
      %v11323 = vadd.f32 %v11064, %v11270
      %v11324 = vadd.f32 %v11065, %v11272
      %v11325 = vadd.f32 %v11066, %v11275
      %v11326 = vadd.f32 %v11067, %v11277
      %v11327 = vadd.f32 %v11068, %v11280
      %v11328 = vadd.f32 %v11069, %v11282
      %v11329 = vadd.f32 %v11070, %v11285
      %v11330 = vadd.f32 %v11071, %v11287
      %v11331 = vadd.f32 %v11072, %v11290
      %v11332 = vadd.f32 %v11073, %v11292
      %v11333 = vadd.f32 %v11074, %v11295
      %v11334 = vadd.f32 %v11075, %v11297
      %v11335 = vld [vmem:[#allocation3 + $0x10] sm:$0xc]
      %v11336 = vld [vmem:[#allocation3 + $0x14] sm:$0xf]
      %v11337 = vld [vmem:[#allocation3 + $0x18] sm:$0xf]
      %v11338 = vld [vmem:[#allocation3 + $0x1c] sm:$0xf]
      %v11339 = vld [vmem:[#allocation3 + $0x20] sm:$0xf]
      %v11340 = vld [vmem:[#allocation3 + $0x24] sm:$0xf]
      %v11341 = vld [vmem:[#allocation3 + $0x28] sm:$0xf]
      %v11342 = vld [vmem:[#allocation3 + $0x2c] sm:$0xf]
      %v11343 = vld [vmem:[#allocation3 + $0x30] sm:$0xf]
      %v11344 = vld [vmem:[#allocation3 + $0x34] sm:$0xf]
      %v11345 = vld [vmem:[#allocation3 + $0x38] sm:$0xf]
      %v11346 = vld [vmem:[#allocation3 + $0x3c] sm:$0xf]
      %v11347 = vld [vmem:[#allocation3 + $0x40] sm:$0xf]
      %v11348 = vld [vmem:[#allocation3 + $0x44] sm:$0xf]
      %v11349 = vld [vmem:[#allocation3 + $0x48] sm:$0xf]
      %v11350 = vld [vmem:[#allocation3 + $0x4c] sm:$0xf]
      %v11351 = vld [vmem:[#allocation3 + $0x50] sm:$0xf]
      %v11352 = vld [vmem:[#allocation3 + $0x54] sm:$0xf]
      %v11353 = vld [vmem:[#allocation3 + $0x58] sm:$0xf]
      %v11354 = vld [vmem:[#allocation3 + $0x5c] sm:$0xf]
      %v11355 = vld [vmem:[#allocation3 + $0x60] sm:$0xf]
      %v11356 = vld [vmem:[#allocation3 + $0x64] sm:$0xf]
      %v11357 = vld [vmem:[#allocation3 + $0x68] sm:$0xf]
      %v11358 = vld [vmem:[#allocation3 + $0x6c] sm:$0xf]
      %v11359 = vld [vmem:[#allocation3 + $0x70] sm:$0xf]
      %v11360 = vld [vmem:[#allocation3 + $0x74] sm:$0xf]
      %v11361 = vld [vmem:[#allocation3 + $0x78] sm:$0xf]
      %v11362 = vld [vmem:[#allocation3 + $0x7c] sm:$0xf]
      %v11363 = vld [vmem:[#allocation3 + $0x80] sm:$0xf]
      %v11364 = vld [vmem:[#allocation3 + $0x84] sm:$0xf]
      %v11365 = vld [vmem:[#allocation3 + $0x88] sm:$0xf]
      %v11366 = vld [vmem:[#allocation3 + $0x8c] sm:$0xf]
      %v11367 = vld [vmem:[#allocation3 + $0x90] sm:$0xf]
      %v11368 = vld [vmem:[#allocation3 + $0x94] sm:$0xf]
      %v11369 = vld [vmem:[#allocation3 + $0x98] sm:$0xf]
      %v11370 = vld [vmem:[#allocation3 + $0x9c] sm:$0xf]
      %v11371 = vld [vmem:[#allocation3 + $0xa0] sm:$0x1]
      %s11372 = scalar_lea.vmem %s3, 384
      %v11373 = vld [vmem:[%s11372] sm:$0xf]
      %v11374 = vld [vmem:[%s11372 + $0x4] sm:$0xf]
      %v11375 = vld [vmem:[%s11372 + $0x8] sm:$0xf]
      %v11376 = vld [vmem:[%s11372 + $0xc] sm:$0xf]
      %v11377 = vld [vmem:[%s11372 + $0x10] sm:$0xf]
      %v11378 = vld [vmem:[%s11372 + $0x14] sm:$0xf]
      %v11379 = vld [vmem:[%s11372 + $0x18] sm:$0xf]
      %v11380 = vld [vmem:[%s11372 + $0x1c] sm:$0xf]
      %v11381 = vld [vmem:[%s11372 + $0x20] sm:$0xf]
      %v11382 = vld [vmem:[%s11372 + $0x24] sm:$0xf]
      %v11383 = vld [vmem:[%s11372 + $0x28] sm:$0xf]
      %v11384 = vld [vmem:[%s11372 + $0x2c] sm:$0xf]
      %v11385 = vld [vmem:[%s11372 + $0x30] sm:$0xf]
      %v11386 = vld [vmem:[%s11372 + $0x34] sm:$0xf]
      %v11387 = vld [vmem:[%s11372 + $0x38] sm:$0xf]
      %v11388 = vld [vmem:[%s11372 + $0x3c] sm:$0xf]
      %v11426 = vunpack.c.l.b16 %v11335
      %v11427 = vunpack.c.l.b16 %v11336
      %v11428 = vunpack.c.l.b16 %v11337
      %v11429 = vunpack.c.l.b16 %v11338
      %v11430 = vunpack.c.l.b16 %v11339
      %v11431 = vunpack.c.l.b16 %v11340
      %v11432 = vunpack.c.l.b16 %v11341
      %v11433 = vunpack.c.l.b16 %v11342
      %v11434 = vunpack.c.l.b16 %v11343
      %v11435 = vunpack.c.l.b16 %v11344
      %v11436 = vunpack.c.l.b16 %v11345
      %v11437 = vunpack.c.l.b16 %v11346
      %v11438 = vunpack.c.l.b16 %v11347
      %v11439 = vunpack.c.l.b16 %v11348
      %v11440 = vunpack.c.l.b16 %v11349
      %v11441 = vunpack.c.l.b16 %v11350
      %v11442 = vunpack.c.l.b16 %v11351
      %v11443 = vunpack.c.l.b16 %v11352
      %v11444 = vunpack.c.l.b16 %v11353
      %v11445 = vunpack.c.l.b16 %v11354
      %v11446 = vunpack.c.l.b16 %v11355
      %v11447 = vunpack.c.l.b16 %v11356
      %v11448 = vunpack.c.l.b16 %v11357
      %v11449 = vunpack.c.l.b16 %v11358
      %v11450 = vunpack.c.l.b16 %v11359
      %v11451 = vunpack.c.l.b16 %v11360
      %v11452 = vunpack.c.l.b16 %v11361
      %v11453 = vunpack.c.l.b16 %v11362
      %v11454 = vunpack.c.l.b16 %v11363
      %v11455 = vunpack.c.l.b16 %v11364
      %v11456 = vunpack.c.l.b16 %v11365
      %v11457 = vunpack.c.l.b16 %v11366
      %v11458 = vunpack.c.l.b16 %v11367
      %v11459 = vunpack.c.l.b16 %v11368
      %v11460 = vunpack.c.l.b16 %v11369
      %v11461 = vunpack.c.l.b16 %v11370
      %v11462 = vunpack.c.l.b16 %v11371
      %v11463 = vpack.c.b16 %v11427, %v11426
      %v11464 = vpack.c.b16 %v11429, %v11428
      %v11465 = vpack.c.b16 %v11431, %v11430
      %v11466 = vpack.c.b16 %v11433, %v11432
      %v11467 = vpack.c.b16 %v11435, %v11434
      %v11468 = vpack.c.b16 %v11437, %v11436
      %v11469 = vpack.c.b16 %v11439, %v11438
      %v11470 = vpack.c.b16 %v11441, %v11440
      %v11471 = vpack.c.b16 %v11443, %v11442
      %v11472 = vpack.c.b16 %v11445, %v11444
      %v11473 = vpack.c.b16 %v11447, %v11446
      %v11474 = vpack.c.b16 %v11449, %v11448
      %v11475 = vpack.c.b16 %v11451, %v11450
      %v11476 = vpack.c.b16 %v11453, %v11452
      %v11477 = vpack.c.b16 %v11455, %v11454
      %v11478 = vpack.c.b16 %v11457, %v11456
      %v11479 = vpack.c.b16 %v11459, %v11458
      %v11480 = vpack.c.b16 %v11461, %v11460
      %v11481 = vpack.c.b16 %v11462, %v11462
      %v11482 = vrot.slane %v11463, 2
      %v11483 = vrot.slane %v11464, 2
      %v11484 = vsel %vm3602, %v11482, %v11483
      %v11485 = vrot.slane %v11465, 2
      %v11486 = vsel %vm3602, %v11483, %v11485
      %v11487 = vrot.slane %v11466, 2
      %v11488 = vsel %vm3602, %v11485, %v11487
      %v11489 = vrot.slane %v11467, 2
      %v11490 = vsel %vm3602, %v11487, %v11489
      %v11491 = vrot.slane %v11468, 2
      %v11492 = vsel %vm3602, %v11489, %v11491
      %v11493 = vrot.slane %v11469, 2
      %v11494 = vsel %vm3602, %v11491, %v11493
      %v11495 = vrot.slane %v11470, 2
      %v11496 = vsel %vm3602, %v11493, %v11495
      %v11497 = vrot.slane %v11471, 2
      %v11498 = vsel %vm3602, %v11495, %v11497
      %v11499 = vrot.slane %v11472, 2
      %v11500 = vsel %vm3602, %v11497, %v11499
      %v11501 = vrot.slane %v11473, 2
      %v11502 = vsel %vm3602, %v11499, %v11501
      %v11503 = vrot.slane %v11474, 2
      %v11504 = vsel %vm3602, %v11501, %v11503
      %v11505 = vrot.slane %v11475, 2
      %v11506 = vsel %vm3602, %v11503, %v11505
      %v11507 = vrot.slane %v11476, 2
      %v11508 = vsel %vm3602, %v11505, %v11507
      %v11509 = vrot.slane %v11477, 2
      %v11510 = vsel %vm3602, %v11507, %v11509
      %v11511 = vrot.slane %v11478, 2
      %v11512 = vsel %vm3602, %v11509, %v11511
      %v11513 = vrot.slane %v11479, 2
      %v11514 = vsel %vm3602, %v11511, %v11513
      %v11515 = vrot.slane %v11480, 2
      %v11516 = vsel %vm3602, %v11513, %v11515
      %v11517 = vrot.slane %v11481, 2
      %v11518 = vsel %vm3602, %v11515, %v11517
      %v11553 = vunpack.c.l.b16 %v11373
      %v11554 = vunpack.c.l.b16 %v11374
      %v11555 = vunpack.c.l.b16 %v11375
      %v11556 = vunpack.c.l.b16 %v11376
      %v11557 = vunpack.c.l.b16 %v11377
      %v11558 = vunpack.c.l.b16 %v11378
      %v11559 = vunpack.c.l.b16 %v11379
      %v11560 = vunpack.c.l.b16 %v11380
      %v11561 = vunpack.c.l.b16 %v11381
      %v11562 = vunpack.c.l.b16 %v11382
      %v11563 = vunpack.c.l.b16 %v11383
      %v11564 = vunpack.c.l.b16 %v11384
      %v11565 = vunpack.c.l.b16 %v11385
      %v11566 = vunpack.c.l.b16 %v11386
      %v11567 = vunpack.c.l.b16 %v11387
      %v11568 = vunpack.c.l.b16 %v11388
      %v11569 = vpack.c.b16 %v11554, %v11553
      %v11570 = vpack.c.b16 %v11556, %v11555
      %v11571 = vpack.c.b16 %v11558, %v11557
      %v11572 = vpack.c.b16 %v11560, %v11559
      %v11573 = vpack.c.b16 %v11562, %v11561
      %v11574 = vpack.c.b16 %v11564, %v11563
      %v11575 = vpack.c.b16 %v11566, %v11565
      %v11576 = vpack.c.b16 %v11568, %v11567
      %11585 = vmatpush.bf16.msra.mxu0 %v11576
      %11586 = vmatpush.bf16.msra.mxu0 %v11575
      %11587 = vmatpush.bf16.msra.mxu0 %v11574
      %11588 = vmatpush.bf16.msra.mxu0 %v11573
      %11589 = vmatpush.bf16.msra.mxu0 %v11572
      %11590 = vmatpush.bf16.msra.mxu0 %v11571
      %11591 = vmatpush.bf16.msra.mxu0 %v11570
      %11592 = vmatpush.bf16.msra.mxu0 %v11569
      %11593 = vmatmul.bf16.gmra.mxu0 %v11484
      %v11594 = vpop.f32.mrf.mxu0
      %v11595 = vadd.f32 0.0, %v11594
      %v11596 = vpop.f32.mrf.mxu0
      %v11597 = vadd.f32 0.0, %v11596
      %11598 = vmatmul.bf16.gmra.mxu0 %v11486
      %v11599 = vpop.f32.mrf.mxu0
      %v11600 = vadd.f32 0.0, %v11599
      %v11601 = vpop.f32.mrf.mxu0
      %v11602 = vadd.f32 0.0, %v11601
      %11603 = vmatmul.bf16.gmra.mxu0 %v11488
      %v11604 = vpop.f32.mrf.mxu0
      %v11605 = vadd.f32 0.0, %v11604
      %v11606 = vpop.f32.mrf.mxu0
      %v11607 = vadd.f32 0.0, %v11606
      %11608 = vmatmul.bf16.gmra.mxu0 %v11490
      %v11609 = vpop.f32.mrf.mxu0
      %v11610 = vadd.f32 0.0, %v11609
      %v11611 = vpop.f32.mrf.mxu0
      %v11612 = vadd.f32 0.0, %v11611
      %11613 = vmatmul.bf16.gmra.mxu0 %v11492
      %v11614 = vpop.f32.mrf.mxu0
      %v11615 = vadd.f32 0.0, %v11614
      %v11616 = vpop.f32.mrf.mxu0
      %v11617 = vadd.f32 0.0, %v11616
      %11618 = vmatmul.bf16.gmra.mxu0 %v11494
      %v11619 = vpop.f32.mrf.mxu0
      %v11620 = vadd.f32 0.0, %v11619
      %v11621 = vpop.f32.mrf.mxu0
      %v11622 = vadd.f32 0.0, %v11621
      %11623 = vmatmul.bf16.gmra.mxu0 %v11496
      %v11624 = vpop.f32.mrf.mxu0
      %v11625 = vadd.f32 0.0, %v11624
      %v11626 = vpop.f32.mrf.mxu0
      %v11627 = vadd.f32 0.0, %v11626
      %11628 = vmatmul.bf16.gmra.mxu0 %v11498
      %v11629 = vpop.f32.mrf.mxu0
      %v11630 = vadd.f32 0.0, %v11629
      %v11631 = vpop.f32.mrf.mxu0
      %v11632 = vadd.f32 0.0, %v11631
      %11633 = vmatmul.bf16.gmra.mxu0 %v11500
      %v11634 = vpop.f32.mrf.mxu0
      %v11635 = vadd.f32 0.0, %v11634
      %v11636 = vpop.f32.mrf.mxu0
      %v11637 = vadd.f32 0.0, %v11636
      %11638 = vmatmul.bf16.gmra.mxu0 %v11502
      %v11639 = vpop.f32.mrf.mxu0
      %v11640 = vadd.f32 0.0, %v11639
      %v11641 = vpop.f32.mrf.mxu0
      %v11642 = vadd.f32 0.0, %v11641
      %11643 = vmatmul.bf16.gmra.mxu0 %v11504
      %v11644 = vpop.f32.mrf.mxu0
      %v11645 = vadd.f32 0.0, %v11644
      %v11646 = vpop.f32.mrf.mxu0
      %v11647 = vadd.f32 0.0, %v11646
      %11648 = vmatmul.bf16.gmra.mxu0 %v11506
      %v11649 = vpop.f32.mrf.mxu0
      %v11650 = vadd.f32 0.0, %v11649
      %v11651 = vpop.f32.mrf.mxu0
      %v11652 = vadd.f32 0.0, %v11651
      %11653 = vmatmul.bf16.gmra.mxu0 %v11508
      %v11654 = vpop.f32.mrf.mxu0
      %v11655 = vadd.f32 0.0, %v11654
      %v11656 = vpop.f32.mrf.mxu0
      %v11657 = vadd.f32 0.0, %v11656
      %11658 = vmatmul.bf16.gmra.mxu0 %v11510
      %v11659 = vpop.f32.mrf.mxu0
      %v11660 = vadd.f32 0.0, %v11659
      %v11661 = vpop.f32.mrf.mxu0
      %v11662 = vadd.f32 0.0, %v11661
      %11663 = vmatmul.bf16.gmra.mxu0 %v11512
      %v11664 = vpop.f32.mrf.mxu0
      %v11665 = vadd.f32 0.0, %v11664
      %v11666 = vpop.f32.mrf.mxu0
      %v11667 = vadd.f32 0.0, %v11666
      %11668 = vmatmul.bf16.gmra.mxu0 %v11514
      %v11669 = vpop.f32.mrf.mxu0
      %v11670 = vadd.f32 0.0, %v11669
      %v11671 = vpop.f32.mrf.mxu0
      %v11672 = vadd.f32 0.0, %v11671
      %11673 = vmatmul.bf16.gmra.mxu0 %v11516
      %v11674 = vpop.f32.mrf.mxu0
      %v11675 = vadd.f32 0.0, %v11674
      %v11676 = vpop.f32.mrf.mxu0
      %v11677 = vadd.f32 0.0, %v11676
      %11678 = vmatmul.bf16.gmra.mxu0 %v11518
      %v11679 = vpop.f32.mrf.mxu0
      %v11680 = vadd.f32 0.0, %v11679
      %v11681 = vpop.f32.mrf.mxu0
      %v11682 = vadd.f32 0.0, %v11681
      %11683 = vdwg.mxu0
      %v11684 = vadd.f32 %v11299, %v11595
      %v11685 = vadd.f32 %v11300, %v11597
      %v11686 = vadd.f32 %v11301, %v11600
      %v11687 = vadd.f32 %v11302, %v11602
      %v11688 = vadd.f32 %v11303, %v11605
      %v11689 = vadd.f32 %v11304, %v11607
      %v11690 = vadd.f32 %v11305, %v11610
      %v11691 = vadd.f32 %v11306, %v11612
      %v11692 = vadd.f32 %v11307, %v11615
      %v11693 = vadd.f32 %v11308, %v11617
      %v11694 = vadd.f32 %v11309, %v11620
      %v11695 = vadd.f32 %v11310, %v11622
      %v11696 = vadd.f32 %v11311, %v11625
      %v11697 = vadd.f32 %v11312, %v11627
      %v11698 = vadd.f32 %v11313, %v11630
      %v11699 = vadd.f32 %v11314, %v11632
      %v11700 = vadd.f32 %v11315, %v11635
      %v11701 = vadd.f32 %v11316, %v11637
      %v11702 = vadd.f32 %v11317, %v11640
      %v11703 = vadd.f32 %v11318, %v11642
      %v11704 = vadd.f32 %v11319, %v11645
      %v11705 = vadd.f32 %v11320, %v11647
      %v11706 = vadd.f32 %v11321, %v11650
      %v11707 = vadd.f32 %v11322, %v11652
      %v11708 = vadd.f32 %v11323, %v11655
      %v11709 = vadd.f32 %v11324, %v11657
      %v11710 = vadd.f32 %v11325, %v11660
      %v11711 = vadd.f32 %v11326, %v11662
      %v11712 = vadd.f32 %v11327, %v11665
      %v11713 = vadd.f32 %v11328, %v11667
      %v11714 = vadd.f32 %v11329, %v11670
      %v11715 = vadd.f32 %v11330, %v11672
      %v11716 = vadd.f32 %v11331, %v11675
      %v11717 = vadd.f32 %v11332, %v11677
      %v11718 = vadd.f32 %v11333, %v11680
      %v11719 = vadd.f32 %v11334, %v11682
      %v11720 = vld [vmem:[#allocation3 + $0xa0] sm:$0x3]
      %s11721 = scalar_lea.vmem %s3, 448
      %v11722 = vld [vmem:[%s11721] sm:$0xf]
      %v11723 = vld [vmem:[%s11721 + $0x4] sm:$0xf]
      %v11724 = vld [vmem:[%s11721 + $0x8] sm:$0xf]
      %v11725 = vld [vmem:[%s11721 + $0xc] sm:$0xf]
      %v11726 = vld [vmem:[%s11721 + $0x10] sm:$0xf]
      %v11727 = vld [vmem:[%s11721 + $0x14] sm:$0xf]
      %v11728 = vld [vmem:[%s11721 + $0x18] sm:$0xf]
      %v11729 = vld [vmem:[%s11721 + $0x1c] sm:$0xf]
      %v11730 = vld [vmem:[%s11721 + $0x20] sm:$0xf]
      %v11731 = vld [vmem:[%s11721 + $0x24] sm:$0xf]
      %v11732 = vld [vmem:[%s11721 + $0x28] sm:$0xf]
      %v11733 = vld [vmem:[%s11721 + $0x2c] sm:$0xf]
      %v11734 = vld [vmem:[%s11721 + $0x30] sm:$0xf]
      %v11735 = vld [vmem:[%s11721 + $0x34] sm:$0xf]
      %v11736 = vld [vmem:[%s11721 + $0x38] sm:$0xf]
      %v11737 = vld [vmem:[%s11721 + $0x3c] sm:$0xf]
      %v11739 = vunpack.c.l.b16 %v11720
      %v11740 = vpack.c.b16 %v11739, %v11739
      %v11742 = vshrl.u32 %v11463, 16
      %v11744 = vrot.slane %v11742, 2
      %v11745 = vshll.u32 %v11463, 16
      %v11747 = vrot.slane %v11745, 3
      %v11748 = vor.u32 %v11744, %v11747
      %v11750 = vshrl.u32 %v11464, 16
      %v11752 = vrot.slane %v11750, 2
      %v11753 = vshll.u32 %v11464, 16
      %v11755 = vrot.slane %v11753, 3
      %v11756 = vor.u32 %v11752, %v11755
      %v11757 = vsel %vm4247, %v11748, %v11756
      %v11759 = vshrl.u32 %v11465, 16
      %v11761 = vrot.slane %v11759, 2
      %v11762 = vshll.u32 %v11465, 16
      %v11764 = vrot.slane %v11762, 3
      %v11765 = vor.u32 %v11761, %v11764
      %v11766 = vsel %vm4247, %v11756, %v11765
      %v11768 = vshrl.u32 %v11466, 16
      %v11770 = vrot.slane %v11768, 2
      %v11771 = vshll.u32 %v11466, 16
      %v11773 = vrot.slane %v11771, 3
      %v11774 = vor.u32 %v11770, %v11773
      %v11775 = vsel %vm4247, %v11765, %v11774
      %v11777 = vshrl.u32 %v11467, 16
      %v11779 = vrot.slane %v11777, 2
      %v11780 = vshll.u32 %v11467, 16
      %v11782 = vrot.slane %v11780, 3
      %v11783 = vor.u32 %v11779, %v11782
      %v11784 = vsel %vm4247, %v11774, %v11783
      %v11786 = vshrl.u32 %v11468, 16
      %v11788 = vrot.slane %v11786, 2
      %v11789 = vshll.u32 %v11468, 16
      %v11791 = vrot.slane %v11789, 3
      %v11792 = vor.u32 %v11788, %v11791
      %v11793 = vsel %vm4247, %v11783, %v11792
      %v11795 = vshrl.u32 %v11469, 16
      %v11797 = vrot.slane %v11795, 2
      %v11798 = vshll.u32 %v11469, 16
      %v11800 = vrot.slane %v11798, 3
      %v11801 = vor.u32 %v11797, %v11800
      %v11802 = vsel %vm4247, %v11792, %v11801
      %v11804 = vshrl.u32 %v11470, 16
      %v11806 = vrot.slane %v11804, 2
      %v11807 = vshll.u32 %v11470, 16
      %v11809 = vrot.slane %v11807, 3
      %v11810 = vor.u32 %v11806, %v11809
      %v11811 = vsel %vm4247, %v11801, %v11810
      %v11813 = vshrl.u32 %v11471, 16
      %v11815 = vrot.slane %v11813, 2
      %v11816 = vshll.u32 %v11471, 16
      %v11818 = vrot.slane %v11816, 3
      %v11819 = vor.u32 %v11815, %v11818
      %v11820 = vsel %vm4247, %v11810, %v11819
      %v11822 = vshrl.u32 %v11472, 16
      %v11824 = vrot.slane %v11822, 2
      %v11825 = vshll.u32 %v11472, 16
      %v11827 = vrot.slane %v11825, 3
      %v11828 = vor.u32 %v11824, %v11827
      %v11829 = vsel %vm4247, %v11819, %v11828
      %v11831 = vshrl.u32 %v11473, 16
      %v11833 = vrot.slane %v11831, 2
      %v11834 = vshll.u32 %v11473, 16
      %v11836 = vrot.slane %v11834, 3
      %v11837 = vor.u32 %v11833, %v11836
      %v11838 = vsel %vm4247, %v11828, %v11837
      %v11840 = vshrl.u32 %v11474, 16
      %v11842 = vrot.slane %v11840, 2
      %v11843 = vshll.u32 %v11474, 16
      %v11845 = vrot.slane %v11843, 3
      %v11846 = vor.u32 %v11842, %v11845
      %v11847 = vsel %vm4247, %v11837, %v11846
      %v11849 = vshrl.u32 %v11475, 16
      %v11851 = vrot.slane %v11849, 2
      %v11852 = vshll.u32 %v11475, 16
      %v11854 = vrot.slane %v11852, 3
      %v11855 = vor.u32 %v11851, %v11854
      %v11856 = vsel %vm4247, %v11846, %v11855
      %v11858 = vshrl.u32 %v11476, 16
      %v11860 = vrot.slane %v11858, 2
      %v11861 = vshll.u32 %v11476, 16
      %v11863 = vrot.slane %v11861, 3
      %v11864 = vor.u32 %v11860, %v11863
      %v11865 = vsel %vm4247, %v11855, %v11864
      %v11867 = vshrl.u32 %v11477, 16
      %v11869 = vrot.slane %v11867, 2
      %v11870 = vshll.u32 %v11477, 16
      %v11872 = vrot.slane %v11870, 3
      %v11873 = vor.u32 %v11869, %v11872
      %v11874 = vsel %vm4247, %v11864, %v11873
      %v11876 = vshrl.u32 %v11478, 16
      %v11878 = vrot.slane %v11876, 2
      %v11879 = vshll.u32 %v11478, 16
      %v11881 = vrot.slane %v11879, 3
      %v11882 = vor.u32 %v11878, %v11881
      %v11883 = vsel %vm4247, %v11873, %v11882
      %v11885 = vshrl.u32 %v11479, 16
      %v11887 = vrot.slane %v11885, 2
      %v11888 = vshll.u32 %v11479, 16
      %v11890 = vrot.slane %v11888, 3
      %v11891 = vor.u32 %v11887, %v11890
      %v11892 = vsel %vm4247, %v11882, %v11891
      %v11894 = vshrl.u32 %v11480, 16
      %v11896 = vrot.slane %v11894, 2
      %v11897 = vshll.u32 %v11480, 16
      %v11899 = vrot.slane %v11897, 3
      %v11900 = vor.u32 %v11896, %v11899
      %v11901 = vsel %vm4247, %v11891, %v11900
      %v11903 = vshrl.u32 %v11740, 16
      %v11905 = vrot.slane %v11903, 2
      %v11906 = vshll.u32 %v11740, 16
      %v11908 = vrot.slane %v11906, 3
      %v11909 = vor.u32 %v11905, %v11908
      %v11910 = vsel %vm4247, %v11900, %v11909
      %v11945 = vunpack.c.l.b16 %v11722
      %v11946 = vunpack.c.l.b16 %v11723
      %v11947 = vunpack.c.l.b16 %v11724
      %v11948 = vunpack.c.l.b16 %v11725
      %v11949 = vunpack.c.l.b16 %v11726
      %v11950 = vunpack.c.l.b16 %v11727
      %v11951 = vunpack.c.l.b16 %v11728
      %v11952 = vunpack.c.l.b16 %v11729
      %v11953 = vunpack.c.l.b16 %v11730
      %v11954 = vunpack.c.l.b16 %v11731
      %v11955 = vunpack.c.l.b16 %v11732
      %v11956 = vunpack.c.l.b16 %v11733
      %v11957 = vunpack.c.l.b16 %v11734
      %v11958 = vunpack.c.l.b16 %v11735
      %v11959 = vunpack.c.l.b16 %v11736
      %v11960 = vunpack.c.l.b16 %v11737
      %v11961 = vpack.c.b16 %v11946, %v11945
      %v11962 = vpack.c.b16 %v11948, %v11947
      %v11963 = vpack.c.b16 %v11950, %v11949
      %v11964 = vpack.c.b16 %v11952, %v11951
      %v11965 = vpack.c.b16 %v11954, %v11953
      %v11966 = vpack.c.b16 %v11956, %v11955
      %v11967 = vpack.c.b16 %v11958, %v11957
      %v11968 = vpack.c.b16 %v11960, %v11959
      %11977 = vmatpush.bf16.msra.mxu0 %v11968
      %11978 = vmatpush.bf16.msra.mxu0 %v11967
      %11979 = vmatpush.bf16.msra.mxu0 %v11966
      %11980 = vmatpush.bf16.msra.mxu0 %v11965
      %11981 = vmatpush.bf16.msra.mxu0 %v11964
      %11982 = vmatpush.bf16.msra.mxu0 %v11963
      %11983 = vmatpush.bf16.msra.mxu0 %v11962
      %11984 = vmatpush.bf16.msra.mxu0 %v11961
      %11985 = vmatmul.bf16.gmra.mxu0 %v11757
      %v11986 = vpop.f32.mrf.mxu0
      %v11987 = vadd.f32 0.0, %v11986
      %v11988 = vpop.f32.mrf.mxu0
      %v11989 = vadd.f32 0.0, %v11988
      %11990 = vmatmul.bf16.gmra.mxu0 %v11766
      %v11991 = vpop.f32.mrf.mxu0
      %v11992 = vadd.f32 0.0, %v11991
      %v11993 = vpop.f32.mrf.mxu0
      %v11994 = vadd.f32 0.0, %v11993
      %11995 = vmatmul.bf16.gmra.mxu0 %v11775
      %v11996 = vpop.f32.mrf.mxu0
      %v11997 = vadd.f32 0.0, %v11996
      %v11998 = vpop.f32.mrf.mxu0
      %v11999 = vadd.f32 0.0, %v11998
      %12000 = vmatmul.bf16.gmra.mxu0 %v11784
      %v12001 = vpop.f32.mrf.mxu0
      %v12002 = vadd.f32 0.0, %v12001
      %v12003 = vpop.f32.mrf.mxu0
      %v12004 = vadd.f32 0.0, %v12003
      %12005 = vmatmul.bf16.gmra.mxu0 %v11793
      %v12006 = vpop.f32.mrf.mxu0
      %v12007 = vadd.f32 0.0, %v12006
      %v12008 = vpop.f32.mrf.mxu0
      %v12009 = vadd.f32 0.0, %v12008
      %12010 = vmatmul.bf16.gmra.mxu0 %v11802
      %v12011 = vpop.f32.mrf.mxu0
      %v12012 = vadd.f32 0.0, %v12011
      %v12013 = vpop.f32.mrf.mxu0
      %v12014 = vadd.f32 0.0, %v12013
      %12015 = vmatmul.bf16.gmra.mxu0 %v11811
      %v12016 = vpop.f32.mrf.mxu0
      %v12017 = vadd.f32 0.0, %v12016
      %v12018 = vpop.f32.mrf.mxu0
      %v12019 = vadd.f32 0.0, %v12018
      %12020 = vmatmul.bf16.gmra.mxu0 %v11820
      %v12021 = vpop.f32.mrf.mxu0
      %v12022 = vadd.f32 0.0, %v12021
      %v12023 = vpop.f32.mrf.mxu0
      %v12024 = vadd.f32 0.0, %v12023
      %12025 = vmatmul.bf16.gmra.mxu0 %v11829
      %v12026 = vpop.f32.mrf.mxu0
      %v12027 = vadd.f32 0.0, %v12026
      %v12028 = vpop.f32.mrf.mxu0
      %v12029 = vadd.f32 0.0, %v12028
      %12030 = vmatmul.bf16.gmra.mxu0 %v11838
      %v12031 = vpop.f32.mrf.mxu0
      %v12032 = vadd.f32 0.0, %v12031
      %v12033 = vpop.f32.mrf.mxu0
      %v12034 = vadd.f32 0.0, %v12033
      %12035 = vmatmul.bf16.gmra.mxu0 %v11847
      %v12036 = vpop.f32.mrf.mxu0
      %v12037 = vadd.f32 0.0, %v12036
      %v12038 = vpop.f32.mrf.mxu0
      %v12039 = vadd.f32 0.0, %v12038
      %12040 = vmatmul.bf16.gmra.mxu0 %v11856
      %v12041 = vpop.f32.mrf.mxu0
      %v12042 = vadd.f32 0.0, %v12041
      %v12043 = vpop.f32.mrf.mxu0
      %v12044 = vadd.f32 0.0, %v12043
      %12045 = vmatmul.bf16.gmra.mxu0 %v11865
      %v12046 = vpop.f32.mrf.mxu0
      %v12047 = vadd.f32 0.0, %v12046
      %v12048 = vpop.f32.mrf.mxu0
      %v12049 = vadd.f32 0.0, %v12048
      %12050 = vmatmul.bf16.gmra.mxu0 %v11874
      %v12051 = vpop.f32.mrf.mxu0
      %v12052 = vadd.f32 0.0, %v12051
      %v12053 = vpop.f32.mrf.mxu0
      %v12054 = vadd.f32 0.0, %v12053
      %12055 = vmatmul.bf16.gmra.mxu0 %v11883
      %v12056 = vpop.f32.mrf.mxu0
      %v12057 = vadd.f32 0.0, %v12056
      %v12058 = vpop.f32.mrf.mxu0
      %v12059 = vadd.f32 0.0, %v12058
      %12060 = vmatmul.bf16.gmra.mxu0 %v11892
      %v12061 = vpop.f32.mrf.mxu0
      %v12062 = vadd.f32 0.0, %v12061
      %v12063 = vpop.f32.mrf.mxu0
      %v12064 = vadd.f32 0.0, %v12063
      %12065 = vmatmul.bf16.gmra.mxu0 %v11901
      %v12066 = vpop.f32.mrf.mxu0
      %v12067 = vadd.f32 0.0, %v12066
      %v12068 = vpop.f32.mrf.mxu0
      %v12069 = vadd.f32 0.0, %v12068
      %12070 = vmatmul.bf16.gmra.mxu0 %v11910
      %v12071 = vpop.f32.mrf.mxu0
      %v12072 = vadd.f32 0.0, %v12071
      %v12073 = vpop.f32.mrf.mxu0
      %v12074 = vadd.f32 0.0, %v12073
      %12075 = vdwg.mxu0
      %v12076 = vadd.f32 %v11684, %v11987
      %v12077 = vadd.f32 %v11685, %v11989
      %v12078 = vadd.f32 %v11686, %v11992
      %v12079 = vadd.f32 %v11687, %v11994
      %v12080 = vadd.f32 %v11688, %v11997
      %v12081 = vadd.f32 %v11689, %v11999
      %v12082 = vadd.f32 %v11690, %v12002
      %v12083 = vadd.f32 %v11691, %v12004
      %v12084 = vadd.f32 %v11692, %v12007
      %v12085 = vadd.f32 %v11693, %v12009
      %v12086 = vadd.f32 %v11694, %v12012
      %v12087 = vadd.f32 %v11695, %v12014
      %v12088 = vadd.f32 %v11696, %v12017
      %v12089 = vadd.f32 %v11697, %v12019
      %v12090 = vadd.f32 %v11698, %v12022
      %v12091 = vadd.f32 %v11699, %v12024
      %v12092 = vadd.f32 %v11700, %v12027
      %v12093 = vadd.f32 %v11701, %v12029
      %v12094 = vadd.f32 %v11702, %v12032
      %v12095 = vadd.f32 %v11703, %v12034
      %v12096 = vadd.f32 %v11704, %v12037
      %v12097 = vadd.f32 %v11705, %v12039
      %v12098 = vadd.f32 %v11706, %v12042
      %v12099 = vadd.f32 %v11707, %v12044
      %v12100 = vadd.f32 %v11708, %v12047
      %v12101 = vadd.f32 %v11709, %v12049
      %v12102 = vadd.f32 %v11710, %v12052
      %v12103 = vadd.f32 %v11711, %v12054
      %v12104 = vadd.f32 %v11712, %v12057
      %v12105 = vadd.f32 %v11713, %v12059
      %v12106 = vadd.f32 %v11714, %v12062
      %v12107 = vadd.f32 %v11715, %v12064
      %v12108 = vadd.f32 %v11716, %v12067
      %v12109 = vadd.f32 %v11717, %v12069
      %v12110 = vadd.f32 %v11718, %v12072
      %v12111 = vadd.f32 %v11719, %v12074
      %v12112 = vld [vmem:[#allocation3 + $0x10] sm:$0x8]
      %s12113 = scalar_lea.vmem %s3, 512
      %v12114 = vld [vmem:[%s12113] sm:$0xf]
      %v12115 = vld [vmem:[%s12113 + $0x4] sm:$0xf]
      %v12116 = vld [vmem:[%s12113 + $0x8] sm:$0xf]
      %v12117 = vld [vmem:[%s12113 + $0xc] sm:$0xf]
      %v12118 = vld [vmem:[%s12113 + $0x10] sm:$0xf]
      %v12119 = vld [vmem:[%s12113 + $0x14] sm:$0xf]
      %v12120 = vld [vmem:[%s12113 + $0x18] sm:$0xf]
      %v12121 = vld [vmem:[%s12113 + $0x1c] sm:$0xf]
      %v12122 = vld [vmem:[%s12113 + $0x20] sm:$0xf]
      %v12123 = vld [vmem:[%s12113 + $0x24] sm:$0xf]
      %v12124 = vld [vmem:[%s12113 + $0x28] sm:$0xf]
      %v12125 = vld [vmem:[%s12113 + $0x2c] sm:$0xf]
      %v12126 = vld [vmem:[%s12113 + $0x30] sm:$0xf]
      %v12127 = vld [vmem:[%s12113 + $0x34] sm:$0xf]
      %v12128 = vld [vmem:[%s12113 + $0x38] sm:$0xf]
      %v12129 = vld [vmem:[%s12113 + $0x3c] sm:$0xf]
      %v12131 = vunpack.c.l.b16 %v12112
      %v12132 = vpack.c.b16 %v11427, %v12131
      %v12133 = vrot.slane %v12132, 3
      %v12134 = vrot.slane %v11464, 3
      %v12135 = vsel %vm4640, %v12133, %v12134
      %v12136 = vrot.slane %v11465, 3
      %v12137 = vsel %vm4640, %v12134, %v12136
      %v12138 = vrot.slane %v11466, 3
      %v12139 = vsel %vm4640, %v12136, %v12138
      %v12140 = vrot.slane %v11467, 3
      %v12141 = vsel %vm4640, %v12138, %v12140
      %v12142 = vrot.slane %v11468, 3
      %v12143 = vsel %vm4640, %v12140, %v12142
      %v12144 = vrot.slane %v11469, 3
      %v12145 = vsel %vm4640, %v12142, %v12144
      %v12146 = vrot.slane %v11470, 3
      %v12147 = vsel %vm4640, %v12144, %v12146
      %v12148 = vrot.slane %v11471, 3
      %v12149 = vsel %vm4640, %v12146, %v12148
      %v12150 = vrot.slane %v11472, 3
      %v12151 = vsel %vm4640, %v12148, %v12150
      %v12152 = vrot.slane %v11473, 3
      %v12153 = vsel %vm4640, %v12150, %v12152
      %v12154 = vrot.slane %v11474, 3
      %v12155 = vsel %vm4640, %v12152, %v12154
      %v12156 = vrot.slane %v11475, 3
      %v12157 = vsel %vm4640, %v12154, %v12156
      %v12158 = vrot.slane %v11476, 3
      %v12159 = vsel %vm4640, %v12156, %v12158
      %v12160 = vrot.slane %v11477, 3
      %v12161 = vsel %vm4640, %v12158, %v12160
      %v12162 = vrot.slane %v11478, 3
      %v12163 = vsel %vm4640, %v12160, %v12162
      %v12164 = vrot.slane %v11479, 3
      %v12165 = vsel %vm4640, %v12162, %v12164
      %v12166 = vrot.slane %v11480, 3
      %v12167 = vsel %vm4640, %v12164, %v12166
      %v12168 = vrot.slane %v11740, 3
      %v12169 = vsel %vm4640, %v12166, %v12168
      %v12204 = vunpack.c.l.b16 %v12114
      %v12205 = vunpack.c.l.b16 %v12115
      %v12206 = vunpack.c.l.b16 %v12116
      %v12207 = vunpack.c.l.b16 %v12117
      %v12208 = vunpack.c.l.b16 %v12118
      %v12209 = vunpack.c.l.b16 %v12119
      %v12210 = vunpack.c.l.b16 %v12120
      %v12211 = vunpack.c.l.b16 %v12121
      %v12212 = vunpack.c.l.b16 %v12122
      %v12213 = vunpack.c.l.b16 %v12123
      %v12214 = vunpack.c.l.b16 %v12124
      %v12215 = vunpack.c.l.b16 %v12125
      %v12216 = vunpack.c.l.b16 %v12126
      %v12217 = vunpack.c.l.b16 %v12127
      %v12218 = vunpack.c.l.b16 %v12128
      %v12219 = vunpack.c.l.b16 %v12129
      %v12220 = vpack.c.b16 %v12205, %v12204
      %v12221 = vpack.c.b16 %v12207, %v12206
      %v12222 = vpack.c.b16 %v12209, %v12208
      %v12223 = vpack.c.b16 %v12211, %v12210
      %v12224 = vpack.c.b16 %v12213, %v12212
      %v12225 = vpack.c.b16 %v12215, %v12214
      %v12226 = vpack.c.b16 %v12217, %v12216
      %v12227 = vpack.c.b16 %v12219, %v12218
      %12236 = vmatpush.bf16.msra.mxu0 %v12227
      %12237 = vmatpush.bf16.msra.mxu0 %v12226
      %12238 = vmatpush.bf16.msra.mxu0 %v12225
      %12239 = vmatpush.bf16.msra.mxu0 %v12224
      %12240 = vmatpush.bf16.msra.mxu0 %v12223
      %12241 = vmatpush.bf16.msra.mxu0 %v12222
      %12242 = vmatpush.bf16.msra.mxu0 %v12221
      %12243 = vmatpush.bf16.msra.mxu0 %v12220
      %12244 = vmatmul.bf16.gmra.mxu0 %v12135
      %v12245 = vpop.f32.mrf.mxu0
      %v12246 = vadd.f32 0.0, %v12245
      %v12247 = vpop.f32.mrf.mxu0
      %v12248 = vadd.f32 0.0, %v12247
      %12249 = vmatmul.bf16.gmra.mxu0 %v12137
      %v12250 = vpop.f32.mrf.mxu0
      %v12251 = vadd.f32 0.0, %v12250
      %v12252 = vpop.f32.mrf.mxu0
      %v12253 = vadd.f32 0.0, %v12252
      %12254 = vmatmul.bf16.gmra.mxu0 %v12139
      %v12255 = vpop.f32.mrf.mxu0
      %v12256 = vadd.f32 0.0, %v12255
      %v12257 = vpop.f32.mrf.mxu0
      %v12258 = vadd.f32 0.0, %v12257
      %12259 = vmatmul.bf16.gmra.mxu0 %v12141
      %v12260 = vpop.f32.mrf.mxu0
      %v12261 = vadd.f32 0.0, %v12260
      %v12262 = vpop.f32.mrf.mxu0
      %v12263 = vadd.f32 0.0, %v12262
      %12264 = vmatmul.bf16.gmra.mxu0 %v12143
      %v12265 = vpop.f32.mrf.mxu0
      %v12266 = vadd.f32 0.0, %v12265
      %v12267 = vpop.f32.mrf.mxu0
      %v12268 = vadd.f32 0.0, %v12267
      %12269 = vmatmul.bf16.gmra.mxu0 %v12145
      %v12270 = vpop.f32.mrf.mxu0
      %v12271 = vadd.f32 0.0, %v12270
      %v12272 = vpop.f32.mrf.mxu0
      %v12273 = vadd.f32 0.0, %v12272
      %12274 = vmatmul.bf16.gmra.mxu0 %v12147
      %v12275 = vpop.f32.mrf.mxu0
      %v12276 = vadd.f32 0.0, %v12275
      %v12277 = vpop.f32.mrf.mxu0
      %v12278 = vadd.f32 0.0, %v12277
      %12279 = vmatmul.bf16.gmra.mxu0 %v12149
      %v12280 = vpop.f32.mrf.mxu0
      %v12281 = vadd.f32 0.0, %v12280
      %v12282 = vpop.f32.mrf.mxu0
      %v12283 = vadd.f32 0.0, %v12282
      %12284 = vmatmul.bf16.gmra.mxu0 %v12151
      %v12285 = vpop.f32.mrf.mxu0
      %v12286 = vadd.f32 0.0, %v12285
      %v12287 = vpop.f32.mrf.mxu0
      %v12288 = vadd.f32 0.0, %v12287
      %12289 = vmatmul.bf16.gmra.mxu0 %v12153
      %v12290 = vpop.f32.mrf.mxu0
      %v12291 = vadd.f32 0.0, %v12290
      %v12292 = vpop.f32.mrf.mxu0
      %v12293 = vadd.f32 0.0, %v12292
      %12294 = vmatmul.bf16.gmra.mxu0 %v12155
      %v12295 = vpop.f32.mrf.mxu0
      %v12296 = vadd.f32 0.0, %v12295
      %v12297 = vpop.f32.mrf.mxu0
      %v12298 = vadd.f32 0.0, %v12297
      %12299 = vmatmul.bf16.gmra.mxu0 %v12157
      %v12300 = vpop.f32.mrf.mxu0
      %v12301 = vadd.f32 0.0, %v12300
      %v12302 = vpop.f32.mrf.mxu0
      %v12303 = vadd.f32 0.0, %v12302
      %12304 = vmatmul.bf16.gmra.mxu0 %v12159
      %v12305 = vpop.f32.mrf.mxu0
      %v12306 = vadd.f32 0.0, %v12305
      %v12307 = vpop.f32.mrf.mxu0
      %v12308 = vadd.f32 0.0, %v12307
      %12309 = vmatmul.bf16.gmra.mxu0 %v12161
      %v12310 = vpop.f32.mrf.mxu0
      %v12311 = vadd.f32 0.0, %v12310
      %v12312 = vpop.f32.mrf.mxu0
      %v12313 = vadd.f32 0.0, %v12312
      %12314 = vmatmul.bf16.gmra.mxu0 %v12163
      %v12315 = vpop.f32.mrf.mxu0
      %v12316 = vadd.f32 0.0, %v12315
      %v12317 = vpop.f32.mrf.mxu0
      %v12318 = vadd.f32 0.0, %v12317
      %12319 = vmatmul.bf16.gmra.mxu0 %v12165
      %v12320 = vpop.f32.mrf.mxu0
      %v12321 = vadd.f32 0.0, %v12320
      %v12322 = vpop.f32.mrf.mxu0
      %v12323 = vadd.f32 0.0, %v12322
      %12324 = vmatmul.bf16.gmra.mxu0 %v12167
      %v12325 = vpop.f32.mrf.mxu0
      %v12326 = vadd.f32 0.0, %v12325
      %v12327 = vpop.f32.mrf.mxu0
      %v12328 = vadd.f32 0.0, %v12327
      %12329 = vmatmul.bf16.gmra.mxu0 %v12169
      %v12330 = vpop.f32.mrf.mxu0
      %v12331 = vadd.f32 0.0, %v12330
      %v12332 = vpop.f32.mrf.mxu0
      %v12333 = vadd.f32 0.0, %v12332
      %12334 = vdwg.mxu0
      %v12335 = vadd.f32 %v12076, %v12246
      %v12336 = vadd.f32 %v12077, %v12248
      %v12337 = vadd.f32 %v12078, %v12251
      %v12338 = vadd.f32 %v12079, %v12253
      %v12339 = vadd.f32 %v12080, %v12256
      %v12340 = vadd.f32 %v12081, %v12258
      %v12341 = vadd.f32 %v12082, %v12261
      %v12342 = vadd.f32 %v12083, %v12263
      %v12343 = vadd.f32 %v12084, %v12266
      %v12344 = vadd.f32 %v12085, %v12268
      %v12345 = vadd.f32 %v12086, %v12271
      %v12346 = vadd.f32 %v12087, %v12273
      %v12347 = vadd.f32 %v12088, %v12276
      %v12348 = vadd.f32 %v12089, %v12278
      %v12349 = vadd.f32 %v12090, %v12281
      %v12350 = vadd.f32 %v12091, %v12283
      %v12351 = vadd.f32 %v12092, %v12286
      %v12352 = vadd.f32 %v12093, %v12288
      %v12353 = vadd.f32 %v12094, %v12291
      %v12354 = vadd.f32 %v12095, %v12293
      %v12355 = vadd.f32 %v12096, %v12296
      %v12356 = vadd.f32 %v12097, %v12298
      %v12357 = vadd.f32 %v12098, %v12301
      %v12358 = vadd.f32 %v12099, %v12303
      %v12359 = vadd.f32 %v12100, %v12306
      %v12360 = vadd.f32 %v12101, %v12308
      %v12361 = vadd.f32 %v12102, %v12311
      %v12362 = vadd.f32 %v12103, %v12313
      %v12363 = vadd.f32 %v12104, %v12316
      %v12364 = vadd.f32 %v12105, %v12318
      %v12365 = vadd.f32 %v12106, %v12321
      %v12366 = vadd.f32 %v12107, %v12323
      %v12367 = vadd.f32 %v12108, %v12326
      %v12368 = vadd.f32 %v12109, %v12328
      %v12369 = vadd.f32 %v12110, %v12331
      %v12370 = vadd.f32 %v12111, %v12333
      %v12371 = vld [vmem:[%s8] sm:$0x1]
      %v12373 = vperm.slane %v12371, 0
      %v12375 = vmul.f32 %v12335, %v12373
      %v12376 = vmul.f32 %v12336, %v12373
      %v12377 = vmul.f32 %v12337, %v12373
      %v12378 = vmul.f32 %v12338, %v12373
      %v12379 = vmul.f32 %v12339, %v12373
      %v12380 = vmul.f32 %v12340, %v12373
      %v12381 = vmul.f32 %v12341, %v12373
      %v12382 = vmul.f32 %v12342, %v12373
      %v12383 = vmul.f32 %v12343, %v12373
      %v12384 = vmul.f32 %v12344, %v12373
      %v12385 = vmul.f32 %v12345, %v12373
      %v12386 = vmul.f32 %v12346, %v12373
      %v12387 = vmul.f32 %v12347, %v12373
      %v12388 = vmul.f32 %v12348, %v12373
      %v12389 = vmul.f32 %v12349, %v12373
      %v12390 = vmul.f32 %v12350, %v12373
      %v12391 = vmul.f32 %v12351, %v12373
      %v12392 = vmul.f32 %v12352, %v12373
      %v12393 = vmul.f32 %v12353, %v12373
      %v12394 = vmul.f32 %v12354, %v12373
      %v12395 = vmul.f32 %v12355, %v12373
      %v12396 = vmul.f32 %v12356, %v12373
      %v12397 = vmul.f32 %v12357, %v12373
      %v12398 = vmul.f32 %v12358, %v12373
      %v12399 = vmul.f32 %v12359, %v12373
      %v12400 = vmul.f32 %v12360, %v12373
      %v12401 = vmul.f32 %v12361, %v12373
      %v12402 = vmul.f32 %v12362, %v12373
      %v12403 = vmul.f32 %v12363, %v12373
      %v12404 = vmul.f32 %v12364, %v12373
      %v12405 = vmul.f32 %v12365, %v12373
      %v12406 = vmul.f32 %v12366, %v12373
      %v12407 = vmul.f32 %v12367, %v12373
      %v12408 = vmul.f32 %v12368, %v12373
      %v12409 = vmul.f32 %v12369, %v12373
      %v12410 = vmul.f32 %v12370, %v12373
      %v12411 = vld [vmem:[%s9] sm:$0x1]
      %v12413 = vperm.slane %v12411, 0
      %v12415 = vadd.f32 %v12375, %v12413
      %v12416 = vadd.f32 %v12376, %v12413
      %v12417 = vadd.f32 %v12377, %v12413
      %v12418 = vadd.f32 %v12378, %v12413
      %v12419 = vadd.f32 %v12379, %v12413
      %v12420 = vadd.f32 %v12380, %v12413
      %v12421 = vadd.f32 %v12381, %v12413
      %v12422 = vadd.f32 %v12382, %v12413
      %v12423 = vadd.f32 %v12383, %v12413
      %v12424 = vadd.f32 %v12384, %v12413
      %v12425 = vadd.f32 %v12385, %v12413
      %v12426 = vadd.f32 %v12386, %v12413
      %v12427 = vadd.f32 %v12387, %v12413
      %v12428 = vadd.f32 %v12388, %v12413
      %v12429 = vadd.f32 %v12389, %v12413
      %v12430 = vadd.f32 %v12390, %v12413
      %v12431 = vadd.f32 %v12391, %v12413
      %v12432 = vadd.f32 %v12392, %v12413
      %v12433 = vadd.f32 %v12393, %v12413
      %v12434 = vadd.f32 %v12394, %v12413
      %v12435 = vadd.f32 %v12395, %v12413
      %v12436 = vadd.f32 %v12396, %v12413
      %v12437 = vadd.f32 %v12397, %v12413
      %v12438 = vadd.f32 %v12398, %v12413
      %v12439 = vadd.f32 %v12399, %v12413
      %v12440 = vadd.f32 %v12400, %v12413
      %v12441 = vadd.f32 %v12401, %v12413
      %v12442 = vadd.f32 %v12402, %v12413
      %v12443 = vadd.f32 %v12403, %v12413
      %v12444 = vadd.f32 %v12404, %v12413
      %v12445 = vadd.f32 %v12405, %v12413
      %v12446 = vadd.f32 %v12406, %v12413
      %v12447 = vadd.f32 %v12407, %v12413
      %v12448 = vadd.f32 %v12408, %v12413
      %v12449 = vadd.f32 %v12409, %v12413
      %v12450 = vadd.f32 %v12410, %v12413
      %v12451 = vmax.f32 %v12415, 0.0
      %v12452 = vmax.f32 %v12416, 0.0
      %v12453 = vmax.f32 %v12417, 0.0
      %v12454 = vmax.f32 %v12418, 0.0
      %v12455 = vmax.f32 %v12419, 0.0
      %v12456 = vmax.f32 %v12420, 0.0
      %v12457 = vmax.f32 %v12421, 0.0
      %v12458 = vmax.f32 %v12422, 0.0
      %v12459 = vmax.f32 %v12423, 0.0
      %v12460 = vmax.f32 %v12424, 0.0
      %v12461 = vmax.f32 %v12425, 0.0
      %v12462 = vmax.f32 %v12426, 0.0
      %v12463 = vmax.f32 %v12427, 0.0
      %v12464 = vmax.f32 %v12428, 0.0
      %v12465 = vmax.f32 %v12429, 0.0
      %v12466 = vmax.f32 %v12430, 0.0
      %v12467 = vmax.f32 %v12431, 0.0
      %v12468 = vmax.f32 %v12432, 0.0
      %v12469 = vmax.f32 %v12433, 0.0
      %v12470 = vmax.f32 %v12434, 0.0
      %v12471 = vmax.f32 %v12435, 0.0
      %v12472 = vmax.f32 %v12436, 0.0
      %v12473 = vmax.f32 %v12437, 0.0
      %v12474 = vmax.f32 %v12438, 0.0
      %v12475 = vmax.f32 %v12439, 0.0
      %v12476 = vmax.f32 %v12440, 0.0
      %v12477 = vmax.f32 %v12441, 0.0
      %v12478 = vmax.f32 %v12442, 0.0
      %v12479 = vmax.f32 %v12443, 0.0
      %v12480 = vmax.f32 %v12444, 0.0
      %v12481 = vmax.f32 %v12445, 0.0
      %v12482 = vmax.f32 %v12446, 0.0
      %v12483 = vmax.f32 %v12447, 0.0
      %v12484 = vmax.f32 %v12448, 0.0
      %v12485 = vmax.f32 %v12449, 0.0
      %v12486 = vmax.f32 %v12450, 0.0
      %v12487 = vpack.c.bf16 %v12451, %v12451
      %v12488 = vpack.c.bf16 %v12452, %v12452
      %v12489 = vpack.c.bf16 %v12453, %v12453
      %v12490 = vpack.c.bf16 %v12454, %v12454
      %v12491 = vpack.c.bf16 %v12455, %v12455
      %v12492 = vpack.c.bf16 %v12456, %v12456
      %v12493 = vpack.c.bf16 %v12457, %v12457
      %v12494 = vpack.c.bf16 %v12458, %v12458
      %v12495 = vpack.c.bf16 %v12459, %v12459
      %v12496 = vpack.c.bf16 %v12460, %v12460
      %v12497 = vpack.c.bf16 %v12461, %v12461
      %v12498 = vpack.c.bf16 %v12462, %v12462
      %v12499 = vpack.c.bf16 %v12463, %v12463
      %v12500 = vpack.c.bf16 %v12464, %v12464
      %v12501 = vpack.c.bf16 %v12465, %v12465
      %v12502 = vpack.c.bf16 %v12466, %v12466
      %v12503 = vpack.c.bf16 %v12467, %v12467
      %v12504 = vpack.c.bf16 %v12468, %v12468
      %v12505 = vpack.c.bf16 %v12469, %v12469
      %v12506 = vpack.c.bf16 %v12470, %v12470
      %v12507 = vpack.c.bf16 %v12471, %v12471
      %v12508 = vpack.c.bf16 %v12472, %v12472
      %v12509 = vpack.c.bf16 %v12473, %v12473
      %v12510 = vpack.c.bf16 %v12474, %v12474
      %v12511 = vpack.c.bf16 %v12475, %v12475
      %v12512 = vpack.c.bf16 %v12476, %v12476
      %v12513 = vpack.c.bf16 %v12477, %v12477
      %v12514 = vpack.c.bf16 %v12478, %v12478
      %v12515 = vpack.c.bf16 %v12479, %v12479
      %v12516 = vpack.c.bf16 %v12480, %v12480
      %v12517 = vpack.c.bf16 %v12481, %v12481
      %v12518 = vpack.c.bf16 %v12482, %v12482
      %v12519 = vpack.c.bf16 %v12483, %v12483
      %v12520 = vpack.c.bf16 %v12484, %v12484
      %v12521 = vpack.c.bf16 %v12485, %v12485
      %v12522 = vpack.c.bf16 %v12486, %v12486
      %12523 = vst [vmem:[%s359] sm:$0xf] %v12487
      %12524 = vst [vmem:[%s359 + $0x4] sm:$0xf] %v12488
      %12525 = vst [vmem:[%s359 + $0x8] sm:$0xf] %v12489
      %12526 = vst [vmem:[%s359 + $0xc] sm:$0xf] %v12490
      %12527 = vst [vmem:[%s359 + $0x10] sm:$0xf] %v12491
      %12528 = vst [vmem:[%s359 + $0x14] sm:$0xf] %v12492
      %12529 = vst [vmem:[%s359 + $0x18] sm:$0xf] %v12493
      %12530 = vst [vmem:[%s359 + $0x1c] sm:$0xf] %v12494
      %12531 = vst [vmem:[%s359 + $0x20] sm:$0xf] %v12495
      %12532 = vst [vmem:[%s359 + $0x24] sm:$0xf] %v12496
      %12533 = vst [vmem:[%s359 + $0x28] sm:$0xf] %v12497
      %12534 = vst [vmem:[%s359 + $0x2c] sm:$0xf] %v12498
      %12535 = vst [vmem:[%s359 + $0x30] sm:$0xf] %v12499
      %12536 = vst [vmem:[%s359 + $0x34] sm:$0xf] %v12500
      %12537 = vst [vmem:[%s359 + $0x38] sm:$0xf] %v12501
      %12538 = vst [vmem:[%s359 + $0x3c] sm:$0xf] %v12502
      %12539 = vst [vmem:[%s359 + $0x40] sm:$0xf] %v12503
      %12540 = vst [vmem:[%s359 + $0x44] sm:$0xf] %v12504
      %12541 = vst [vmem:[%s359 + $0x48] sm:$0xf] %v12505
      %12542 = vst [vmem:[%s359 + $0x4c] sm:$0xf] %v12506
      %12543 = vst [vmem:[%s359 + $0x50] sm:$0xf] %v12507
      %12544 = vst [vmem:[%s359 + $0x54] sm:$0xf] %v12508
      %12545 = vst [vmem:[%s359 + $0x58] sm:$0xf] %v12509
      %12546 = vst [vmem:[%s359 + $0x5c] sm:$0xf] %v12510
      %12547 = vst [vmem:[%s359 + $0x60] sm:$0xf] %v12511
      %12548 = vst [vmem:[%s359 + $0x64] sm:$0xf] %v12512
      %12549 = vst [vmem:[%s359 + $0x68] sm:$0xf] %v12513
      %12550 = vst [vmem:[%s359 + $0x6c] sm:$0xf] %v12514
      %12551 = vst [vmem:[%s359 + $0x70] sm:$0xf] %v12515
      %12552 = vst [vmem:[%s359 + $0x74] sm:$0xf] %v12516
      %12553 = vst [vmem:[%s359 + $0x78] sm:$0xf] %v12517
      %12554 = vst [vmem:[%s359 + $0x7c] sm:$0xf] %v12518
      %12555 = vst [vmem:[%s359 + $0x80] sm:$0xf] %v12519
      %12556 = vst [vmem:[%s359 + $0x84] sm:$0xf] %v12520
      %12557 = vst [vmem:[%s359 + $0x88] sm:$0xf] %v12521
      %12558 = vst [vmem:[%s359 + $0x8c] sm:$0x7] %v12522
      %p12559 = scmp.lt.s32.totalorder %s21, 1
      %s12560 = scalar_select %p12559, %s21, 1
      %s12561 = smul.addr %s12560, 36
      %s12562 = smul.addr %s12561, 4
      %s12563 = scalar_lea.vmem %s10, %s12562
      // Predicated region
      $region61: #{unet_up_block.1} parent=59 // pred_check
        %p12564 = pneg %p254
      $region62: #{unet_up_block.1} parent=59 // pred_check_branch
        %12566 = sbr.rel (%p12564) target = $region64
      $region63: #{unet_up_block.1} parent=59 // pred_region
        _
      $region64: #{unet_up_block.1} parent=59 // pred_fallthru
        _
    $region60: #{unet_up_block.1} parent=5 // pred_fallthru
      _
    %p12567 = scmp.le.s32.totalorder 2, %s16
    // Predicated region
    $region65: #{unet_up_block.1} parent=5 // pred_check
      %p12568 = pneg %p12567
    $region66: #{unet_up_block.1} parent=5 // pred_check_branch
      %12570 = sbr.rel (%p12568) target = $region68
    $region67: #{unet_up_block.1} parent=5 // pred_region
      %s12571 = ssub.s32 %s16, 2
      // Predicated region
      $region69: #{unet_up_block.1} parent=67 // pred_check
        %p12572 = pneg %p260
      $region70: #{unet_up_block.1} parent=67 // pred_check_branch
        %12574 = sbr.rel (%p12572) target = $region72
      $region71: #{unet_up_block.1} parent=67 // pred_region
        %p12575 = scmp.lt.s32.totalorder %s22, 1
        %s12576 = scalar_select %p12575, %s22, 1
        %s12577 = smul.addr %s12576, 36
        %s12578 = smul.addr %s12577, 4
        %s12579 = scalar_lea.vmem %s10, %s12578
      $region72: #{unet_up_block.1} parent=67 // pred_fallthru
        _
    $region68: #{unet_up_block.1} parent=5 // pred_fallthru
      _
  $region6: #{unet_up_block.1} parent=0 // loop_footer
    %s20 = sadd.s32 1, %s16
  $region7: #{unet_up_block.1} parent=0 // loop_footer_branch
    %15 = sbr.rel target = $region3
  $region8: #{unet_up_block.1} parent=0 // loop_exit
    _

</llo_original>
